<compile_context>
chip_gen: v7x
topology: tpu7x:2x2x1
jax: 0.10.0
libtpu: 0.0.40
codegen_flags: <defaults>
</compile_context>

<pallas_src>
import jax
import jax.numpy as jnp
from jax import lax
from jax.experimental import pallas as pl
from jax.experimental.pallas import tpu as pltpu

NEG_SLOPE = 0.01   # nn.LeakyReLU default
BN_EPS = 1e-5      # nn.BatchNorm2d default


# ----------------------------- in-kernel helpers -----------------------------

def _leaky(v):
    return jnp.where(v >= 0, v, NEG_SLOPE * v)


def _bn_affine_2d(v2, gamma, beta):
    """Training-mode BatchNorm reduced to a per-channel affine, single pass.

    v2: (M, C) flattened activation; gamma/beta: (1, C).
    Returns (scale, shift), both (1, C), such that BN(x) == x*scale + shift.
    """
    m = v2.shape[0]
    inv_m = 1.0 / float(m)
    s1 = jnp.sum(v2, axis=0, keepdims=True)
    s2 = jnp.sum(v2 * v2, axis=0, keepdims=True)
    mean = s1 * inv_m
    var = s2 * inv_m - mean * mean           # biased variance (training mode)
    scale = lax.rsqrt(var + BN_EPS) * gamma
    shift = beta - mean * scale
    return scale, shift


def _bn_fold_pointwise(v, gamma, beta, pw_w, pw_b):
    """point_conv(BN(v)) with the BN affine folded into the 1x1-conv weights.

    v: (N,H,W,Ci); gamma/beta/pw_b: (1,Ci)/(1,Ci)/(1,Co); pw_w: (Ci,Co).
    """
    n, h, w, ci = v.shape
    co = pw_w.shape[1]
    v2 = v.reshape(n * h * w, ci)
    scale, shift = _bn_affine_2d(v2, gamma, beta)

    # W' = diag(scale) @ W, built with an iota-eye + tiny MXU matmul so we
    # never need a (1,C)->(C,1) cross-lane relayout of `scale`.
    rows = lax.broadcasted_iota(jnp.int32, (ci, ci), 0)
    cols = lax.broadcasted_iota(jnp.int32, (ci, ci), 1)
    diag_scale = (rows == cols).astype(jnp.float32) * scale        # (Ci, Ci)
    w_eff = jnp.dot(diag_scale, pw_w, preferred_element_type=jnp.float32)

    # b' = shift @ W + b  (broadcast shift to 8 rows so the matmul M-dim is
    # sublane aligned; take row 0 back afterwards).
    shift8 = jnp.broadcast_to(shift, (8, ci))
    b_eff = jnp.dot(shift8, pw_w, preferred_element_type=jnp.float32)[0:1, :] + pw_b

    y = jnp.dot(v2, w_eff, preferred_element_type=jnp.float32) + b_eff
    return y.reshape(n, h, w, co)


def _depthwise3x3(pad_ref, v, w_ref, b, dil, scale=None, shift=None):
    """'same' depthwise 3x3 conv with dilation=padding=dil via a shared
    zero-halo scratch. Only the halo strips are zeroed; the interior is
    written once, optionally fused with a preceding per-channel BN affine.
    LeakyReLU is fused into the epilogue."""
    n, h, wdim, c = v.shape
    pad = dil
    ph, pw = h + 2 * pad, wdim + 2 * pad

    # zero only the halo ring (top / bottom rows, left / right columns)
    zero_rows = jnp.zeros((n, pad, pw, c), jnp.float32)
    pad_ref[:, 0:pad, 0:pw, :] = zero_rows
    pad_ref[:, pad + h:ph, 0:pw, :] = zero_rows
    zero_cols = jnp.zeros((n, h, pad, c), jnp.float32)
    pad_ref[:, pad:pad + h, 0:pad, :] = zero_cols
    pad_ref[:, pad:pad + h, pad + wdim:pw, :] = zero_cols

    # interior store, with the optional BN affine fused in (correct w.r.t. the
    # zero padding: the halo stays exactly zero, matching PyTorch's padding of
    # the *normalized* tensor).
    if scale is None:
        interior = v
    else:
        interior = v * scale.reshape(1, 1, 1, c) + shift.reshape(1, 1, 1, c)
    pad_ref[:, pad:pad + h, pad:pad + wdim, :] = interior

    taps = w_ref[...]                                  # (9, C), loaded once
    acc = jnp.zeros((n, h, wdim, c), jnp.float32)
    for ky in range(3):
        for kx in range(3):
            tap = taps[ky * 3 + kx].reshape(1, 1, 1, c)
            win = pad_ref[:, ky * dil:ky * dil + h, kx * dil:kx * dil + wdim, :]
            acc = acc + win * tap
    return _leaky(acc + b.reshape(1, 1, 1, c))


# --------------------------------- the kernel --------------------------------

def _rescontext_kernel(
    x_ref,
    dw1_w, dw1_b, bnc1_g, bnc1_b, pw1_w, pw1_b,
    dw2_w, dw2_b, bnc2_g, bnc2_b, pw2_w, pw2_b,
    dw3_w, dw3_b, bnc3_g, bnc3_b, pw3_w, pw3_b,
    bn1_g, bn1_b, bn2_g, bn2_b,
    out_ref,
    pad_ref,
):
    x = x_ref[...]
    n, h, w, cin = x.shape

    # --- conv1: DepthWiseConv2D(in, out, k=(1,1)) ----------------------------
    # depthwise 1x1 conv == per-channel scale + bias
    t = x * dw1_w[...].reshape(1, 1, 1, cin) + dw1_b[...].reshape(1, 1, 1, cin)
    t = _leaky(t)
    shortcut = _bn_fold_pointwise(t, bnc1_g[...], bnc1_b[...], pw1_w[...], pw1_b[...])
    shortcut = _leaky(shortcut)                                   # act1
    cout = shortcut.shape[-1]

    # --- conv2: DepthWiseConv2D(out, out, k=(3,3), padding=1) ----------------
    t = _depthwise3x3(pad_ref, shortcut, dw2_w, dw2_b[...], dil=1)
    resA = _bn_fold_pointwise(t, bnc2_g[...], bnc2_b[...], pw2_w[...], pw2_b[...])
    resA = _leaky(resA)                                           # act2
    # bn1: per-channel affine, folded into the conv3 halo-buffer interior store
    s1, sh1 = _bn_affine_2d(resA.reshape(n * h * w, cout), bn1_g[...], bn1_b[...])

    # --- conv3: DepthWiseConv2D(out, out, k=(3,3), dilation=2, padding=2) ----
    t = _depthwise3x3(pad_ref, resA, dw3_w, dw3_b[...], dil=2, scale=s1, shift=sh1)
    resB = _bn_fold_pointwise(t, bnc3_g[...], bnc3_b[...], pw3_w[...], pw3_b[...])
    resB = _leaky(resB)                                           # act3
    # bn2: per-channel affine folded into the residual add
    s2, sh2 = _bn_affine_2d(resB.reshape(n * h * w, cout), bn2_g[...], bn2_b[...])

    out_ref[...] = (shortcut
                    + resB * s2.reshape(1, 1, 1, cout)
                    + sh2.reshape(1, 1, 1, cout))


# --------------------------------- wrapper ------------------------------------

def res_context_block_dp(x_nchw, params):
    n, _, h, w = x_nchw.shape
    cout = params["pw1_w"].shape[1]
    x_nhwc = jnp.transpose(x_nchw, (0, 2, 3, 1)).astype(jnp.float32)

    kernel_inputs = [
        x_nhwc,
        params["dw1_w"], params["dw1_b"], params["bnc1_g"], params["bnc1_b"],
        params["pw1_w"], params["pw1_b"],
        params["dw2_w"], params["dw2_b"], params["bnc2_g"], params["bnc2_b"],
        params["pw2_w"], params["pw2_b"],
        params["dw3_w"], params["dw3_b"], params["bnc3_g"], params["bnc3_b"],
        params["pw3_w"], params["pw3_b"],
        params["bn1_g"], params["bn1_b"], params["bn2_g"], params["bn2_b"],
    ]

    vmem_spec = pl.BlockSpec(memory_space=pltpu.MemorySpace.VMEM)
    out_nhwc = pl.pallas_call(
        _rescontext_kernel,
        out_shape=jax.ShapeDtypeStruct((n, h, w, cout), jnp.float32),
        in_specs=[vmem_spec] * len(kernel_inputs),
        out_specs=vmem_spec,
        scratch_shapes=[
            # single shared zero-halo buffer: big enough for the dil=2 conv;
            # the dil=1 conv uses its [:, :h+2, :w+2, :] corner.
            pltpu.VMEM((n, h + 4, w + 4, cout), jnp.float32),
        ],
    )(*kernel_inputs)
    return jnp.transpose(out_nhwc, (0, 3, 1, 2))


# ------------------------ deterministic parameter init -------------------------

def init_params(key, in_filters, out_filters):
    keys = iter(jax.random.split(key, 32))

    def nrm(shape, scale=0.1):
        return (scale * jax.random.normal(next(keys), shape)).astype(jnp.float32)

    p = {}
    # conv1 = DepthWiseConv2D(in_filters, out_filters, k=(1,1))
    p["dw1_w"] = 1.0 + nrm((1, in_filters), 0.5)          # depthwise weight (taps=1, Cin)
    p["dw1_b"] = nrm((1, in_filters))
    p["bnc1_g"] = 1.0 + nrm((1, in_filters))              # inner BN (train mode, affine)
    p["bnc1_b"] = nrm((1, in_filters))
    p["pw1_w"] = nrm((in_filters, out_filters), 0.3)      # pointwise weight (Cin, Cout)
    p["pw1_b"] = nrm((1, out_filters))
    # conv2 = DepthWiseConv2D(out_filters, out_filters, k=(3,3), padding=1)
    p["dw2_w"] = nrm((9, out_filters), 0.3)               # (ky*3+kx, C)
    p["dw2_b"] = nrm((1, out_filters))
    p["bnc2_g"] = 1.0 + nrm((1, out_filters))
    p["bnc2_b"] = nrm((1, out_filters))
    p["pw2_w"] = nrm((out_filters, out_filters), 0.3)
    p["pw2_b"] = nrm((1, out_filters))
    # conv3 = DepthWiseConv2D(out_filters, out_filters, k=(3,3), dilation=2, padding=2)
    p["dw3_w"] = nrm((9, out_filters), 0.3)
    p["dw3_b"] = nrm((1, out_filters))
    p["bnc3_g"] = 1.0 + nrm((1, out_filters))
    p["bnc3_b"] = nrm((1, out_filters))
    p["pw3_w"] = nrm((out_filters, out_filters), 0.3)
    p["pw3_b"] = nrm((1, out_filters))
    # bn1 / bn2
    p["bn1_g"] = 1.0 + nrm((1, out_filters))
    p["bn1_b"] = nrm((1, out_filters))
    p["bn2_g"] = 1.0 + nrm((1, out_filters))
    p["bn2_b"] = nrm((1, out_filters))
    return p


# ----------------------- plain-JAX reference (for checking) --------------------

def _ref_bn(v, g, b):
    mean = v.mean(axis=(0, 1, 2), keepdims=True)
    var = ((v - mean) ** 2).mean(axis=(0, 1, 2), keepdims=True)
    return (v - mean) / jnp.sqrt(var + BN_EPS) * g.reshape(1, 1, 1, -1) + b.reshape(1, 1, 1, -1)


def _ref_dwc(v, dw_w, dw_b, bn_g, bn_b, pw_w, pw_b, k, dil, pad):
    c = v.shape[-1]
    rhs = dw_w.reshape(k, k, c)[:, :, None, :]             # HWIO, depthwise
    t = lax.conv_general_dilated(
        v, rhs, window_strides=(1, 1), padding=[(pad, pad), (pad, pad)],
        rhs_dilation=(dil, dil),
        dimension_numbers=("NHWC", "HWIO", "NHWC"),
        feature_group_count=c, precision=lax.Precision.HIGHEST)
    t = t + dw_b.reshape(1, 1, 1, c)
    t = _ref_bn(_leaky(t), bn_g, bn_b)
    co = pw_w.shape[1]
    t = jnp.einsum("nhwc,co->nhwo", t, pw_w,
                   precision=lax.Precision.HIGHEST) + pw_b.reshape(1, 1, 1, co)
    return t


def ref_forward(x_nchw, p):
    v = jnp.transpose(x_nchw, (0, 2, 3, 1)).astype(jnp.float32)
    shortcut = _leaky(_ref_dwc(v, p["dw1_w"], p["dw1_b"], p["bnc1_g"], p["bnc1_b"],
                               p["pw1_w"], p["pw1_b"], 1, 1, 0))
    resA = _leaky(_ref_dwc(shortcut, p["dw2_w"], p["dw2_b"], p["bnc2_g"], p["bnc2_b"],
                           p["pw2_w"], p["pw2_b"], 3, 1, 1))
    resA1 = _ref_bn(resA, p["bn1_g"], p["bn1_b"])
    resA = _leaky(_ref_dwc(resA1, p["dw3_w"], p["dw3_b"], p["bnc3_g"], p["bnc3_b"],
                           p["pw3_w"], p["pw3_b"], 3, 2, 2))
    resA2 = _ref_bn(resA, p["bn2_g"], p["bn2_b"])
    out = shortcut + resA2
    return jnp.transpose(out, (0, 3, 1, 2))


# ------------------------------------ main -------------------------------------

if __name__ == "__main__":
    N, IN_F, OUT_F, H, W = 2, 8, 16, 16, 16
    key = jax.random.PRNGKey(0)
    pkey, xkey = jax.random.split(key)
    params = init_params(pkey, IN_F, OUT_F)
    x = jax.random.normal(xkey, (N, IN_F, H, W), dtype=jnp.float32)

    out = jax.block_until_ready(res_context_block_dp(x, params))
    assert out.shape == (N, OUT_F, H, W), out.shape

    ref = jax.block_until_ready(ref_forward(x, params))
    max_diff = float(jnp.max(jnp.abs(out - ref)))
    assert max_diff < 1e-2, f"mismatch vs reference: max|diff|={max_diff}"

    print("KERNEL_OK")
</pallas_src>

<mosaic_0001>
module attributes {stable_mosaic.version = 11 : i64} {
  func.func @_rescontext_kernel(%arg0: memref<2x16x16x8xf32, #tpu.memory_space<vmem>>, %arg1: memref<1x8xf32, #tpu.memory_space<vmem>>, %arg2: memref<1x8xf32, #tpu.memory_space<vmem>>, %arg3: memref<1x8xf32, #tpu.memory_space<vmem>>, %arg4: memref<1x8xf32, #tpu.memory_space<vmem>>, %arg5: memref<8x16xf32, #tpu.memory_space<vmem>>, %arg6: memref<1x16xf32, #tpu.memory_space<vmem>>, %arg7: memref<9x16xf32, #tpu.memory_space<vmem>>, %arg8: memref<1x16xf32, #tpu.memory_space<vmem>>, %arg9: memref<1x16xf32, #tpu.memory_space<vmem>>, %arg10: memref<1x16xf32, #tpu.memory_space<vmem>>, %arg11: memref<16x16xf32, #tpu.memory_space<vmem>>, %arg12: memref<1x16xf32, #tpu.memory_space<vmem>>, %arg13: memref<9x16xf32, #tpu.memory_space<vmem>>, %arg14: memref<1x16xf32, #tpu.memory_space<vmem>>, %arg15: memref<1x16xf32, #tpu.memory_space<vmem>>, %arg16: memref<1x16xf32, #tpu.memory_space<vmem>>, %arg17: memref<16x16xf32, #tpu.memory_space<vmem>>, %arg18: memref<1x16xf32, #tpu.memory_space<vmem>>, %arg19: memref<1x16xf32, #tpu.memory_space<vmem>>, %arg20: memref<1x16xf32, #tpu.memory_space<vmem>>, %arg21: memref<1x16xf32, #tpu.memory_space<vmem>>, %arg22: memref<1x16xf32, #tpu.memory_space<vmem>>, %arg23: memref<2x16x16x16xf32, #tpu.memory_space<vmem>>, %arg24: memref<2x20x20x16xf32, #tpu.memory_space<vmem>>) attributes {dimension_semantics = [], scalar_prefetch = 0 : i64, scratch_operands = 1 : i64, tpu.core_type = #tpu.core_type<tc>} {
    %c0 = arith.constant 0 : index
    %c0_0 = arith.constant 0 : index
    %c0_1 = arith.constant 0 : index
    %c0_2 = arith.constant 0 : index
    %0 = vector.load %arg0[%c0, %c0_0, %c0_1, %c0_2] : memref<2x16x16x8xf32, #tpu.memory_space<vmem>>, vector<2x16x16x8xf32>
    %c0_3 = arith.constant 0 : index
    %c0_4 = arith.constant 0 : index
    %1 = vector.load %arg1[%c0_3, %c0_4] : memref<1x8xf32, #tpu.memory_space<vmem>>, vector<1x8xf32>
    %2 = vector.shape_cast %1 : vector<1x8xf32> to vector<1x1x1x8xf32>
    %3 = vector.broadcast %2 : vector<1x1x1x8xf32> to vector<2x16x16x8xf32>
    %4 = arith.mulf %0, %3 : vector<2x16x16x8xf32>
    %c0_5 = arith.constant 0 : index
    %c0_6 = arith.constant 0 : index
    %5 = vector.load %arg2[%c0_5, %c0_6] : memref<1x8xf32, #tpu.memory_space<vmem>>, vector<1x8xf32>
    %6 = vector.shape_cast %5 : vector<1x8xf32> to vector<1x1x1x8xf32>
    %7 = vector.broadcast %6 : vector<1x1x1x8xf32> to vector<2x16x16x8xf32>
    %8 = arith.addf %4, %7 : vector<2x16x16x8xf32>
    %cst = arith.constant 0.000000e+00 : f32
    %9 = vector.broadcast %cst : f32 to vector<2x16x16x8xf32>
    %10 = arith.cmpf oge, %8, %9 : vector<2x16x16x8xf32>
    %cst_7 = arith.constant 0.00999999977 : f32
    %11 = vector.broadcast %cst_7 : f32 to vector<2x16x16x8xf32>
    %12 = arith.mulf %11, %8 : vector<2x16x16x8xf32>
    %13 = arith.select %10, %8, %12 : vector<2x16x16x8xi1>, vector<2x16x16x8xf32>
    %c0_8 = arith.constant 0 : index
    %c0_9 = arith.constant 0 : index
    %14 = vector.load %arg3[%c0_8, %c0_9] : memref<1x8xf32, #tpu.memory_space<vmem>>, vector<1x8xf32>
    %c0_10 = arith.constant 0 : index
    %c0_11 = arith.constant 0 : index
    %15 = vector.load %arg4[%c0_10, %c0_11] : memref<1x8xf32, #tpu.memory_space<vmem>>, vector<1x8xf32>
    %c0_12 = arith.constant 0 : index
    %c0_13 = arith.constant 0 : index
    %16 = vector.load %arg5[%c0_12, %c0_13] : memref<8x16xf32, #tpu.memory_space<vmem>>, vector<8x16xf32>
    %c0_14 = arith.constant 0 : index
    %c0_15 = arith.constant 0 : index
    %17 = vector.load %arg6[%c0_14, %c0_15] : memref<1x16xf32, #tpu.memory_space<vmem>>, vector<1x16xf32>
    %18 = vector.shape_cast %13 : vector<2x16x16x8xf32> to vector<512x8xf32>
    %cst_16 = arith.constant dense<0.000000e+00> : vector<8xf32>
    %19 = vector.multi_reduction <add>, %18, %cst_16 [0] : vector<512x8xf32> to vector<8xf32>
    %20 = vector.shape_cast %19 : vector<8xf32> to vector<1x8xf32>
    %21 = arith.mulf %18, %18 : vector<512x8xf32>
    %cst_17 = arith.constant dense<0.000000e+00> : vector<8xf32>
    %22 = vector.multi_reduction <add>, %21, %cst_17 [0] : vector<512x8xf32> to vector<8xf32>
    %23 = vector.shape_cast %22 : vector<8xf32> to vector<1x8xf32>
    %cst_18 = arith.constant 0.001953125 : f32
    %24 = vector.broadcast %cst_18 : f32 to vector<1x8xf32>
    %25 = arith.mulf %20, %24 : vector<1x8xf32>
    %cst_19 = arith.constant 0.001953125 : f32
    %26 = vector.broadcast %cst_19 : f32 to vector<1x8xf32>
    %27 = arith.mulf %23, %26 : vector<1x8xf32>
    %28 = arith.mulf %25, %25 : vector<1x8xf32>
    %29 = arith.subf %27, %28 : vector<1x8xf32>
    %cst_20 = arith.constant 9.99999974E-6 : f32
    %30 = vector.broadcast %cst_20 : f32 to vector<1x8xf32>
    %31 = arith.addf %29, %30 : vector<1x8xf32>
    %32 = math.rsqrt %31 : vector<1x8xf32>
    %33 = arith.mulf %32, %14 : vector<1x8xf32>
    %34 = arith.mulf %25, %33 : vector<1x8xf32>
    %35 = arith.subf %15, %34 : vector<1x8xf32>
    %36 = tpu.iota {dimensions = array<i32: 0>} : vector<8x8xi32>
    %37 = tpu.iota {dimensions = array<i32: 1>} : vector<8x8xi32>
    %38 = arith.cmpi eq, %36, %37 : vector<8x8xi32>
    %39 = arith.extui %38 : vector<8x8xi1> to vector<8x8xi32>
    %40 = arith.sitofp %39 : vector<8x8xi32> to vector<8x8xf32>
    %41 = vector.broadcast %33 : vector<1x8xf32> to vector<8x8xf32>
    %42 = arith.mulf %40, %41 : vector<8x8xf32>
    %cst_21 = arith.constant dense<0.000000e+00> : vector<8x16xf32>
    %43 = tpu.matmul %42, %16, %cst_21 {dimension_numbers = #tpu.dot_dimension_numbers<[1], [0], [0], [1], [0, 0, 1, 1], [], []>} : vector<8x8xf32>, vector<8x16xf32>, vector<8x16xf32> -> vector<8x16xf32>
    %44 = vector.shape_cast %35 : vector<1x8xf32> to vector<1x8xf32>
    %45 = vector.broadcast %44 : vector<1x8xf32> to vector<8x8xf32>
    %cst_22 = arith.constant dense<0.000000e+00> : vector<8x16xf32>
    %46 = tpu.matmul %45, %16, %cst_22 {dimension_numbers = #tpu.dot_dimension_numbers<[1], [0], [0], [1], [0, 0, 1, 1], [], []>} : vector<8x8xf32>, vector<8x16xf32>, vector<8x16xf32> -> vector<8x16xf32>
    %47 = vector.extract_strided_slice %46 {offsets = [0, 0], sizes = [1, 16], strides = [1, 1]} : vector<8x16xf32> to vector<1x16xf32>
    %48 = arith.addf %47, %17 : vector<1x16xf32>
    %cst_23 = arith.constant dense<0.000000e+00> : vector<512x16xf32>
    %49 = tpu.matmul %18, %43, %cst_23 {dimension_numbers = #tpu.dot_dimension_numbers<[1], [0], [0], [1], [0, 0, 1, 1], [], []>} : vector<512x8xf32>, vector<8x16xf32>, vector<512x16xf32> -> vector<512x16xf32>
    %50 = vector.broadcast %48 : vector<1x16xf32> to vector<512x16xf32>
    %51 = arith.addf %49, %50 : vector<512x16xf32>
    %52 = vector.shape_cast %51 : vector<512x16xf32> to vector<2x16x16x16xf32>
    %cst_24 = arith.constant 0.000000e+00 : f32
    %53 = vector.broadcast %cst_24 : f32 to vector<2x16x16x16xf32>
    %54 = arith.cmpf oge, %52, %53 : vector<2x16x16x16xf32>
    %cst_25 = arith.constant 0.00999999977 : f32
    %55 = vector.broadcast %cst_25 : f32 to vector<2x16x16x16xf32>
    %56 = arith.mulf %55, %52 : vector<2x16x16x16xf32>
    %57 = arith.select %54, %52, %56 : vector<2x16x16x16xi1>, vector<2x16x16x16xf32>
    %c0_26 = arith.constant 0 : index
    %c0_27 = arith.constant 0 : index
    %58 = vector.load %arg8[%c0_26, %c0_27] : memref<1x16xf32, #tpu.memory_space<vmem>>, vector<1x16xf32>
    %cst_28 = arith.constant 0.000000e+00 : f32
    %59 = vector.broadcast %cst_28 : f32 to vector<2x1x18x16xf32>
    %c0_29 = arith.constant 0 : index
    %c0_30 = arith.constant 0 : index
    %c0_31 = arith.constant 0 : index
    %c0_32 = arith.constant 0 : index
    %60 = vector.load %arg24[%c0_29, %c0_30, %c0_31, %c0_32] : memref<2x20x20x16xf32, #tpu.memory_space<vmem>>, vector<2x1x18x16xf32>
    tpu.vector_store %arg24[%c0_29, %c0_30, %c0_31, %c0_32], %59 {strides = array<i32>} : memref<2x20x20x16xf32, #tpu.memory_space<vmem>>, vector<2x1x18x16xf32>,
    %c0_33 = arith.constant 0 : index
    %c17 = arith.constant 17 : index
    %c0_34 = arith.constant 0 : index
    %c0_35 = arith.constant 0 : index
    %61 = vector.load %arg24[%c0_33, %c17, %c0_34, %c0_35] : memref<2x20x20x16xf32, #tpu.memory_space<vmem>>, vector<2x1x18x16xf32>
    tpu.vector_store %arg24[%c0_33, %c17, %c0_34, %c0_35], %59 {strides = array<i32>} : memref<2x20x20x16xf32, #tpu.memory_space<vmem>>, vector<2x1x18x16xf32>,
    %cst_36 = arith.constant 0.000000e+00 : f32
    %62 = vector.broadcast %cst_36 : f32 to vector<2x16x1x16xf32>
    %c0_37 = arith.constant 0 : index
    %c1 = arith.constant 1 : index
    %c0_38 = arith.constant 0 : index
    %c0_39 = arith.constant 0 : index
    %63 = vector.load %arg24[%c0_37, %c1, %c0_38, %c0_39] : memref<2x20x20x16xf32, #tpu.memory_space<vmem>>, vector<2x16x1x16xf32>
    tpu.vector_store %arg24[%c0_37, %c1, %c0_38, %c0_39], %62 {strides = array<i32>} : memref<2x20x20x16xf32, #tpu.memory_space<vmem>>, vector<2x16x1x16xf32>,
    %c0_40 = arith.constant 0 : index
    %c1_41 = arith.constant 1 : index
    %c17_42 = arith.constant 17 : index
    %c0_43 = arith.constant 0 : index
    %64 = vector.load %arg24[%c0_40, %c1_41, %c17_42, %c0_43] : memref<2x20x20x16xf32, #tpu.memory_space<vmem>>, vector<2x16x1x16xf32>
    tpu.vector_store %arg24[%c0_40, %c1_41, %c17_42, %c0_43], %62 {strides = array<i32>} : memref<2x20x20x16xf32, #tpu.memory_space<vmem>>, vector<2x16x1x16xf32>,
    %c0_44 = arith.constant 0 : index
    %c1_45 = arith.constant 1 : index
    %c1_46 = arith.constant 1 : index
    %c0_47 = arith.constant 0 : index
    %65 = vector.load %arg24[%c0_44, %c1_45, %c1_46, %c0_47] : memref<2x20x20x16xf32, #tpu.memory_space<vmem>>, vector<2x16x16x16xf32>
    tpu.vector_store %arg24[%c0_44, %c1_45, %c1_46, %c0_47], %57 {strides = array<i32>} : memref<2x20x20x16xf32, #tpu.memory_space<vmem>>, vector<2x16x16x16xf32>,
    %c0_48 = arith.constant 0 : index
    %c0_49 = arith.constant 0 : index
    %66 = vector.load %arg7[%c0_48, %c0_49] : memref<9x16xf32, #tpu.memory_space<vmem>>, vector<9x16xf32>
    %cst_50 = arith.constant 0.000000e+00 : f32
    %67 = vector.broadcast %cst_50 : f32 to vector<2x16x16x16xf32>
    %68 = vector.extract_strided_slice %66 {offsets = [0, 0], sizes = [1, 16], strides = [1, 1]} : vector<9x16xf32> to vector<1x16xf32>
    %69 = vector.shape_cast %68 : vector<1x16xf32> to vector<16xf32>
    %70 = vector.shape_cast %69 : vector<16xf32> to vector<1x1x1x16xf32>
    %c0_51 = arith.constant 0 : index
    %c0_52 = arith.constant 0 : index
    %c0_53 = arith.constant 0 : index
    %c0_54 = arith.constant 0 : index
    %71 = vector.load %arg24[%c0_51, %c0_52, %c0_53, %c0_54] : memref<2x20x20x16xf32, #tpu.memory_space<vmem>>, vector<2x16x16x16xf32>
    %72 = vector.broadcast %70 : vector<1x1x1x16xf32> to vector<2x16x16x16xf32>
    %73 = arith.mulf %71, %72 : vector<2x16x16x16xf32>
    %74 = arith.addf %67, %73 : vector<2x16x16x16xf32>
    %75 = vector.extract_strided_slice %66 {offsets = [1, 0], sizes = [1, 16], strides = [1, 1]} : vector<9x16xf32> to vector<1x16xf32>
    %76 = vector.shape_cast %75 : vector<1x16xf32> to vector<16xf32>
    %77 = vector.shape_cast %76 : vector<16xf32> to vector<1x1x1x16xf32>
    %c0_55 = arith.constant 0 : index
    %c0_56 = arith.constant 0 : index
    %c1_57 = arith.constant 1 : index
    %c0_58 = arith.constant 0 : index
    %78 = vector.load %arg24[%c0_55, %c0_56, %c1_57, %c0_58] : memref<2x20x20x16xf32, #tpu.memory_space<vmem>>, vector<2x16x16x16xf32>
    %79 = vector.broadcast %77 : vector<1x1x1x16xf32> to vector<2x16x16x16xf32>
    %80 = arith.mulf %78, %79 : vector<2x16x16x16xf32>
    %81 = arith.addf %74, %80 : vector<2x16x16x16xf32>
    %82 = vector.extract_strided_slice %66 {offsets = [2, 0], sizes = [1, 16], strides = [1, 1]} : vector<9x16xf32> to vector<1x16xf32>
    %83 = vector.shape_cast %82 : vector<1x16xf32> to vector<16xf32>
    %84 = vector.shape_cast %83 : vector<16xf32> to vector<1x1x1x16xf32>
    %c0_59 = arith.constant 0 : index
    %c0_60 = arith.constant 0 : index
    %c2 = arith.constant 2 : index
    %c0_61 = arith.constant 0 : index
    %85 = vector.load %arg24[%c0_59, %c0_60, %c2, %c0_61] : memref<2x20x20x16xf32, #tpu.memory_space<vmem>>, vector<2x16x16x16xf32>
    %86 = vector.broadcast %84 : vector<1x1x1x16xf32> to vector<2x16x16x16xf32>
    %87 = arith.mulf %85, %86 : vector<2x16x16x16xf32>
    %88 = arith.addf %81, %87 : vector<2x16x16x16xf32>
    %89 = vector.extract_strided_slice %66 {offsets = [3, 0], sizes = [1, 16], strides = [1, 1]} : vector<9x16xf32> to vector<1x16xf32>
    %90 = vector.shape_cast %89 : vector<1x16xf32> to vector<16xf32>
    %91 = vector.shape_cast %90 : vector<16xf32> to vector<1x1x1x16xf32>
    %c0_62 = arith.constant 0 : index
    %c1_63 = arith.constant 1 : index
    %c0_64 = arith.constant 0 : index
    %c0_65 = arith.constant 0 : index
    %92 = vector.load %arg24[%c0_62, %c1_63, %c0_64, %c0_65] : memref<2x20x20x16xf32, #tpu.memory_space<vmem>>, vector<2x16x16x16xf32>
    %93 = vector.broadcast %91 : vector<1x1x1x16xf32> to vector<2x16x16x16xf32>
    %94 = arith.mulf %92, %93 : vector<2x16x16x16xf32>
    %95 = arith.addf %88, %94 : vector<2x16x16x16xf32>
    %96 = vector.extract_strided_slice %66 {offsets = [4, 0], sizes = [1, 16], strides = [1, 1]} : vector<9x16xf32> to vector<1x16xf32>
    %97 = vector.shape_cast %96 : vector<1x16xf32> to vector<16xf32>
    %98 = vector.shape_cast %97 : vector<16xf32> to vector<1x1x1x16xf32>
    %c0_66 = arith.constant 0 : index
    %c1_67 = arith.constant 1 : index
    %c1_68 = arith.constant 1 : index
    %c0_69 = arith.constant 0 : index
    %99 = vector.load %arg24[%c0_66, %c1_67, %c1_68, %c0_69] : memref<2x20x20x16xf32, #tpu.memory_space<vmem>>, vector<2x16x16x16xf32>
    %100 = vector.broadcast %98 : vector<1x1x1x16xf32> to vector<2x16x16x16xf32>
    %101 = arith.mulf %99, %100 : vector<2x16x16x16xf32>
    %102 = arith.addf %95, %101 : vector<2x16x16x16xf32>
    %103 = vector.extract_strided_slice %66 {offsets = [5, 0], sizes = [1, 16], strides = [1, 1]} : vector<9x16xf32> to vector<1x16xf32>
    %104 = vector.shape_cast %103 : vector<1x16xf32> to vector<16xf32>
    %105 = vector.shape_cast %104 : vector<16xf32> to vector<1x1x1x16xf32>
    %c0_70 = arith.constant 0 : index
    %c1_71 = arith.constant 1 : index
    %c2_72 = arith.constant 2 : index
    %c0_73 = arith.constant 0 : index
    %106 = vector.load %arg24[%c0_70, %c1_71, %c2_72, %c0_73] : memref<2x20x20x16xf32, #tpu.memory_space<vmem>>, vector<2x16x16x16xf32>
    %107 = vector.broadcast %105 : vector<1x1x1x16xf32> to vector<2x16x16x16xf32>
    %108 = arith.mulf %106, %107 : vector<2x16x16x16xf32>
    %109 = arith.addf %102, %108 : vector<2x16x16x16xf32>
    %110 = vector.extract_strided_slice %66 {offsets = [6, 0], sizes = [1, 16], strides = [1, 1]} : vector<9x16xf32> to vector<1x16xf32>
    %111 = vector.shape_cast %110 : vector<1x16xf32> to vector<16xf32>
    %112 = vector.shape_cast %111 : vector<16xf32> to vector<1x1x1x16xf32>
    %c0_74 = arith.constant 0 : index
    %c2_75 = arith.constant 2 : index
    %c0_76 = arith.constant 0 : index
    %c0_77 = arith.constant 0 : index
    %113 = vector.load %arg24[%c0_74, %c2_75, %c0_76, %c0_77] : memref<2x20x20x16xf32, #tpu.memory_space<vmem>>, vector<2x16x16x16xf32>
    %114 = vector.broadcast %112 : vector<1x1x1x16xf32> to vector<2x16x16x16xf32>
    %115 = arith.mulf %113, %114 : vector<2x16x16x16xf32>
    %116 = arith.addf %109, %115 : vector<2x16x16x16xf32>
    %117 = vector.extract_strided_slice %66 {offsets = [7, 0], sizes = [1, 16], strides = [1, 1]} : vector<9x16xf32> to vector<1x16xf32>
    %118 = vector.shape_cast %117 : vector<1x16xf32> to vector<16xf32>
    %119 = vector.shape_cast %118 : vector<16xf32> to vector<1x1x1x16xf32>
    %c0_78 = arith.constant 0 : index
    %c2_79 = arith.constant 2 : index
    %c1_80 = arith.constant 1 : index
    %c0_81 = arith.constant 0 : index
    %120 = vector.load %arg24[%c0_78, %c2_79, %c1_80, %c0_81] : memref<2x20x20x16xf32, #tpu.memory_space<vmem>>, vector<2x16x16x16xf32>
    %121 = vector.broadcast %119 : vector<1x1x1x16xf32> to vector<2x16x16x16xf32>
    %122 = arith.mulf %120, %121 : vector<2x16x16x16xf32>
    %123 = arith.addf %116, %122 : vector<2x16x16x16xf32>
    %124 = vector.extract_strided_slice %66 {offsets = [8, 0], sizes = [1, 16], strides = [1, 1]} : vector<9x16xf32> to vector<1x16xf32>
    %125 = vector.shape_cast %124 : vector<1x16xf32> to vector<16xf32>
    %126 = vector.shape_cast %125 : vector<16xf32> to vector<1x1x1x16xf32>
    %c0_82 = arith.constant 0 : index
    %c2_83 = arith.constant 2 : index
    %c2_84 = arith.constant 2 : index
    %c0_85 = arith.constant 0 : index
    %127 = vector.load %arg24[%c0_82, %c2_83, %c2_84, %c0_85] : memref<2x20x20x16xf32, #tpu.memory_space<vmem>>, vector<2x16x16x16xf32>
    %128 = vector.broadcast %126 : vector<1x1x1x16xf32> to vector<2x16x16x16xf32>
    %129 = arith.mulf %127, %128 : vector<2x16x16x16xf32>
    %130 = arith.addf %123, %129 : vector<2x16x16x16xf32>
    %131 = vector.shape_cast %58 : vector<1x16xf32> to vector<1x1x1x16xf32>
    %132 = vector.broadcast %131 : vector<1x1x1x16xf32> to vector<2x16x16x16xf32>
    %133 = arith.addf %130, %132 : vector<2x16x16x16xf32>
    %cst_86 = arith.constant 0.000000e+00 : f32
    %134 = vector.broadcast %cst_86 : f32 to vector<2x16x16x16xf32>
    %135 = arith.cmpf oge, %133, %134 : vector<2x16x16x16xf32>
    %cst_87 = arith.constant 0.00999999977 : f32
    %136 = vector.broadcast %cst_87 : f32 to vector<2x16x16x16xf32>
    %137 = arith.mulf %136, %133 : vector<2x16x16x16xf32>
    %138 = arith.select %135, %133, %137 : vector<2x16x16x16xi1>, vector<2x16x16x16xf32>
    %c0_88 = arith.constant 0 : index
    %c0_89 = arith.constant 0 : index
    %139 = vector.load %arg9[%c0_88, %c0_89] : memref<1x16xf32, #tpu.memory_space<vmem>>, vector<1x16xf32>
    %c0_90 = arith.constant 0 : index
    %c0_91 = arith.constant 0 : index
    %140 = vector.load %arg10[%c0_90, %c0_91] : memref<1x16xf32, #tpu.memory_space<vmem>>, vector<1x16xf32>
    %c0_92 = arith.constant 0 : index
    %c0_93 = arith.constant 0 : index
    %141 = vector.load %arg11[%c0_92, %c0_93] : memref<16x16xf32, #tpu.memory_space<vmem>>, vector<16x16xf32>
    %c0_94 = arith.constant 0 : index
    %c0_95 = arith.constant 0 : index
    %142 = vector.load %arg12[%c0_94, %c0_95] : memref<1x16xf32, #tpu.memory_space<vmem>>, vector<1x16xf32>
    %143 = vector.shape_cast %138 : vector<2x16x16x16xf32> to vector<512x16xf32>
    %cst_96 = arith.constant dense<0.000000e+00> : vector<16xf32>
    %144 = vector.multi_reduction <add>, %143, %cst_96 [0] : vector<512x16xf32> to vector<16xf32>
    %145 = vector.shape_cast %144 : vector<16xf32> to vector<1x16xf32>
    %146 = arith.mulf %143, %143 : vector<512x16xf32>
    %cst_97 = arith.constant dense<0.000000e+00> : vector<16xf32>
    %147 = vector.multi_reduction <add>, %146, %cst_97 [0] : vector<512x16xf32> to vector<16xf32>
    %148 = vector.shape_cast %147 : vector<16xf32> to vector<1x16xf32>
    %cst_98 = arith.constant 0.001953125 : f32
    %149 = vector.broadcast %cst_98 : f32 to vector<1x16xf32>
    %150 = arith.mulf %145, %149 : vector<1x16xf32>
    %cst_99 = arith.constant 0.001953125 : f32
    %151 = vector.broadcast %cst_99 : f32 to vector<1x16xf32>
    %152 = arith.mulf %148, %151 : vector<1x16xf32>
    %153 = arith.mulf %150, %150 : vector<1x16xf32>
    %154 = arith.subf %152, %153 : vector<1x16xf32>
    %cst_100 = arith.constant 9.99999974E-6 : f32
    %155 = vector.broadcast %cst_100 : f32 to vector<1x16xf32>
    %156 = arith.addf %154, %155 : vector<1x16xf32>
    %157 = math.rsqrt %156 : vector<1x16xf32>
    %158 = arith.mulf %157, %139 : vector<1x16xf32>
    %159 = arith.mulf %150, %158 : vector<1x16xf32>
    %160 = arith.subf %140, %159 : vector<1x16xf32>
    %161 = tpu.iota {dimensions = array<i32: 0>} : vector<16x16xi32>
    %162 = tpu.iota {dimensions = array<i32: 1>} : vector<16x16xi32>
    %163 = arith.cmpi eq, %161, %162 : vector<16x16xi32>
    %164 = arith.extui %163 : vector<16x16xi1> to vector<16x16xi32>
    %165 = arith.sitofp %164 : vector<16x16xi32> to vector<16x16xf32>
    %166 = vector.broadcast %158 : vector<1x16xf32> to vector<16x16xf32>
    %167 = arith.mulf %165, %166 : vector<16x16xf32>
    %cst_101 = arith.constant dense<0.000000e+00> : vector<16x16xf32>
    %168 = tpu.matmul %167, %141, %cst_101 {dimension_numbers = #tpu.dot_dimension_numbers<[1], [0], [0], [1], [0, 0, 1, 1], [], []>} : vector<16x16xf32>, vector<16x16xf32>, vector<16x16xf32> -> vector<16x16xf32>
    %169 = vector.shape_cast %160 : vector<1x16xf32> to vector<1x16xf32>
    %170 = vector.broadcast %169 : vector<1x16xf32> to vector<8x16xf32>
    %cst_102 = arith.constant dense<0.000000e+00> : vector<8x16xf32>
    %171 = tpu.matmul %170, %141, %cst_102 {dimension_numbers = #tpu.dot_dimension_numbers<[1], [0], [0], [1], [0, 0, 1, 1], [], []>} : vector<8x16xf32>, vector<16x16xf32>, vector<8x16xf32> -> vector<8x16xf32>
    %172 = vector.extract_strided_slice %171 {offsets = [0, 0], sizes = [1, 16], strides = [1, 1]} : vector<8x16xf32> to vector<1x16xf32>
    %173 = arith.addf %172, %142 : vector<1x16xf32>
    %cst_103 = arith.constant dense<0.000000e+00> : vector<512x16xf32>
    %174 = tpu.matmul %143, %168, %cst_103 {dimension_numbers = #tpu.dot_dimension_numbers<[1], [0], [0], [1], [0, 0, 1, 1], [], []>} : vector<512x16xf32>, vector<16x16xf32>, vector<512x16xf32> -> vector<512x16xf32>
    %175 = vector.broadcast %173 : vector<1x16xf32> to vector<512x16xf32>
    %176 = arith.addf %174, %175 : vector<512x16xf32>
    %177 = vector.shape_cast %176 : vector<512x16xf32> to vector<2x16x16x16xf32>
    %cst_104 = arith.constant 0.000000e+00 : f32
    %178 = vector.broadcast %cst_104 : f32 to vector<2x16x16x16xf32>
    %179 = arith.cmpf oge, %177, %178 : vector<2x16x16x16xf32>
    %cst_105 = arith.constant 0.00999999977 : f32
    %180 = vector.broadcast %cst_105 : f32 to vector<2x16x16x16xf32>
    %181 = arith.mulf %180, %177 : vector<2x16x16x16xf32>
    %182 = arith.select %179, %177, %181 : vector<2x16x16x16xi1>, vector<2x16x16x16xf32>
    %183 = vector.shape_cast %182 : vector<2x16x16x16xf32> to vector<512x16xf32>
    %c0_106 = arith.constant 0 : index
    %c0_107 = arith.constant 0 : index
    %184 = vector.load %arg19[%c0_106, %c0_107] : memref<1x16xf32, #tpu.memory_space<vmem>>, vector<1x16xf32>
    %c0_108 = arith.constant 0 : index
    %c0_109 = arith.constant 0 : index
    %185 = vector.load %arg20[%c0_108, %c0_109] : memref<1x16xf32, #tpu.memory_space<vmem>>, vector<1x16xf32>
    %cst_110 = arith.constant dense<0.000000e+00> : vector<16xf32>
    %186 = vector.multi_reduction <add>, %183, %cst_110 [0] : vector<512x16xf32> to vector<16xf32>
    %187 = vector.shape_cast %186 : vector<16xf32> to vector<1x16xf32>
    %188 = arith.mulf %183, %183 : vector<512x16xf32>
    %cst_111 = arith.constant dense<0.000000e+00> : vector<16xf32>
    %189 = vector.multi_reduction <add>, %188, %cst_111 [0] : vector<512x16xf32> to vector<16xf32>
    %190 = vector.shape_cast %189 : vector<16xf32> to vector<1x16xf32>
    %cst_112 = arith.constant 0.001953125 : f32
    %191 = vector.broadcast %cst_112 : f32 to vector<1x16xf32>
    %192 = arith.mulf %187, %191 : vector<1x16xf32>
    %cst_113 = arith.constant 0.001953125 : f32
    %193 = vector.broadcast %cst_113 : f32 to vector<1x16xf32>
    %194 = arith.mulf %190, %193 : vector<1x16xf32>
    %195 = arith.mulf %192, %192 : vector<1x16xf32>
    %196 = arith.subf %194, %195 : vector<1x16xf32>
    %cst_114 = arith.constant 9.99999974E-6 : f32
    %197 = vector.broadcast %cst_114 : f32 to vector<1x16xf32>
    %198 = arith.addf %196, %197 : vector<1x16xf32>
    %199 = math.rsqrt %198 : vector<1x16xf32>
    %200 = arith.mulf %199, %184 : vector<1x16xf32>
    %201 = arith.mulf %192, %200 : vector<1x16xf32>
    %202 = arith.subf %185, %201 : vector<1x16xf32>
    %c0_115 = arith.constant 0 : index
    %c0_116 = arith.constant 0 : index
    %203 = vector.load %arg14[%c0_115, %c0_116] : memref<1x16xf32, #tpu.memory_space<vmem>>, vector<1x16xf32>
    %cst_117 = arith.constant 0.000000e+00 : f32
    %204 = vector.broadcast %cst_117 : f32 to vector<2x2x20x16xf32>
    %c0_118 = arith.constant 0 : index
    %c0_119 = arith.constant 0 : index
    %c0_120 = arith.constant 0 : index
    %c0_121 = arith.constant 0 : index
    %205 = vector.load %arg24[%c0_118, %c0_119, %c0_120, %c0_121] : memref<2x20x20x16xf32, #tpu.memory_space<vmem>>, vector<2x2x20x16xf32>
    tpu.vector_store %arg24[%c0_118, %c0_119, %c0_120, %c0_121], %204 {strides = array<i32>} : memref<2x20x20x16xf32, #tpu.memory_space<vmem>>, vector<2x2x20x16xf32>,
    %c0_122 = arith.constant 0 : index
    %c18 = arith.constant 18 : index
    %c0_123 = arith.constant 0 : index
    %c0_124 = arith.constant 0 : index
    %206 = vector.load %arg24[%c0_122, %c18, %c0_123, %c0_124] : memref<2x20x20x16xf32, #tpu.memory_space<vmem>>, vector<2x2x20x16xf32>
    tpu.vector_store %arg24[%c0_122, %c18, %c0_123, %c0_124], %204 {strides = array<i32>} : memref<2x20x20x16xf32, #tpu.memory_space<vmem>>, vector<2x2x20x16xf32>,
    %cst_125 = arith.constant 0.000000e+00 : f32
    %207 = vector.broadcast %cst_125 : f32 to vector<2x16x2x16xf32>
    %c0_126 = arith.constant 0 : index
    %c2_127 = arith.constant 2 : index
    %c0_128 = arith.constant 0 : index
    %c0_129 = arith.constant 0 : index
    %208 = vector.load %arg24[%c0_126, %c2_127, %c0_128, %c0_129] : memref<2x20x20x16xf32, #tpu.memory_space<vmem>>, vector<2x16x2x16xf32>
    tpu.vector_store %arg24[%c0_126, %c2_127, %c0_128, %c0_129], %207 {strides = array<i32>} : memref<2x20x20x16xf32, #tpu.memory_space<vmem>>, vector<2x16x2x16xf32>,
    %c0_130 = arith.constant 0 : index
    %c2_131 = arith.constant 2 : index
    %c18_132 = arith.constant 18 : index
    %c0_133 = arith.constant 0 : index
    %209 = vector.load %arg24[%c0_130, %c2_131, %c18_132, %c0_133] : memref<2x20x20x16xf32, #tpu.memory_space<vmem>>, vector<2x16x2x16xf32>
    tpu.vector_store %arg24[%c0_130, %c2_131, %c18_132, %c0_133], %207 {strides = array<i32>} : memref<2x20x20x16xf32, #tpu.memory_space<vmem>>, vector<2x16x2x16xf32>,
    %210 = vector.shape_cast %200 : vector<1x16xf32> to vector<1x1x1x16xf32>
    %211 = vector.broadcast %210 : vector<1x1x1x16xf32> to vector<2x16x16x16xf32>
    %212 = arith.mulf %182, %211 : vector<2x16x16x16xf32>
    %213 = vector.shape_cast %202 : vector<1x16xf32> to vector<1x1x1x16xf32>
    %214 = vector.broadcast %213 : vector<1x1x1x16xf32> to vector<2x16x16x16xf32>
    %215 = arith.addf %212, %214 : vector<2x16x16x16xf32>
    %c0_134 = arith.constant 0 : index
    %c2_135 = arith.constant 2 : index
    %c2_136 = arith.constant 2 : index
    %c0_137 = arith.constant 0 : index
    %216 = vector.load %arg24[%c0_134, %c2_135, %c2_136, %c0_137] : memref<2x20x20x16xf32, #tpu.memory_space<vmem>>, vector<2x16x16x16xf32>
    tpu.vector_store %arg24[%c0_134, %c2_135, %c2_136, %c0_137], %215 {strides = array<i32>} : memref<2x20x20x16xf32, #tpu.memory_space<vmem>>, vector<2x16x16x16xf32>,
    %c0_138 = arith.constant 0 : index
    %c0_139 = arith.constant 0 : index
    %217 = vector.load %arg13[%c0_138, %c0_139] : memref<9x16xf32, #tpu.memory_space<vmem>>, vector<9x16xf32>
    %cst_140 = arith.constant 0.000000e+00 : f32
    %218 = vector.broadcast %cst_140 : f32 to vector<2x16x16x16xf32>
    %219 = vector.extract_strided_slice %217 {offsets = [0, 0], sizes = [1, 16], strides = [1, 1]} : vector<9x16xf32> to vector<1x16xf32>
    %220 = vector.shape_cast %219 : vector<1x16xf32> to vector<16xf32>
    %221 = vector.shape_cast %220 : vector<16xf32> to vector<1x1x1x16xf32>
    %c0_141 = arith.constant 0 : index
    %c0_142 = arith.constant 0 : index
    %c0_143 = arith.constant 0 : index
    %c0_144 = arith.constant 0 : index
    %222 = vector.load %arg24[%c0_141, %c0_142, %c0_143, %c0_144] : memref<2x20x20x16xf32, #tpu.memory_space<vmem>>, vector<2x16x16x16xf32>
    %223 = vector.broadcast %221 : vector<1x1x1x16xf32> to vector<2x16x16x16xf32>
    %224 = arith.mulf %222, %223 : vector<2x16x16x16xf32>
    %225 = arith.addf %218, %224 : vector<2x16x16x16xf32>
    %226 = vector.extract_strided_slice %217 {offsets = [1, 0], sizes = [1, 16], strides = [1, 1]} : vector<9x16xf32> to vector<1x16xf32>
    %227 = vector.shape_cast %226 : vector<1x16xf32> to vector<16xf32>
    %228 = vector.shape_cast %227 : vector<16xf32> to vector<1x1x1x16xf32>
    %c0_145 = arith.constant 0 : index
    %c0_146 = arith.constant 0 : index
    %c2_147 = arith.constant 2 : index
    %c0_148 = arith.constant 0 : index
    %229 = vector.load %arg24[%c0_145, %c0_146, %c2_147, %c0_148] : memref<2x20x20x16xf32, #tpu.memory_space<vmem>>, vector<2x16x16x16xf32>
    %230 = vector.broadcast %228 : vector<1x1x1x16xf32> to vector<2x16x16x16xf32>
    %231 = arith.mulf %229, %230 : vector<2x16x16x16xf32>
    %232 = arith.addf %225, %231 : vector<2x16x16x16xf32>
    %233 = vector.extract_strided_slice %217 {offsets = [2, 0], sizes = [1, 16], strides = [1, 1]} : vector<9x16xf32> to vector<1x16xf32>
    %234 = vector.shape_cast %233 : vector<1x16xf32> to vector<16xf32>
    %235 = vector.shape_cast %234 : vector<16xf32> to vector<1x1x1x16xf32>
    %c0_149 = arith.constant 0 : index
    %c0_150 = arith.constant 0 : index
    %c4 = arith.constant 4 : index
    %c0_151 = arith.constant 0 : index
    %236 = vector.load %arg24[%c0_149, %c0_150, %c4, %c0_151] : memref<2x20x20x16xf32, #tpu.memory_space<vmem>>, vector<2x16x16x16xf32>
    %237 = vector.broadcast %235 : vector<1x1x1x16xf32> to vector<2x16x16x16xf32>
    %238 = arith.mulf %236, %237 : vector<2x16x16x16xf32>
    %239 = arith.addf %232, %238 : vector<2x16x16x16xf32>
    %240 = vector.extract_strided_slice %217 {offsets = [3, 0], sizes = [1, 16], strides = [1, 1]} : vector<9x16xf32> to vector<1x16xf32>
    %241 = vector.shape_cast %240 : vector<1x16xf32> to vector<16xf32>
    %242 = vector.shape_cast %241 : vector<16xf32> to vector<1x1x1x16xf32>
    %c0_152 = arith.constant 0 : index
    %c2_153 = arith.constant 2 : index
    %c0_154 = arith.constant 0 : index
    %c0_155 = arith.constant 0 : index
    %243 = vector.load %arg24[%c0_152, %c2_153, %c0_154, %c0_155] : memref<2x20x20x16xf32, #tpu.memory_space<vmem>>, vector<2x16x16x16xf32>
    %244 = vector.broadcast %242 : vector<1x1x1x16xf32> to vector<2x16x16x16xf32>
    %245 = arith.mulf %243, %244 : vector<2x16x16x16xf32>
    %246 = arith.addf %239, %245 : vector<2x16x16x16xf32>
    %247 = vector.extract_strided_slice %217 {offsets = [4, 0], sizes = [1, 16], strides = [1, 1]} : vector<9x16xf32> to vector<1x16xf32>
    %248 = vector.shape_cast %247 : vector<1x16xf32> to vector<16xf32>
    %249 = vector.shape_cast %248 : vector<16xf32> to vector<1x1x1x16xf32>
    %c0_156 = arith.constant 0 : index
    %c2_157 = arith.constant 2 : index
    %c2_158 = arith.constant 2 : index
    %c0_159 = arith.constant 0 : index
    %250 = vector.load %arg24[%c0_156, %c2_157, %c2_158, %c0_159] : memref<2x20x20x16xf32, #tpu.memory_space<vmem>>, vector<2x16x16x16xf32>
    %251 = vector.broadcast %249 : vector<1x1x1x16xf32> to vector<2x16x16x16xf32>
    %252 = arith.mulf %250, %251 : vector<2x16x16x16xf32>
    %253 = arith.addf %246, %252 : vector<2x16x16x16xf32>
    %254 = vector.extract_strided_slice %217 {offsets = [5, 0], sizes = [1, 16], strides = [1, 1]} : vector<9x16xf32> to vector<1x16xf32>
    %255 = vector.shape_cast %254 : vector<1x16xf32> to vector<16xf32>
    %256 = vector.shape_cast %255 : vector<16xf32> to vector<1x1x1x16xf32>
    %c0_160 = arith.constant 0 : index
    %c2_161 = arith.constant 2 : index
    %c4_162 = arith.constant 4 : index
    %c0_163 = arith.constant 0 : index
    %257 = vector.load %arg24[%c0_160, %c2_161, %c4_162, %c0_163] : memref<2x20x20x16xf32, #tpu.memory_space<vmem>>, vector<2x16x16x16xf32>
    %258 = vector.broadcast %256 : vector<1x1x1x16xf32> to vector<2x16x16x16xf32>
    %259 = arith.mulf %257, %258 : vector<2x16x16x16xf32>
    %260 = arith.addf %253, %259 : vector<2x16x16x16xf32>
    %261 = vector.extract_strided_slice %217 {offsets = [6, 0], sizes = [1, 16], strides = [1, 1]} : vector<9x16xf32> to vector<1x16xf32>
    %262 = vector.shape_cast %261 : vector<1x16xf32> to vector<16xf32>
    %263 = vector.shape_cast %262 : vector<16xf32> to vector<1x1x1x16xf32>
    %c0_164 = arith.constant 0 : index
    %c4_165 = arith.constant 4 : index
    %c0_166 = arith.constant 0 : index
    %c0_167 = arith.constant 0 : index
    %264 = vector.load %arg24[%c0_164, %c4_165, %c0_166, %c0_167] : memref<2x20x20x16xf32, #tpu.memory_space<vmem>>, vector<2x16x16x16xf32>
    %265 = vector.broadcast %263 : vector<1x1x1x16xf32> to vector<2x16x16x16xf32>
    %266 = arith.mulf %264, %265 : vector<2x16x16x16xf32>
    %267 = arith.addf %260, %266 : vector<2x16x16x16xf32>
    %268 = vector.extract_strided_slice %217 {offsets = [7, 0], sizes = [1, 16], strides = [1, 1]} : vector<9x16xf32> to vector<1x16xf32>
    %269 = vector.shape_cast %268 : vector<1x16xf32> to vector<16xf32>
    %270 = vector.shape_cast %269 : vector<16xf32> to vector<1x1x1x16xf32>
    %c0_168 = arith.constant 0 : index
    %c4_169 = arith.constant 4 : index
    %c2_170 = arith.constant 2 : index
    %c0_171 = arith.constant 0 : index
    %271 = vector.load %arg24[%c0_168, %c4_169, %c2_170, %c0_171] : memref<2x20x20x16xf32, #tpu.memory_space<vmem>>, vector<2x16x16x16xf32>
    %272 = vector.broadcast %270 : vector<1x1x1x16xf32> to vector<2x16x16x16xf32>
    %273 = arith.mulf %271, %272 : vector<2x16x16x16xf32>
    %274 = arith.addf %267, %273 : vector<2x16x16x16xf32>
    %275 = vector.extract_strided_slice %217 {offsets = [8, 0], sizes = [1, 16], strides = [1, 1]} : vector<9x16xf32> to vector<1x16xf32>
    %276 = vector.shape_cast %275 : vector<1x16xf32> to vector<16xf32>
    %277 = vector.shape_cast %276 : vector<16xf32> to vector<1x1x1x16xf32>
    %c0_172 = arith.constant 0 : index
    %c4_173 = arith.constant 4 : index
    %c4_174 = arith.constant 4 : index
    %c0_175 = arith.constant 0 : index
    %278 = vector.load %arg24[%c0_172, %c4_173, %c4_174, %c0_175] : memref<2x20x20x16xf32, #tpu.memory_space<vmem>>, vector<2x16x16x16xf32>
    %279 = vector.broadcast %277 : vector<1x1x1x16xf32> to vector<2x16x16x16xf32>
    %280 = arith.mulf %278, %279 : vector<2x16x16x16xf32>
    %281 = arith.addf %274, %280 : vector<2x16x16x16xf32>
    %282 = vector.shape_cast %203 : vector<1x16xf32> to vector<1x1x1x16xf32>
    %283 = vector.broadcast %282 : vector<1x1x1x16xf32> to vector<2x16x16x16xf32>
    %284 = arith.addf %281, %283 : vector<2x16x16x16xf32>
    %cst_176 = arith.constant 0.000000e+00 : f32
    %285 = vector.broadcast %cst_176 : f32 to vector<2x16x16x16xf32>
    %286 = arith.cmpf oge, %284, %285 : vector<2x16x16x16xf32>
    %cst_177 = arith.constant 0.00999999977 : f32
    %287 = vector.broadcast %cst_177 : f32 to vector<2x16x16x16xf32>
    %288 = arith.mulf %287, %284 : vector<2x16x16x16xf32>
    %289 = arith.select %286, %284, %288 : vector<2x16x16x16xi1>, vector<2x16x16x16xf32>
    %c0_178 = arith.constant 0 : index
    %c0_179 = arith.constant 0 : index
    %290 = vector.load %arg15[%c0_178, %c0_179] : memref<1x16xf32, #tpu.memory_space<vmem>>, vector<1x16xf32>
    %c0_180 = arith.constant 0 : index
    %c0_181 = arith.constant 0 : index
    %291 = vector.load %arg16[%c0_180, %c0_181] : memref<1x16xf32, #tpu.memory_space<vmem>>, vector<1x16xf32>
    %c0_182 = arith.constant 0 : index
    %c0_183 = arith.constant 0 : index
    %292 = vector.load %arg17[%c0_182, %c0_183] : memref<16x16xf32, #tpu.memory_space<vmem>>, vector<16x16xf32>
    %c0_184 = arith.constant 0 : index
    %c0_185 = arith.constant 0 : index
    %293 = vector.load %arg18[%c0_184, %c0_185] : memref<1x16xf32, #tpu.memory_space<vmem>>, vector<1x16xf32>
    %294 = vector.shape_cast %289 : vector<2x16x16x16xf32> to vector<512x16xf32>
    %cst_186 = arith.constant dense<0.000000e+00> : vector<16xf32>
    %295 = vector.multi_reduction <add>, %294, %cst_186 [0] : vector<512x16xf32> to vector<16xf32>
    %296 = vector.shape_cast %295 : vector<16xf32> to vector<1x16xf32>
    %297 = arith.mulf %294, %294 : vector<512x16xf32>
    %cst_187 = arith.constant dense<0.000000e+00> : vector<16xf32>
    %298 = vector.multi_reduction <add>, %297, %cst_187 [0] : vector<512x16xf32> to vector<16xf32>
    %299 = vector.shape_cast %298 : vector<16xf32> to vector<1x16xf32>
    %cst_188 = arith.constant 0.001953125 : f32
    %300 = vector.broadcast %cst_188 : f32 to vector<1x16xf32>
    %301 = arith.mulf %296, %300 : vector<1x16xf32>
    %cst_189 = arith.constant 0.001953125 : f32
    %302 = vector.broadcast %cst_189 : f32 to vector<1x16xf32>
    %303 = arith.mulf %299, %302 : vector<1x16xf32>
    %304 = arith.mulf %301, %301 : vector<1x16xf32>
    %305 = arith.subf %303, %304 : vector<1x16xf32>
    %cst_190 = arith.constant 9.99999974E-6 : f32
    %306 = vector.broadcast %cst_190 : f32 to vector<1x16xf32>
    %307 = arith.addf %305, %306 : vector<1x16xf32>
    %308 = math.rsqrt %307 : vector<1x16xf32>
    %309 = arith.mulf %308, %290 : vector<1x16xf32>
    %310 = arith.mulf %301, %309 : vector<1x16xf32>
    %311 = arith.subf %291, %310 : vector<1x16xf32>
    %312 = tpu.iota {dimensions = array<i32: 0>} : vector<16x16xi32>
    %313 = tpu.iota {dimensions = array<i32: 1>} : vector<16x16xi32>
    %314 = arith.cmpi eq, %312, %313 : vector<16x16xi32>
    %315 = arith.extui %314 : vector<16x16xi1> to vector<16x16xi32>
    %316 = arith.sitofp %315 : vector<16x16xi32> to vector<16x16xf32>
    %317 = vector.broadcast %309 : vector<1x16xf32> to vector<16x16xf32>
    %318 = arith.mulf %316, %317 : vector<16x16xf32>
    %cst_191 = arith.constant dense<0.000000e+00> : vector<16x16xf32>
    %319 = tpu.matmul %318, %292, %cst_191 {dimension_numbers = #tpu.dot_dimension_numbers<[1], [0], [0], [1], [0, 0, 1, 1], [], []>} : vector<16x16xf32>, vector<16x16xf32>, vector<16x16xf32> -> vector<16x16xf32>
    %320 = vector.shape_cast %311 : vector<1x16xf32> to vector<1x16xf32>
    %321 = vector.broadcast %320 : vector<1x16xf32> to vector<8x16xf32>
    %cst_192 = arith.constant dense<0.000000e+00> : vector<8x16xf32>
    %322 = tpu.matmul %321, %292, %cst_192 {dimension_numbers = #tpu.dot_dimension_numbers<[1], [0], [0], [1], [0, 0, 1, 1], [], []>} : vector<8x16xf32>, vector<16x16xf32>, vector<8x16xf32> -> vector<8x16xf32>
    %323 = vector.extract_strided_slice %322 {offsets = [0, 0], sizes = [1, 16], strides = [1, 1]} : vector<8x16xf32> to vector<1x16xf32>
    %324 = arith.addf %323, %293 : vector<1x16xf32>
    %cst_193 = arith.constant dense<0.000000e+00> : vector<512x16xf32>
    %325 = tpu.matmul %294, %319, %cst_193 {dimension_numbers = #tpu.dot_dimension_numbers<[1], [0], [0], [1], [0, 0, 1, 1], [], []>} : vector<512x16xf32>, vector<16x16xf32>, vector<512x16xf32> -> vector<512x16xf32>
    %326 = vector.broadcast %324 : vector<1x16xf32> to vector<512x16xf32>
    %327 = arith.addf %325, %326 : vector<512x16xf32>
    %328 = vector.shape_cast %327 : vector<512x16xf32> to vector<2x16x16x16xf32>
    %cst_194 = arith.constant 0.000000e+00 : f32
    %329 = vector.broadcast %cst_194 : f32 to vector<2x16x16x16xf32>
    %330 = arith.cmpf oge, %328, %329 : vector<2x16x16x16xf32>
    %cst_195 = arith.constant 0.00999999977 : f32
    %331 = vector.broadcast %cst_195 : f32 to vector<2x16x16x16xf32>
    %332 = arith.mulf %331, %328 : vector<2x16x16x16xf32>
    %333 = arith.select %330, %328, %332 : vector<2x16x16x16xi1>, vector<2x16x16x16xf32>
    %334 = vector.shape_cast %333 : vector<2x16x16x16xf32> to vector<512x16xf32>
    %c0_196 = arith.constant 0 : index
    %c0_197 = arith.constant 0 : index
    %335 = vector.load %arg21[%c0_196, %c0_197] : memref<1x16xf32, #tpu.memory_space<vmem>>, vector<1x16xf32>
    %c0_198 = arith.constant 0 : index
    %c0_199 = arith.constant 0 : index
    %336 = vector.load %arg22[%c0_198, %c0_199] : memref<1x16xf32, #tpu.memory_space<vmem>>, vector<1x16xf32>
    %cst_200 = arith.constant dense<0.000000e+00> : vector<16xf32>
    %337 = vector.multi_reduction <add>, %334, %cst_200 [0] : vector<512x16xf32> to vector<16xf32>
    %338 = vector.shape_cast %337 : vector<16xf32> to vector<1x16xf32>
    %339 = arith.mulf %334, %334 : vector<512x16xf32>
    %cst_201 = arith.constant dense<0.000000e+00> : vector<16xf32>
    %340 = vector.multi_reduction <add>, %339, %cst_201 [0] : vector<512x16xf32> to vector<16xf32>
    %341 = vector.shape_cast %340 : vector<16xf32> to vector<1x16xf32>
    %cst_202 = arith.constant 0.001953125 : f32
    %342 = vector.broadcast %cst_202 : f32 to vector<1x16xf32>
    %343 = arith.mulf %338, %342 : vector<1x16xf32>
    %cst_203 = arith.constant 0.001953125 : f32
    %344 = vector.broadcast %cst_203 : f32 to vector<1x16xf32>
    %345 = arith.mulf %341, %344 : vector<1x16xf32>
    %346 = arith.mulf %343, %343 : vector<1x16xf32>
    %347 = arith.subf %345, %346 : vector<1x16xf32>
    %cst_204 = arith.constant 9.99999974E-6 : f32
    %348 = vector.broadcast %cst_204 : f32 to vector<1x16xf32>
    %349 = arith.addf %347, %348 : vector<1x16xf32>
    %350 = math.rsqrt %349 : vector<1x16xf32>
    %351 = arith.mulf %350, %335 : vector<1x16xf32>
    %352 = arith.mulf %343, %351 : vector<1x16xf32>
    %353 = arith.subf %336, %352 : vector<1x16xf32>
    %354 = vector.shape_cast %351 : vector<1x16xf32> to vector<1x1x1x16xf32>
    %355 = vector.broadcast %354 : vector<1x1x1x16xf32> to vector<2x16x16x16xf32>
    %356 = arith.mulf %333, %355 : vector<2x16x16x16xf32>
    %357 = arith.addf %57, %356 : vector<2x16x16x16xf32>
    %358 = vector.shape_cast %353 : vector<1x16xf32> to vector<1x1x1x16xf32>
    %359 = vector.broadcast %358 : vector<1x1x1x16xf32> to vector<2x16x16x16xf32>
    %360 = arith.addf %357, %359 : vector<2x16x16x16xf32>
    %c0_205 = arith.constant 0 : index
    %c0_206 = arith.constant 0 : index
    %c0_207 = arith.constant 0 : index
    %c0_208 = arith.constant 0 : index
    %361 = vector.load %arg23[%c0_205, %c0_206, %c0_207, %c0_208] : memref<2x16x16x16xf32, #tpu.memory_space<vmem>>, vector<2x16x16x16xf32>
    tpu.vector_store %arg23[%c0_205, %c0_206, %c0_207, %c0_208], %360 {strides = array<i32>} : memref<2x16x16x16xf32, #tpu.memory_space<vmem>>, vector<2x16x16x16xf32>,
    return
  }
}

</mosaic_0001>

<llo_original>
// kernel: tpu_custom_call.1
$region0: #{tpu_custom_call.1}
  #allocation0 [shape = 'u32[]', space=smem, size = 0x4, offset = 0x4, fixed_abs, tag = 'smem constant byte address 0x4 - core index']
  #allocation1 [shape = 'u32[144,128]{1,0:T(1,128)}', space=vmem, size = 0x12000, scoped, tag = 'internal scratch']
  #allocation2 [shape = 'f32[2,20,20,16]{3,2,1,0:T(8,128)}', space=vmem, size = 0x78000, scoped, tag = 'scratch operand']
  %s0 = inlined_call_operand.vmem [shape: f32[2,16,16,8], index: 0, kind: input, shape index: {}]
  %s1 = inlined_call_operand.vmem [shape: f32[1,8], index: 1, kind: input, shape index: {}]
  %s2 = inlined_call_operand.vmem [shape: f32[1,8], index: 2, kind: input, shape index: {}]
  %s3 = inlined_call_operand.vmem [shape: f32[1,8], index: 3, kind: input, shape index: {}]
  %s4 = inlined_call_operand.vmem [shape: f32[1,8], index: 4, kind: input, shape index: {}]
  %s5 = inlined_call_operand.vmem [shape: f32[8,16], index: 5, kind: input, shape index: {}]
  %s6 = inlined_call_operand.vmem [shape: f32[1,16], index: 6, kind: input, shape index: {}]
  %s7 = inlined_call_operand.vmem [shape: f32[9,16], index: 7, kind: input, shape index: {}]
  %s8 = inlined_call_operand.vmem [shape: f32[1,16], index: 8, kind: input, shape index: {}]
  %s9 = inlined_call_operand.vmem [shape: f32[1,16], index: 9, kind: input, shape index: {}]
  %s10 = inlined_call_operand.vmem [shape: f32[1,16], index: 10, kind: input, shape index: {}]
  %s11 = inlined_call_operand.vmem [shape: f32[16,16], index: 11, kind: input, shape index: {}]
  %s12 = inlined_call_operand.vmem [shape: f32[1,16], index: 12, kind: input, shape index: {}]
  %s13 = inlined_call_operand.vmem [shape: f32[9,16], index: 13, kind: input, shape index: {}]
  %s14 = inlined_call_operand.vmem [shape: f32[1,16], index: 14, kind: input, shape index: {}]
  %s15 = inlined_call_operand.vmem [shape: f32[1,16], index: 15, kind: input, shape index: {}]
  %s16 = inlined_call_operand.vmem [shape: f32[1,16], index: 16, kind: input, shape index: {}]
  %s17 = inlined_call_operand.vmem [shape: f32[16,16], index: 17, kind: input, shape index: {}]
  %s18 = inlined_call_operand.vmem [shape: f32[1,16], index: 18, kind: input, shape index: {}]
  %s19 = inlined_call_operand.vmem [shape: f32[1,16], index: 19, kind: input, shape index: {}]
  %s20 = inlined_call_operand.vmem [shape: f32[1,16], index: 20, kind: input, shape index: {}]
  %s21 = inlined_call_operand.vmem [shape: f32[1,16], index: 21, kind: input, shape index: {}]
  %s22 = inlined_call_operand.vmem [shape: f32[1,16], index: 22, kind: input, shape index: {}]
  %s23 = inlined_call_operand.hbm [shape: f32[2,16,16,16], index: 23, kind: output, shape index: {}]
  %s24 = sld [smem:[#allocation0]]
  $region102: #{tpu_custom_call.1} parent=0
    _
  %s26 = ssub.s32 1, %s24
  %s27 = scalar_select 0, %s26, %s24
  $region1: #{tpu_custom_call.1} parent=0
    #allocation3 [shape = 'u8[262144]{0}', space=vmem, size = 0x40000, scoped, tag = 'output window, operand 0, single buffered']
    #allocation4 [shape = 's32[1]{0}', space=sflag, size = 0x4, scoped, tag = 'scoped memory for tpu_custom_call.1']
    %28 = vsyncpa [#allocation4], 0
    // Predicated region
    $region2: #{tpu_custom_call.1} parent=1 // pred_check
      _
    $region3: #{tpu_custom_call.1} parent=1 // pred_check_branch
      %30 = sbr.rel (0) target = $region5
    $region4: #{tpu_custom_call.1} parent=1 // pred_region
      _
    $region5: #{tpu_custom_call.1} parent=1 // pred_fallthru
      _
    // Predicated region
    $region6: #{tpu_custom_call.1} parent=1 // pred_check
      _
    $region7: #{tpu_custom_call.1} parent=1 // pred_check_branch
      %32 = sbr.rel (0) target = $region9
    $region8: #{tpu_custom_call.1} parent=1 // pred_region
      _
    $region9: #{tpu_custom_call.1} parent=1 // pred_fallthru
      _
    // Predicated region
    $region10: #{tpu_custom_call.1} parent=1 // pred_check
      _
    $region11: #{tpu_custom_call.1} parent=1 // pred_check_branch
      %34 = sbr.rel (0) target = $region13
    $region12: #{tpu_custom_call.1} parent=1 // pred_region
      _
    $region13: #{tpu_custom_call.1} parent=1 // pred_fallthru
      _
    // Predicated region
    $region14: #{tpu_custom_call.1} parent=1 // pred_check
      _
    $region15: #{tpu_custom_call.1} parent=1 // pred_check_branch
      %36 = sbr.rel (0) target = $region17
    $region16: #{tpu_custom_call.1} parent=1 // pred_region
      _
    $region17: #{tpu_custom_call.1} parent=1 // pred_fallthru
      _
    // Predicated region
    $region18: #{tpu_custom_call.1} parent=1 // pred_check
      _
    $region19: #{tpu_custom_call.1} parent=1 // pred_check_branch
      %38 = sbr.rel (0) target = $region21
    $region20: #{tpu_custom_call.1} parent=1 // pred_region
      _
    $region21: #{tpu_custom_call.1} parent=1 // pred_fallthru
      _
    // Predicated region
    $region22: #{tpu_custom_call.1} parent=1 // pred_check
      _
    $region23: #{tpu_custom_call.1} parent=1 // pred_check_branch
      %40 = sbr.rel (0) target = $region25
    $region24: #{tpu_custom_call.1} parent=1 // pred_region
      _
    $region25: #{tpu_custom_call.1} parent=1 // pred_fallthru
      _
    // Predicated region
    $region26: #{tpu_custom_call.1} parent=1 // pred_check
      _
    $region27: #{tpu_custom_call.1} parent=1 // pred_check_branch
      %42 = sbr.rel (0) target = $region29
    $region28: #{tpu_custom_call.1} parent=1 // pred_region
      _
    $region29: #{tpu_custom_call.1} parent=1 // pred_fallthru
      _
    // Predicated region
    $region30: #{tpu_custom_call.1} parent=1 // pred_check
      _
    $region31: #{tpu_custom_call.1} parent=1 // pred_check_branch
      %44 = sbr.rel (0) target = $region33
    $region32: #{tpu_custom_call.1} parent=1 // pred_region
      _
    $region33: #{tpu_custom_call.1} parent=1 // pred_fallthru
      _
    // Predicated region
    $region34: #{tpu_custom_call.1} parent=1 // pred_check
      _
    $region35: #{tpu_custom_call.1} parent=1 // pred_check_branch
      %46 = sbr.rel (0) target = $region37
    $region36: #{tpu_custom_call.1} parent=1 // pred_region
      _
    $region37: #{tpu_custom_call.1} parent=1 // pred_fallthru
      _
    // Predicated region
    $region38: #{tpu_custom_call.1} parent=1 // pred_check
      _
    $region39: #{tpu_custom_call.1} parent=1 // pred_check_branch
      %48 = sbr.rel (0) target = $region41
    $region40: #{tpu_custom_call.1} parent=1 // pred_region
      _
    $region41: #{tpu_custom_call.1} parent=1 // pred_fallthru
      _
    // Predicated region
    $region42: #{tpu_custom_call.1} parent=1 // pred_check
      _
    $region43: #{tpu_custom_call.1} parent=1 // pred_check_branch
      %50 = sbr.rel (0) target = $region45
    $region44: #{tpu_custom_call.1} parent=1 // pred_region
      _
    $region45: #{tpu_custom_call.1} parent=1 // pred_fallthru
      _
    // Predicated region
    $region46: #{tpu_custom_call.1} parent=1 // pred_check
      _
    $region47: #{tpu_custom_call.1} parent=1 // pred_check_branch
      %52 = sbr.rel (0) target = $region49
    $region48: #{tpu_custom_call.1} parent=1 // pred_region
      _
    $region49: #{tpu_custom_call.1} parent=1 // pred_fallthru
      _
    // Predicated region
    $region50: #{tpu_custom_call.1} parent=1 // pred_check
      _
    $region51: #{tpu_custom_call.1} parent=1 // pred_check_branch
      %54 = sbr.rel (0) target = $region53
    $region52: #{tpu_custom_call.1} parent=1 // pred_region
      _
    $region53: #{tpu_custom_call.1} parent=1 // pred_fallthru
      _
    // Predicated region
    $region54: #{tpu_custom_call.1} parent=1 // pred_check
      _
    $region55: #{tpu_custom_call.1} parent=1 // pred_check_branch
      %56 = sbr.rel (0) target = $region57
    $region56: #{tpu_custom_call.1} parent=1 // pred_region
      _
    $region57: #{tpu_custom_call.1} parent=1 // pred_fallthru
      _
    // Predicated region
    $region58: #{tpu_custom_call.1} parent=1 // pred_check
      _
    $region59: #{tpu_custom_call.1} parent=1 // pred_check_branch
      %58 = sbr.rel (0) target = $region61
    $region60: #{tpu_custom_call.1} parent=1 // pred_region
      _
    $region61: #{tpu_custom_call.1} parent=1 // pred_fallthru
      _
    // Predicated region
    $region62: #{tpu_custom_call.1} parent=1 // pred_check
      _
    $region63: #{tpu_custom_call.1} parent=1 // pred_check_branch
      %60 = sbr.rel (0) target = $region65
    $region64: #{tpu_custom_call.1} parent=1 // pred_region
      _
    $region65: #{tpu_custom_call.1} parent=1 // pred_fallthru
      _
    // Predicated region
    $region66: #{tpu_custom_call.1} parent=1 // pred_check
      _
    $region67: #{tpu_custom_call.1} parent=1 // pred_check_branch
      %62 = sbr.rel (0) target = $region69
    $region68: #{tpu_custom_call.1} parent=1 // pred_region
      _
    $region69: #{tpu_custom_call.1} parent=1 // pred_fallthru
      _
    // Predicated region
    $region70: #{tpu_custom_call.1} parent=1 // pred_check
      _
    $region71: #{tpu_custom_call.1} parent=1 // pred_check_branch
      %64 = sbr.rel (0) target = $region73
    $region72: #{tpu_custom_call.1} parent=1 // pred_region
      _
    $region73: #{tpu_custom_call.1} parent=1 // pred_fallthru
      _
    // Predicated region
    $region74: #{tpu_custom_call.1} parent=1 // pred_check
      _
    $region75: #{tpu_custom_call.1} parent=1 // pred_check_branch
      %66 = sbr.rel (0) target = $region77
    $region76: #{tpu_custom_call.1} parent=1 // pred_region
      _
    $region77: #{tpu_custom_call.1} parent=1 // pred_fallthru
      _
    // Predicated region
    $region78: #{tpu_custom_call.1} parent=1 // pred_check
      _
    $region79: #{tpu_custom_call.1} parent=1 // pred_check_branch
      %68 = sbr.rel (0) target = $region81
    $region80: #{tpu_custom_call.1} parent=1 // pred_region
      _
    $region81: #{tpu_custom_call.1} parent=1 // pred_fallthru
      _
    // Predicated region
    $region82: #{tpu_custom_call.1} parent=1 // pred_check
      _
    $region83: #{tpu_custom_call.1} parent=1 // pred_check_branch
      %70 = sbr.rel (0) target = $region85
    $region84: #{tpu_custom_call.1} parent=1 // pred_region
      _
    $region85: #{tpu_custom_call.1} parent=1 // pred_fallthru
      _
    // Predicated region
    $region86: #{tpu_custom_call.1} parent=1 // pred_check
      _
    $region87: #{tpu_custom_call.1} parent=1 // pred_check_branch
      %72 = sbr.rel (0) target = $region89
    $region88: #{tpu_custom_call.1} parent=1 // pred_region
      _
    $region89: #{tpu_custom_call.1} parent=1 // pred_fallthru
      _
    // Predicated region
    $region90: #{tpu_custom_call.1} parent=1 // pred_check
      _
    $region91: #{tpu_custom_call.1} parent=1 // pred_check_branch
      %74 = sbr.rel (0) target = $region93
    $region92: #{tpu_custom_call.1} parent=1 // pred_region
      _
    $region93: #{tpu_custom_call.1} parent=1 // pred_fallthru
      _
    %v75 = vld [vmem:[%s0] sm:$0xff]
    %v76 = vld [vmem:[%s0 + $0x8] sm:$0xff]
    %v77 = vld [vmem:[%s0 + $0x10] sm:$0xff]
    %v78 = vld [vmem:[%s0 + $0x18] sm:$0xff]
    %v79 = vld [vmem:[%s0 + $0x20] sm:$0xff]
    %v80 = vld [vmem:[%s0 + $0x28] sm:$0xff]
    %v81 = vld [vmem:[%s0 + $0x30] sm:$0xff]
    %v82 = vld [vmem:[%s0 + $0x38] sm:$0xff]
    %v83 = vld [vmem:[%s0 + $0x40] sm:$0xff]
    %v84 = vld [vmem:[%s0 + $0x48] sm:$0xff]
    %v85 = vld [vmem:[%s0 + $0x50] sm:$0xff]
    %v86 = vld [vmem:[%s0 + $0x58] sm:$0xff]
    %v87 = vld [vmem:[%s0 + $0x60] sm:$0xff]
    %v88 = vld [vmem:[%s0 + $0x68] sm:$0xff]
    %v89 = vld [vmem:[%s0 + $0x70] sm:$0xff]
    %v90 = vld [vmem:[%s0 + $0x78] sm:$0xff]
    %v91 = vld [vmem:[%s0 + $0x80] sm:$0xff]
    %v92 = vld [vmem:[%s0 + $0x88] sm:$0xff]
    %v93 = vld [vmem:[%s0 + $0x90] sm:$0xff]
    %v94 = vld [vmem:[%s0 + $0x98] sm:$0xff]
    %v95 = vld [vmem:[%s0 + $0xa0] sm:$0xff]
    %v96 = vld [vmem:[%s0 + $0xa8] sm:$0xff]
    %v97 = vld [vmem:[%s0 + $0xb0] sm:$0xff]
    %v98 = vld [vmem:[%s0 + $0xb8] sm:$0xff]
    %v99 = vld [vmem:[%s0 + $0xc0] sm:$0xff]
    %v100 = vld [vmem:[%s0 + $0xc8] sm:$0xff]
    %v101 = vld [vmem:[%s0 + $0xd0] sm:$0xff]
    %v102 = vld [vmem:[%s0 + $0xd8] sm:$0xff]
    %v103 = vld [vmem:[%s0 + $0xe0] sm:$0xff]
    %v104 = vld [vmem:[%s0 + $0xe8] sm:$0xff]
    %v105 = vld [vmem:[%s0 + $0xf0] sm:$0xff]
    %v106 = vld [vmem:[%s0 + $0xf8] sm:$0xff]
    %v107 = vld [vmem:[%s0 + $0x100] sm:$0xff]
    %v108 = vld [vmem:[%s0 + $0x108] sm:$0xff]
    %v109 = vld [vmem:[%s0 + $0x110] sm:$0xff]
    %v110 = vld [vmem:[%s0 + $0x118] sm:$0xff]
    %v111 = vld [vmem:[%s0 + $0x120] sm:$0xff]
    %v112 = vld [vmem:[%s0 + $0x128] sm:$0xff]
    %v113 = vld [vmem:[%s0 + $0x130] sm:$0xff]
    %v114 = vld [vmem:[%s0 + $0x138] sm:$0xff]
    %v115 = vld [vmem:[%s0 + $0x140] sm:$0xff]
    %v116 = vld [vmem:[%s0 + $0x148] sm:$0xff]
    %v117 = vld [vmem:[%s0 + $0x150] sm:$0xff]
    %v118 = vld [vmem:[%s0 + $0x158] sm:$0xff]
    %v119 = vld [vmem:[%s0 + $0x160] sm:$0xff]
    %v120 = vld [vmem:[%s0 + $0x168] sm:$0xff]
    %v121 = vld [vmem:[%s0 + $0x170] sm:$0xff]
    %v122 = vld [vmem:[%s0 + $0x178] sm:$0xff]
    %v123 = vld [vmem:[%s0 + $0x180] sm:$0xff]
    %v124 = vld [vmem:[%s0 + $0x188] sm:$0xff]
    %v125 = vld [vmem:[%s0 + $0x190] sm:$0xff]
    %v126 = vld [vmem:[%s0 + $0x198] sm:$0xff]
    %v127 = vld [vmem:[%s0 + $0x1a0] sm:$0xff]
    %v128 = vld [vmem:[%s0 + $0x1a8] sm:$0xff]
    %v129 = vld [vmem:[%s0 + $0x1b0] sm:$0xff]
    %v130 = vld [vmem:[%s0 + $0x1b8] sm:$0xff]
    %v131 = vld [vmem:[%s0 + $0x1c0] sm:$0xff]
    %v132 = vld [vmem:[%s0 + $0x1c8] sm:$0xff]
    %v133 = vld [vmem:[%s0 + $0x1d0] sm:$0xff]
    %v134 = vld [vmem:[%s0 + $0x1d8] sm:$0xff]
    %v135 = vld [vmem:[%s0 + $0x1e0] sm:$0xff]
    %v136 = vld [vmem:[%s0 + $0x1e8] sm:$0xff]
    %v137 = vld [vmem:[%s0 + $0x1f0] sm:$0xff]
    %v138 = vld [vmem:[%s0 + $0x1f8] sm:$0xff]
    %v139 = vld [vmem:[%s1] sm:$0x1]
    %v141 = vlaneseq
    %v142 = vshrl.u32 %v141, 7
    %v143 = vsub.s32 0, %v142
    %v144 = vrot.slane %v139, %v143
    %v146 = vmul.f32 %v75, %v144
    %v147 = vmul.f32 %v76, %v144
    %v148 = vmul.f32 %v77, %v144
    %v149 = vmul.f32 %v78, %v144
    %v150 = vmul.f32 %v79, %v144
    %v151 = vmul.f32 %v80, %v144
    %v152 = vmul.f32 %v81, %v144
    %v153 = vmul.f32 %v82, %v144
    %v154 = vmul.f32 %v83, %v144
    %v155 = vmul.f32 %v84, %v144
    %v156 = vmul.f32 %v85, %v144
    %v157 = vmul.f32 %v86, %v144
    %v158 = vmul.f32 %v87, %v144
    %v159 = vmul.f32 %v88, %v144
    %v160 = vmul.f32 %v89, %v144
    %v161 = vmul.f32 %v90, %v144
    %v162 = vmul.f32 %v91, %v144
    %v163 = vmul.f32 %v92, %v144
    %v164 = vmul.f32 %v93, %v144
    %v165 = vmul.f32 %v94, %v144
    %v166 = vmul.f32 %v95, %v144
    %v167 = vmul.f32 %v96, %v144
    %v168 = vmul.f32 %v97, %v144
    %v169 = vmul.f32 %v98, %v144
    %v170 = vmul.f32 %v99, %v144
    %v171 = vmul.f32 %v100, %v144
    %v172 = vmul.f32 %v101, %v144
    %v173 = vmul.f32 %v102, %v144
    %v174 = vmul.f32 %v103, %v144
    %v175 = vmul.f32 %v104, %v144
    %v176 = vmul.f32 %v105, %v144
    %v177 = vmul.f32 %v106, %v144
    %v178 = vmul.f32 %v107, %v144
    %v179 = vmul.f32 %v108, %v144
    %v180 = vmul.f32 %v109, %v144
    %v181 = vmul.f32 %v110, %v144
    %v182 = vmul.f32 %v111, %v144
    %v183 = vmul.f32 %v112, %v144
    %v184 = vmul.f32 %v113, %v144
    %v185 = vmul.f32 %v114, %v144
    %v186 = vmul.f32 %v115, %v144
    %v187 = vmul.f32 %v116, %v144
    %v188 = vmul.f32 %v117, %v144
    %v189 = vmul.f32 %v118, %v144
    %v190 = vmul.f32 %v119, %v144
    %v191 = vmul.f32 %v120, %v144
    %v192 = vmul.f32 %v121, %v144
    %v193 = vmul.f32 %v122, %v144
    %v194 = vmul.f32 %v123, %v144
    %v195 = vmul.f32 %v124, %v144
    %v196 = vmul.f32 %v125, %v144
    %v197 = vmul.f32 %v126, %v144
    %v198 = vmul.f32 %v127, %v144
    %v199 = vmul.f32 %v128, %v144
    %v200 = vmul.f32 %v129, %v144
    %v201 = vmul.f32 %v130, %v144
    %v202 = vmul.f32 %v131, %v144
    %v203 = vmul.f32 %v132, %v144
    %v204 = vmul.f32 %v133, %v144
    %v205 = vmul.f32 %v134, %v144
    %v206 = vmul.f32 %v135, %v144
    %v207 = vmul.f32 %v136, %v144
    %v208 = vmul.f32 %v137, %v144
    %v209 = vmul.f32 %v138, %v144
    %v210 = vld [vmem:[%s2] sm:$0x1]
    %v212 = vlaneseq
    %v213 = vshrl.u32 %v212, 7
    %v214 = vsub.s32 0, %v213
    %v215 = vrot.slane %v210, %v214
    %v217 = vadd.f32 %v146, %v215
    %v218 = vadd.f32 %v147, %v215
    %v219 = vadd.f32 %v148, %v215
    %v220 = vadd.f32 %v149, %v215
    %v221 = vadd.f32 %v150, %v215
    %v222 = vadd.f32 %v151, %v215
    %v223 = vadd.f32 %v152, %v215
    %v224 = vadd.f32 %v153, %v215
    %v225 = vadd.f32 %v154, %v215
    %v226 = vadd.f32 %v155, %v215
    %v227 = vadd.f32 %v156, %v215
    %v228 = vadd.f32 %v157, %v215
    %v229 = vadd.f32 %v158, %v215
    %v230 = vadd.f32 %v159, %v215
    %v231 = vadd.f32 %v160, %v215
    %v232 = vadd.f32 %v161, %v215
    %v233 = vadd.f32 %v162, %v215
    %v234 = vadd.f32 %v163, %v215
    %v235 = vadd.f32 %v164, %v215
    %v236 = vadd.f32 %v165, %v215
    %v237 = vadd.f32 %v166, %v215
    %v238 = vadd.f32 %v167, %v215
    %v239 = vadd.f32 %v168, %v215
    %v240 = vadd.f32 %v169, %v215
    %v241 = vadd.f32 %v170, %v215
    %v242 = vadd.f32 %v171, %v215
    %v243 = vadd.f32 %v172, %v215
    %v244 = vadd.f32 %v173, %v215
    %v245 = vadd.f32 %v174, %v215
    %v246 = vadd.f32 %v175, %v215
    %v247 = vadd.f32 %v176, %v215
    %v248 = vadd.f32 %v177, %v215
    %v249 = vadd.f32 %v178, %v215
    %v250 = vadd.f32 %v179, %v215
    %v251 = vadd.f32 %v180, %v215
    %v252 = vadd.f32 %v181, %v215
    %v253 = vadd.f32 %v182, %v215
    %v254 = vadd.f32 %v183, %v215
    %v255 = vadd.f32 %v184, %v215
    %v256 = vadd.f32 %v185, %v215
    %v257 = vadd.f32 %v186, %v215
    %v258 = vadd.f32 %v187, %v215
    %v259 = vadd.f32 %v188, %v215
    %v260 = vadd.f32 %v189, %v215
    %v261 = vadd.f32 %v190, %v215
    %v262 = vadd.f32 %v191, %v215
    %v263 = vadd.f32 %v192, %v215
    %v264 = vadd.f32 %v193, %v215
    %v265 = vadd.f32 %v194, %v215
    %v266 = vadd.f32 %v195, %v215
    %v267 = vadd.f32 %v196, %v215
    %v268 = vadd.f32 %v197, %v215
    %v269 = vadd.f32 %v198, %v215
    %v270 = vadd.f32 %v199, %v215
    %v271 = vadd.f32 %v200, %v215
    %v272 = vadd.f32 %v201, %v215
    %v273 = vadd.f32 %v202, %v215
    %v274 = vadd.f32 %v203, %v215
    %v275 = vadd.f32 %v204, %v215
    %v276 = vadd.f32 %v205, %v215
    %v277 = vadd.f32 %v206, %v215
    %v278 = vadd.f32 %v207, %v215
    %v279 = vadd.f32 %v208, %v215
    %v280 = vadd.f32 %v209, %v215
    %vm281 = vcmp.ge.f32.partialorder %v217, 0.0
    %vm282 = vcmp.ge.f32.partialorder %v218, 0.0
    %vm283 = vcmp.ge.f32.partialorder %v219, 0.0
    %vm284 = vcmp.ge.f32.partialorder %v220, 0.0
    %vm285 = vcmp.ge.f32.partialorder %v221, 0.0
    %vm286 = vcmp.ge.f32.partialorder %v222, 0.0
    %vm287 = vcmp.ge.f32.partialorder %v223, 0.0
    %vm288 = vcmp.ge.f32.partialorder %v224, 0.0
    %vm289 = vcmp.ge.f32.partialorder %v225, 0.0
    %vm290 = vcmp.ge.f32.partialorder %v226, 0.0
    %vm291 = vcmp.ge.f32.partialorder %v227, 0.0
    %vm292 = vcmp.ge.f32.partialorder %v228, 0.0
    %vm293 = vcmp.ge.f32.partialorder %v229, 0.0
    %vm294 = vcmp.ge.f32.partialorder %v230, 0.0
    %vm295 = vcmp.ge.f32.partialorder %v231, 0.0
    %vm296 = vcmp.ge.f32.partialorder %v232, 0.0
    %vm297 = vcmp.ge.f32.partialorder %v233, 0.0
    %vm298 = vcmp.ge.f32.partialorder %v234, 0.0
    %vm299 = vcmp.ge.f32.partialorder %v235, 0.0
    %vm300 = vcmp.ge.f32.partialorder %v236, 0.0
    %vm301 = vcmp.ge.f32.partialorder %v237, 0.0
    %vm302 = vcmp.ge.f32.partialorder %v238, 0.0
    %vm303 = vcmp.ge.f32.partialorder %v239, 0.0
    %vm304 = vcmp.ge.f32.partialorder %v240, 0.0
    %vm305 = vcmp.ge.f32.partialorder %v241, 0.0
    %vm306 = vcmp.ge.f32.partialorder %v242, 0.0
    %vm307 = vcmp.ge.f32.partialorder %v243, 0.0
    %vm308 = vcmp.ge.f32.partialorder %v244, 0.0
    %vm309 = vcmp.ge.f32.partialorder %v245, 0.0
    %vm310 = vcmp.ge.f32.partialorder %v246, 0.0
    %vm311 = vcmp.ge.f32.partialorder %v247, 0.0
    %vm312 = vcmp.ge.f32.partialorder %v248, 0.0
    %vm313 = vcmp.ge.f32.partialorder %v249, 0.0
    %vm314 = vcmp.ge.f32.partialorder %v250, 0.0
    %vm315 = vcmp.ge.f32.partialorder %v251, 0.0
    %vm316 = vcmp.ge.f32.partialorder %v252, 0.0
    %vm317 = vcmp.ge.f32.partialorder %v253, 0.0
    %vm318 = vcmp.ge.f32.partialorder %v254, 0.0
    %vm319 = vcmp.ge.f32.partialorder %v255, 0.0
    %vm320 = vcmp.ge.f32.partialorder %v256, 0.0
    %vm321 = vcmp.ge.f32.partialorder %v257, 0.0
    %vm322 = vcmp.ge.f32.partialorder %v258, 0.0
    %vm323 = vcmp.ge.f32.partialorder %v259, 0.0
    %vm324 = vcmp.ge.f32.partialorder %v260, 0.0
    %vm325 = vcmp.ge.f32.partialorder %v261, 0.0
    %vm326 = vcmp.ge.f32.partialorder %v262, 0.0
    %vm327 = vcmp.ge.f32.partialorder %v263, 0.0
    %vm328 = vcmp.ge.f32.partialorder %v264, 0.0
    %vm329 = vcmp.ge.f32.partialorder %v265, 0.0
    %vm330 = vcmp.ge.f32.partialorder %v266, 0.0
    %vm331 = vcmp.ge.f32.partialorder %v267, 0.0
    %vm332 = vcmp.ge.f32.partialorder %v268, 0.0
    %vm333 = vcmp.ge.f32.partialorder %v269, 0.0
    %vm334 = vcmp.ge.f32.partialorder %v270, 0.0
    %vm335 = vcmp.ge.f32.partialorder %v271, 0.0
    %vm336 = vcmp.ge.f32.partialorder %v272, 0.0
    %vm337 = vcmp.ge.f32.partialorder %v273, 0.0
    %vm338 = vcmp.ge.f32.partialorder %v274, 0.0
    %vm339 = vcmp.ge.f32.partialorder %v275, 0.0
    %vm340 = vcmp.ge.f32.partialorder %v276, 0.0
    %vm341 = vcmp.ge.f32.partialorder %v277, 0.0
    %vm342 = vcmp.ge.f32.partialorder %v278, 0.0
    %vm343 = vcmp.ge.f32.partialorder %v279, 0.0
    %vm344 = vcmp.ge.f32.partialorder %v280, 0.0
    %v345 = vmul.f32 %v217, 0.01
    %v346 = vmul.f32 %v218, 0.01
    %v347 = vmul.f32 %v219, 0.01
    %v348 = vmul.f32 %v220, 0.01
    %v349 = vmul.f32 %v221, 0.01
    %v350 = vmul.f32 %v222, 0.01
    %v351 = vmul.f32 %v223, 0.01
    %v352 = vmul.f32 %v224, 0.01
    %v353 = vmul.f32 %v225, 0.01
    %v354 = vmul.f32 %v226, 0.01
    %v355 = vmul.f32 %v227, 0.01
    %v356 = vmul.f32 %v228, 0.01
    %v357 = vmul.f32 %v229, 0.01
    %v358 = vmul.f32 %v230, 0.01
    %v359 = vmul.f32 %v231, 0.01
    %v360 = vmul.f32 %v232, 0.01
    %v361 = vmul.f32 %v233, 0.01
    %v362 = vmul.f32 %v234, 0.01
    %v363 = vmul.f32 %v235, 0.01
    %v364 = vmul.f32 %v236, 0.01
    %v365 = vmul.f32 %v237, 0.01
    %v366 = vmul.f32 %v238, 0.01
    %v367 = vmul.f32 %v239, 0.01
    %v368 = vmul.f32 %v240, 0.01
    %v369 = vmul.f32 %v241, 0.01
    %v370 = vmul.f32 %v242, 0.01
    %v371 = vmul.f32 %v243, 0.01
    %v372 = vmul.f32 %v244, 0.01
    %v373 = vmul.f32 %v245, 0.01
    %v374 = vmul.f32 %v246, 0.01
    %v375 = vmul.f32 %v247, 0.01
    %v376 = vmul.f32 %v248, 0.01
    %v377 = vmul.f32 %v249, 0.01
    %v378 = vmul.f32 %v250, 0.01
    %v379 = vmul.f32 %v251, 0.01
    %v380 = vmul.f32 %v252, 0.01
    %v381 = vmul.f32 %v253, 0.01
    %v382 = vmul.f32 %v254, 0.01
    %v383 = vmul.f32 %v255, 0.01
    %v384 = vmul.f32 %v256, 0.01
    %v385 = vmul.f32 %v257, 0.01
    %v386 = vmul.f32 %v258, 0.01
    %v387 = vmul.f32 %v259, 0.01
    %v388 = vmul.f32 %v260, 0.01
    %v389 = vmul.f32 %v261, 0.01
    %v390 = vmul.f32 %v262, 0.01
    %v391 = vmul.f32 %v263, 0.01
    %v392 = vmul.f32 %v264, 0.01
    %v393 = vmul.f32 %v265, 0.01
    %v394 = vmul.f32 %v266, 0.01
    %v395 = vmul.f32 %v267, 0.01
    %v396 = vmul.f32 %v268, 0.01
    %v397 = vmul.f32 %v269, 0.01
    %v398 = vmul.f32 %v270, 0.01
    %v399 = vmul.f32 %v271, 0.01
    %v400 = vmul.f32 %v272, 0.01
    %v401 = vmul.f32 %v273, 0.01
    %v402 = vmul.f32 %v274, 0.01
    %v403 = vmul.f32 %v275, 0.01
    %v404 = vmul.f32 %v276, 0.01
    %v405 = vmul.f32 %v277, 0.01
    %v406 = vmul.f32 %v278, 0.01
    %v407 = vmul.f32 %v279, 0.01
    %v408 = vmul.f32 %v280, 0.01
    %v409 = vsel %vm281, %v217, %v345
    %v410 = vsel %vm282, %v218, %v346
    %v411 = vsel %vm283, %v219, %v347
    %v412 = vsel %vm284, %v220, %v348
    %v413 = vsel %vm285, %v221, %v349
    %v414 = vsel %vm286, %v222, %v350
    %v415 = vsel %vm287, %v223, %v351
    %v416 = vsel %vm288, %v224, %v352
    %v417 = vsel %vm289, %v225, %v353
    %v418 = vsel %vm290, %v226, %v354
    %v419 = vsel %vm291, %v227, %v355
    %v420 = vsel %vm292, %v228, %v356
    %v421 = vsel %vm293, %v229, %v357
    %v422 = vsel %vm294, %v230, %v358
    %v423 = vsel %vm295, %v231, %v359
    %v424 = vsel %vm296, %v232, %v360
    %v425 = vsel %vm297, %v233, %v361
    %v426 = vsel %vm298, %v234, %v362
    %v427 = vsel %vm299, %v235, %v363
    %v428 = vsel %vm300, %v236, %v364
    %v429 = vsel %vm301, %v237, %v365
    %v430 = vsel %vm302, %v238, %v366
    %v431 = vsel %vm303, %v239, %v367
    %v432 = vsel %vm304, %v240, %v368
    %v433 = vsel %vm305, %v241, %v369
    %v434 = vsel %vm306, %v242, %v370
    %v435 = vsel %vm307, %v243, %v371
    %v436 = vsel %vm308, %v244, %v372
    %v437 = vsel %vm309, %v245, %v373
    %v438 = vsel %vm310, %v246, %v374
    %v439 = vsel %vm311, %v247, %v375
    %v440 = vsel %vm312, %v248, %v376
    %v441 = vsel %vm313, %v249, %v377
    %v442 = vsel %vm314, %v250, %v378
    %v443 = vsel %vm315, %v251, %v379
    %v444 = vsel %vm316, %v252, %v380
    %v445 = vsel %vm317, %v253, %v381
    %v446 = vsel %vm318, %v254, %v382
    %v447 = vsel %vm319, %v255, %v383
    %v448 = vsel %vm320, %v256, %v384
    %v449 = vsel %vm321, %v257, %v385
    %v450 = vsel %vm322, %v258, %v386
    %v451 = vsel %vm323, %v259, %v387
    %v452 = vsel %vm324, %v260, %v388
    %v453 = vsel %vm325, %v261, %v389
    %v454 = vsel %vm326, %v262, %v390
    %v455 = vsel %vm327, %v263, %v391
    %v456 = vsel %vm328, %v264, %v392
    %v457 = vsel %vm329, %v265, %v393
    %v458 = vsel %vm330, %v266, %v394
    %v459 = vsel %vm331, %v267, %v395
    %v460 = vsel %vm332, %v268, %v396
    %v461 = vsel %vm333, %v269, %v397
    %v462 = vsel %vm334, %v270, %v398
    %v463 = vsel %vm335, %v271, %v399
    %v464 = vsel %vm336, %v272, %v400
    %v465 = vsel %vm337, %v273, %v401
    %v466 = vsel %vm338, %v274, %v402
    %v467 = vsel %vm339, %v275, %v403
    %v468 = vsel %vm340, %v276, %v404
    %v469 = vsel %vm341, %v277, %v405
    %v470 = vsel %vm342, %v278, %v406
    %v471 = vsel %vm343, %v279, %v407
    %v472 = vsel %vm344, %v280, %v408
    %v473 = vld [vmem:[%s3] sm:$0x1]
    %v474 = vld [vmem:[%s4] sm:$0x1]
    %v475 = vld [vmem:[%s5] sm:$0xff]
    %v476 = vld [vmem:[%s6] sm:$0x1]
    %vm477 = vcmask 64512
    %v478 = vsel %vm477, %v409, 0.0
    %v479 = vsel %vm477, %v410, 0.0
    %v480 = vadd.f32 %v478, %v479
    %v481 = vsel %vm477, %v411, 0.0
    %v482 = vadd.f32 %v480, %v481
    %v483 = vsel %vm477, %v412, 0.0
    %v484 = vadd.f32 %v482, %v483
    %v485 = vsel %vm477, %v413, 0.0
    %v486 = vadd.f32 %v484, %v485
    %v487 = vsel %vm477, %v414, 0.0
    %v488 = vadd.f32 %v486, %v487
    %v489 = vsel %vm477, %v415, 0.0
    %v490 = vadd.f32 %v488, %v489
    %v491 = vsel %vm477, %v416, 0.0
    %v492 = vadd.f32 %v490, %v491
    %v493 = vsel %vm477, %v417, 0.0
    %v494 = vadd.f32 %v492, %v493
    %v495 = vsel %vm477, %v418, 0.0
    %v496 = vadd.f32 %v494, %v495
    %v497 = vsel %vm477, %v419, 0.0
    %v498 = vadd.f32 %v496, %v497
    %v499 = vsel %vm477, %v420, 0.0
    %v500 = vadd.f32 %v498, %v499
    %v501 = vsel %vm477, %v421, 0.0
    %v502 = vadd.f32 %v500, %v501
    %v503 = vsel %vm477, %v422, 0.0
    %v504 = vadd.f32 %v502, %v503
    %v505 = vsel %vm477, %v423, 0.0
    %v506 = vadd.f32 %v504, %v505
    %v507 = vsel %vm477, %v424, 0.0
    %v508 = vadd.f32 %v506, %v507
    %v509 = vsel %vm477, %v425, 0.0
    %v510 = vadd.f32 %v508, %v509
    %v511 = vsel %vm477, %v426, 0.0
    %v512 = vadd.f32 %v510, %v511
    %v513 = vsel %vm477, %v427, 0.0
    %v514 = vadd.f32 %v512, %v513
    %v515 = vsel %vm477, %v428, 0.0
    %v516 = vadd.f32 %v514, %v515
    %v517 = vsel %vm477, %v429, 0.0
    %v518 = vadd.f32 %v516, %v517
    %v519 = vsel %vm477, %v430, 0.0
    %v520 = vadd.f32 %v518, %v519
    %v521 = vsel %vm477, %v431, 0.0
    %v522 = vadd.f32 %v520, %v521
    %v523 = vsel %vm477, %v432, 0.0
    %v524 = vadd.f32 %v522, %v523
    %v525 = vsel %vm477, %v433, 0.0
    %v526 = vadd.f32 %v524, %v525
    %v527 = vsel %vm477, %v434, 0.0
    %v528 = vadd.f32 %v526, %v527
    %v529 = vsel %vm477, %v435, 0.0
    %v530 = vadd.f32 %v528, %v529
    %v531 = vsel %vm477, %v436, 0.0
    %v532 = vadd.f32 %v530, %v531
    %v533 = vsel %vm477, %v437, 0.0
    %v534 = vadd.f32 %v532, %v533
    %v535 = vsel %vm477, %v438, 0.0
    %v536 = vadd.f32 %v534, %v535
    %v537 = vsel %vm477, %v439, 0.0
    %v538 = vadd.f32 %v536, %v537
    %v539 = vsel %vm477, %v440, 0.0
    %v540 = vadd.f32 %v538, %v539
    %v541 = vsel %vm477, %v441, 0.0
    %v542 = vadd.f32 %v540, %v541
    %v543 = vsel %vm477, %v442, 0.0
    %v544 = vadd.f32 %v542, %v543
    %v545 = vsel %vm477, %v443, 0.0
    %v546 = vadd.f32 %v544, %v545
    %v547 = vsel %vm477, %v444, 0.0
    %v548 = vadd.f32 %v546, %v547
    %v549 = vsel %vm477, %v445, 0.0
    %v550 = vadd.f32 %v548, %v549
    %v551 = vsel %vm477, %v446, 0.0
    %v552 = vadd.f32 %v550, %v551
    %v553 = vsel %vm477, %v447, 0.0
    %v554 = vadd.f32 %v552, %v553
    %v555 = vsel %vm477, %v448, 0.0
    %v556 = vadd.f32 %v554, %v555
    %v557 = vsel %vm477, %v449, 0.0
    %v558 = vadd.f32 %v556, %v557
    %v559 = vsel %vm477, %v450, 0.0
    %v560 = vadd.f32 %v558, %v559
    %v561 = vsel %vm477, %v451, 0.0
    %v562 = vadd.f32 %v560, %v561
    %v563 = vsel %vm477, %v452, 0.0
    %v564 = vadd.f32 %v562, %v563
    %v565 = vsel %vm477, %v453, 0.0
    %v566 = vadd.f32 %v564, %v565
    %v567 = vsel %vm477, %v454, 0.0
    %v568 = vadd.f32 %v566, %v567
    %v569 = vsel %vm477, %v455, 0.0
    %v570 = vadd.f32 %v568, %v569
    %v571 = vsel %vm477, %v456, 0.0
    %v572 = vadd.f32 %v570, %v571
    %v573 = vsel %vm477, %v457, 0.0
    %v574 = vadd.f32 %v572, %v573
    %v575 = vsel %vm477, %v458, 0.0
    %v576 = vadd.f32 %v574, %v575
    %v577 = vsel %vm477, %v459, 0.0
    %v578 = vadd.f32 %v576, %v577
    %v579 = vsel %vm477, %v460, 0.0
    %v580 = vadd.f32 %v578, %v579
    %v581 = vsel %vm477, %v461, 0.0
    %v582 = vadd.f32 %v580, %v581
    %v583 = vsel %vm477, %v462, 0.0
    %v584 = vadd.f32 %v582, %v583
    %v585 = vsel %vm477, %v463, 0.0
    %v586 = vadd.f32 %v584, %v585
    %v587 = vsel %vm477, %v464, 0.0
    %v588 = vadd.f32 %v586, %v587
    %v589 = vsel %vm477, %v465, 0.0
    %v590 = vadd.f32 %v588, %v589
    %v591 = vsel %vm477, %v466, 0.0
    %v592 = vadd.f32 %v590, %v591
    %v593 = vsel %vm477, %v467, 0.0
    %v594 = vadd.f32 %v592, %v593
    %v595 = vsel %vm477, %v468, 0.0
    %v596 = vadd.f32 %v594, %v595
    %v597 = vsel %vm477, %v469, 0.0
    %v598 = vadd.f32 %v596, %v597
    %v599 = vsel %vm477, %v470, 0.0
    %v600 = vadd.f32 %v598, %v599
    %v601 = vsel %vm477, %v471, 0.0
    %v602 = vadd.f32 %v600, %v601
    %v603 = vsel %vm477, %v472, 0.0
    %v604 = vadd.f32 %v602, %v603
    %v605 = vrot.slane %v604, 4
    %v606 = vadd.f32 %v604, %v605
    %v607 = vrot.slane %v606, 2
    %v608 = vadd.f32 %v606, %v607
    %v609 = vrot.slane %v608, 1
    %v610 = vadd.f32 %v608, %v609
    %v611 = vmul.f32 %v409, %v409
    %v612 = vmul.f32 %v410, %v410
    %v613 = vmul.f32 %v411, %v411
    %v614 = vmul.f32 %v412, %v412
    %v615 = vmul.f32 %v413, %v413
    %v616 = vmul.f32 %v414, %v414
    %v617 = vmul.f32 %v415, %v415
    %v618 = vmul.f32 %v416, %v416
    %v619 = vmul.f32 %v417, %v417
    %v620 = vmul.f32 %v418, %v418
    %v621 = vmul.f32 %v419, %v419
    %v622 = vmul.f32 %v420, %v420
    %v623 = vmul.f32 %v421, %v421
    %v624 = vmul.f32 %v422, %v422
    %v625 = vmul.f32 %v423, %v423
    %v626 = vmul.f32 %v424, %v424
    %v627 = vmul.f32 %v425, %v425
    %v628 = vmul.f32 %v426, %v426
    %v629 = vmul.f32 %v427, %v427
    %v630 = vmul.f32 %v428, %v428
    %v631 = vmul.f32 %v429, %v429
    %v632 = vmul.f32 %v430, %v430
    %v633 = vmul.f32 %v431, %v431
    %v634 = vmul.f32 %v432, %v432
    %v635 = vmul.f32 %v433, %v433
    %v636 = vmul.f32 %v434, %v434
    %v637 = vmul.f32 %v435, %v435
    %v638 = vmul.f32 %v436, %v436
    %v639 = vmul.f32 %v437, %v437
    %v640 = vmul.f32 %v438, %v438
    %v641 = vmul.f32 %v439, %v439
    %v642 = vmul.f32 %v440, %v440
    %v643 = vmul.f32 %v441, %v441
    %v644 = vmul.f32 %v442, %v442
    %v645 = vmul.f32 %v443, %v443
    %v646 = vmul.f32 %v444, %v444
    %v647 = vmul.f32 %v445, %v445
    %v648 = vmul.f32 %v446, %v446
    %v649 = vmul.f32 %v447, %v447
    %v650 = vmul.f32 %v448, %v448
    %v651 = vmul.f32 %v449, %v449
    %v652 = vmul.f32 %v450, %v450
    %v653 = vmul.f32 %v451, %v451
    %v654 = vmul.f32 %v452, %v452
    %v655 = vmul.f32 %v453, %v453
    %v656 = vmul.f32 %v454, %v454
    %v657 = vmul.f32 %v455, %v455
    %v658 = vmul.f32 %v456, %v456
    %v659 = vmul.f32 %v457, %v457
    %v660 = vmul.f32 %v458, %v458
    %v661 = vmul.f32 %v459, %v459
    %v662 = vmul.f32 %v460, %v460
    %v663 = vmul.f32 %v461, %v461
    %v664 = vmul.f32 %v462, %v462
    %v665 = vmul.f32 %v463, %v463
    %v666 = vmul.f32 %v464, %v464
    %v667 = vmul.f32 %v465, %v465
    %v668 = vmul.f32 %v466, %v466
    %v669 = vmul.f32 %v467, %v467
    %v670 = vmul.f32 %v468, %v468
    %v671 = vmul.f32 %v469, %v469
    %v672 = vmul.f32 %v470, %v470
    %v673 = vmul.f32 %v471, %v471
    %v674 = vmul.f32 %v472, %v472
    %v675 = vsel %vm477, %v611, 0.0
    %v676 = vsel %vm477, %v612, 0.0
    %v677 = vadd.f32 %v675, %v676
    %v678 = vsel %vm477, %v613, 0.0
    %v679 = vadd.f32 %v677, %v678
    %v680 = vsel %vm477, %v614, 0.0
    %v681 = vadd.f32 %v679, %v680
    %v682 = vsel %vm477, %v615, 0.0
    %v683 = vadd.f32 %v681, %v682
    %v684 = vsel %vm477, %v616, 0.0
    %v685 = vadd.f32 %v683, %v684
    %v686 = vsel %vm477, %v617, 0.0
    %v687 = vadd.f32 %v685, %v686
    %v688 = vsel %vm477, %v618, 0.0
    %v689 = vadd.f32 %v687, %v688
    %v690 = vsel %vm477, %v619, 0.0
    %v691 = vadd.f32 %v689, %v690
    %v692 = vsel %vm477, %v620, 0.0
    %v693 = vadd.f32 %v691, %v692
    %v694 = vsel %vm477, %v621, 0.0
    %v695 = vadd.f32 %v693, %v694
    %v696 = vsel %vm477, %v622, 0.0
    %v697 = vadd.f32 %v695, %v696
    %v698 = vsel %vm477, %v623, 0.0
    %v699 = vadd.f32 %v697, %v698
    %v700 = vsel %vm477, %v624, 0.0
    %v701 = vadd.f32 %v699, %v700
    %v702 = vsel %vm477, %v625, 0.0
    %v703 = vadd.f32 %v701, %v702
    %v704 = vsel %vm477, %v626, 0.0
    %v705 = vadd.f32 %v703, %v704
    %v706 = vsel %vm477, %v627, 0.0
    %v707 = vadd.f32 %v705, %v706
    %v708 = vsel %vm477, %v628, 0.0
    %v709 = vadd.f32 %v707, %v708
    %v710 = vsel %vm477, %v629, 0.0
    %v711 = vadd.f32 %v709, %v710
    %v712 = vsel %vm477, %v630, 0.0
    %v713 = vadd.f32 %v711, %v712
    %v714 = vsel %vm477, %v631, 0.0
    %v715 = vadd.f32 %v713, %v714
    %v716 = vsel %vm477, %v632, 0.0
    %v717 = vadd.f32 %v715, %v716
    %v718 = vsel %vm477, %v633, 0.0
    %v719 = vadd.f32 %v717, %v718
    %v720 = vsel %vm477, %v634, 0.0
    %v721 = vadd.f32 %v719, %v720
    %v722 = vsel %vm477, %v635, 0.0
    %v723 = vadd.f32 %v721, %v722
    %v724 = vsel %vm477, %v636, 0.0
    %v725 = vadd.f32 %v723, %v724
    %v726 = vsel %vm477, %v637, 0.0
    %v727 = vadd.f32 %v725, %v726
    %v728 = vsel %vm477, %v638, 0.0
    %v729 = vadd.f32 %v727, %v728
    %v730 = vsel %vm477, %v639, 0.0
    %v731 = vadd.f32 %v729, %v730
    %v732 = vsel %vm477, %v640, 0.0
    %v733 = vadd.f32 %v731, %v732
    %v734 = vsel %vm477, %v641, 0.0
    %v735 = vadd.f32 %v733, %v734
    %v736 = vsel %vm477, %v642, 0.0
    %v737 = vadd.f32 %v735, %v736
    %v738 = vsel %vm477, %v643, 0.0
    %v739 = vadd.f32 %v737, %v738
    %v740 = vsel %vm477, %v644, 0.0
    %v741 = vadd.f32 %v739, %v740
    %v742 = vsel %vm477, %v645, 0.0
    %v743 = vadd.f32 %v741, %v742
    %v744 = vsel %vm477, %v646, 0.0
    %v745 = vadd.f32 %v743, %v744
    %v746 = vsel %vm477, %v647, 0.0
    %v747 = vadd.f32 %v745, %v746
    %v748 = vsel %vm477, %v648, 0.0
    %v749 = vadd.f32 %v747, %v748
    %v750 = vsel %vm477, %v649, 0.0
    %v751 = vadd.f32 %v749, %v750
    %v752 = vsel %vm477, %v650, 0.0
    %v753 = vadd.f32 %v751, %v752
    %v754 = vsel %vm477, %v651, 0.0
    %v755 = vadd.f32 %v753, %v754
    %v756 = vsel %vm477, %v652, 0.0
    %v757 = vadd.f32 %v755, %v756
    %v758 = vsel %vm477, %v653, 0.0
    %v759 = vadd.f32 %v757, %v758
    %v760 = vsel %vm477, %v654, 0.0
    %v761 = vadd.f32 %v759, %v760
    %v762 = vsel %vm477, %v655, 0.0
    %v763 = vadd.f32 %v761, %v762
    %v764 = vsel %vm477, %v656, 0.0
    %v765 = vadd.f32 %v763, %v764
    %v766 = vsel %vm477, %v657, 0.0
    %v767 = vadd.f32 %v765, %v766
    %v768 = vsel %vm477, %v658, 0.0
    %v769 = vadd.f32 %v767, %v768
    %v770 = vsel %vm477, %v659, 0.0
    %v771 = vadd.f32 %v769, %v770
    %v772 = vsel %vm477, %v660, 0.0
    %v773 = vadd.f32 %v771, %v772
    %v774 = vsel %vm477, %v661, 0.0
    %v775 = vadd.f32 %v773, %v774
    %v776 = vsel %vm477, %v662, 0.0
    %v777 = vadd.f32 %v775, %v776
    %v778 = vsel %vm477, %v663, 0.0
    %v779 = vadd.f32 %v777, %v778
    %v780 = vsel %vm477, %v664, 0.0
    %v781 = vadd.f32 %v779, %v780
    %v782 = vsel %vm477, %v665, 0.0
    %v783 = vadd.f32 %v781, %v782
    %v784 = vsel %vm477, %v666, 0.0
    %v785 = vadd.f32 %v783, %v784
    %v786 = vsel %vm477, %v667, 0.0
    %v787 = vadd.f32 %v785, %v786
    %v788 = vsel %vm477, %v668, 0.0
    %v789 = vadd.f32 %v787, %v788
    %v790 = vsel %vm477, %v669, 0.0
    %v791 = vadd.f32 %v789, %v790
    %v792 = vsel %vm477, %v670, 0.0
    %v793 = vadd.f32 %v791, %v792
    %v794 = vsel %vm477, %v671, 0.0
    %v795 = vadd.f32 %v793, %v794
    %v796 = vsel %vm477, %v672, 0.0
    %v797 = vadd.f32 %v795, %v796
    %v798 = vsel %vm477, %v673, 0.0
    %v799 = vadd.f32 %v797, %v798
    %v800 = vsel %vm477, %v674, 0.0
    %v801 = vadd.f32 %v799, %v800
    %v802 = vrot.slane %v801, 4
    %v803 = vadd.f32 %v801, %v802
    %v804 = vrot.slane %v803, 2
    %v805 = vadd.f32 %v803, %v804
    %v806 = vrot.slane %v805, 1
    %v807 = vadd.f32 %v805, %v806
    %v808 = vmul.f32 %v610, 0.001953125
    %v809 = vmul.f32 %v807, 0.001953125
    %v810 = vmul.f32 %v808, %v808
    %v811 = vsub.f32 %v809, %v810
    %v812 = vadd.f32 %v811, 1e-05
    %v813 = vrsqrt.pop %v812
    %v814 = vmul.f32 %v813, %v473
    %v815 = vmul.f32 %v808, %v814
    %v816 = vsub.f32 %v474, %v815
    %v817 = vlaneseq
    %v818 = vshrl.u32 %v817, 7
    %v819 = vlaneseq
    %v820 = vand.u32 %v819, 127
    %vm821 = vcmp.eq.s32.totalorder %v818, %v820
    %v822 = vsel %vm821, 1, 0
    %v823 = vcvt.s32.f32 %v822
    %v824 = vlaneseq
    %v825 = vshrl.u32 %v824, 7
    %v826 = vsub.s32 0, %v825
    %v827 = vrot.slane %v814, %v826
    %v828 = vmul.f32 %v823, %v827
    %v830 = vsel %vm477, %v828, 0
    %832 = vmatprep.subr.mxu0 0.0
    %833 = vmatpush1.msra.mxu0 %v475
    %834 = vmatprep.subr.mxu0 0.0
    %835 = vmatpush1.msra.mxu0 0.0
    %836 = vmatprep.subr.mxu0 0.0
    %837 = vmatpush1.msra.mxu0 0.0
    %838 = vmatprep.subr.mxu0 0.0
    %839 = vmatpush1.msra.mxu0 0.0
    %840 = vmatprep.subr.mxu0 0.0
    %841 = vmatpush1.msra.mxu0 0.0
    %842 = vmatprep.subr.mxu0 0.0
    %843 = vmatpush1.msra.mxu0 0.0
    %844 = vmatprep.subr.mxu0 0.0
    %845 = vmatpush1.msra.mxu0 0.0
    %846 = vmatprep.subr.mxu0 0.0
    %847 = vmatpush1.msra.mxu0 0.0
    %848 = vmatprep.subr.mxu0 0.0
    %849 = vmatpush1.msra.mxu0 0.0
    %850 = vmatprep.subr.mxu0 0.0
    %851 = vmatpush1.msra.mxu0 0.0
    %852 = vmatprep.subr.mxu0 0.0
    %853 = vmatpush1.msra.mxu0 0.0
    %854 = vmatprep.subr.mxu0 0.0
    %855 = vmatpush1.msra.mxu0 0.0
    %856 = vmatprep.subr.mxu0 0.0
    %857 = vmatpush1.msra.mxu0 0.0
    %858 = vmatprep.subr.mxu0 0.0
    %859 = vmatpush1.msra.mxu0 0.0
    %860 = vmatprep.subr.mxu0 0.0
    %861 = vmatpush1.msra.mxu0 0.0
    %862 = vmatprep.subr.mxu0 0.0
    %863 = vmatpush1.msra.mxu0 0.0
    %864 = vmatprep.subr.mxu0 0.0
    %865 = vmatpush1.msra.mxu0 0.0
    %866 = vmatprep.subr.mxu0 0.0
    %867 = vmatpush1.msra.mxu0 0.0
    %868 = vmatprep.subr.mxu0 0.0
    %869 = vmatpush1.msra.mxu0 0.0
    %870 = vmatprep.subr.mxu0 0.0
    %871 = vmatpush1.msra.mxu0 0.0
    %872 = vmatprep.subr.mxu0 0.0
    %873 = vmatpush1.msra.mxu0 0.0
    %874 = vmatprep.subr.mxu0 0.0
    %875 = vmatpush1.msra.mxu0 0.0
    %876 = vmatprep.subr.mxu0 0.0
    %877 = vmatpush1.msra.mxu0 0.0
    %878 = vmatprep.subr.mxu0 0.0
    %879 = vmatpush1.msra.mxu0 0.0
    %880 = vmatprep.subr.mxu0 0.0
    %881 = vmatpush1.msra.mxu0 0.0
    %882 = vmatprep.subr.mxu0 0.0
    %883 = vmatpush1.msra.mxu0 0.0
    %884 = vmatprep.subr.mxu0 0.0
    %885 = vmatpush1.msra.mxu0 0.0
    %886 = vmatprep.subr.mxu0 0.0
    %887 = vmatpush1.msra.mxu0 0.0
    %888 = vmatprep.subr.mxu0 0.0
    %889 = vmatpush1.msra.mxu0 0.0
    %890 = vmatprep.subr.mxu0 0.0
    %891 = vmatpush1.msra.mxu0 0.0
    %892 = vmatprep.subr.mxu0 0.0
    %893 = vmatpush1.msra.mxu0 0.0
    %894 = vmatprep.subr.mxu0 0.0
    %895 = vmatpush1.msra.mxu0 0.0
    %896 = vmatprep.mubr.f32.mxu0 0.0
    %897 = vmatmul.mubr.f32.gmra.mrb[0].mxu0 %v830
    %v898 = vpop.f32.mrb[0].mxu0
    %v899 = vadd.f32 0.0, %v898
    %v900 = vpop.f32.mrb[0].mxu0
    %901 = vdwg.mxu0
    %v903 = vlaneseq
    %v904 = vshrl.u32 %v903, 7
    %v905 = vsub.s32 0, %v904
    %v906 = vrot.slane %v816, %v905
    %v907 = vsel %vm477, %v906, 0
    %909 = vmatprep.subr.mxu0 0.0
    %910 = vmatpush1.msra.mxu0 %v475
    %911 = vmatprep.subr.mxu0 0.0
    %912 = vmatpush1.msra.mxu0 0.0
    %913 = vmatprep.subr.mxu0 0.0
    %914 = vmatpush1.msra.mxu0 0.0
    %915 = vmatprep.subr.mxu0 0.0
    %916 = vmatpush1.msra.mxu0 0.0
    %917 = vmatprep.subr.mxu0 0.0
    %918 = vmatpush1.msra.mxu0 0.0
    %919 = vmatprep.subr.mxu0 0.0
    %920 = vmatpush1.msra.mxu0 0.0
    %921 = vmatprep.subr.mxu0 0.0
    %922 = vmatpush1.msra.mxu0 0.0
    %923 = vmatprep.subr.mxu0 0.0
    %924 = vmatpush1.msra.mxu0 0.0
    %925 = vmatprep.subr.mxu0 0.0
    %926 = vmatpush1.msra.mxu0 0.0
    %927 = vmatprep.subr.mxu0 0.0
    %928 = vmatpush1.msra.mxu0 0.0
    %929 = vmatprep.subr.mxu0 0.0
    %930 = vmatpush1.msra.mxu0 0.0
    %931 = vmatprep.subr.mxu0 0.0
    %932 = vmatpush1.msra.mxu0 0.0
    %933 = vmatprep.subr.mxu0 0.0
    %934 = vmatpush1.msra.mxu0 0.0
    %935 = vmatprep.subr.mxu0 0.0
    %936 = vmatpush1.msra.mxu0 0.0
    %937 = vmatprep.subr.mxu0 0.0
    %938 = vmatpush1.msra.mxu0 0.0
    %939 = vmatprep.subr.mxu0 0.0
    %940 = vmatpush1.msra.mxu0 0.0
    %941 = vmatprep.subr.mxu0 0.0
    %942 = vmatpush1.msra.mxu0 0.0
    %943 = vmatprep.subr.mxu0 0.0
    %944 = vmatpush1.msra.mxu0 0.0
    %945 = vmatprep.subr.mxu0 0.0
    %946 = vmatpush1.msra.mxu0 0.0
    %947 = vmatprep.subr.mxu0 0.0
    %948 = vmatpush1.msra.mxu0 0.0
    %949 = vmatprep.subr.mxu0 0.0
    %950 = vmatpush1.msra.mxu0 0.0
    %951 = vmatprep.subr.mxu0 0.0
    %952 = vmatpush1.msra.mxu0 0.0
    %953 = vmatprep.subr.mxu0 0.0
    %954 = vmatpush1.msra.mxu0 0.0
    %955 = vmatprep.subr.mxu0 0.0
    %956 = vmatpush1.msra.mxu0 0.0
    %957 = vmatprep.subr.mxu0 0.0
    %958 = vmatpush1.msra.mxu0 0.0
    %959 = vmatprep.subr.mxu0 0.0
    %960 = vmatpush1.msra.mxu0 0.0
    %961 = vmatprep.subr.mxu0 0.0
    %962 = vmatpush1.msra.mxu0 0.0
    %963 = vmatprep.subr.mxu0 0.0
    %964 = vmatpush1.msra.mxu0 0.0
    %965 = vmatprep.subr.mxu0 0.0
    %966 = vmatpush1.msra.mxu0 0.0
    %967 = vmatprep.subr.mxu0 0.0
    %968 = vmatpush1.msra.mxu0 0.0
    %969 = vmatprep.subr.mxu0 0.0
    %970 = vmatpush1.msra.mxu0 0.0
    %971 = vmatprep.subr.mxu0 0.0
    %972 = vmatpush1.msra.mxu0 0.0
    %973 = vmatprep.mubr.f32.mxu0 0.0
    %974 = vmatmul.mubr.f32.gmra.mrb[0].mxu0 %v907
    %v975 = vpop.f32.mrb[0].mxu0
    %v976 = vadd.f32 0.0, %v975
    %v977 = vpop.f32.mrb[0].mxu0
    %978 = vdwg.mxu0
    %v979 = vadd.f32 %v976, %v476
    %v980 = vlaneseq
    %v981 = vshrl.u32 %v980, 7
    %v982 = vsub.s32 0, %v981
    %v983 = vrot.slane %v979, %v982
    %v985 = vsel %vm477, %v409, 0
    %v988 = vsel %vm477, %v410, 0
    %v991 = vsel %vm477, %v411, 0
    %v994 = vsel %vm477, %v412, 0
    %v997 = vsel %vm477, %v413, 0
    %v1000 = vsel %vm477, %v414, 0
    %v1003 = vsel %vm477, %v415, 0
    %v1006 = vsel %vm477, %v416, 0
    %v1009 = vsel %vm477, %v417, 0
    %v1012 = vsel %vm477, %v418, 0
    %v1015 = vsel %vm477, %v419, 0
    %v1018 = vsel %vm477, %v420, 0
    %v1021 = vsel %vm477, %v421, 0
    %v1024 = vsel %vm477, %v422, 0
    %v1027 = vsel %vm477, %v423, 0
    %v1030 = vsel %vm477, %v424, 0
    %v1033 = vsel %vm477, %v425, 0
    %v1036 = vsel %vm477, %v426, 0
    %v1039 = vsel %vm477, %v427, 0
    %v1042 = vsel %vm477, %v428, 0
    %v1045 = vsel %vm477, %v429, 0
    %v1048 = vsel %vm477, %v430, 0
    %v1051 = vsel %vm477, %v431, 0
    %v1054 = vsel %vm477, %v432, 0
    %v1057 = vsel %vm477, %v433, 0
    %v1060 = vsel %vm477, %v434, 0
    %v1063 = vsel %vm477, %v435, 0
    %v1066 = vsel %vm477, %v436, 0
    %v1069 = vsel %vm477, %v437, 0
    %v1072 = vsel %vm477, %v438, 0
    %v1075 = vsel %vm477, %v439, 0
    %v1078 = vsel %vm477, %v440, 0
    %v1081 = vsel %vm477, %v441, 0
    %v1084 = vsel %vm477, %v442, 0
    %v1087 = vsel %vm477, %v443, 0
    %v1090 = vsel %vm477, %v444, 0
    %v1093 = vsel %vm477, %v445, 0
    %v1096 = vsel %vm477, %v446, 0
    %v1099 = vsel %vm477, %v447, 0
    %v1102 = vsel %vm477, %v448, 0
    %v1105 = vsel %vm477, %v449, 0
    %v1108 = vsel %vm477, %v450, 0
    %v1111 = vsel %vm477, %v451, 0
    %v1114 = vsel %vm477, %v452, 0
    %v1117 = vsel %vm477, %v453, 0
    %v1120 = vsel %vm477, %v454, 0
    %v1123 = vsel %vm477, %v455, 0
    %v1126 = vsel %vm477, %v456, 0
    %v1129 = vsel %vm477, %v457, 0
    %v1132 = vsel %vm477, %v458, 0
    %v1135 = vsel %vm477, %v459, 0
    %v1138 = vsel %vm477, %v460, 0
    %v1141 = vsel %vm477, %v461, 0
    %v1144 = vsel %vm477, %v462, 0
    %v1147 = vsel %vm477, %v463, 0
    %v1150 = vsel %vm477, %v464, 0
    %v1153 = vsel %vm477, %v465, 0
    %v1156 = vsel %vm477, %v466, 0
    %v1159 = vsel %vm477, %v467, 0
    %v1162 = vsel %vm477, %v468, 0
    %v1165 = vsel %vm477, %v469, 0
    %v1168 = vsel %vm477, %v470, 0
    %v1171 = vsel %vm477, %v471, 0
    %v1174 = vsel %vm477, %v472, 0
    %1176 = vmatprep.subr.mxu0 0.0
    %1177 = vmatpush1.msra.mxu0 %v899
    %1178 = vmatprep.subr.mxu0 0.0
    %1179 = vmatpush1.msra.mxu0 0.0
    %1180 = vmatprep.subr.mxu0 0.0
    %1181 = vmatpush1.msra.mxu0 0.0
    %1182 = vmatprep.subr.mxu0 0.0
    %1183 = vmatpush1.msra.mxu0 0.0
    %1184 = vmatprep.subr.mxu0 0.0
    %1185 = vmatpush1.msra.mxu0 0.0
    %1186 = vmatprep.subr.mxu0 0.0
    %1187 = vmatpush1.msra.mxu0 0.0
    %1188 = vmatprep.subr.mxu0 0.0
    %1189 = vmatpush1.msra.mxu0 0.0
    %1190 = vmatprep.subr.mxu0 0.0
    %1191 = vmatpush1.msra.mxu0 0.0
    %1192 = vmatprep.subr.mxu0 0.0
    %1193 = vmatpush1.msra.mxu0 0.0
    %1194 = vmatprep.subr.mxu0 0.0
    %1195 = vmatpush1.msra.mxu0 0.0
    %1196 = vmatprep.subr.mxu0 0.0
    %1197 = vmatpush1.msra.mxu0 0.0
    %1198 = vmatprep.subr.mxu0 0.0
    %1199 = vmatpush1.msra.mxu0 0.0
    %1200 = vmatprep.subr.mxu0 0.0
    %1201 = vmatpush1.msra.mxu0 0.0
    %1202 = vmatprep.subr.mxu0 0.0
    %1203 = vmatpush1.msra.mxu0 0.0
    %1204 = vmatprep.subr.mxu0 0.0
    %1205 = vmatpush1.msra.mxu0 0.0
    %1206 = vmatprep.subr.mxu0 0.0
    %1207 = vmatpush1.msra.mxu0 0.0
    %1208 = vmatprep.subr.mxu0 0.0
    %1209 = vmatpush1.msra.mxu0 0.0
    %1210 = vmatprep.subr.mxu0 0.0
    %1211 = vmatpush1.msra.mxu0 0.0
    %1212 = vmatprep.subr.mxu0 0.0
    %1213 = vmatpush1.msra.mxu0 0.0
    %1214 = vmatprep.subr.mxu0 0.0
    %1215 = vmatpush1.msra.mxu0 0.0
    %1216 = vmatprep.subr.mxu0 0.0
    %1217 = vmatpush1.msra.mxu0 0.0
    %1218 = vmatprep.subr.mxu0 0.0
    %1219 = vmatpush1.msra.mxu0 0.0
    %1220 = vmatprep.subr.mxu0 0.0
    %1221 = vmatpush1.msra.mxu0 0.0
    %1222 = vmatprep.subr.mxu0 0.0
    %1223 = vmatpush1.msra.mxu0 0.0
    %1224 = vmatprep.subr.mxu0 0.0
    %1225 = vmatpush1.msra.mxu0 0.0
    %1226 = vmatprep.subr.mxu0 0.0
    %1227 = vmatpush1.msra.mxu0 0.0
    %1228 = vmatprep.subr.mxu0 0.0
    %1229 = vmatpush1.msra.mxu0 0.0
    %1230 = vmatprep.subr.mxu0 0.0
    %1231 = vmatpush1.msra.mxu0 0.0
    %1232 = vmatprep.subr.mxu0 0.0
    %1233 = vmatpush1.msra.mxu0 0.0
    %1234 = vmatprep.subr.mxu0 0.0
    %1235 = vmatpush1.msra.mxu0 0.0
    %1236 = vmatprep.subr.mxu0 0.0
    %1237 = vmatpush1.msra.mxu0 0.0
    %1238 = vmatprep.subr.mxu0 0.0
    %1239 = vmatpush1.msra.mxu0 0.0
    %1240 = vmatprep.mubr.f32.mxu0 0.0
    %1241 = vmatmul.mubr.f32.gmra.mrb[0].mxu0 %v985
    %v1242 = vpop.f32.mrb[0].mxu0
    %v1243 = vadd.f32 %v983, %v1242
    %v1244 = vpop.f32.mrb[0].mxu0
    %1245 = vmatprep.mubr.f32.mxu0 0.0
    %1246 = vmatmul.mubr.f32.gmra.mrb[0].mxu0 %v988
    %v1247 = vpop.f32.mrb[0].mxu0
    %v1248 = vadd.f32 %v983, %v1247
    %v1249 = vpop.f32.mrb[0].mxu0
    %1250 = vmatprep.mubr.f32.mxu0 0.0
    %1251 = vmatmul.mubr.f32.gmra.mrb[0].mxu0 %v991
    %v1252 = vpop.f32.mrb[0].mxu0
    %v1253 = vadd.f32 %v983, %v1252
    %v1254 = vpop.f32.mrb[0].mxu0
    %1255 = vmatprep.mubr.f32.mxu0 0.0
    %1256 = vmatmul.mubr.f32.gmra.mrb[0].mxu0 %v994
    %v1257 = vpop.f32.mrb[0].mxu0
    %v1258 = vadd.f32 %v983, %v1257
    %v1259 = vpop.f32.mrb[0].mxu0
    %1260 = vmatprep.mubr.f32.mxu0 0.0
    %1261 = vmatmul.mubr.f32.gmra.mrb[0].mxu0 %v997
    %v1262 = vpop.f32.mrb[0].mxu0
    %v1263 = vadd.f32 %v983, %v1262
    %v1264 = vpop.f32.mrb[0].mxu0
    %1265 = vmatprep.mubr.f32.mxu0 0.0
    %1266 = vmatmul.mubr.f32.gmra.mrb[0].mxu0 %v1000
    %v1267 = vpop.f32.mrb[0].mxu0
    %v1268 = vadd.f32 %v983, %v1267
    %v1269 = vpop.f32.mrb[0].mxu0
    %1270 = vmatprep.mubr.f32.mxu0 0.0
    %1271 = vmatmul.mubr.f32.gmra.mrb[0].mxu0 %v1003
    %v1272 = vpop.f32.mrb[0].mxu0
    %v1273 = vadd.f32 %v983, %v1272
    %v1274 = vpop.f32.mrb[0].mxu0
    %1275 = vmatprep.mubr.f32.mxu0 0.0
    %1276 = vmatmul.mubr.f32.gmra.mrb[0].mxu0 %v1006
    %v1277 = vpop.f32.mrb[0].mxu0
    %v1278 = vadd.f32 %v983, %v1277
    %v1279 = vpop.f32.mrb[0].mxu0
    %1280 = vmatprep.mubr.f32.mxu0 0.0
    %1281 = vmatmul.mubr.f32.gmra.mrb[0].mxu0 %v1009
    %v1282 = vpop.f32.mrb[0].mxu0
    %v1283 = vadd.f32 %v983, %v1282
    %v1284 = vpop.f32.mrb[0].mxu0
    %1285 = vmatprep.mubr.f32.mxu0 0.0
    %1286 = vmatmul.mubr.f32.gmra.mrb[0].mxu0 %v1012
    %v1287 = vpop.f32.mrb[0].mxu0
    %v1288 = vadd.f32 %v983, %v1287
    %v1289 = vpop.f32.mrb[0].mxu0
    %1290 = vmatprep.mubr.f32.mxu0 0.0
    %1291 = vmatmul.mubr.f32.gmra.mrb[0].mxu0 %v1015
    %v1292 = vpop.f32.mrb[0].mxu0
    %v1293 = vadd.f32 %v983, %v1292
    %v1294 = vpop.f32.mrb[0].mxu0
    %1295 = vmatprep.mubr.f32.mxu0 0.0
    %1296 = vmatmul.mubr.f32.gmra.mrb[0].mxu0 %v1018
    %v1297 = vpop.f32.mrb[0].mxu0
    %v1298 = vadd.f32 %v983, %v1297
    %v1299 = vpop.f32.mrb[0].mxu0
    %1300 = vmatprep.mubr.f32.mxu0 0.0
    %1301 = vmatmul.mubr.f32.gmra.mrb[0].mxu0 %v1021
    %v1302 = vpop.f32.mrb[0].mxu0
    %v1303 = vadd.f32 %v983, %v1302
    %v1304 = vpop.f32.mrb[0].mxu0
    %1305 = vmatprep.mubr.f32.mxu0 0.0
    %1306 = vmatmul.mubr.f32.gmra.mrb[0].mxu0 %v1024
    %v1307 = vpop.f32.mrb[0].mxu0
    %v1308 = vadd.f32 %v983, %v1307
    %v1309 = vpop.f32.mrb[0].mxu0
    %1310 = vmatprep.mubr.f32.mxu0 0.0
    %1311 = vmatmul.mubr.f32.gmra.mrb[0].mxu0 %v1027
    %v1312 = vpop.f32.mrb[0].mxu0
    %v1313 = vadd.f32 %v983, %v1312
    %v1314 = vpop.f32.mrb[0].mxu0
    %1315 = vmatprep.mubr.f32.mxu0 0.0
    %1316 = vmatmul.mubr.f32.gmra.mrb[0].mxu0 %v1030
    %v1317 = vpop.f32.mrb[0].mxu0
    %v1318 = vadd.f32 %v983, %v1317
    %v1319 = vpop.f32.mrb[0].mxu0
    %1320 = vmatprep.mubr.f32.mxu0 0.0
    %1321 = vmatmul.mubr.f32.gmra.mrb[0].mxu0 %v1033
    %v1322 = vpop.f32.mrb[0].mxu0
    %v1323 = vadd.f32 %v983, %v1322
    %v1324 = vpop.f32.mrb[0].mxu0
    %1325 = vmatprep.mubr.f32.mxu0 0.0
    %1326 = vmatmul.mubr.f32.gmra.mrb[0].mxu0 %v1036
    %v1327 = vpop.f32.mrb[0].mxu0
    %v1328 = vadd.f32 %v983, %v1327
    %v1329 = vpop.f32.mrb[0].mxu0
    %1330 = vmatprep.mubr.f32.mxu0 0.0
    %1331 = vmatmul.mubr.f32.gmra.mrb[0].mxu0 %v1039
    %v1332 = vpop.f32.mrb[0].mxu0
    %v1333 = vadd.f32 %v983, %v1332
    %v1334 = vpop.f32.mrb[0].mxu0
    %1335 = vmatprep.mubr.f32.mxu0 0.0
    %1336 = vmatmul.mubr.f32.gmra.mrb[0].mxu0 %v1042
    %v1337 = vpop.f32.mrb[0].mxu0
    %v1338 = vadd.f32 %v983, %v1337
    %v1339 = vpop.f32.mrb[0].mxu0
    %1340 = vmatprep.mubr.f32.mxu0 0.0
    %1341 = vmatmul.mubr.f32.gmra.mrb[0].mxu0 %v1045
    %v1342 = vpop.f32.mrb[0].mxu0
    %v1343 = vadd.f32 %v983, %v1342
    %v1344 = vpop.f32.mrb[0].mxu0
    %1345 = vmatprep.mubr.f32.mxu0 0.0
    %1346 = vmatmul.mubr.f32.gmra.mrb[0].mxu0 %v1048
    %v1347 = vpop.f32.mrb[0].mxu0
    %v1348 = vadd.f32 %v983, %v1347
    %v1349 = vpop.f32.mrb[0].mxu0
    %1350 = vmatprep.mubr.f32.mxu0 0.0
    %1351 = vmatmul.mubr.f32.gmra.mrb[0].mxu0 %v1051
    %v1352 = vpop.f32.mrb[0].mxu0
    %v1353 = vadd.f32 %v983, %v1352
    %v1354 = vpop.f32.mrb[0].mxu0
    %1355 = vmatprep.mubr.f32.mxu0 0.0
    %1356 = vmatmul.mubr.f32.gmra.mrb[0].mxu0 %v1054
    %v1357 = vpop.f32.mrb[0].mxu0
    %v1358 = vadd.f32 %v983, %v1357
    %v1359 = vpop.f32.mrb[0].mxu0
    %1360 = vmatprep.mubr.f32.mxu0 0.0
    %1361 = vmatmul.mubr.f32.gmra.mrb[0].mxu0 %v1057
    %v1362 = vpop.f32.mrb[0].mxu0
    %v1363 = vadd.f32 %v983, %v1362
    %v1364 = vpop.f32.mrb[0].mxu0
    %1365 = vmatprep.mubr.f32.mxu0 0.0
    %1366 = vmatmul.mubr.f32.gmra.mrb[0].mxu0 %v1060
    %v1367 = vpop.f32.mrb[0].mxu0
    %v1368 = vadd.f32 %v983, %v1367
    %v1369 = vpop.f32.mrb[0].mxu0
    %1370 = vmatprep.mubr.f32.mxu0 0.0
    %1371 = vmatmul.mubr.f32.gmra.mrb[0].mxu0 %v1063
    %v1372 = vpop.f32.mrb[0].mxu0
    %v1373 = vadd.f32 %v983, %v1372
    %v1374 = vpop.f32.mrb[0].mxu0
    %1375 = vmatprep.mubr.f32.mxu0 0.0
    %1376 = vmatmul.mubr.f32.gmra.mrb[0].mxu0 %v1066
    %v1377 = vpop.f32.mrb[0].mxu0
    %v1378 = vadd.f32 %v983, %v1377
    %v1379 = vpop.f32.mrb[0].mxu0
    %1380 = vmatprep.mubr.f32.mxu0 0.0
    %1381 = vmatmul.mubr.f32.gmra.mrb[0].mxu0 %v1069
    %v1382 = vpop.f32.mrb[0].mxu0
    %v1383 = vadd.f32 %v983, %v1382
    %v1384 = vpop.f32.mrb[0].mxu0
    %1385 = vmatprep.mubr.f32.mxu0 0.0
    %1386 = vmatmul.mubr.f32.gmra.mrb[0].mxu0 %v1072
    %v1387 = vpop.f32.mrb[0].mxu0
    %v1388 = vadd.f32 %v983, %v1387
    %v1389 = vpop.f32.mrb[0].mxu0
    %1390 = vmatprep.mubr.f32.mxu0 0.0
    %1391 = vmatmul.mubr.f32.gmra.mrb[0].mxu0 %v1075
    %v1392 = vpop.f32.mrb[0].mxu0
    %v1393 = vadd.f32 %v983, %v1392
    %v1394 = vpop.f32.mrb[0].mxu0
    %1395 = vmatprep.mubr.f32.mxu0 0.0
    %1396 = vmatmul.mubr.f32.gmra.mrb[0].mxu0 %v1078
    %v1397 = vpop.f32.mrb[0].mxu0
    %v1398 = vadd.f32 %v983, %v1397
    %v1399 = vpop.f32.mrb[0].mxu0
    %1400 = vmatprep.mubr.f32.mxu0 0.0
    %1401 = vmatmul.mubr.f32.gmra.mrb[0].mxu0 %v1081
    %v1402 = vpop.f32.mrb[0].mxu0
    %v1403 = vadd.f32 %v983, %v1402
    %v1404 = vpop.f32.mrb[0].mxu0
    %1405 = vmatprep.mubr.f32.mxu0 0.0
    %1406 = vmatmul.mubr.f32.gmra.mrb[0].mxu0 %v1084
    %v1407 = vpop.f32.mrb[0].mxu0
    %v1408 = vadd.f32 %v983, %v1407
    %v1409 = vpop.f32.mrb[0].mxu0
    %1410 = vmatprep.mubr.f32.mxu0 0.0
    %1411 = vmatmul.mubr.f32.gmra.mrb[0].mxu0 %v1087
    %v1412 = vpop.f32.mrb[0].mxu0
    %v1413 = vadd.f32 %v983, %v1412
    %v1414 = vpop.f32.mrb[0].mxu0
    %1415 = vmatprep.mubr.f32.mxu0 0.0
    %1416 = vmatmul.mubr.f32.gmra.mrb[0].mxu0 %v1090
    %v1417 = vpop.f32.mrb[0].mxu0
    %v1418 = vadd.f32 %v983, %v1417
    %v1419 = vpop.f32.mrb[0].mxu0
    %1420 = vmatprep.mubr.f32.mxu0 0.0
    %1421 = vmatmul.mubr.f32.gmra.mrb[0].mxu0 %v1093
    %v1422 = vpop.f32.mrb[0].mxu0
    %v1423 = vadd.f32 %v983, %v1422
    %v1424 = vpop.f32.mrb[0].mxu0
    %1425 = vmatprep.mubr.f32.mxu0 0.0
    %1426 = vmatmul.mubr.f32.gmra.mrb[0].mxu0 %v1096
    %v1427 = vpop.f32.mrb[0].mxu0
    %v1428 = vadd.f32 %v983, %v1427
    %v1429 = vpop.f32.mrb[0].mxu0
    %1430 = vmatprep.mubr.f32.mxu0 0.0
    %1431 = vmatmul.mubr.f32.gmra.mrb[0].mxu0 %v1099
    %v1432 = vpop.f32.mrb[0].mxu0
    %v1433 = vadd.f32 %v983, %v1432
    %v1434 = vpop.f32.mrb[0].mxu0
    %1435 = vmatprep.mubr.f32.mxu0 0.0
    %1436 = vmatmul.mubr.f32.gmra.mrb[0].mxu0 %v1102
    %v1437 = vpop.f32.mrb[0].mxu0
    %v1438 = vadd.f32 %v983, %v1437
    %v1439 = vpop.f32.mrb[0].mxu0
    %1440 = vmatprep.mubr.f32.mxu0 0.0
    %1441 = vmatmul.mubr.f32.gmra.mrb[0].mxu0 %v1105
    %v1442 = vpop.f32.mrb[0].mxu0
    %v1443 = vadd.f32 %v983, %v1442
    %v1444 = vpop.f32.mrb[0].mxu0
    %1445 = vmatprep.mubr.f32.mxu0 0.0
    %1446 = vmatmul.mubr.f32.gmra.mrb[0].mxu0 %v1108
    %v1447 = vpop.f32.mrb[0].mxu0
    %v1448 = vadd.f32 %v983, %v1447
    %v1449 = vpop.f32.mrb[0].mxu0
    %1450 = vmatprep.mubr.f32.mxu0 0.0
    %1451 = vmatmul.mubr.f32.gmra.mrb[0].mxu0 %v1111
    %v1452 = vpop.f32.mrb[0].mxu0
    %v1453 = vadd.f32 %v983, %v1452
    %v1454 = vpop.f32.mrb[0].mxu0
    %1455 = vmatprep.mubr.f32.mxu0 0.0
    %1456 = vmatmul.mubr.f32.gmra.mrb[0].mxu0 %v1114
    %v1457 = vpop.f32.mrb[0].mxu0
    %v1458 = vadd.f32 %v983, %v1457
    %v1459 = vpop.f32.mrb[0].mxu0
    %1460 = vmatprep.mubr.f32.mxu0 0.0
    %1461 = vmatmul.mubr.f32.gmra.mrb[0].mxu0 %v1117
    %v1462 = vpop.f32.mrb[0].mxu0
    %v1463 = vadd.f32 %v983, %v1462
    %v1464 = vpop.f32.mrb[0].mxu0
    %1465 = vmatprep.mubr.f32.mxu0 0.0
    %1466 = vmatmul.mubr.f32.gmra.mrb[0].mxu0 %v1120
    %v1467 = vpop.f32.mrb[0].mxu0
    %v1468 = vadd.f32 %v983, %v1467
    %v1469 = vpop.f32.mrb[0].mxu0
    %1470 = vmatprep.mubr.f32.mxu0 0.0
    %1471 = vmatmul.mubr.f32.gmra.mrb[0].mxu0 %v1123
    %v1472 = vpop.f32.mrb[0].mxu0
    %v1473 = vadd.f32 %v983, %v1472
    %v1474 = vpop.f32.mrb[0].mxu0
    %1475 = vmatprep.mubr.f32.mxu0 0.0
    %1476 = vmatmul.mubr.f32.gmra.mrb[0].mxu0 %v1126
    %v1477 = vpop.f32.mrb[0].mxu0
    %v1478 = vadd.f32 %v983, %v1477
    %v1479 = vpop.f32.mrb[0].mxu0
    %1480 = vmatprep.mubr.f32.mxu0 0.0
    %1481 = vmatmul.mubr.f32.gmra.mrb[0].mxu0 %v1129
    %v1482 = vpop.f32.mrb[0].mxu0
    %v1483 = vadd.f32 %v983, %v1482
    %v1484 = vpop.f32.mrb[0].mxu0
    %1485 = vmatprep.mubr.f32.mxu0 0.0
    %1486 = vmatmul.mubr.f32.gmra.mrb[0].mxu0 %v1132
    %v1487 = vpop.f32.mrb[0].mxu0
    %v1488 = vadd.f32 %v983, %v1487
    %v1489 = vpop.f32.mrb[0].mxu0
    %1490 = vmatprep.mubr.f32.mxu0 0.0
    %1491 = vmatmul.mubr.f32.gmra.mrb[0].mxu0 %v1135
    %v1492 = vpop.f32.mrb[0].mxu0
    %v1493 = vadd.f32 %v983, %v1492
    %v1494 = vpop.f32.mrb[0].mxu0
    %1495 = vmatprep.mubr.f32.mxu0 0.0
    %1496 = vmatmul.mubr.f32.gmra.mrb[0].mxu0 %v1138
    %v1497 = vpop.f32.mrb[0].mxu0
    %v1498 = vadd.f32 %v983, %v1497
    %v1499 = vpop.f32.mrb[0].mxu0
    %1500 = vmatprep.mubr.f32.mxu0 0.0
    %1501 = vmatmul.mubr.f32.gmra.mrb[0].mxu0 %v1141
    %v1502 = vpop.f32.mrb[0].mxu0
    %v1503 = vadd.f32 %v983, %v1502
    %v1504 = vpop.f32.mrb[0].mxu0
    %1505 = vmatprep.mubr.f32.mxu0 0.0
    %1506 = vmatmul.mubr.f32.gmra.mrb[0].mxu0 %v1144
    %v1507 = vpop.f32.mrb[0].mxu0
    %v1508 = vadd.f32 %v983, %v1507
    %v1509 = vpop.f32.mrb[0].mxu0
    %1510 = vmatprep.mubr.f32.mxu0 0.0
    %1511 = vmatmul.mubr.f32.gmra.mrb[0].mxu0 %v1147
    %v1512 = vpop.f32.mrb[0].mxu0
    %v1513 = vadd.f32 %v983, %v1512
    %v1514 = vpop.f32.mrb[0].mxu0
    %1515 = vmatprep.mubr.f32.mxu0 0.0
    %1516 = vmatmul.mubr.f32.gmra.mrb[0].mxu0 %v1150
    %v1517 = vpop.f32.mrb[0].mxu0
    %v1518 = vadd.f32 %v983, %v1517
    %v1519 = vpop.f32.mrb[0].mxu0
    %1520 = vmatprep.mubr.f32.mxu0 0.0
    %1521 = vmatmul.mubr.f32.gmra.mrb[0].mxu0 %v1153
    %v1522 = vpop.f32.mrb[0].mxu0
    %v1523 = vadd.f32 %v983, %v1522
    %v1524 = vpop.f32.mrb[0].mxu0
    %1525 = vmatprep.mubr.f32.mxu0 0.0
    %1526 = vmatmul.mubr.f32.gmra.mrb[0].mxu0 %v1156
    %v1527 = vpop.f32.mrb[0].mxu0
    %v1528 = vadd.f32 %v983, %v1527
    %v1529 = vpop.f32.mrb[0].mxu0
    %1530 = vmatprep.mubr.f32.mxu0 0.0
    %1531 = vmatmul.mubr.f32.gmra.mrb[0].mxu0 %v1159
    %v1532 = vpop.f32.mrb[0].mxu0
    %v1533 = vadd.f32 %v983, %v1532
    %v1534 = vpop.f32.mrb[0].mxu0
    %1535 = vmatprep.mubr.f32.mxu0 0.0
    %1536 = vmatmul.mubr.f32.gmra.mrb[0].mxu0 %v1162
    %v1537 = vpop.f32.mrb[0].mxu0
    %v1538 = vadd.f32 %v983, %v1537
    %v1539 = vpop.f32.mrb[0].mxu0
    %1540 = vmatprep.mubr.f32.mxu0 0.0
    %1541 = vmatmul.mubr.f32.gmra.mrb[0].mxu0 %v1165
    %v1542 = vpop.f32.mrb[0].mxu0
    %v1543 = vadd.f32 %v983, %v1542
    %v1544 = vpop.f32.mrb[0].mxu0
    %1545 = vmatprep.mubr.f32.mxu0 0.0
    %1546 = vmatmul.mubr.f32.gmra.mrb[0].mxu0 %v1168
    %v1547 = vpop.f32.mrb[0].mxu0
    %v1548 = vadd.f32 %v983, %v1547
    %v1549 = vpop.f32.mrb[0].mxu0
    %1550 = vmatprep.mubr.f32.mxu0 0.0
    %1551 = vmatmul.mubr.f32.gmra.mrb[0].mxu0 %v1171
    %v1552 = vpop.f32.mrb[0].mxu0
    %v1553 = vadd.f32 %v983, %v1552
    %v1554 = vpop.f32.mrb[0].mxu0
    %1555 = vmatprep.mubr.f32.mxu0 0.0
    %1556 = vmatmul.mubr.f32.gmra.mrb[0].mxu0 %v1174
    %v1557 = vpop.f32.mrb[0].mxu0
    %v1558 = vadd.f32 %v983, %v1557
    %v1559 = vpop.f32.mrb[0].mxu0
    %1560 = vdwg.mxu0
    %vm1561 = vcmp.ge.f32.partialorder %v1243, 0.0
    %vm1562 = vcmp.ge.f32.partialorder %v1248, 0.0
    %vm1563 = vcmp.ge.f32.partialorder %v1253, 0.0
    %vm1564 = vcmp.ge.f32.partialorder %v1258, 0.0
    %vm1565 = vcmp.ge.f32.partialorder %v1263, 0.0
    %vm1566 = vcmp.ge.f32.partialorder %v1268, 0.0
    %vm1567 = vcmp.ge.f32.partialorder %v1273, 0.0
    %vm1568 = vcmp.ge.f32.partialorder %v1278, 0.0
    %vm1569 = vcmp.ge.f32.partialorder %v1283, 0.0
    %vm1570 = vcmp.ge.f32.partialorder %v1288, 0.0
    %vm1571 = vcmp.ge.f32.partialorder %v1293, 0.0
    %vm1572 = vcmp.ge.f32.partialorder %v1298, 0.0
    %vm1573 = vcmp.ge.f32.partialorder %v1303, 0.0
    %vm1574 = vcmp.ge.f32.partialorder %v1308, 0.0
    %vm1575 = vcmp.ge.f32.partialorder %v1313, 0.0
    %vm1576 = vcmp.ge.f32.partialorder %v1318, 0.0
    %vm1577 = vcmp.ge.f32.partialorder %v1323, 0.0
    %vm1578 = vcmp.ge.f32.partialorder %v1328, 0.0
    %vm1579 = vcmp.ge.f32.partialorder %v1333, 0.0
    %vm1580 = vcmp.ge.f32.partialorder %v1338, 0.0
    %vm1581 = vcmp.ge.f32.partialorder %v1343, 0.0
    %vm1582 = vcmp.ge.f32.partialorder %v1348, 0.0
    %vm1583 = vcmp.ge.f32.partialorder %v1353, 0.0
    %vm1584 = vcmp.ge.f32.partialorder %v1358, 0.0
    %vm1585 = vcmp.ge.f32.partialorder %v1363, 0.0
    %vm1586 = vcmp.ge.f32.partialorder %v1368, 0.0
    %vm1587 = vcmp.ge.f32.partialorder %v1373, 0.0
    %vm1588 = vcmp.ge.f32.partialorder %v1378, 0.0
    %vm1589 = vcmp.ge.f32.partialorder %v1383, 0.0
    %vm1590 = vcmp.ge.f32.partialorder %v1388, 0.0
    %vm1591 = vcmp.ge.f32.partialorder %v1393, 0.0
    %vm1592 = vcmp.ge.f32.partialorder %v1398, 0.0
    %vm1593 = vcmp.ge.f32.partialorder %v1403, 0.0
    %vm1594 = vcmp.ge.f32.partialorder %v1408, 0.0
    %vm1595 = vcmp.ge.f32.partialorder %v1413, 0.0
    %vm1596 = vcmp.ge.f32.partialorder %v1418, 0.0
    %vm1597 = vcmp.ge.f32.partialorder %v1423, 0.0
    %vm1598 = vcmp.ge.f32.partialorder %v1428, 0.0
    %vm1599 = vcmp.ge.f32.partialorder %v1433, 0.0
    %vm1600 = vcmp.ge.f32.partialorder %v1438, 0.0
    %vm1601 = vcmp.ge.f32.partialorder %v1443, 0.0
    %vm1602 = vcmp.ge.f32.partialorder %v1448, 0.0
    %vm1603 = vcmp.ge.f32.partialorder %v1453, 0.0
    %vm1604 = vcmp.ge.f32.partialorder %v1458, 0.0
    %vm1605 = vcmp.ge.f32.partialorder %v1463, 0.0
    %vm1606 = vcmp.ge.f32.partialorder %v1468, 0.0
    %vm1607 = vcmp.ge.f32.partialorder %v1473, 0.0
    %vm1608 = vcmp.ge.f32.partialorder %v1478, 0.0
    %vm1609 = vcmp.ge.f32.partialorder %v1483, 0.0
    %vm1610 = vcmp.ge.f32.partialorder %v1488, 0.0
    %vm1611 = vcmp.ge.f32.partialorder %v1493, 0.0
    %vm1612 = vcmp.ge.f32.partialorder %v1498, 0.0
    %vm1613 = vcmp.ge.f32.partialorder %v1503, 0.0
    %vm1614 = vcmp.ge.f32.partialorder %v1508, 0.0
    %vm1615 = vcmp.ge.f32.partialorder %v1513, 0.0
    %vm1616 = vcmp.ge.f32.partialorder %v1518, 0.0
    %vm1617 = vcmp.ge.f32.partialorder %v1523, 0.0
    %vm1618 = vcmp.ge.f32.partialorder %v1528, 0.0
    %vm1619 = vcmp.ge.f32.partialorder %v1533, 0.0
    %vm1620 = vcmp.ge.f32.partialorder %v1538, 0.0
    %vm1621 = vcmp.ge.f32.partialorder %v1543, 0.0
    %vm1622 = vcmp.ge.f32.partialorder %v1548, 0.0
    %vm1623 = vcmp.ge.f32.partialorder %v1553, 0.0
    %vm1624 = vcmp.ge.f32.partialorder %v1558, 0.0
    %v1625 = vmul.f32 %v1243, 0.01
    %v1626 = vmul.f32 %v1248, 0.01
    %v1627 = vmul.f32 %v1253, 0.01
    %v1628 = vmul.f32 %v1258, 0.01
    %v1629 = vmul.f32 %v1263, 0.01
    %v1630 = vmul.f32 %v1268, 0.01
    %v1631 = vmul.f32 %v1273, 0.01
    %v1632 = vmul.f32 %v1278, 0.01
    %v1633 = vmul.f32 %v1283, 0.01
    %v1634 = vmul.f32 %v1288, 0.01
    %v1635 = vmul.f32 %v1293, 0.01
    %v1636 = vmul.f32 %v1298, 0.01
    %v1637 = vmul.f32 %v1303, 0.01
    %v1638 = vmul.f32 %v1308, 0.01
    %v1639 = vmul.f32 %v1313, 0.01
    %v1640 = vmul.f32 %v1318, 0.01
    %v1641 = vmul.f32 %v1323, 0.01
    %v1642 = vmul.f32 %v1328, 0.01
    %v1643 = vmul.f32 %v1333, 0.01
    %v1644 = vmul.f32 %v1338, 0.01
    %v1645 = vmul.f32 %v1343, 0.01
    %v1646 = vmul.f32 %v1348, 0.01
    %v1647 = vmul.f32 %v1353, 0.01
    %v1648 = vmul.f32 %v1358, 0.01
    %v1649 = vmul.f32 %v1363, 0.01
    %v1650 = vmul.f32 %v1368, 0.01
    %v1651 = vmul.f32 %v1373, 0.01
    %v1652 = vmul.f32 %v1378, 0.01
    %v1653 = vmul.f32 %v1383, 0.01
    %v1654 = vmul.f32 %v1388, 0.01
    %v1655 = vmul.f32 %v1393, 0.01
    %v1656 = vmul.f32 %v1398, 0.01
    %v1657 = vmul.f32 %v1403, 0.01
    %v1658 = vmul.f32 %v1408, 0.01
    %v1659 = vmul.f32 %v1413, 0.01
    %v1660 = vmul.f32 %v1418, 0.01
    %v1661 = vmul.f32 %v1423, 0.01
    %v1662 = vmul.f32 %v1428, 0.01
    %v1663 = vmul.f32 %v1433, 0.01
    %v1664 = vmul.f32 %v1438, 0.01
    %v1665 = vmul.f32 %v1443, 0.01
    %v1666 = vmul.f32 %v1448, 0.01
    %v1667 = vmul.f32 %v1453, 0.01
    %v1668 = vmul.f32 %v1458, 0.01
    %v1669 = vmul.f32 %v1463, 0.01
    %v1670 = vmul.f32 %v1468, 0.01
    %v1671 = vmul.f32 %v1473, 0.01
    %v1672 = vmul.f32 %v1478, 0.01
    %v1673 = vmul.f32 %v1483, 0.01
    %v1674 = vmul.f32 %v1488, 0.01
    %v1675 = vmul.f32 %v1493, 0.01
    %v1676 = vmul.f32 %v1498, 0.01
    %v1677 = vmul.f32 %v1503, 0.01
    %v1678 = vmul.f32 %v1508, 0.01
    %v1679 = vmul.f32 %v1513, 0.01
    %v1680 = vmul.f32 %v1518, 0.01
    %v1681 = vmul.f32 %v1523, 0.01
    %v1682 = vmul.f32 %v1528, 0.01
    %v1683 = vmul.f32 %v1533, 0.01
    %v1684 = vmul.f32 %v1538, 0.01
    %v1685 = vmul.f32 %v1543, 0.01
    %v1686 = vmul.f32 %v1548, 0.01
    %v1687 = vmul.f32 %v1553, 0.01
    %v1688 = vmul.f32 %v1558, 0.01
    %v1689 = vsel %vm1561, %v1243, %v1625
    %v1690 = vsel %vm1562, %v1248, %v1626
    %v1691 = vsel %vm1563, %v1253, %v1627
    %v1692 = vsel %vm1564, %v1258, %v1628
    %v1693 = vsel %vm1565, %v1263, %v1629
    %v1694 = vsel %vm1566, %v1268, %v1630
    %v1695 = vsel %vm1567, %v1273, %v1631
    %v1696 = vsel %vm1568, %v1278, %v1632
    %v1697 = vsel %vm1569, %v1283, %v1633
    %v1698 = vsel %vm1570, %v1288, %v1634
    %v1699 = vsel %vm1571, %v1293, %v1635
    %v1700 = vsel %vm1572, %v1298, %v1636
    %v1701 = vsel %vm1573, %v1303, %v1637
    %v1702 = vsel %vm1574, %v1308, %v1638
    %v1703 = vsel %vm1575, %v1313, %v1639
    %v1704 = vsel %vm1576, %v1318, %v1640
    %v1705 = vsel %vm1577, %v1323, %v1641
    %v1706 = vsel %vm1578, %v1328, %v1642
    %v1707 = vsel %vm1579, %v1333, %v1643
    %v1708 = vsel %vm1580, %v1338, %v1644
    %v1709 = vsel %vm1581, %v1343, %v1645
    %v1710 = vsel %vm1582, %v1348, %v1646
    %v1711 = vsel %vm1583, %v1353, %v1647
    %v1712 = vsel %vm1584, %v1358, %v1648
    %v1713 = vsel %vm1585, %v1363, %v1649
    %v1714 = vsel %vm1586, %v1368, %v1650
    %v1715 = vsel %vm1587, %v1373, %v1651
    %v1716 = vsel %vm1588, %v1378, %v1652
    %v1717 = vsel %vm1589, %v1383, %v1653
    %v1718 = vsel %vm1590, %v1388, %v1654
    %v1719 = vsel %vm1591, %v1393, %v1655
    %v1720 = vsel %vm1592, %v1398, %v1656
    %v1721 = vsel %vm1593, %v1403, %v1657
    %v1722 = vsel %vm1594, %v1408, %v1658
    %v1723 = vsel %vm1595, %v1413, %v1659
    %v1724 = vsel %vm1596, %v1418, %v1660
    %v1725 = vsel %vm1597, %v1423, %v1661
    %v1726 = vsel %vm1598, %v1428, %v1662
    %v1727 = vsel %vm1599, %v1433, %v1663
    %v1728 = vsel %vm1600, %v1438, %v1664
    %v1729 = vsel %vm1601, %v1443, %v1665
    %v1730 = vsel %vm1602, %v1448, %v1666
    %v1731 = vsel %vm1603, %v1453, %v1667
    %v1732 = vsel %vm1604, %v1458, %v1668
    %v1733 = vsel %vm1605, %v1463, %v1669
    %v1734 = vsel %vm1606, %v1468, %v1670
    %v1735 = vsel %vm1607, %v1473, %v1671
    %v1736 = vsel %vm1608, %v1478, %v1672
    %v1737 = vsel %vm1609, %v1483, %v1673
    %v1738 = vsel %vm1610, %v1488, %v1674
    %v1739 = vsel %vm1611, %v1493, %v1675
    %v1740 = vsel %vm1612, %v1498, %v1676
    %v1741 = vsel %vm1613, %v1503, %v1677
    %v1742 = vsel %vm1614, %v1508, %v1678
    %v1743 = vsel %vm1615, %v1513, %v1679
    %v1744 = vsel %vm1616, %v1518, %v1680
    %v1745 = vsel %vm1617, %v1523, %v1681
    %v1746 = vsel %vm1618, %v1528, %v1682
    %v1747 = vsel %vm1619, %v1533, %v1683
    %v1748 = vsel %vm1620, %v1538, %v1684
    %v1749 = vsel %vm1621, %v1543, %v1685
    %v1750 = vsel %vm1622, %v1548, %v1686
    %v1751 = vsel %vm1623, %v1553, %v1687
    %v1752 = vsel %vm1624, %v1558, %v1688
    %v1753 = vld [vmem:[%s8] sm:$0x1]
    %vm1754 = vcmask 130048
    %1755 = vst.msk [vmem:[#allocation2] sm:$0xff] %vm1754, 0.0
    %1756 = vst.msk [vmem:[#allocation2 + $0x8] sm:$0xff] %vm1754, 0.0
    %vm1757 = vcmask 123904
    %1758 = vst.msk [vmem:[#allocation2 + $0x10] sm:$0x3] %vm1757, 0.0
    %1759 = vst.msk [vmem:[#allocation2 + $0x1e0] sm:$0xff] %vm1754, 0.0
    %1760 = vst.msk [vmem:[#allocation2 + $0x1e8] sm:$0xff] %vm1754, 0.0
    %1761 = vst.msk [vmem:[#allocation2 + $0x1f0] sm:$0x3] %vm1757, 0.0
    %s1762 = scalar_lea.vmem [#allocation2], 408
    %1763 = vst.msk [vmem:[%s1762] sm:$0xff] %vm1754, 0.0
    %1764 = vst.msk [vmem:[%s1762 + $0x8] sm:$0xff] %vm1754, 0.0
    %1765 = vst.msk [vmem:[%s1762 + $0x10] sm:$0x3] %vm1757, 0.0
    %1766 = vst.msk [vmem:[%s1762 + $0x1e0] sm:$0xff] %vm1754, 0.0
    %1767 = vst.msk [vmem:[%s1762 + $0x1e8] sm:$0xff] %vm1754, 0.0
    %1768 = vst.msk [vmem:[%s1762 + $0x1f0] sm:$0x3] %vm1757, 0.0
    %s1769 = scalar_lea.vmem [#allocation2], 24
    %vm1770 = vcmask 122880
    %1771 = vst.msk [vmem:[%s1769] sm:$0x1] %vm1770, 0.0
    %1772 = vst.msk [vmem:[%s1769 + $0x18] sm:$0x1] %vm1770, 0.0
    %1773 = vst.msk [vmem:[%s1769 + $0x30] sm:$0x1] %vm1770, 0.0
    %1774 = vst.msk [vmem:[%s1769 + $0x48] sm:$0x1] %vm1770, 0.0
    %1775 = vst.msk [vmem:[%s1769 + $0x60] sm:$0x1] %vm1770, 0.0
    %1776 = vst.msk [vmem:[%s1769 + $0x78] sm:$0x1] %vm1770, 0.0
    %1777 = vst.msk [vmem:[%s1769 + $0x90] sm:$0x1] %vm1770, 0.0
    %1778 = vst.msk [vmem:[%s1769 + $0xa8] sm:$0x1] %vm1770, 0.0
    %1779 = vst.msk [vmem:[%s1769 + $0xc0] sm:$0x1] %vm1770, 0.0
    %1780 = vst.msk [vmem:[%s1769 + $0xd8] sm:$0x1] %vm1770, 0.0
    %1781 = vst.msk [vmem:[%s1769 + $0xf0] sm:$0x1] %vm1770, 0.0
    %1782 = vst.msk [vmem:[%s1769 + $0x108] sm:$0x1] %vm1770, 0.0
    %1783 = vst.msk [vmem:[%s1769 + $0x120] sm:$0x1] %vm1770, 0.0
    %1784 = vst.msk [vmem:[%s1769 + $0x138] sm:$0x1] %vm1770, 0.0
    %1785 = vst.msk [vmem:[%s1769 + $0x150] sm:$0x1] %vm1770, 0.0
    %1786 = vst.msk [vmem:[%s1769 + $0x168] sm:$0x1] %vm1770, 0.0
    %1787 = vst.msk [vmem:[%s1769 + $0x1e0] sm:$0x1] %vm1770, 0.0
    %1788 = vst.msk [vmem:[%s1769 + $0x1f8] sm:$0x1] %vm1770, 0.0
    %1789 = vst.msk [vmem:[%s1769 + $0x210] sm:$0x1] %vm1770, 0.0
    %1790 = vst.msk [vmem:[%s1769 + $0x228] sm:$0x1] %vm1770, 0.0
    %1791 = vst.msk [vmem:[%s1769 + $0x240] sm:$0x1] %vm1770, 0.0
    %1792 = vst.msk [vmem:[%s1769 + $0x258] sm:$0x1] %vm1770, 0.0
    %1793 = vst.msk [vmem:[%s1769 + $0x270] sm:$0x1] %vm1770, 0.0
    %1794 = vst.msk [vmem:[%s1769 + $0x288] sm:$0x1] %vm1770, 0.0
    %1795 = vst.msk [vmem:[%s1769 + $0x2a0] sm:$0x1] %vm1770, 0.0
    %1796 = vst.msk [vmem:[%s1769 + $0x2b8] sm:$0x1] %vm1770, 0.0
    %1797 = vst.msk [vmem:[%s1769 + $0x2d0] sm:$0x1] %vm1770, 0.0
    %1798 = vst.msk [vmem:[%s1769 + $0x2e8] sm:$0x1] %vm1770, 0.0
    %1799 = vst.msk [vmem:[%s1769 + $0x300] sm:$0x1] %vm1770, 0.0
    %1800 = vst.msk [vmem:[%s1769 + $0x318] sm:$0x1] %vm1770, 0.0
    %1801 = vst.msk [vmem:[%s1769 + $0x330] sm:$0x1] %vm1770, 0.0
    %1802 = vst.msk [vmem:[%s1769 + $0x348] sm:$0x1] %vm1770, 0.0
    %1803 = vst.msk [vmem:[%s1769 + $0x11] sm:$0x1] %vm1770, 0.0
    %1804 = vst.msk [vmem:[%s1769 + $0x29] sm:$0x1] %vm1770, 0.0
    %1805 = vst.msk [vmem:[%s1769 + $0x41] sm:$0x1] %vm1770, 0.0
    %1806 = vst.msk [vmem:[%s1769 + $0x59] sm:$0x1] %vm1770, 0.0
    %1807 = vst.msk [vmem:[%s1769 + $0x71] sm:$0x1] %vm1770, 0.0
    %1808 = vst.msk [vmem:[%s1769 + $0x89] sm:$0x1] %vm1770, 0.0
    %1809 = vst.msk [vmem:[%s1769 + $0xa1] sm:$0x1] %vm1770, 0.0
    %1810 = vst.msk [vmem:[%s1769 + $0xb9] sm:$0x1] %vm1770, 0.0
    %1811 = vst.msk [vmem:[%s1769 + $0xd1] sm:$0x1] %vm1770, 0.0
    %1812 = vst.msk [vmem:[%s1769 + $0xe9] sm:$0x1] %vm1770, 0.0
    %1813 = vst.msk [vmem:[%s1769 + $0x101] sm:$0x1] %vm1770, 0.0
    %1814 = vst.msk [vmem:[%s1769 + $0x119] sm:$0x1] %vm1770, 0.0
    %1815 = vst.msk [vmem:[%s1769 + $0x131] sm:$0x1] %vm1770, 0.0
    %1816 = vst.msk [vmem:[%s1769 + $0x149] sm:$0x1] %vm1770, 0.0
    %1817 = vst.msk [vmem:[%s1769 + $0x161] sm:$0x1] %vm1770, 0.0
    %1818 = vst.msk [vmem:[%s1769 + $0x179] sm:$0x1] %vm1770, 0.0
    %1819 = vst.msk [vmem:[%s1769 + $0x1f1] sm:$0x1] %vm1770, 0.0
    %1820 = vst.msk [vmem:[%s1769 + $0x209] sm:$0x1] %vm1770, 0.0
    %1821 = vst.msk [vmem:[%s1769 + $0x221] sm:$0x1] %vm1770, 0.0
    %1822 = vst.msk [vmem:[%s1769 + $0x239] sm:$0x1] %vm1770, 0.0
    %1823 = vst.msk [vmem:[%s1769 + $0x251] sm:$0x1] %vm1770, 0.0
    %1824 = vst.msk [vmem:[%s1769 + $0x269] sm:$0x1] %vm1770, 0.0
    %1825 = vst.msk [vmem:[%s1769 + $0x281] sm:$0x1] %vm1770, 0.0
    %1826 = vst.msk [vmem:[%s1769 + $0x299] sm:$0x1] %vm1770, 0.0
    %1827 = vst.msk [vmem:[%s1769 + $0x2b1] sm:$0x1] %vm1770, 0.0
    %1828 = vst.msk [vmem:[%s1769 + $0x2c9] sm:$0x1] %vm1770, 0.0
    %1829 = vst.msk [vmem:[%s1769 + $0x2e1] sm:$0x1] %vm1770, 0.0
    %1830 = vst.msk [vmem:[%s1769 + $0x2f9] sm:$0x1] %vm1770, 0.0
    %1831 = vst.msk [vmem:[%s1769 + $0x311] sm:$0x1] %vm1770, 0.0
    %1832 = vst.msk [vmem:[%s1769 + $0x329] sm:$0x1] %vm1770, 0.0
    %1833 = vst.msk [vmem:[%s1769 + $0x341] sm:$0x1] %vm1770, 0.0
    %1834 = vst.msk [vmem:[%s1769 + $0x359] sm:$0x1] %vm1770, 0.0
    %1835 = vst.msk [vmem:[%s1769 + $0x1] sm:$0xff] %vm1754, %v1689
    %1836 = vst.msk [vmem:[%s1769 + $0x9] sm:$0xff] %vm1754, %v1690
    %1837 = vst.msk [vmem:[%s1769 + $0x19] sm:$0xff] %vm1754, %v1691
    %1838 = vst.msk [vmem:[%s1769 + $0x21] sm:$0xff] %vm1754, %v1692
    %1839 = vst.msk [vmem:[%s1769 + $0x31] sm:$0xff] %vm1754, %v1693
    %1840 = vst.msk [vmem:[%s1769 + $0x39] sm:$0xff] %vm1754, %v1694
    %1841 = vst.msk [vmem:[%s1769 + $0x49] sm:$0xff] %vm1754, %v1695
    %1842 = vst.msk [vmem:[%s1769 + $0x51] sm:$0xff] %vm1754, %v1696
    %1843 = vst.msk [vmem:[%s1769 + $0x61] sm:$0xff] %vm1754, %v1697
    %1844 = vst.msk [vmem:[%s1769 + $0x69] sm:$0xff] %vm1754, %v1698
    %1845 = vst.msk [vmem:[%s1769 + $0x79] sm:$0xff] %vm1754, %v1699
    %1846 = vst.msk [vmem:[%s1769 + $0x81] sm:$0xff] %vm1754, %v1700
    %1847 = vst.msk [vmem:[%s1769 + $0x91] sm:$0xff] %vm1754, %v1701
    %1848 = vst.msk [vmem:[%s1769 + $0x99] sm:$0xff] %vm1754, %v1702
    %1849 = vst.msk [vmem:[%s1769 + $0xa9] sm:$0xff] %vm1754, %v1703
    %1850 = vst.msk [vmem:[%s1769 + $0xb1] sm:$0xff] %vm1754, %v1704
    %1851 = vst.msk [vmem:[%s1769 + $0xc1] sm:$0xff] %vm1754, %v1705
    %1852 = vst.msk [vmem:[%s1769 + $0xc9] sm:$0xff] %vm1754, %v1706
    %1853 = vst.msk [vmem:[%s1769 + $0xd9] sm:$0xff] %vm1754, %v1707
    %1854 = vst.msk [vmem:[%s1769 + $0xe1] sm:$0xff] %vm1754, %v1708
    %1855 = vst.msk [vmem:[%s1769 + $0xf1] sm:$0xff] %vm1754, %v1709
    %1856 = vst.msk [vmem:[%s1769 + $0xf9] sm:$0xff] %vm1754, %v1710
    %1857 = vst.msk [vmem:[%s1769 + $0x109] sm:$0xff] %vm1754, %v1711
    %1858 = vst.msk [vmem:[%s1769 + $0x111] sm:$0xff] %vm1754, %v1712
    %1859 = vst.msk [vmem:[%s1769 + $0x121] sm:$0xff] %vm1754, %v1713
    %1860 = vst.msk [vmem:[%s1769 + $0x129] sm:$0xff] %vm1754, %v1714
    %1861 = vst.msk [vmem:[%s1769 + $0x139] sm:$0xff] %vm1754, %v1715
    %1862 = vst.msk [vmem:[%s1769 + $0x141] sm:$0xff] %vm1754, %v1716
    %1863 = vst.msk [vmem:[%s1769 + $0x151] sm:$0xff] %vm1754, %v1717
    %1864 = vst.msk [vmem:[%s1769 + $0x159] sm:$0xff] %vm1754, %v1718
    %1865 = vst.msk [vmem:[%s1769 + $0x169] sm:$0xff] %vm1754, %v1719
    %1866 = vst.msk [vmem:[%s1769 + $0x171] sm:$0xff] %vm1754, %v1720
    %1867 = vst.msk [vmem:[%s1769 + $0x1e1] sm:$0xff] %vm1754, %v1721
    %1868 = vst.msk [vmem:[%s1769 + $0x1e9] sm:$0xff] %vm1754, %v1722
    %1869 = vst.msk [vmem:[%s1769 + $0x1f9] sm:$0xff] %vm1754, %v1723
    %1870 = vst.msk [vmem:[%s1769 + $0x201] sm:$0xff] %vm1754, %v1724
    %1871 = vst.msk [vmem:[%s1769 + $0x211] sm:$0xff] %vm1754, %v1725
    %1872 = vst.msk [vmem:[%s1769 + $0x219] sm:$0xff] %vm1754, %v1726
    %1873 = vst.msk [vmem:[%s1769 + $0x229] sm:$0xff] %vm1754, %v1727
    %1874 = vst.msk [vmem:[%s1769 + $0x231] sm:$0xff] %vm1754, %v1728
    %1875 = vst.msk [vmem:[%s1769 + $0x241] sm:$0xff] %vm1754, %v1729
    %1876 = vst.msk [vmem:[%s1769 + $0x249] sm:$0xff] %vm1754, %v1730
    %1877 = vst.msk [vmem:[%s1769 + $0x259] sm:$0xff] %vm1754, %v1731
    %1878 = vst.msk [vmem:[%s1769 + $0x261] sm:$0xff] %vm1754, %v1732
    %1879 = vst.msk [vmem:[%s1769 + $0x271] sm:$0xff] %vm1754, %v1733
    %1880 = vst.msk [vmem:[%s1769 + $0x279] sm:$0xff] %vm1754, %v1734
    %1881 = vst.msk [vmem:[%s1769 + $0x289] sm:$0xff] %vm1754, %v1735
    %1882 = vst.msk [vmem:[%s1769 + $0x291] sm:$0xff] %vm1754, %v1736
    %1883 = vst.msk [vmem:[%s1769 + $0x2a1] sm:$0xff] %vm1754, %v1737
    %1884 = vst.msk [vmem:[%s1769 + $0x2a9] sm:$0xff] %vm1754, %v1738
    %1885 = vst.msk [vmem:[%s1769 + $0x2b9] sm:$0xff] %vm1754, %v1739
    %1886 = vst.msk [vmem:[%s1769 + $0x2c1] sm:$0xff] %vm1754, %v1740
    %1887 = vst.msk [vmem:[%s1769 + $0x2d1] sm:$0xff] %vm1754, %v1741
    %1888 = vst.msk [vmem:[%s1769 + $0x2d9] sm:$0xff] %vm1754, %v1742
    %1889 = vst.msk [vmem:[%s1769 + $0x2e9] sm:$0xff] %vm1754, %v1743
    %1890 = vst.msk [vmem:[%s1769 + $0x2f1] sm:$0xff] %vm1754, %v1744
    %1891 = vst.msk [vmem:[%s1769 + $0x301] sm:$0xff] %vm1754, %v1745
    %1892 = vst.msk [vmem:[%s1769 + $0x309] sm:$0xff] %vm1754, %v1746
    %1893 = vst.msk [vmem:[%s1769 + $0x319] sm:$0xff] %vm1754, %v1747
    %1894 = vst.msk [vmem:[%s1769 + $0x321] sm:$0xff] %vm1754, %v1748
    %1895 = vst.msk [vmem:[%s1769 + $0x331] sm:$0xff] %vm1754, %v1749
    %1896 = vst.msk [vmem:[%s1769 + $0x339] sm:$0xff] %vm1754, %v1750
    %1897 = vst.msk [vmem:[%s1769 + $0x349] sm:$0xff] %vm1754, %v1751
    %1898 = vst.msk [vmem:[%s1769 + $0x351] sm:$0xff] %vm1754, %v1752
    %v1899 = vld [vmem:[%s7] sm:$0xff]
    %v1900 = vld [vmem:[%s7 + $0x8] sm:$0x1]
    %v1901 = vld [vmem:[#allocation2] sm:$0xff]
    %v1902 = vld [vmem:[#allocation2 + $0x8] sm:$0xff]
    %v1903 = vld [vmem:[#allocation2 + $0x18] sm:$0xff]
    %v1904 = vld [vmem:[#allocation2 + $0x20] sm:$0xff]
    %v1905 = vld [vmem:[#allocation2 + $0x30] sm:$0xff]
    %v1906 = vld [vmem:[#allocation2 + $0x38] sm:$0xff]
    %v1907 = vld [vmem:[#allocation2 + $0x48] sm:$0xff]
    %v1908 = vld [vmem:[#allocation2 + $0x50] sm:$0xff]
    %v1909 = vld [vmem:[#allocation2 + $0x60] sm:$0xff]
    %v1910 = vld [vmem:[#allocation2 + $0x68] sm:$0xff]
    %v1911 = vld [vmem:[#allocation2 + $0x78] sm:$0xff]
    %v1912 = vld [vmem:[#allocation2 + $0x80] sm:$0xff]
    %v1913 = vld [vmem:[#allocation2 + $0x90] sm:$0xff]
    %v1914 = vld [vmem:[#allocation2 + $0x98] sm:$0xff]
    %v1915 = vld [vmem:[#allocation2 + $0xa8] sm:$0xff]
    %v1916 = vld [vmem:[#allocation2 + $0xb0] sm:$0xff]
    %v1917 = vld [vmem:[#allocation2 + $0xc0] sm:$0xff]
    %v1918 = vld [vmem:[#allocation2 + $0xc8] sm:$0xff]
    %v1919 = vld [vmem:[#allocation2 + $0xd8] sm:$0xff]
    %v1920 = vld [vmem:[#allocation2 + $0xe0] sm:$0xff]
    %v1921 = vld [vmem:[#allocation2 + $0xf0] sm:$0xff]
    %v1922 = vld [vmem:[#allocation2 + $0xf8] sm:$0xff]
    %v1923 = vld [vmem:[#allocation2 + $0x108] sm:$0xff]
    %v1924 = vld [vmem:[#allocation2 + $0x110] sm:$0xff]
    %v1925 = vld [vmem:[#allocation2 + $0x120] sm:$0xff]
    %v1926 = vld [vmem:[#allocation2 + $0x128] sm:$0xff]
    %v1927 = vld [vmem:[#allocation2 + $0x138] sm:$0xff]
    %v1928 = vld [vmem:[#allocation2 + $0x140] sm:$0xff]
    %v1929 = vld [vmem:[#allocation2 + $0x150] sm:$0xff]
    %v1930 = vld [vmem:[#allocation2 + $0x158] sm:$0xff]
    %v1931 = vld [vmem:[#allocation2 + $0x168] sm:$0xff]
    %v1932 = vld [vmem:[#allocation2 + $0x170] sm:$0xff]
    %v1933 = vld [vmem:[#allocation2 + $0x1e0] sm:$0xff]
    %v1934 = vld [vmem:[#allocation2 + $0x1e8] sm:$0xff]
    %v1935 = vld [vmem:[#allocation2 + $0x1f8] sm:$0xff]
    %v1936 = vld [vmem:[#allocation2 + $0x200] sm:$0xff]
    %v1937 = vld [vmem:[#allocation2 + $0x210] sm:$0xff]
    %v1938 = vld [vmem:[#allocation2 + $0x218] sm:$0xff]
    %v1939 = vld [vmem:[#allocation2 + $0x228] sm:$0xff]
    %v1940 = vld [vmem:[#allocation2 + $0x230] sm:$0xff]
    %v1941 = vld [vmem:[#allocation2 + $0x240] sm:$0xff]
    %v1942 = vld [vmem:[#allocation2 + $0x248] sm:$0xff]
    %v1943 = vld [vmem:[#allocation2 + $0x258] sm:$0xff]
    %v1944 = vld [vmem:[#allocation2 + $0x260] sm:$0xff]
    %v1945 = vld [vmem:[#allocation2 + $0x270] sm:$0xff]
    %v1946 = vld [vmem:[#allocation2 + $0x278] sm:$0xff]
    %v1947 = vld [vmem:[#allocation2 + $0x288] sm:$0xff]
    %v1948 = vld [vmem:[#allocation2 + $0x290] sm:$0xff]
    %v1949 = vld [vmem:[#allocation2 + $0x2a0] sm:$0xff]
    %v1950 = vld [vmem:[#allocation2 + $0x2a8] sm:$0xff]
    %v1951 = vld [vmem:[#allocation2 + $0x2b8] sm:$0xff]
    %v1952 = vld [vmem:[#allocation2 + $0x2c0] sm:$0xff]
    %v1953 = vld [vmem:[#allocation2 + $0x2d0] sm:$0xff]
    %v1954 = vld [vmem:[#allocation2 + $0x2d8] sm:$0xff]
    %v1955 = vld [vmem:[#allocation2 + $0x2e8] sm:$0xff]
    %v1956 = vld [vmem:[#allocation2 + $0x2f0] sm:$0xff]
    %v1957 = vld [vmem:[#allocation2 + $0x300] sm:$0xff]
    %v1958 = vld [vmem:[#allocation2 + $0x308] sm:$0xff]
    %v1959 = vld [vmem:[#allocation2 + $0x318] sm:$0xff]
    %v1960 = vld [vmem:[#allocation2 + $0x320] sm:$0xff]
    %v1961 = vld [vmem:[#allocation2 + $0x330] sm:$0xff]
    %v1962 = vld [vmem:[#allocation2 + $0x338] sm:$0xff]
    %v1963 = vld [vmem:[#allocation2 + $0x348] sm:$0xff]
    %v1964 = vld [vmem:[#allocation2 + $0x350] sm:$0xff]
    %v1965 = vlaneseq
    %v1966 = vshrl.u32 %v1965, 7
    %v1967 = vsub.s32 0, %v1966
    %v1968 = vrot.slane %v1899, %v1967
    %v1969 = vmul.f32 %v1901, %v1968
    %v1970 = vmul.f32 %v1902, %v1968
    %v1971 = vmul.f32 %v1903, %v1968
    %v1972 = vmul.f32 %v1904, %v1968
    %v1973 = vmul.f32 %v1905, %v1968
    %v1974 = vmul.f32 %v1906, %v1968
    %v1975 = vmul.f32 %v1907, %v1968
    %v1976 = vmul.f32 %v1908, %v1968
    %v1977 = vmul.f32 %v1909, %v1968
    %v1978 = vmul.f32 %v1910, %v1968
    %v1979 = vmul.f32 %v1911, %v1968
    %v1980 = vmul.f32 %v1912, %v1968
    %v1981 = vmul.f32 %v1913, %v1968
    %v1982 = vmul.f32 %v1914, %v1968
    %v1983 = vmul.f32 %v1915, %v1968
    %v1984 = vmul.f32 %v1916, %v1968
    %v1985 = vmul.f32 %v1917, %v1968
    %v1986 = vmul.f32 %v1918, %v1968
    %v1987 = vmul.f32 %v1919, %v1968
    %v1988 = vmul.f32 %v1920, %v1968
    %v1989 = vmul.f32 %v1921, %v1968
    %v1990 = vmul.f32 %v1922, %v1968
    %v1991 = vmul.f32 %v1923, %v1968
    %v1992 = vmul.f32 %v1924, %v1968
    %v1993 = vmul.f32 %v1925, %v1968
    %v1994 = vmul.f32 %v1926, %v1968
    %v1995 = vmul.f32 %v1927, %v1968
    %v1996 = vmul.f32 %v1928, %v1968
    %v1997 = vmul.f32 %v1929, %v1968
    %v1998 = vmul.f32 %v1930, %v1968
    %v1999 = vmul.f32 %v1931, %v1968
    %v2000 = vmul.f32 %v1932, %v1968
    %v2001 = vmul.f32 %v1933, %v1968
    %v2002 = vmul.f32 %v1934, %v1968
    %v2003 = vmul.f32 %v1935, %v1968
    %v2004 = vmul.f32 %v1936, %v1968
    %v2005 = vmul.f32 %v1937, %v1968
    %v2006 = vmul.f32 %v1938, %v1968
    %v2007 = vmul.f32 %v1939, %v1968
    %v2008 = vmul.f32 %v1940, %v1968
    %v2009 = vmul.f32 %v1941, %v1968
    %v2010 = vmul.f32 %v1942, %v1968
    %v2011 = vmul.f32 %v1943, %v1968
    %v2012 = vmul.f32 %v1944, %v1968
    %v2013 = vmul.f32 %v1945, %v1968
    %v2014 = vmul.f32 %v1946, %v1968
    %v2015 = vmul.f32 %v1947, %v1968
    %v2016 = vmul.f32 %v1948, %v1968
    %v2017 = vmul.f32 %v1949, %v1968
    %v2018 = vmul.f32 %v1950, %v1968
    %v2019 = vmul.f32 %v1951, %v1968
    %v2020 = vmul.f32 %v1952, %v1968
    %v2021 = vmul.f32 %v1953, %v1968
    %v2022 = vmul.f32 %v1954, %v1968
    %v2023 = vmul.f32 %v1955, %v1968
    %v2024 = vmul.f32 %v1956, %v1968
    %v2025 = vmul.f32 %v1957, %v1968
    %v2026 = vmul.f32 %v1958, %v1968
    %v2027 = vmul.f32 %v1959, %v1968
    %v2028 = vmul.f32 %v1960, %v1968
    %v2029 = vmul.f32 %v1961, %v1968
    %v2030 = vmul.f32 %v1962, %v1968
    %v2031 = vmul.f32 %v1963, %v1968
    %v2032 = vmul.f32 %v1964, %v1968
    %v2033 = vadd.f32 %v1969, 0.0
    %v2034 = vadd.f32 %v1970, 0.0
    %v2035 = vadd.f32 %v1971, 0.0
    %v2036 = vadd.f32 %v1972, 0.0
    %v2037 = vadd.f32 %v1973, 0.0
    %v2038 = vadd.f32 %v1974, 0.0
    %v2039 = vadd.f32 %v1975, 0.0
    %v2040 = vadd.f32 %v1976, 0.0
    %v2041 = vadd.f32 %v1977, 0.0
    %v2042 = vadd.f32 %v1978, 0.0
    %v2043 = vadd.f32 %v1979, 0.0
    %v2044 = vadd.f32 %v1980, 0.0
    %v2045 = vadd.f32 %v1981, 0.0
    %v2046 = vadd.f32 %v1982, 0.0
    %v2047 = vadd.f32 %v1983, 0.0
    %v2048 = vadd.f32 %v1984, 0.0
    %v2049 = vadd.f32 %v1985, 0.0
    %v2050 = vadd.f32 %v1986, 0.0
    %v2051 = vadd.f32 %v1987, 0.0
    %v2052 = vadd.f32 %v1988, 0.0
    %v2053 = vadd.f32 %v1989, 0.0
    %v2054 = vadd.f32 %v1990, 0.0
    %v2055 = vadd.f32 %v1991, 0.0
    %v2056 = vadd.f32 %v1992, 0.0
    %v2057 = vadd.f32 %v1993, 0.0
    %v2058 = vadd.f32 %v1994, 0.0
    %v2059 = vadd.f32 %v1995, 0.0
    %v2060 = vadd.f32 %v1996, 0.0
    %v2061 = vadd.f32 %v1997, 0.0
    %v2062 = vadd.f32 %v1998, 0.0
    %v2063 = vadd.f32 %v1999, 0.0
    %v2064 = vadd.f32 %v2000, 0.0
    %v2065 = vadd.f32 %v2001, 0.0
    %v2066 = vadd.f32 %v2002, 0.0
    %v2067 = vadd.f32 %v2003, 0.0
    %v2068 = vadd.f32 %v2004, 0.0
    %v2069 = vadd.f32 %v2005, 0.0
    %v2070 = vadd.f32 %v2006, 0.0
    %v2071 = vadd.f32 %v2007, 0.0
    %v2072 = vadd.f32 %v2008, 0.0
    %v2073 = vadd.f32 %v2009, 0.0
    %v2074 = vadd.f32 %v2010, 0.0
    %v2075 = vadd.f32 %v2011, 0.0
    %v2076 = vadd.f32 %v2012, 0.0
    %v2077 = vadd.f32 %v2013, 0.0
    %v2078 = vadd.f32 %v2014, 0.0
    %v2079 = vadd.f32 %v2015, 0.0
    %v2080 = vadd.f32 %v2016, 0.0
    %v2081 = vadd.f32 %v2017, 0.0
    %v2082 = vadd.f32 %v2018, 0.0
    %v2083 = vadd.f32 %v2019, 0.0
    %v2084 = vadd.f32 %v2020, 0.0
    %v2085 = vadd.f32 %v2021, 0.0
    %v2086 = vadd.f32 %v2022, 0.0
    %v2087 = vadd.f32 %v2023, 0.0
    %v2088 = vadd.f32 %v2024, 0.0
    %v2089 = vadd.f32 %v2025, 0.0
    %v2090 = vadd.f32 %v2026, 0.0
    %v2091 = vadd.f32 %v2027, 0.0
    %v2092 = vadd.f32 %v2028, 0.0
    %v2093 = vadd.f32 %v2029, 0.0
    %v2094 = vadd.f32 %v2030, 0.0
    %v2095 = vadd.f32 %v2031, 0.0
    %v2096 = vadd.f32 %v2032, 0.0
    %v2097 = vld [vmem:[#allocation2 + $0x1] sm:$0xff]
    %v2098 = vld [vmem:[#allocation2 + $0x9] sm:$0xff]
    %v2099 = vld [vmem:[#allocation2 + $0x19] sm:$0xff]
    %v2100 = vld [vmem:[#allocation2 + $0x21] sm:$0xff]
    %v2101 = vld [vmem:[#allocation2 + $0x31] sm:$0xff]
    %v2102 = vld [vmem:[#allocation2 + $0x39] sm:$0xff]
    %v2103 = vld [vmem:[#allocation2 + $0x49] sm:$0xff]
    %v2104 = vld [vmem:[#allocation2 + $0x51] sm:$0xff]
    %v2105 = vld [vmem:[#allocation2 + $0x61] sm:$0xff]
    %v2106 = vld [vmem:[#allocation2 + $0x69] sm:$0xff]
    %v2107 = vld [vmem:[#allocation2 + $0x79] sm:$0xff]
    %v2108 = vld [vmem:[#allocation2 + $0x81] sm:$0xff]
    %v2109 = vld [vmem:[#allocation2 + $0x91] sm:$0xff]
    %v2110 = vld [vmem:[#allocation2 + $0x99] sm:$0xff]
    %v2111 = vld [vmem:[#allocation2 + $0xa9] sm:$0xff]
    %v2112 = vld [vmem:[#allocation2 + $0xb1] sm:$0xff]
    %v2113 = vld [vmem:[#allocation2 + $0xc1] sm:$0xff]
    %v2114 = vld [vmem:[#allocation2 + $0xc9] sm:$0xff]
    %v2115 = vld [vmem:[#allocation2 + $0xd9] sm:$0xff]
    %v2116 = vld [vmem:[#allocation2 + $0xe1] sm:$0xff]
    %v2117 = vld [vmem:[#allocation2 + $0xf1] sm:$0xff]
    %v2118 = vld [vmem:[#allocation2 + $0xf9] sm:$0xff]
    %v2119 = vld [vmem:[#allocation2 + $0x109] sm:$0xff]
    %v2120 = vld [vmem:[#allocation2 + $0x111] sm:$0xff]
    %v2121 = vld [vmem:[#allocation2 + $0x121] sm:$0xff]
    %v2122 = vld [vmem:[#allocation2 + $0x129] sm:$0xff]
    %v2123 = vld [vmem:[#allocation2 + $0x139] sm:$0xff]
    %v2124 = vld [vmem:[#allocation2 + $0x141] sm:$0xff]
    %v2125 = vld [vmem:[#allocation2 + $0x151] sm:$0xff]
    %v2126 = vld [vmem:[#allocation2 + $0x159] sm:$0xff]
    %v2127 = vld [vmem:[#allocation2 + $0x169] sm:$0xff]
    %v2128 = vld [vmem:[#allocation2 + $0x171] sm:$0xff]
    %v2129 = vld [vmem:[#allocation2 + $0x1e1] sm:$0xff]
    %v2130 = vld [vmem:[#allocation2 + $0x1e9] sm:$0xff]
    %v2131 = vld [vmem:[#allocation2 + $0x1f9] sm:$0xff]
    %v2132 = vld [vmem:[#allocation2 + $0x201] sm:$0xff]
    %v2133 = vld [vmem:[#allocation2 + $0x211] sm:$0xff]
    %v2134 = vld [vmem:[#allocation2 + $0x219] sm:$0xff]
    %v2135 = vld [vmem:[#allocation2 + $0x229] sm:$0xff]
    %v2136 = vld [vmem:[#allocation2 + $0x231] sm:$0xff]
    %v2137 = vld [vmem:[#allocation2 + $0x241] sm:$0xff]
    %v2138 = vld [vmem:[#allocation2 + $0x249] sm:$0xff]
    %v2139 = vld [vmem:[#allocation2 + $0x259] sm:$0xff]
    %v2140 = vld [vmem:[#allocation2 + $0x261] sm:$0xff]
    %v2141 = vld [vmem:[#allocation2 + $0x271] sm:$0xff]
    %v2142 = vld [vmem:[#allocation2 + $0x279] sm:$0xff]
    %v2143 = vld [vmem:[#allocation2 + $0x289] sm:$0xff]
    %v2144 = vld [vmem:[#allocation2 + $0x291] sm:$0xff]
    %v2145 = vld [vmem:[#allocation2 + $0x2a1] sm:$0xff]
    %v2146 = vld [vmem:[#allocation2 + $0x2a9] sm:$0xff]
    %v2147 = vld [vmem:[#allocation2 + $0x2b9] sm:$0xff]
    %v2148 = vld [vmem:[#allocation2 + $0x2c1] sm:$0xff]
    %v2149 = vld [vmem:[#allocation2 + $0x2d1] sm:$0xff]
    %v2150 = vld [vmem:[#allocation2 + $0x2d9] sm:$0xff]
    %v2151 = vld [vmem:[#allocation2 + $0x2e9] sm:$0xff]
    %v2152 = vld [vmem:[#allocation2 + $0x2f1] sm:$0xff]
    %v2153 = vld [vmem:[#allocation2 + $0x301] sm:$0xff]
    %v2154 = vld [vmem:[#allocation2 + $0x309] sm:$0xff]
    %v2155 = vld [vmem:[#allocation2 + $0x319] sm:$0xff]
    %v2156 = vld [vmem:[#allocation2 + $0x321] sm:$0xff]
    %v2157 = vld [vmem:[#allocation2 + $0x331] sm:$0xff]
    %v2158 = vld [vmem:[#allocation2 + $0x339] sm:$0xff]
    %v2159 = vld [vmem:[#allocation2 + $0x349] sm:$0xff]
    %v2160 = vld [vmem:[#allocation2 + $0x351] sm:$0xff]
    %v2161 = vlaneseq
    %v2162 = vshrl.u32 %v2161, 7
    %v2163 = vsub.s32 1, %v2162
    %v2164 = vrot.slane %v1899, %v2163
    %v2165 = vmul.f32 %v2097, %v2164
    %v2166 = vmul.f32 %v2098, %v2164
    %v2167 = vmul.f32 %v2099, %v2164
    %v2168 = vmul.f32 %v2100, %v2164
    %v2169 = vmul.f32 %v2101, %v2164
    %v2170 = vmul.f32 %v2102, %v2164
    %v2171 = vmul.f32 %v2103, %v2164
    %v2172 = vmul.f32 %v2104, %v2164
    %v2173 = vmul.f32 %v2105, %v2164
    %v2174 = vmul.f32 %v2106, %v2164
    %v2175 = vmul.f32 %v2107, %v2164
    %v2176 = vmul.f32 %v2108, %v2164
    %v2177 = vmul.f32 %v2109, %v2164
    %v2178 = vmul.f32 %v2110, %v2164
    %v2179 = vmul.f32 %v2111, %v2164
    %v2180 = vmul.f32 %v2112, %v2164
    %v2181 = vmul.f32 %v2113, %v2164
    %v2182 = vmul.f32 %v2114, %v2164
    %v2183 = vmul.f32 %v2115, %v2164
    %v2184 = vmul.f32 %v2116, %v2164
    %v2185 = vmul.f32 %v2117, %v2164
    %v2186 = vmul.f32 %v2118, %v2164
    %v2187 = vmul.f32 %v2119, %v2164
    %v2188 = vmul.f32 %v2120, %v2164
    %v2189 = vmul.f32 %v2121, %v2164
    %v2190 = vmul.f32 %v2122, %v2164
    %v2191 = vmul.f32 %v2123, %v2164
    %v2192 = vmul.f32 %v2124, %v2164
    %v2193 = vmul.f32 %v2125, %v2164
    %v2194 = vmul.f32 %v2126, %v2164
    %v2195 = vmul.f32 %v2127, %v2164
    %v2196 = vmul.f32 %v2128, %v2164
    %v2197 = vmul.f32 %v2129, %v2164
    %v2198 = vmul.f32 %v2130, %v2164
    %v2199 = vmul.f32 %v2131, %v2164
    %v2200 = vmul.f32 %v2132, %v2164
    %v2201 = vmul.f32 %v2133, %v2164
    %v2202 = vmul.f32 %v2134, %v2164
    %v2203 = vmul.f32 %v2135, %v2164
    %v2204 = vmul.f32 %v2136, %v2164
    %v2205 = vmul.f32 %v2137, %v2164
    %v2206 = vmul.f32 %v2138, %v2164
    %v2207 = vmul.f32 %v2139, %v2164
    %v2208 = vmul.f32 %v2140, %v2164
    %v2209 = vmul.f32 %v2141, %v2164
    %v2210 = vmul.f32 %v2142, %v2164
    %v2211 = vmul.f32 %v2143, %v2164
    %v2212 = vmul.f32 %v2144, %v2164
    %v2213 = vmul.f32 %v2145, %v2164
    %v2214 = vmul.f32 %v2146, %v2164
    %v2215 = vmul.f32 %v2147, %v2164
    %v2216 = vmul.f32 %v2148, %v2164
    %v2217 = vmul.f32 %v2149, %v2164
    %v2218 = vmul.f32 %v2150, %v2164
    %v2219 = vmul.f32 %v2151, %v2164
    %v2220 = vmul.f32 %v2152, %v2164
    %v2221 = vmul.f32 %v2153, %v2164
    %v2222 = vmul.f32 %v2154, %v2164
    %v2223 = vmul.f32 %v2155, %v2164
    %v2224 = vmul.f32 %v2156, %v2164
    %v2225 = vmul.f32 %v2157, %v2164
    %v2226 = vmul.f32 %v2158, %v2164
    %v2227 = vmul.f32 %v2159, %v2164
    %v2228 = vmul.f32 %v2160, %v2164
    %v2229 = vadd.f32 %v2033, %v2165
    %v2230 = vadd.f32 %v2034, %v2166
    %v2231 = vadd.f32 %v2035, %v2167
    %v2232 = vadd.f32 %v2036, %v2168
    %v2233 = vadd.f32 %v2037, %v2169
    %v2234 = vadd.f32 %v2038, %v2170
    %v2235 = vadd.f32 %v2039, %v2171
    %v2236 = vadd.f32 %v2040, %v2172
    %v2237 = vadd.f32 %v2041, %v2173
    %v2238 = vadd.f32 %v2042, %v2174
    %v2239 = vadd.f32 %v2043, %v2175
    %v2240 = vadd.f32 %v2044, %v2176
    %v2241 = vadd.f32 %v2045, %v2177
    %v2242 = vadd.f32 %v2046, %v2178
    %v2243 = vadd.f32 %v2047, %v2179
    %v2244 = vadd.f32 %v2048, %v2180
    %v2245 = vadd.f32 %v2049, %v2181
    %v2246 = vadd.f32 %v2050, %v2182
    %v2247 = vadd.f32 %v2051, %v2183
    %v2248 = vadd.f32 %v2052, %v2184
    %v2249 = vadd.f32 %v2053, %v2185
    %v2250 = vadd.f32 %v2054, %v2186
    %v2251 = vadd.f32 %v2055, %v2187
    %v2252 = vadd.f32 %v2056, %v2188
    %v2253 = vadd.f32 %v2057, %v2189
    %v2254 = vadd.f32 %v2058, %v2190
    %v2255 = vadd.f32 %v2059, %v2191
    %v2256 = vadd.f32 %v2060, %v2192
    %v2257 = vadd.f32 %v2061, %v2193
    %v2258 = vadd.f32 %v2062, %v2194
    %v2259 = vadd.f32 %v2063, %v2195
    %v2260 = vadd.f32 %v2064, %v2196
    %v2261 = vadd.f32 %v2065, %v2197
    %v2262 = vadd.f32 %v2066, %v2198
    %v2263 = vadd.f32 %v2067, %v2199
    %v2264 = vadd.f32 %v2068, %v2200
    %v2265 = vadd.f32 %v2069, %v2201
    %v2266 = vadd.f32 %v2070, %v2202
    %v2267 = vadd.f32 %v2071, %v2203
    %v2268 = vadd.f32 %v2072, %v2204
    %v2269 = vadd.f32 %v2073, %v2205
    %v2270 = vadd.f32 %v2074, %v2206
    %v2271 = vadd.f32 %v2075, %v2207
    %v2272 = vadd.f32 %v2076, %v2208
    %v2273 = vadd.f32 %v2077, %v2209
    %v2274 = vadd.f32 %v2078, %v2210
    %v2275 = vadd.f32 %v2079, %v2211
    %v2276 = vadd.f32 %v2080, %v2212
    %v2277 = vadd.f32 %v2081, %v2213
    %v2278 = vadd.f32 %v2082, %v2214
    %v2279 = vadd.f32 %v2083, %v2215
    %v2280 = vadd.f32 %v2084, %v2216
    %v2281 = vadd.f32 %v2085, %v2217
    %v2282 = vadd.f32 %v2086, %v2218
    %v2283 = vadd.f32 %v2087, %v2219
    %v2284 = vadd.f32 %v2088, %v2220
    %v2285 = vadd.f32 %v2089, %v2221
    %v2286 = vadd.f32 %v2090, %v2222
    %v2287 = vadd.f32 %v2091, %v2223
    %v2288 = vadd.f32 %v2092, %v2224
    %v2289 = vadd.f32 %v2093, %v2225
    %v2290 = vadd.f32 %v2094, %v2226
    %v2291 = vadd.f32 %v2095, %v2227
    %v2292 = vadd.f32 %v2096, %v2228
    %v2293 = vld [vmem:[#allocation2 + $0x2] sm:$0xff]
    %v2294 = vld [vmem:[#allocation2 + $0xa] sm:$0xff]
    %v2295 = vld [vmem:[#allocation2 + $0x1a] sm:$0xff]
    %v2296 = vld [vmem:[#allocation2 + $0x22] sm:$0xff]
    %v2297 = vld [vmem:[#allocation2 + $0x32] sm:$0xff]
    %v2298 = vld [vmem:[#allocation2 + $0x3a] sm:$0xff]
    %v2299 = vld [vmem:[#allocation2 + $0x4a] sm:$0xff]
    %v2300 = vld [vmem:[#allocation2 + $0x52] sm:$0xff]
    %v2301 = vld [vmem:[#allocation2 + $0x62] sm:$0xff]
    %v2302 = vld [vmem:[#allocation2 + $0x6a] sm:$0xff]
    %v2303 = vld [vmem:[#allocation2 + $0x7a] sm:$0xff]
    %v2304 = vld [vmem:[#allocation2 + $0x82] sm:$0xff]
    %v2305 = vld [vmem:[#allocation2 + $0x92] sm:$0xff]
    %v2306 = vld [vmem:[#allocation2 + $0x9a] sm:$0xff]
    %v2307 = vld [vmem:[#allocation2 + $0xaa] sm:$0xff]
    %v2308 = vld [vmem:[#allocation2 + $0xb2] sm:$0xff]
    %v2309 = vld [vmem:[#allocation2 + $0xc2] sm:$0xff]
    %v2310 = vld [vmem:[#allocation2 + $0xca] sm:$0xff]
    %v2311 = vld [vmem:[#allocation2 + $0xda] sm:$0xff]
    %v2312 = vld [vmem:[#allocation2 + $0xe2] sm:$0xff]
    %v2313 = vld [vmem:[#allocation2 + $0xf2] sm:$0xff]
    %v2314 = vld [vmem:[#allocation2 + $0xfa] sm:$0xff]
    %v2315 = vld [vmem:[#allocation2 + $0x10a] sm:$0xff]
    %v2316 = vld [vmem:[#allocation2 + $0x112] sm:$0xff]
    %v2317 = vld [vmem:[#allocation2 + $0x122] sm:$0xff]
    %v2318 = vld [vmem:[#allocation2 + $0x12a] sm:$0xff]
    %v2319 = vld [vmem:[#allocation2 + $0x13a] sm:$0xff]
    %v2320 = vld [vmem:[#allocation2 + $0x142] sm:$0xff]
    %v2321 = vld [vmem:[#allocation2 + $0x152] sm:$0xff]
    %v2322 = vld [vmem:[#allocation2 + $0x15a] sm:$0xff]
    %v2323 = vld [vmem:[#allocation2 + $0x16a] sm:$0xff]
    %v2324 = vld [vmem:[#allocation2 + $0x172] sm:$0xff]
    %v2325 = vld [vmem:[#allocation2 + $0x1e2] sm:$0xff]
    %v2326 = vld [vmem:[#allocation2 + $0x1ea] sm:$0xff]
    %v2327 = vld [vmem:[#allocation2 + $0x1fa] sm:$0xff]
    %v2328 = vld [vmem:[#allocation2 + $0x202] sm:$0xff]
    %v2329 = vld [vmem:[#allocation2 + $0x212] sm:$0xff]
    %v2330 = vld [vmem:[#allocation2 + $0x21a] sm:$0xff]
    %v2331 = vld [vmem:[#allocation2 + $0x22a] sm:$0xff]
    %v2332 = vld [vmem:[#allocation2 + $0x232] sm:$0xff]
    %v2333 = vld [vmem:[#allocation2 + $0x242] sm:$0xff]
    %v2334 = vld [vmem:[#allocation2 + $0x24a] sm:$0xff]
    %v2335 = vld [vmem:[#allocation2 + $0x25a] sm:$0xff]
    %v2336 = vld [vmem:[#allocation2 + $0x262] sm:$0xff]
    %v2337 = vld [vmem:[#allocation2 + $0x272] sm:$0xff]
    %v2338 = vld [vmem:[#allocation2 + $0x27a] sm:$0xff]
    %v2339 = vld [vmem:[#allocation2 + $0x28a] sm:$0xff]
    %v2340 = vld [vmem:[#allocation2 + $0x292] sm:$0xff]
    %v2341 = vld [vmem:[#allocation2 + $0x2a2] sm:$0xff]
    %v2342 = vld [vmem:[#allocation2 + $0x2aa] sm:$0xff]
    %v2343 = vld [vmem:[#allocation2 + $0x2ba] sm:$0xff]
    %v2344 = vld [vmem:[#allocation2 + $0x2c2] sm:$0xff]
    %v2345 = vld [vmem:[#allocation2 + $0x2d2] sm:$0xff]
    %v2346 = vld [vmem:[#allocation2 + $0x2da] sm:$0xff]
    %v2347 = vld [vmem:[#allocation2 + $0x2ea] sm:$0xff]
    %v2348 = vld [vmem:[#allocation2 + $0x2f2] sm:$0xff]
    %v2349 = vld [vmem:[#allocation2 + $0x302] sm:$0xff]
    %v2350 = vld [vmem:[#allocation2 + $0x30a] sm:$0xff]
    %v2351 = vld [vmem:[#allocation2 + $0x31a] sm:$0xff]
    %v2352 = vld [vmem:[#allocation2 + $0x322] sm:$0xff]
    %v2353 = vld [vmem:[#allocation2 + $0x332] sm:$0xff]
    %v2354 = vld [vmem:[#allocation2 + $0x33a] sm:$0xff]
    %v2355 = vld [vmem:[#allocation2 + $0x34a] sm:$0xff]
    %v2356 = vld [vmem:[#allocation2 + $0x352] sm:$0xff]
    %v2357 = vlaneseq
    %v2358 = vshrl.u32 %v2357, 7
    %v2359 = vsub.s32 2, %v2358
    %v2360 = vrot.slane %v1899, %v2359
    %v2361 = vmul.f32 %v2293, %v2360
    %v2362 = vmul.f32 %v2294, %v2360
    %v2363 = vmul.f32 %v2295, %v2360
    %v2364 = vmul.f32 %v2296, %v2360
    %v2365 = vmul.f32 %v2297, %v2360
    %v2366 = vmul.f32 %v2298, %v2360
    %v2367 = vmul.f32 %v2299, %v2360
    %v2368 = vmul.f32 %v2300, %v2360
    %v2369 = vmul.f32 %v2301, %v2360
    %v2370 = vmul.f32 %v2302, %v2360
    %v2371 = vmul.f32 %v2303, %v2360
    %v2372 = vmul.f32 %v2304, %v2360
    %v2373 = vmul.f32 %v2305, %v2360
    %v2374 = vmul.f32 %v2306, %v2360
    %v2375 = vmul.f32 %v2307, %v2360
    %v2376 = vmul.f32 %v2308, %v2360
    %v2377 = vmul.f32 %v2309, %v2360
    %v2378 = vmul.f32 %v2310, %v2360
    %v2379 = vmul.f32 %v2311, %v2360
    %v2380 = vmul.f32 %v2312, %v2360
    %v2381 = vmul.f32 %v2313, %v2360
    %v2382 = vmul.f32 %v2314, %v2360
    %v2383 = vmul.f32 %v2315, %v2360
    %v2384 = vmul.f32 %v2316, %v2360
    %v2385 = vmul.f32 %v2317, %v2360
    %v2386 = vmul.f32 %v2318, %v2360
    %v2387 = vmul.f32 %v2319, %v2360
    %v2388 = vmul.f32 %v2320, %v2360
    %v2389 = vmul.f32 %v2321, %v2360
    %v2390 = vmul.f32 %v2322, %v2360
    %v2391 = vmul.f32 %v2323, %v2360
    %v2392 = vmul.f32 %v2324, %v2360
    %v2393 = vmul.f32 %v2325, %v2360
    %v2394 = vmul.f32 %v2326, %v2360
    %v2395 = vmul.f32 %v2327, %v2360
    %v2396 = vmul.f32 %v2328, %v2360
    %v2397 = vmul.f32 %v2329, %v2360
    %v2398 = vmul.f32 %v2330, %v2360
    %v2399 = vmul.f32 %v2331, %v2360
    %v2400 = vmul.f32 %v2332, %v2360
    %v2401 = vmul.f32 %v2333, %v2360
    %v2402 = vmul.f32 %v2334, %v2360
    %v2403 = vmul.f32 %v2335, %v2360
    %v2404 = vmul.f32 %v2336, %v2360
    %v2405 = vmul.f32 %v2337, %v2360
    %v2406 = vmul.f32 %v2338, %v2360
    %v2407 = vmul.f32 %v2339, %v2360
    %v2408 = vmul.f32 %v2340, %v2360
    %v2409 = vmul.f32 %v2341, %v2360
    %v2410 = vmul.f32 %v2342, %v2360
    %v2411 = vmul.f32 %v2343, %v2360
    %v2412 = vmul.f32 %v2344, %v2360
    %v2413 = vmul.f32 %v2345, %v2360
    %v2414 = vmul.f32 %v2346, %v2360
    %v2415 = vmul.f32 %v2347, %v2360
    %v2416 = vmul.f32 %v2348, %v2360
    %v2417 = vmul.f32 %v2349, %v2360
    %v2418 = vmul.f32 %v2350, %v2360
    %v2419 = vmul.f32 %v2351, %v2360
    %v2420 = vmul.f32 %v2352, %v2360
    %v2421 = vmul.f32 %v2353, %v2360
    %v2422 = vmul.f32 %v2354, %v2360
    %v2423 = vmul.f32 %v2355, %v2360
    %v2424 = vmul.f32 %v2356, %v2360
    %v2425 = vadd.f32 %v2229, %v2361
    %v2426 = vadd.f32 %v2230, %v2362
    %v2427 = vadd.f32 %v2231, %v2363
    %v2428 = vadd.f32 %v2232, %v2364
    %v2429 = vadd.f32 %v2233, %v2365
    %v2430 = vadd.f32 %v2234, %v2366
    %v2431 = vadd.f32 %v2235, %v2367
    %v2432 = vadd.f32 %v2236, %v2368
    %v2433 = vadd.f32 %v2237, %v2369
    %v2434 = vadd.f32 %v2238, %v2370
    %v2435 = vadd.f32 %v2239, %v2371
    %v2436 = vadd.f32 %v2240, %v2372
    %v2437 = vadd.f32 %v2241, %v2373
    %v2438 = vadd.f32 %v2242, %v2374
    %v2439 = vadd.f32 %v2243, %v2375
    %v2440 = vadd.f32 %v2244, %v2376
    %v2441 = vadd.f32 %v2245, %v2377
    %v2442 = vadd.f32 %v2246, %v2378
    %v2443 = vadd.f32 %v2247, %v2379
    %v2444 = vadd.f32 %v2248, %v2380
    %v2445 = vadd.f32 %v2249, %v2381
    %v2446 = vadd.f32 %v2250, %v2382
    %v2447 = vadd.f32 %v2251, %v2383
    %v2448 = vadd.f32 %v2252, %v2384
    %v2449 = vadd.f32 %v2253, %v2385
    %v2450 = vadd.f32 %v2254, %v2386
    %v2451 = vadd.f32 %v2255, %v2387
    %v2452 = vadd.f32 %v2256, %v2388
    %v2453 = vadd.f32 %v2257, %v2389
    %v2454 = vadd.f32 %v2258, %v2390
    %v2455 = vadd.f32 %v2259, %v2391
    %v2456 = vadd.f32 %v2260, %v2392
    %v2457 = vadd.f32 %v2261, %v2393
    %v2458 = vadd.f32 %v2262, %v2394
    %v2459 = vadd.f32 %v2263, %v2395
    %v2460 = vadd.f32 %v2264, %v2396
    %v2461 = vadd.f32 %v2265, %v2397
    %v2462 = vadd.f32 %v2266, %v2398
    %v2463 = vadd.f32 %v2267, %v2399
    %v2464 = vadd.f32 %v2268, %v2400
    %v2465 = vadd.f32 %v2269, %v2401
    %v2466 = vadd.f32 %v2270, %v2402
    %v2467 = vadd.f32 %v2271, %v2403
    %v2468 = vadd.f32 %v2272, %v2404
    %v2469 = vadd.f32 %v2273, %v2405
    %v2470 = vadd.f32 %v2274, %v2406
    %v2471 = vadd.f32 %v2275, %v2407
    %v2472 = vadd.f32 %v2276, %v2408
    %v2473 = vadd.f32 %v2277, %v2409
    %v2474 = vadd.f32 %v2278, %v2410
    %v2475 = vadd.f32 %v2279, %v2411
    %v2476 = vadd.f32 %v2280, %v2412
    %v2477 = vadd.f32 %v2281, %v2413
    %v2478 = vadd.f32 %v2282, %v2414
    %v2479 = vadd.f32 %v2283, %v2415
    %v2480 = vadd.f32 %v2284, %v2416
    %v2481 = vadd.f32 %v2285, %v2417
    %v2482 = vadd.f32 %v2286, %v2418
    %v2483 = vadd.f32 %v2287, %v2419
    %v2484 = vadd.f32 %v2288, %v2420
    %v2485 = vadd.f32 %v2289, %v2421
    %v2486 = vadd.f32 %v2290, %v2422
    %v2487 = vadd.f32 %v2291, %v2423
    %v2488 = vadd.f32 %v2292, %v2424
    %v2489 = vld [vmem:[%s1769] sm:$0xff]
    %v2490 = vld [vmem:[%s1769 + $0x8] sm:$0xff]
    %v2491 = vld [vmem:[%s1769 + $0x18] sm:$0xff]
    %v2492 = vld [vmem:[%s1769 + $0x20] sm:$0xff]
    %v2493 = vld [vmem:[%s1769 + $0x30] sm:$0xff]
    %v2494 = vld [vmem:[%s1769 + $0x38] sm:$0xff]
    %v2495 = vld [vmem:[%s1769 + $0x48] sm:$0xff]
    %v2496 = vld [vmem:[%s1769 + $0x50] sm:$0xff]
    %v2497 = vld [vmem:[%s1769 + $0x60] sm:$0xff]
    %v2498 = vld [vmem:[%s1769 + $0x68] sm:$0xff]
    %v2499 = vld [vmem:[%s1769 + $0x78] sm:$0xff]
    %v2500 = vld [vmem:[%s1769 + $0x80] sm:$0xff]
    %v2501 = vld [vmem:[%s1769 + $0x90] sm:$0xff]
    %v2502 = vld [vmem:[%s1769 + $0x98] sm:$0xff]
    %v2503 = vld [vmem:[%s1769 + $0xa8] sm:$0xff]
    %v2504 = vld [vmem:[%s1769 + $0xb0] sm:$0xff]
    %v2505 = vld [vmem:[%s1769 + $0xc0] sm:$0xff]
    %v2506 = vld [vmem:[%s1769 + $0xc8] sm:$0xff]
    %v2507 = vld [vmem:[%s1769 + $0xd8] sm:$0xff]
    %v2508 = vld [vmem:[%s1769 + $0xe0] sm:$0xff]
    %v2509 = vld [vmem:[%s1769 + $0xf0] sm:$0xff]
    %v2510 = vld [vmem:[%s1769 + $0xf8] sm:$0xff]
    %v2511 = vld [vmem:[%s1769 + $0x108] sm:$0xff]
    %v2512 = vld [vmem:[%s1769 + $0x110] sm:$0xff]
    %v2513 = vld [vmem:[%s1769 + $0x120] sm:$0xff]
    %v2514 = vld [vmem:[%s1769 + $0x128] sm:$0xff]
    %v2515 = vld [vmem:[%s1769 + $0x138] sm:$0xff]
    %v2516 = vld [vmem:[%s1769 + $0x140] sm:$0xff]
    %v2517 = vld [vmem:[%s1769 + $0x150] sm:$0xff]
    %v2518 = vld [vmem:[%s1769 + $0x158] sm:$0xff]
    %v2519 = vld [vmem:[%s1769 + $0x168] sm:$0xff]
    %v2520 = vld [vmem:[%s1769 + $0x170] sm:$0xff]
    %v2521 = vld [vmem:[%s1769 + $0x1e0] sm:$0xff]
    %v2522 = vld [vmem:[%s1769 + $0x1e8] sm:$0xff]
    %v2523 = vld [vmem:[%s1769 + $0x1f8] sm:$0xff]
    %v2524 = vld [vmem:[%s1769 + $0x200] sm:$0xff]
    %v2525 = vld [vmem:[%s1769 + $0x210] sm:$0xff]
    %v2526 = vld [vmem:[%s1769 + $0x218] sm:$0xff]
    %v2527 = vld [vmem:[%s1769 + $0x228] sm:$0xff]
    %v2528 = vld [vmem:[%s1769 + $0x230] sm:$0xff]
    %v2529 = vld [vmem:[%s1769 + $0x240] sm:$0xff]
    %v2530 = vld [vmem:[%s1769 + $0x248] sm:$0xff]
    %v2531 = vld [vmem:[%s1769 + $0x258] sm:$0xff]
    %v2532 = vld [vmem:[%s1769 + $0x260] sm:$0xff]
    %v2533 = vld [vmem:[%s1769 + $0x270] sm:$0xff]
    %v2534 = vld [vmem:[%s1769 + $0x278] sm:$0xff]
    %v2535 = vld [vmem:[%s1769 + $0x288] sm:$0xff]
    %v2536 = vld [vmem:[%s1769 + $0x290] sm:$0xff]
    %v2537 = vld [vmem:[%s1769 + $0x2a0] sm:$0xff]
    %v2538 = vld [vmem:[%s1769 + $0x2a8] sm:$0xff]
    %v2539 = vld [vmem:[%s1769 + $0x2b8] sm:$0xff]
    %v2540 = vld [vmem:[%s1769 + $0x2c0] sm:$0xff]
    %v2541 = vld [vmem:[%s1769 + $0x2d0] sm:$0xff]
    %v2542 = vld [vmem:[%s1769 + $0x2d8] sm:$0xff]
    %v2543 = vld [vmem:[%s1769 + $0x2e8] sm:$0xff]
    %v2544 = vld [vmem:[%s1769 + $0x2f0] sm:$0xff]
    %v2545 = vld [vmem:[%s1769 + $0x300] sm:$0xff]
    %v2546 = vld [vmem:[%s1769 + $0x308] sm:$0xff]
    %v2547 = vld [vmem:[%s1769 + $0x318] sm:$0xff]
    %v2548 = vld [vmem:[%s1769 + $0x320] sm:$0xff]
    %v2549 = vld [vmem:[%s1769 + $0x330] sm:$0xff]
    %v2550 = vld [vmem:[%s1769 + $0x338] sm:$0xff]
    %v2551 = vld [vmem:[%s1769 + $0x348] sm:$0xff]
    %v2552 = vld [vmem:[%s1769 + $0x350] sm:$0xff]
    %v2553 = vlaneseq
    %v2554 = vshrl.u32 %v2553, 7
    %v2555 = vsub.s32 3, %v2554
    %v2556 = vrot.slane %v1899, %v2555
    %v2557 = vmul.f32 %v2489, %v2556
    %v2558 = vmul.f32 %v2490, %v2556
    %v2559 = vmul.f32 %v2491, %v2556
    %v2560 = vmul.f32 %v2492, %v2556
    %v2561 = vmul.f32 %v2493, %v2556
    %v2562 = vmul.f32 %v2494, %v2556
    %v2563 = vmul.f32 %v2495, %v2556
    %v2564 = vmul.f32 %v2496, %v2556
    %v2565 = vmul.f32 %v2497, %v2556
    %v2566 = vmul.f32 %v2498, %v2556
    %v2567 = vmul.f32 %v2499, %v2556
    %v2568 = vmul.f32 %v2500, %v2556
    %v2569 = vmul.f32 %v2501, %v2556
    %v2570 = vmul.f32 %v2502, %v2556
    %v2571 = vmul.f32 %v2503, %v2556
    %v2572 = vmul.f32 %v2504, %v2556
    %v2573 = vmul.f32 %v2505, %v2556
    %v2574 = vmul.f32 %v2506, %v2556
    %v2575 = vmul.f32 %v2507, %v2556
    %v2576 = vmul.f32 %v2508, %v2556
    %v2577 = vmul.f32 %v2509, %v2556
    %v2578 = vmul.f32 %v2510, %v2556
    %v2579 = vmul.f32 %v2511, %v2556
    %v2580 = vmul.f32 %v2512, %v2556
    %v2581 = vmul.f32 %v2513, %v2556
    %v2582 = vmul.f32 %v2514, %v2556
    %v2583 = vmul.f32 %v2515, %v2556
    %v2584 = vmul.f32 %v2516, %v2556
    %v2585 = vmul.f32 %v2517, %v2556
    %v2586 = vmul.f32 %v2518, %v2556
    %v2587 = vmul.f32 %v2519, %v2556
    %v2588 = vmul.f32 %v2520, %v2556
    %v2589 = vmul.f32 %v2521, %v2556
    %v2590 = vmul.f32 %v2522, %v2556
    %v2591 = vmul.f32 %v2523, %v2556
    %v2592 = vmul.f32 %v2524, %v2556
    %v2593 = vmul.f32 %v2525, %v2556
    %v2594 = vmul.f32 %v2526, %v2556
    %v2595 = vmul.f32 %v2527, %v2556
    %v2596 = vmul.f32 %v2528, %v2556
    %v2597 = vmul.f32 %v2529, %v2556
    %v2598 = vmul.f32 %v2530, %v2556
    %v2599 = vmul.f32 %v2531, %v2556
    %v2600 = vmul.f32 %v2532, %v2556
    %v2601 = vmul.f32 %v2533, %v2556
    %v2602 = vmul.f32 %v2534, %v2556
    %v2603 = vmul.f32 %v2535, %v2556
    %v2604 = vmul.f32 %v2536, %v2556
    %v2605 = vmul.f32 %v2537, %v2556
    %v2606 = vmul.f32 %v2538, %v2556
    %v2607 = vmul.f32 %v2539, %v2556
    %v2608 = vmul.f32 %v2540, %v2556
    %v2609 = vmul.f32 %v2541, %v2556
    %v2610 = vmul.f32 %v2542, %v2556
    %v2611 = vmul.f32 %v2543, %v2556
    %v2612 = vmul.f32 %v2544, %v2556
    %v2613 = vmul.f32 %v2545, %v2556
    %v2614 = vmul.f32 %v2546, %v2556
    %v2615 = vmul.f32 %v2547, %v2556
    %v2616 = vmul.f32 %v2548, %v2556
    %v2617 = vmul.f32 %v2549, %v2556
    %v2618 = vmul.f32 %v2550, %v2556
    %v2619 = vmul.f32 %v2551, %v2556
    %v2620 = vmul.f32 %v2552, %v2556
    %v2621 = vadd.f32 %v2425, %v2557
    %v2622 = vadd.f32 %v2426, %v2558
    %v2623 = vadd.f32 %v2427, %v2559
    %v2624 = vadd.f32 %v2428, %v2560
    %v2625 = vadd.f32 %v2429, %v2561
    %v2626 = vadd.f32 %v2430, %v2562
    %v2627 = vadd.f32 %v2431, %v2563
    %v2628 = vadd.f32 %v2432, %v2564
    %v2629 = vadd.f32 %v2433, %v2565
    %v2630 = vadd.f32 %v2434, %v2566
    %v2631 = vadd.f32 %v2435, %v2567
    %v2632 = vadd.f32 %v2436, %v2568
    %v2633 = vadd.f32 %v2437, %v2569
    %v2634 = vadd.f32 %v2438, %v2570
    %v2635 = vadd.f32 %v2439, %v2571
    %v2636 = vadd.f32 %v2440, %v2572
    %v2637 = vadd.f32 %v2441, %v2573
    %v2638 = vadd.f32 %v2442, %v2574
    %v2639 = vadd.f32 %v2443, %v2575
    %v2640 = vadd.f32 %v2444, %v2576
    %v2641 = vadd.f32 %v2445, %v2577
    %v2642 = vadd.f32 %v2446, %v2578
    %v2643 = vadd.f32 %v2447, %v2579
    %v2644 = vadd.f32 %v2448, %v2580
    %v2645 = vadd.f32 %v2449, %v2581
    %v2646 = vadd.f32 %v2450, %v2582
    %v2647 = vadd.f32 %v2451, %v2583
    %v2648 = vadd.f32 %v2452, %v2584
    %v2649 = vadd.f32 %v2453, %v2585
    %v2650 = vadd.f32 %v2454, %v2586
    %v2651 = vadd.f32 %v2455, %v2587
    %v2652 = vadd.f32 %v2456, %v2588
    %v2653 = vadd.f32 %v2457, %v2589
    %v2654 = vadd.f32 %v2458, %v2590
    %v2655 = vadd.f32 %v2459, %v2591
    %v2656 = vadd.f32 %v2460, %v2592
    %v2657 = vadd.f32 %v2461, %v2593
    %v2658 = vadd.f32 %v2462, %v2594
    %v2659 = vadd.f32 %v2463, %v2595
    %v2660 = vadd.f32 %v2464, %v2596
    %v2661 = vadd.f32 %v2465, %v2597
    %v2662 = vadd.f32 %v2466, %v2598
    %v2663 = vadd.f32 %v2467, %v2599
    %v2664 = vadd.f32 %v2468, %v2600
    %v2665 = vadd.f32 %v2469, %v2601
    %v2666 = vadd.f32 %v2470, %v2602
    %v2667 = vadd.f32 %v2471, %v2603
    %v2668 = vadd.f32 %v2472, %v2604
    %v2669 = vadd.f32 %v2473, %v2605
    %v2670 = vadd.f32 %v2474, %v2606
    %v2671 = vadd.f32 %v2475, %v2607
    %v2672 = vadd.f32 %v2476, %v2608
    %v2673 = vadd.f32 %v2477, %v2609
    %v2674 = vadd.f32 %v2478, %v2610
    %v2675 = vadd.f32 %v2479, %v2611
    %v2676 = vadd.f32 %v2480, %v2612
    %v2677 = vadd.f32 %v2481, %v2613
    %v2678 = vadd.f32 %v2482, %v2614
    %v2679 = vadd.f32 %v2483, %v2615
    %v2680 = vadd.f32 %v2484, %v2616
    %v2681 = vadd.f32 %v2485, %v2617
    %v2682 = vadd.f32 %v2486, %v2618
    %v2683 = vadd.f32 %v2487, %v2619
    %v2684 = vadd.f32 %v2488, %v2620
    %v2685 = vld [vmem:[%s1769 + $0x1] sm:$0xff]
    %v2686 = vld [vmem:[%s1769 + $0x9] sm:$0xff]
    %v2687 = vld [vmem:[%s1769 + $0x19] sm:$0xff]
    %v2688 = vld [vmem:[%s1769 + $0x21] sm:$0xff]
    %v2689 = vld [vmem:[%s1769 + $0x31] sm:$0xff]
    %v2690 = vld [vmem:[%s1769 + $0x39] sm:$0xff]
    %v2691 = vld [vmem:[%s1769 + $0x49] sm:$0xff]
    %v2692 = vld [vmem:[%s1769 + $0x51] sm:$0xff]
    %v2693 = vld [vmem:[%s1769 + $0x61] sm:$0xff]
    %v2694 = vld [vmem:[%s1769 + $0x69] sm:$0xff]
    %v2695 = vld [vmem:[%s1769 + $0x79] sm:$0xff]
    %v2696 = vld [vmem:[%s1769 + $0x81] sm:$0xff]
    %v2697 = vld [vmem:[%s1769 + $0x91] sm:$0xff]
    %v2698 = vld [vmem:[%s1769 + $0x99] sm:$0xff]
    %v2699 = vld [vmem:[%s1769 + $0xa9] sm:$0xff]
    %v2700 = vld [vmem:[%s1769 + $0xb1] sm:$0xff]
    %v2701 = vld [vmem:[%s1769 + $0xc1] sm:$0xff]
    %v2702 = vld [vmem:[%s1769 + $0xc9] sm:$0xff]
    %v2703 = vld [vmem:[%s1769 + $0xd9] sm:$0xff]
    %v2704 = vld [vmem:[%s1769 + $0xe1] sm:$0xff]
    %v2705 = vld [vmem:[%s1769 + $0xf1] sm:$0xff]
    %v2706 = vld [vmem:[%s1769 + $0xf9] sm:$0xff]
    %v2707 = vld [vmem:[%s1769 + $0x109] sm:$0xff]
    %v2708 = vld [vmem:[%s1769 + $0x111] sm:$0xff]
    %v2709 = vld [vmem:[%s1769 + $0x121] sm:$0xff]
    %v2710 = vld [vmem:[%s1769 + $0x129] sm:$0xff]
    %v2711 = vld [vmem:[%s1769 + $0x139] sm:$0xff]
    %v2712 = vld [vmem:[%s1769 + $0x141] sm:$0xff]
    %v2713 = vld [vmem:[%s1769 + $0x151] sm:$0xff]
    %v2714 = vld [vmem:[%s1769 + $0x159] sm:$0xff]
    %v2715 = vld [vmem:[%s1769 + $0x169] sm:$0xff]
    %v2716 = vld [vmem:[%s1769 + $0x171] sm:$0xff]
    %v2717 = vld [vmem:[%s1769 + $0x1e1] sm:$0xff]
    %v2718 = vld [vmem:[%s1769 + $0x1e9] sm:$0xff]
    %v2719 = vld [vmem:[%s1769 + $0x1f9] sm:$0xff]
    %v2720 = vld [vmem:[%s1769 + $0x201] sm:$0xff]
    %v2721 = vld [vmem:[%s1769 + $0x211] sm:$0xff]
    %v2722 = vld [vmem:[%s1769 + $0x219] sm:$0xff]
    %v2723 = vld [vmem:[%s1769 + $0x229] sm:$0xff]
    %v2724 = vld [vmem:[%s1769 + $0x231] sm:$0xff]
    %v2725 = vld [vmem:[%s1769 + $0x241] sm:$0xff]
    %v2726 = vld [vmem:[%s1769 + $0x249] sm:$0xff]
    %v2727 = vld [vmem:[%s1769 + $0x259] sm:$0xff]
    %v2728 = vld [vmem:[%s1769 + $0x261] sm:$0xff]
    %v2729 = vld [vmem:[%s1769 + $0x271] sm:$0xff]
    %v2730 = vld [vmem:[%s1769 + $0x279] sm:$0xff]
    %v2731 = vld [vmem:[%s1769 + $0x289] sm:$0xff]
    %v2732 = vld [vmem:[%s1769 + $0x291] sm:$0xff]
    %v2733 = vld [vmem:[%s1769 + $0x2a1] sm:$0xff]
    %v2734 = vld [vmem:[%s1769 + $0x2a9] sm:$0xff]
    %v2735 = vld [vmem:[%s1769 + $0x2b9] sm:$0xff]
    %v2736 = vld [vmem:[%s1769 + $0x2c1] sm:$0xff]
    %v2737 = vld [vmem:[%s1769 + $0x2d1] sm:$0xff]
    %v2738 = vld [vmem:[%s1769 + $0x2d9] sm:$0xff]
    %v2739 = vld [vmem:[%s1769 + $0x2e9] sm:$0xff]
    %v2740 = vld [vmem:[%s1769 + $0x2f1] sm:$0xff]
    %v2741 = vld [vmem:[%s1769 + $0x301] sm:$0xff]
    %v2742 = vld [vmem:[%s1769 + $0x309] sm:$0xff]
    %v2743 = vld [vmem:[%s1769 + $0x319] sm:$0xff]
    %v2744 = vld [vmem:[%s1769 + $0x321] sm:$0xff]
    %v2745 = vld [vmem:[%s1769 + $0x331] sm:$0xff]
    %v2746 = vld [vmem:[%s1769 + $0x339] sm:$0xff]
    %v2747 = vld [vmem:[%s1769 + $0x349] sm:$0xff]
    %v2748 = vld [vmem:[%s1769 + $0x351] sm:$0xff]
    %v2749 = vlaneseq
    %v2750 = vshrl.u32 %v2749, 7
    %v2751 = vsub.s32 4, %v2750
    %v2752 = vrot.slane %v1899, %v2751
    %v2753 = vmul.f32 %v2685, %v2752
    %v2754 = vmul.f32 %v2686, %v2752
    %v2755 = vmul.f32 %v2687, %v2752
    %v2756 = vmul.f32 %v2688, %v2752
    %v2757 = vmul.f32 %v2689, %v2752
    %v2758 = vmul.f32 %v2690, %v2752
    %v2759 = vmul.f32 %v2691, %v2752
    %v2760 = vmul.f32 %v2692, %v2752
    %v2761 = vmul.f32 %v2693, %v2752
    %v2762 = vmul.f32 %v2694, %v2752
    %v2763 = vmul.f32 %v2695, %v2752
    %v2764 = vmul.f32 %v2696, %v2752
    %v2765 = vmul.f32 %v2697, %v2752
    %v2766 = vmul.f32 %v2698, %v2752
    %v2767 = vmul.f32 %v2699, %v2752
    %v2768 = vmul.f32 %v2700, %v2752
    %v2769 = vmul.f32 %v2701, %v2752
    %v2770 = vmul.f32 %v2702, %v2752
    %v2771 = vmul.f32 %v2703, %v2752
    %v2772 = vmul.f32 %v2704, %v2752
    %v2773 = vmul.f32 %v2705, %v2752
    %v2774 = vmul.f32 %v2706, %v2752
    %v2775 = vmul.f32 %v2707, %v2752
    %v2776 = vmul.f32 %v2708, %v2752
    %v2777 = vmul.f32 %v2709, %v2752
    %v2778 = vmul.f32 %v2710, %v2752
    %v2779 = vmul.f32 %v2711, %v2752
    %v2780 = vmul.f32 %v2712, %v2752
    %v2781 = vmul.f32 %v2713, %v2752
    %v2782 = vmul.f32 %v2714, %v2752
    %v2783 = vmul.f32 %v2715, %v2752
    %v2784 = vmul.f32 %v2716, %v2752
    %v2785 = vmul.f32 %v2717, %v2752
    %v2786 = vmul.f32 %v2718, %v2752
    %v2787 = vmul.f32 %v2719, %v2752
    %v2788 = vmul.f32 %v2720, %v2752
    %v2789 = vmul.f32 %v2721, %v2752
    %v2790 = vmul.f32 %v2722, %v2752
    %v2791 = vmul.f32 %v2723, %v2752
    %v2792 = vmul.f32 %v2724, %v2752
    %v2793 = vmul.f32 %v2725, %v2752
    %v2794 = vmul.f32 %v2726, %v2752
    %v2795 = vmul.f32 %v2727, %v2752
    %v2796 = vmul.f32 %v2728, %v2752
    %v2797 = vmul.f32 %v2729, %v2752
    %v2798 = vmul.f32 %v2730, %v2752
    %v2799 = vmul.f32 %v2731, %v2752
    %v2800 = vmul.f32 %v2732, %v2752
    %v2801 = vmul.f32 %v2733, %v2752
    %v2802 = vmul.f32 %v2734, %v2752
    %v2803 = vmul.f32 %v2735, %v2752
    %v2804 = vmul.f32 %v2736, %v2752
    %v2805 = vmul.f32 %v2737, %v2752
    %v2806 = vmul.f32 %v2738, %v2752
    %v2807 = vmul.f32 %v2739, %v2752
    %v2808 = vmul.f32 %v2740, %v2752
    %v2809 = vmul.f32 %v2741, %v2752
    %v2810 = vmul.f32 %v2742, %v2752
    %v2811 = vmul.f32 %v2743, %v2752
    %v2812 = vmul.f32 %v2744, %v2752
    %v2813 = vmul.f32 %v2745, %v2752
    %v2814 = vmul.f32 %v2746, %v2752
    %v2815 = vmul.f32 %v2747, %v2752
    %v2816 = vmul.f32 %v2748, %v2752
    %v2817 = vadd.f32 %v2621, %v2753
    %v2818 = vadd.f32 %v2622, %v2754
    %v2819 = vadd.f32 %v2623, %v2755
    %v2820 = vadd.f32 %v2624, %v2756
    %v2821 = vadd.f32 %v2625, %v2757
    %v2822 = vadd.f32 %v2626, %v2758
    %v2823 = vadd.f32 %v2627, %v2759
    %v2824 = vadd.f32 %v2628, %v2760
    %v2825 = vadd.f32 %v2629, %v2761
    %v2826 = vadd.f32 %v2630, %v2762
    %v2827 = vadd.f32 %v2631, %v2763
    %v2828 = vadd.f32 %v2632, %v2764
    %v2829 = vadd.f32 %v2633, %v2765
    %v2830 = vadd.f32 %v2634, %v2766
    %v2831 = vadd.f32 %v2635, %v2767
    %v2832 = vadd.f32 %v2636, %v2768
    %v2833 = vadd.f32 %v2637, %v2769
    %v2834 = vadd.f32 %v2638, %v2770
    %v2835 = vadd.f32 %v2639, %v2771
    %v2836 = vadd.f32 %v2640, %v2772
    %v2837 = vadd.f32 %v2641, %v2773
    %v2838 = vadd.f32 %v2642, %v2774
    %v2839 = vadd.f32 %v2643, %v2775
    %v2840 = vadd.f32 %v2644, %v2776
    %v2841 = vadd.f32 %v2645, %v2777
    %v2842 = vadd.f32 %v2646, %v2778
    %v2843 = vadd.f32 %v2647, %v2779
    %v2844 = vadd.f32 %v2648, %v2780
    %v2845 = vadd.f32 %v2649, %v2781
    %v2846 = vadd.f32 %v2650, %v2782
    %v2847 = vadd.f32 %v2651, %v2783
    %v2848 = vadd.f32 %v2652, %v2784
    %v2849 = vadd.f32 %v2653, %v2785
    %v2850 = vadd.f32 %v2654, %v2786
    %v2851 = vadd.f32 %v2655, %v2787
    %v2852 = vadd.f32 %v2656, %v2788
    %v2853 = vadd.f32 %v2657, %v2789
    %v2854 = vadd.f32 %v2658, %v2790
    %v2855 = vadd.f32 %v2659, %v2791
    %v2856 = vadd.f32 %v2660, %v2792
    %v2857 = vadd.f32 %v2661, %v2793
    %v2858 = vadd.f32 %v2662, %v2794
    %v2859 = vadd.f32 %v2663, %v2795
    %v2860 = vadd.f32 %v2664, %v2796
    %v2861 = vadd.f32 %v2665, %v2797
    %v2862 = vadd.f32 %v2666, %v2798
    %v2863 = vadd.f32 %v2667, %v2799
    %v2864 = vadd.f32 %v2668, %v2800
    %v2865 = vadd.f32 %v2669, %v2801
    %v2866 = vadd.f32 %v2670, %v2802
    %v2867 = vadd.f32 %v2671, %v2803
    %v2868 = vadd.f32 %v2672, %v2804
    %v2869 = vadd.f32 %v2673, %v2805
    %v2870 = vadd.f32 %v2674, %v2806
    %v2871 = vadd.f32 %v2675, %v2807
    %v2872 = vadd.f32 %v2676, %v2808
    %v2873 = vadd.f32 %v2677, %v2809
    %v2874 = vadd.f32 %v2678, %v2810
    %v2875 = vadd.f32 %v2679, %v2811
    %v2876 = vadd.f32 %v2680, %v2812
    %v2877 = vadd.f32 %v2681, %v2813
    %v2878 = vadd.f32 %v2682, %v2814
    %v2879 = vadd.f32 %v2683, %v2815
    %v2880 = vadd.f32 %v2684, %v2816
    %v2881 = vld [vmem:[%s1769 + $0x2] sm:$0xff]
    %v2882 = vld [vmem:[%s1769 + $0xa] sm:$0xff]
    %v2883 = vld [vmem:[%s1769 + $0x1a] sm:$0xff]
    %v2884 = vld [vmem:[%s1769 + $0x22] sm:$0xff]
    %v2885 = vld [vmem:[%s1769 + $0x32] sm:$0xff]
    %v2886 = vld [vmem:[%s1769 + $0x3a] sm:$0xff]
    %v2887 = vld [vmem:[%s1769 + $0x4a] sm:$0xff]
    %v2888 = vld [vmem:[%s1769 + $0x52] sm:$0xff]
    %v2889 = vld [vmem:[%s1769 + $0x62] sm:$0xff]
    %v2890 = vld [vmem:[%s1769 + $0x6a] sm:$0xff]
    %v2891 = vld [vmem:[%s1769 + $0x7a] sm:$0xff]
    %v2892 = vld [vmem:[%s1769 + $0x82] sm:$0xff]
    %v2893 = vld [vmem:[%s1769 + $0x92] sm:$0xff]
    %v2894 = vld [vmem:[%s1769 + $0x9a] sm:$0xff]
    %v2895 = vld [vmem:[%s1769 + $0xaa] sm:$0xff]
    %v2896 = vld [vmem:[%s1769 + $0xb2] sm:$0xff]
    %v2897 = vld [vmem:[%s1769 + $0xc2] sm:$0xff]
    %v2898 = vld [vmem:[%s1769 + $0xca] sm:$0xff]
    %v2899 = vld [vmem:[%s1769 + $0xda] sm:$0xff]
    %v2900 = vld [vmem:[%s1769 + $0xe2] sm:$0xff]
    %v2901 = vld [vmem:[%s1769 + $0xf2] sm:$0xff]
    %v2902 = vld [vmem:[%s1769 + $0xfa] sm:$0xff]
    %v2903 = vld [vmem:[%s1769 + $0x10a] sm:$0xff]
    %v2904 = vld [vmem:[%s1769 + $0x112] sm:$0xff]
    %v2905 = vld [vmem:[%s1769 + $0x122] sm:$0xff]
    %v2906 = vld [vmem:[%s1769 + $0x12a] sm:$0xff]
    %v2907 = vld [vmem:[%s1769 + $0x13a] sm:$0xff]
    %v2908 = vld [vmem:[%s1769 + $0x142] sm:$0xff]
    %v2909 = vld [vmem:[%s1769 + $0x152] sm:$0xff]
    %v2910 = vld [vmem:[%s1769 + $0x15a] sm:$0xff]
    %v2911 = vld [vmem:[%s1769 + $0x16a] sm:$0xff]
    %v2912 = vld [vmem:[%s1769 + $0x172] sm:$0xff]
    %v2913 = vld [vmem:[%s1769 + $0x1e2] sm:$0xff]
    %v2914 = vld [vmem:[%s1769 + $0x1ea] sm:$0xff]
    %v2915 = vld [vmem:[%s1769 + $0x1fa] sm:$0xff]
    %v2916 = vld [vmem:[%s1769 + $0x202] sm:$0xff]
    %v2917 = vld [vmem:[%s1769 + $0x212] sm:$0xff]
    %v2918 = vld [vmem:[%s1769 + $0x21a] sm:$0xff]
    %v2919 = vld [vmem:[%s1769 + $0x22a] sm:$0xff]
    %v2920 = vld [vmem:[%s1769 + $0x232] sm:$0xff]
    %v2921 = vld [vmem:[%s1769 + $0x242] sm:$0xff]
    %v2922 = vld [vmem:[%s1769 + $0x24a] sm:$0xff]
    %v2923 = vld [vmem:[%s1769 + $0x25a] sm:$0xff]
    %v2924 = vld [vmem:[%s1769 + $0x262] sm:$0xff]
    %v2925 = vld [vmem:[%s1769 + $0x272] sm:$0xff]
    %v2926 = vld [vmem:[%s1769 + $0x27a] sm:$0xff]
    %v2927 = vld [vmem:[%s1769 + $0x28a] sm:$0xff]
    %v2928 = vld [vmem:[%s1769 + $0x292] sm:$0xff]
    %v2929 = vld [vmem:[%s1769 + $0x2a2] sm:$0xff]
    %v2930 = vld [vmem:[%s1769 + $0x2aa] sm:$0xff]
    %v2931 = vld [vmem:[%s1769 + $0x2ba] sm:$0xff]
    %v2932 = vld [vmem:[%s1769 + $0x2c2] sm:$0xff]
    %v2933 = vld [vmem:[%s1769 + $0x2d2] sm:$0xff]
    %v2934 = vld [vmem:[%s1769 + $0x2da] sm:$0xff]
    %v2935 = vld [vmem:[%s1769 + $0x2ea] sm:$0xff]
    %v2936 = vld [vmem:[%s1769 + $0x2f2] sm:$0xff]
    %v2937 = vld [vmem:[%s1769 + $0x302] sm:$0xff]
    %v2938 = vld [vmem:[%s1769 + $0x30a] sm:$0xff]
    %v2939 = vld [vmem:[%s1769 + $0x31a] sm:$0xff]
    %v2940 = vld [vmem:[%s1769 + $0x322] sm:$0xff]
    %v2941 = vld [vmem:[%s1769 + $0x332] sm:$0xff]
    %v2942 = vld [vmem:[%s1769 + $0x33a] sm:$0xff]
    %v2943 = vld [vmem:[%s1769 + $0x34a] sm:$0xff]
    %v2944 = vld [vmem:[%s1769 + $0x352] sm:$0xff]
    %v2945 = vlaneseq
    %v2946 = vshrl.u32 %v2945, 7
    %v2947 = vsub.s32 5, %v2946
    %v2948 = vrot.slane %v1899, %v2947
    %v2949 = vmul.f32 %v2881, %v2948
    %v2950 = vmul.f32 %v2882, %v2948
    %v2951 = vmul.f32 %v2883, %v2948
    %v2952 = vmul.f32 %v2884, %v2948
    %v2953 = vmul.f32 %v2885, %v2948
    %v2954 = vmul.f32 %v2886, %v2948
    %v2955 = vmul.f32 %v2887, %v2948
    %v2956 = vmul.f32 %v2888, %v2948
    %v2957 = vmul.f32 %v2889, %v2948
    %v2958 = vmul.f32 %v2890, %v2948
    %v2959 = vmul.f32 %v2891, %v2948
    %v2960 = vmul.f32 %v2892, %v2948
    %v2961 = vmul.f32 %v2893, %v2948
    %v2962 = vmul.f32 %v2894, %v2948
    %v2963 = vmul.f32 %v2895, %v2948
    %v2964 = vmul.f32 %v2896, %v2948
    %v2965 = vmul.f32 %v2897, %v2948
    %v2966 = vmul.f32 %v2898, %v2948
    %v2967 = vmul.f32 %v2899, %v2948
    %v2968 = vmul.f32 %v2900, %v2948
    %v2969 = vmul.f32 %v2901, %v2948
    %v2970 = vmul.f32 %v2902, %v2948
    %v2971 = vmul.f32 %v2903, %v2948
    %v2972 = vmul.f32 %v2904, %v2948
    %v2973 = vmul.f32 %v2905, %v2948
    %v2974 = vmul.f32 %v2906, %v2948
    %v2975 = vmul.f32 %v2907, %v2948
    %v2976 = vmul.f32 %v2908, %v2948
    %v2977 = vmul.f32 %v2909, %v2948
    %v2978 = vmul.f32 %v2910, %v2948
    %v2979 = vmul.f32 %v2911, %v2948
    %v2980 = vmul.f32 %v2912, %v2948
    %v2981 = vmul.f32 %v2913, %v2948
    %v2982 = vmul.f32 %v2914, %v2948
    %v2983 = vmul.f32 %v2915, %v2948
    %v2984 = vmul.f32 %v2916, %v2948
    %v2985 = vmul.f32 %v2917, %v2948
    %v2986 = vmul.f32 %v2918, %v2948
    %v2987 = vmul.f32 %v2919, %v2948
    %v2988 = vmul.f32 %v2920, %v2948
    %v2989 = vmul.f32 %v2921, %v2948
    %v2990 = vmul.f32 %v2922, %v2948
    %v2991 = vmul.f32 %v2923, %v2948
    %v2992 = vmul.f32 %v2924, %v2948
    %v2993 = vmul.f32 %v2925, %v2948
    %v2994 = vmul.f32 %v2926, %v2948
    %v2995 = vmul.f32 %v2927, %v2948
    %v2996 = vmul.f32 %v2928, %v2948
    %v2997 = vmul.f32 %v2929, %v2948
    %v2998 = vmul.f32 %v2930, %v2948
    %v2999 = vmul.f32 %v2931, %v2948
    %v3000 = vmul.f32 %v2932, %v2948
    %v3001 = vmul.f32 %v2933, %v2948
    %v3002 = vmul.f32 %v2934, %v2948
    %v3003 = vmul.f32 %v2935, %v2948
    %v3004 = vmul.f32 %v2936, %v2948
    %v3005 = vmul.f32 %v2937, %v2948
    %v3006 = vmul.f32 %v2938, %v2948
    %v3007 = vmul.f32 %v2939, %v2948
    %v3008 = vmul.f32 %v2940, %v2948
    %v3009 = vmul.f32 %v2941, %v2948
    %v3010 = vmul.f32 %v2942, %v2948
    %v3011 = vmul.f32 %v2943, %v2948
    %v3012 = vmul.f32 %v2944, %v2948
    %v3013 = vadd.f32 %v2817, %v2949
    %v3014 = vadd.f32 %v2818, %v2950
    %v3015 = vadd.f32 %v2819, %v2951
    %v3016 = vadd.f32 %v2820, %v2952
    %v3017 = vadd.f32 %v2821, %v2953
    %v3018 = vadd.f32 %v2822, %v2954
    %v3019 = vadd.f32 %v2823, %v2955
    %v3020 = vadd.f32 %v2824, %v2956
    %v3021 = vadd.f32 %v2825, %v2957
    %v3022 = vadd.f32 %v2826, %v2958
    %v3023 = vadd.f32 %v2827, %v2959
    %v3024 = vadd.f32 %v2828, %v2960
    %v3025 = vadd.f32 %v2829, %v2961
    %v3026 = vadd.f32 %v2830, %v2962
    %v3027 = vadd.f32 %v2831, %v2963
    %v3028 = vadd.f32 %v2832, %v2964
    %v3029 = vadd.f32 %v2833, %v2965
    %v3030 = vadd.f32 %v2834, %v2966
    %v3031 = vadd.f32 %v2835, %v2967
    %v3032 = vadd.f32 %v2836, %v2968
    %v3033 = vadd.f32 %v2837, %v2969
    %v3034 = vadd.f32 %v2838, %v2970
    %v3035 = vadd.f32 %v2839, %v2971
    %v3036 = vadd.f32 %v2840, %v2972
    %v3037 = vadd.f32 %v2841, %v2973
    %v3038 = vadd.f32 %v2842, %v2974
    %v3039 = vadd.f32 %v2843, %v2975
    %v3040 = vadd.f32 %v2844, %v2976
    %v3041 = vadd.f32 %v2845, %v2977
    %v3042 = vadd.f32 %v2846, %v2978
    %v3043 = vadd.f32 %v2847, %v2979
    %v3044 = vadd.f32 %v2848, %v2980
    %v3045 = vadd.f32 %v2849, %v2981
    %v3046 = vadd.f32 %v2850, %v2982
    %v3047 = vadd.f32 %v2851, %v2983
    %v3048 = vadd.f32 %v2852, %v2984
    %v3049 = vadd.f32 %v2853, %v2985
    %v3050 = vadd.f32 %v2854, %v2986
    %v3051 = vadd.f32 %v2855, %v2987
    %v3052 = vadd.f32 %v2856, %v2988
    %v3053 = vadd.f32 %v2857, %v2989
    %v3054 = vadd.f32 %v2858, %v2990
    %v3055 = vadd.f32 %v2859, %v2991
    %v3056 = vadd.f32 %v2860, %v2992
    %v3057 = vadd.f32 %v2861, %v2993
    %v3058 = vadd.f32 %v2862, %v2994
    %v3059 = vadd.f32 %v2863, %v2995
    %v3060 = vadd.f32 %v2864, %v2996
    %v3061 = vadd.f32 %v2865, %v2997
    %v3062 = vadd.f32 %v2866, %v2998
    %v3063 = vadd.f32 %v2867, %v2999
    %v3064 = vadd.f32 %v2868, %v3000
    %v3065 = vadd.f32 %v2869, %v3001
    %v3066 = vadd.f32 %v2870, %v3002
    %v3067 = vadd.f32 %v2871, %v3003
    %v3068 = vadd.f32 %v2872, %v3004
    %v3069 = vadd.f32 %v2873, %v3005
    %v3070 = vadd.f32 %v2874, %v3006
    %v3071 = vadd.f32 %v2875, %v3007
    %v3072 = vadd.f32 %v2876, %v3008
    %v3073 = vadd.f32 %v2877, %v3009
    %v3074 = vadd.f32 %v2878, %v3010
    %v3075 = vadd.f32 %v2879, %v3011
    %v3076 = vadd.f32 %v2880, %v3012
    %s3077 = scalar_lea.vmem [#allocation2], 48
    %v3078 = vld [vmem:[%s3077] sm:$0xff]
    %v3079 = vld [vmem:[%s3077 + $0x8] sm:$0xff]
    %v3080 = vld [vmem:[%s3077 + $0x18] sm:$0xff]
    %v3081 = vld [vmem:[%s3077 + $0x20] sm:$0xff]
    %v3082 = vld [vmem:[%s3077 + $0x30] sm:$0xff]
    %v3083 = vld [vmem:[%s3077 + $0x38] sm:$0xff]
    %v3084 = vld [vmem:[%s3077 + $0x48] sm:$0xff]
    %v3085 = vld [vmem:[%s3077 + $0x50] sm:$0xff]
    %v3086 = vld [vmem:[%s3077 + $0x60] sm:$0xff]
    %v3087 = vld [vmem:[%s3077 + $0x68] sm:$0xff]
    %v3088 = vld [vmem:[%s3077 + $0x78] sm:$0xff]
    %v3089 = vld [vmem:[%s3077 + $0x80] sm:$0xff]
    %v3090 = vld [vmem:[%s3077 + $0x90] sm:$0xff]
    %v3091 = vld [vmem:[%s3077 + $0x98] sm:$0xff]
    %v3092 = vld [vmem:[%s3077 + $0xa8] sm:$0xff]
    %v3093 = vld [vmem:[%s3077 + $0xb0] sm:$0xff]
    %v3094 = vld [vmem:[%s3077 + $0xc0] sm:$0xff]
    %v3095 = vld [vmem:[%s3077 + $0xc8] sm:$0xff]
    %v3096 = vld [vmem:[%s3077 + $0xd8] sm:$0xff]
    %v3097 = vld [vmem:[%s3077 + $0xe0] sm:$0xff]
    %v3098 = vld [vmem:[%s3077 + $0xf0] sm:$0xff]
    %v3099 = vld [vmem:[%s3077 + $0xf8] sm:$0xff]
    %v3100 = vld [vmem:[%s3077 + $0x108] sm:$0xff]
    %v3101 = vld [vmem:[%s3077 + $0x110] sm:$0xff]
    %v3102 = vld [vmem:[%s3077 + $0x120] sm:$0xff]
    %v3103 = vld [vmem:[%s3077 + $0x128] sm:$0xff]
    %v3104 = vld [vmem:[%s3077 + $0x138] sm:$0xff]
    %v3105 = vld [vmem:[%s3077 + $0x140] sm:$0xff]
    %v3106 = vld [vmem:[%s3077 + $0x150] sm:$0xff]
    %v3107 = vld [vmem:[%s3077 + $0x158] sm:$0xff]
    %v3108 = vld [vmem:[%s3077 + $0x168] sm:$0xff]
    %v3109 = vld [vmem:[%s3077 + $0x170] sm:$0xff]
    %v3110 = vld [vmem:[%s3077 + $0x1e0] sm:$0xff]
    %v3111 = vld [vmem:[%s3077 + $0x1e8] sm:$0xff]
    %v3112 = vld [vmem:[%s3077 + $0x1f8] sm:$0xff]
    %v3113 = vld [vmem:[%s3077 + $0x200] sm:$0xff]
    %v3114 = vld [vmem:[%s3077 + $0x210] sm:$0xff]
    %v3115 = vld [vmem:[%s3077 + $0x218] sm:$0xff]
    %v3116 = vld [vmem:[%s3077 + $0x228] sm:$0xff]
    %v3117 = vld [vmem:[%s3077 + $0x230] sm:$0xff]
    %v3118 = vld [vmem:[%s3077 + $0x240] sm:$0xff]
    %v3119 = vld [vmem:[%s3077 + $0x248] sm:$0xff]
    %v3120 = vld [vmem:[%s3077 + $0x258] sm:$0xff]
    %v3121 = vld [vmem:[%s3077 + $0x260] sm:$0xff]
    %v3122 = vld [vmem:[%s3077 + $0x270] sm:$0xff]
    %v3123 = vld [vmem:[%s3077 + $0x278] sm:$0xff]
    %v3124 = vld [vmem:[%s3077 + $0x288] sm:$0xff]
    %v3125 = vld [vmem:[%s3077 + $0x290] sm:$0xff]
    %v3126 = vld [vmem:[%s3077 + $0x2a0] sm:$0xff]
    %v3127 = vld [vmem:[%s3077 + $0x2a8] sm:$0xff]
    %v3128 = vld [vmem:[%s3077 + $0x2b8] sm:$0xff]
    %v3129 = vld [vmem:[%s3077 + $0x2c0] sm:$0xff]
    %v3130 = vld [vmem:[%s3077 + $0x2d0] sm:$0xff]
    %v3131 = vld [vmem:[%s3077 + $0x2d8] sm:$0xff]
    %v3132 = vld [vmem:[%s3077 + $0x2e8] sm:$0xff]
    %v3133 = vld [vmem:[%s3077 + $0x2f0] sm:$0xff]
    %v3134 = vld [vmem:[%s3077 + $0x300] sm:$0xff]
    %v3135 = vld [vmem:[%s3077 + $0x308] sm:$0xff]
    %v3136 = vld [vmem:[%s3077 + $0x318] sm:$0xff]
    %v3137 = vld [vmem:[%s3077 + $0x320] sm:$0xff]
    %v3138 = vld [vmem:[%s3077 + $0x330] sm:$0xff]
    %v3139 = vld [vmem:[%s3077 + $0x338] sm:$0xff]
    %v3140 = vld [vmem:[%s3077 + $0x348] sm:$0xff]
    %v3141 = vld [vmem:[%s3077 + $0x350] sm:$0xff]
    %v3142 = vlaneseq
    %v3143 = vshrl.u32 %v3142, 7
    %v3144 = vsub.s32 6, %v3143
    %v3145 = vrot.slane %v1899, %v3144
    %v3146 = vmul.f32 %v3078, %v3145
    %v3147 = vmul.f32 %v3079, %v3145
    %v3148 = vmul.f32 %v3080, %v3145
    %v3149 = vmul.f32 %v3081, %v3145
    %v3150 = vmul.f32 %v3082, %v3145
    %v3151 = vmul.f32 %v3083, %v3145
    %v3152 = vmul.f32 %v3084, %v3145
    %v3153 = vmul.f32 %v3085, %v3145
    %v3154 = vmul.f32 %v3086, %v3145
    %v3155 = vmul.f32 %v3087, %v3145
    %v3156 = vmul.f32 %v3088, %v3145
    %v3157 = vmul.f32 %v3089, %v3145
    %v3158 = vmul.f32 %v3090, %v3145
    %v3159 = vmul.f32 %v3091, %v3145
    %v3160 = vmul.f32 %v3092, %v3145
    %v3161 = vmul.f32 %v3093, %v3145
    %v3162 = vmul.f32 %v3094, %v3145
    %v3163 = vmul.f32 %v3095, %v3145
    %v3164 = vmul.f32 %v3096, %v3145
    %v3165 = vmul.f32 %v3097, %v3145
    %v3166 = vmul.f32 %v3098, %v3145
    %v3167 = vmul.f32 %v3099, %v3145
    %v3168 = vmul.f32 %v3100, %v3145
    %v3169 = vmul.f32 %v3101, %v3145
    %v3170 = vmul.f32 %v3102, %v3145
    %v3171 = vmul.f32 %v3103, %v3145
    %v3172 = vmul.f32 %v3104, %v3145
    %v3173 = vmul.f32 %v3105, %v3145
    %v3174 = vmul.f32 %v3106, %v3145
    %v3175 = vmul.f32 %v3107, %v3145
    %v3176 = vmul.f32 %v3108, %v3145
    %v3177 = vmul.f32 %v3109, %v3145
    %v3178 = vmul.f32 %v3110, %v3145
    %v3179 = vmul.f32 %v3111, %v3145
    %v3180 = vmul.f32 %v3112, %v3145
    %v3181 = vmul.f32 %v3113, %v3145
    %v3182 = vmul.f32 %v3114, %v3145
    %v3183 = vmul.f32 %v3115, %v3145
    %v3184 = vmul.f32 %v3116, %v3145
    %v3185 = vmul.f32 %v3117, %v3145
    %v3186 = vmul.f32 %v3118, %v3145
    %v3187 = vmul.f32 %v3119, %v3145
    %v3188 = vmul.f32 %v3120, %v3145
    %v3189 = vmul.f32 %v3121, %v3145
    %v3190 = vmul.f32 %v3122, %v3145
    %v3191 = vmul.f32 %v3123, %v3145
    %v3192 = vmul.f32 %v3124, %v3145
    %v3193 = vmul.f32 %v3125, %v3145
    %v3194 = vmul.f32 %v3126, %v3145
    %v3195 = vmul.f32 %v3127, %v3145
    %v3196 = vmul.f32 %v3128, %v3145
    %v3197 = vmul.f32 %v3129, %v3145
    %v3198 = vmul.f32 %v3130, %v3145
    %v3199 = vmul.f32 %v3131, %v3145
    %v3200 = vmul.f32 %v3132, %v3145
    %v3201 = vmul.f32 %v3133, %v3145
    %v3202 = vmul.f32 %v3134, %v3145
    %v3203 = vmul.f32 %v3135, %v3145
    %v3204 = vmul.f32 %v3136, %v3145
    %v3205 = vmul.f32 %v3137, %v3145
    %v3206 = vmul.f32 %v3138, %v3145
    %v3207 = vmul.f32 %v3139, %v3145
    %v3208 = vmul.f32 %v3140, %v3145
    %v3209 = vmul.f32 %v3141, %v3145
    %v3210 = vadd.f32 %v3013, %v3146
    %v3211 = vadd.f32 %v3014, %v3147
    %v3212 = vadd.f32 %v3015, %v3148
    %v3213 = vadd.f32 %v3016, %v3149
    %v3214 = vadd.f32 %v3017, %v3150
    %v3215 = vadd.f32 %v3018, %v3151
    %v3216 = vadd.f32 %v3019, %v3152
    %v3217 = vadd.f32 %v3020, %v3153
    %v3218 = vadd.f32 %v3021, %v3154
    %v3219 = vadd.f32 %v3022, %v3155
    %v3220 = vadd.f32 %v3023, %v3156
    %v3221 = vadd.f32 %v3024, %v3157
    %v3222 = vadd.f32 %v3025, %v3158
    %v3223 = vadd.f32 %v3026, %v3159
    %v3224 = vadd.f32 %v3027, %v3160
    %v3225 = vadd.f32 %v3028, %v3161
    %v3226 = vadd.f32 %v3029, %v3162
    %v3227 = vadd.f32 %v3030, %v3163
    %v3228 = vadd.f32 %v3031, %v3164
    %v3229 = vadd.f32 %v3032, %v3165
    %v3230 = vadd.f32 %v3033, %v3166
    %v3231 = vadd.f32 %v3034, %v3167
    %v3232 = vadd.f32 %v3035, %v3168
    %v3233 = vadd.f32 %v3036, %v3169
    %v3234 = vadd.f32 %v3037, %v3170
    %v3235 = vadd.f32 %v3038, %v3171
    %v3236 = vadd.f32 %v3039, %v3172
    %v3237 = vadd.f32 %v3040, %v3173
    %v3238 = vadd.f32 %v3041, %v3174
    %v3239 = vadd.f32 %v3042, %v3175
    %v3240 = vadd.f32 %v3043, %v3176
    %v3241 = vadd.f32 %v3044, %v3177
    %v3242 = vadd.f32 %v3045, %v3178
    %v3243 = vadd.f32 %v3046, %v3179
    %v3244 = vadd.f32 %v3047, %v3180
    %v3245 = vadd.f32 %v3048, %v3181
    %v3246 = vadd.f32 %v3049, %v3182
    %v3247 = vadd.f32 %v3050, %v3183
    %v3248 = vadd.f32 %v3051, %v3184
    %v3249 = vadd.f32 %v3052, %v3185
    %v3250 = vadd.f32 %v3053, %v3186
    %v3251 = vadd.f32 %v3054, %v3187
    %v3252 = vadd.f32 %v3055, %v3188
    %v3253 = vadd.f32 %v3056, %v3189
    %v3254 = vadd.f32 %v3057, %v3190
    %v3255 = vadd.f32 %v3058, %v3191
    %v3256 = vadd.f32 %v3059, %v3192
    %v3257 = vadd.f32 %v3060, %v3193
    %v3258 = vadd.f32 %v3061, %v3194
    %v3259 = vadd.f32 %v3062, %v3195
    %v3260 = vadd.f32 %v3063, %v3196
    %v3261 = vadd.f32 %v3064, %v3197
    %v3262 = vadd.f32 %v3065, %v3198
    %v3263 = vadd.f32 %v3066, %v3199
    %v3264 = vadd.f32 %v3067, %v3200
    %v3265 = vadd.f32 %v3068, %v3201
    %v3266 = vadd.f32 %v3069, %v3202
    %v3267 = vadd.f32 %v3070, %v3203
    %v3268 = vadd.f32 %v3071, %v3204
    %v3269 = vadd.f32 %v3072, %v3205
    %v3270 = vadd.f32 %v3073, %v3206
    %v3271 = vadd.f32 %v3074, %v3207
    %v3272 = vadd.f32 %v3075, %v3208
    %v3273 = vadd.f32 %v3076, %v3209
    %v3274 = vld [vmem:[%s3077 + $0x1] sm:$0xff]
    %v3275 = vld [vmem:[%s3077 + $0x9] sm:$0xff]
    %v3276 = vld [vmem:[%s3077 + $0x19] sm:$0xff]
    %v3277 = vld [vmem:[%s3077 + $0x21] sm:$0xff]
    %v3278 = vld [vmem:[%s3077 + $0x31] sm:$0xff]
    %v3279 = vld [vmem:[%s3077 + $0x39] sm:$0xff]
    %v3280 = vld [vmem:[%s3077 + $0x49] sm:$0xff]
    %v3281 = vld [vmem:[%s3077 + $0x51] sm:$0xff]
    %v3282 = vld [vmem:[%s3077 + $0x61] sm:$0xff]
    %v3283 = vld [vmem:[%s3077 + $0x69] sm:$0xff]
    %v3284 = vld [vmem:[%s3077 + $0x79] sm:$0xff]
    %v3285 = vld [vmem:[%s3077 + $0x81] sm:$0xff]
    %v3286 = vld [vmem:[%s3077 + $0x91] sm:$0xff]
    %v3287 = vld [vmem:[%s3077 + $0x99] sm:$0xff]
    %v3288 = vld [vmem:[%s3077 + $0xa9] sm:$0xff]
    %v3289 = vld [vmem:[%s3077 + $0xb1] sm:$0xff]
    %v3290 = vld [vmem:[%s3077 + $0xc1] sm:$0xff]
    %v3291 = vld [vmem:[%s3077 + $0xc9] sm:$0xff]
    %v3292 = vld [vmem:[%s3077 + $0xd9] sm:$0xff]
    %v3293 = vld [vmem:[%s3077 + $0xe1] sm:$0xff]
    %v3294 = vld [vmem:[%s3077 + $0xf1] sm:$0xff]
    %v3295 = vld [vmem:[%s3077 + $0xf9] sm:$0xff]
    %v3296 = vld [vmem:[%s3077 + $0x109] sm:$0xff]
    %v3297 = vld [vmem:[%s3077 + $0x111] sm:$0xff]
    %v3298 = vld [vmem:[%s3077 + $0x121] sm:$0xff]
    %v3299 = vld [vmem:[%s3077 + $0x129] sm:$0xff]
    %v3300 = vld [vmem:[%s3077 + $0x139] sm:$0xff]
    %v3301 = vld [vmem:[%s3077 + $0x141] sm:$0xff]
    %v3302 = vld [vmem:[%s3077 + $0x151] sm:$0xff]
    %v3303 = vld [vmem:[%s3077 + $0x159] sm:$0xff]
    %v3304 = vld [vmem:[%s3077 + $0x169] sm:$0xff]
    %v3305 = vld [vmem:[%s3077 + $0x171] sm:$0xff]
    %v3306 = vld [vmem:[%s3077 + $0x1e1] sm:$0xff]
    %v3307 = vld [vmem:[%s3077 + $0x1e9] sm:$0xff]
    %v3308 = vld [vmem:[%s3077 + $0x1f9] sm:$0xff]
    %v3309 = vld [vmem:[%s3077 + $0x201] sm:$0xff]
    %v3310 = vld [vmem:[%s3077 + $0x211] sm:$0xff]
    %v3311 = vld [vmem:[%s3077 + $0x219] sm:$0xff]
    %v3312 = vld [vmem:[%s3077 + $0x229] sm:$0xff]
    %v3313 = vld [vmem:[%s3077 + $0x231] sm:$0xff]
    %v3314 = vld [vmem:[%s3077 + $0x241] sm:$0xff]
    %v3315 = vld [vmem:[%s3077 + $0x249] sm:$0xff]
    %v3316 = vld [vmem:[%s3077 + $0x259] sm:$0xff]
    %v3317 = vld [vmem:[%s3077 + $0x261] sm:$0xff]
    %v3318 = vld [vmem:[%s3077 + $0x271] sm:$0xff]
    %v3319 = vld [vmem:[%s3077 + $0x279] sm:$0xff]
    %v3320 = vld [vmem:[%s3077 + $0x289] sm:$0xff]
    %v3321 = vld [vmem:[%s3077 + $0x291] sm:$0xff]
    %v3322 = vld [vmem:[%s3077 + $0x2a1] sm:$0xff]
    %v3323 = vld [vmem:[%s3077 + $0x2a9] sm:$0xff]
    %v3324 = vld [vmem:[%s3077 + $0x2b9] sm:$0xff]
    %v3325 = vld [vmem:[%s3077 + $0x2c1] sm:$0xff]
    %v3326 = vld [vmem:[%s3077 + $0x2d1] sm:$0xff]
    %v3327 = vld [vmem:[%s3077 + $0x2d9] sm:$0xff]
    %v3328 = vld [vmem:[%s3077 + $0x2e9] sm:$0xff]
    %v3329 = vld [vmem:[%s3077 + $0x2f1] sm:$0xff]
    %v3330 = vld [vmem:[%s3077 + $0x301] sm:$0xff]
    %v3331 = vld [vmem:[%s3077 + $0x309] sm:$0xff]
    %v3332 = vld [vmem:[%s3077 + $0x319] sm:$0xff]
    %v3333 = vld [vmem:[%s3077 + $0x321] sm:$0xff]
    %v3334 = vld [vmem:[%s3077 + $0x331] sm:$0xff]
    %v3335 = vld [vmem:[%s3077 + $0x339] sm:$0xff]
    %v3336 = vld [vmem:[%s3077 + $0x349] sm:$0xff]
    %v3337 = vld [vmem:[%s3077 + $0x351] sm:$0xff]
    %v3338 = vlaneseq
    %v3339 = vshrl.u32 %v3338, 7
    %v3340 = vsub.s32 7, %v3339
    %v3341 = vrot.slane %v1899, %v3340
    %v3342 = vmul.f32 %v3274, %v3341
    %v3343 = vmul.f32 %v3275, %v3341
    %v3344 = vmul.f32 %v3276, %v3341
    %v3345 = vmul.f32 %v3277, %v3341
    %v3346 = vmul.f32 %v3278, %v3341
    %v3347 = vmul.f32 %v3279, %v3341
    %v3348 = vmul.f32 %v3280, %v3341
    %v3349 = vmul.f32 %v3281, %v3341
    %v3350 = vmul.f32 %v3282, %v3341
    %v3351 = vmul.f32 %v3283, %v3341
    %v3352 = vmul.f32 %v3284, %v3341
    %v3353 = vmul.f32 %v3285, %v3341
    %v3354 = vmul.f32 %v3286, %v3341
    %v3355 = vmul.f32 %v3287, %v3341
    %v3356 = vmul.f32 %v3288, %v3341
    %v3357 = vmul.f32 %v3289, %v3341
    %v3358 = vmul.f32 %v3290, %v3341
    %v3359 = vmul.f32 %v3291, %v3341
    %v3360 = vmul.f32 %v3292, %v3341
    %v3361 = vmul.f32 %v3293, %v3341
    %v3362 = vmul.f32 %v3294, %v3341
    %v3363 = vmul.f32 %v3295, %v3341
    %v3364 = vmul.f32 %v3296, %v3341
    %v3365 = vmul.f32 %v3297, %v3341
    %v3366 = vmul.f32 %v3298, %v3341
    %v3367 = vmul.f32 %v3299, %v3341
    %v3368 = vmul.f32 %v3300, %v3341
    %v3369 = vmul.f32 %v3301, %v3341
    %v3370 = vmul.f32 %v3302, %v3341
    %v3371 = vmul.f32 %v3303, %v3341
    %v3372 = vmul.f32 %v3304, %v3341
    %v3373 = vmul.f32 %v3305, %v3341
    %v3374 = vmul.f32 %v3306, %v3341
    %v3375 = vmul.f32 %v3307, %v3341
    %v3376 = vmul.f32 %v3308, %v3341
    %v3377 = vmul.f32 %v3309, %v3341
    %v3378 = vmul.f32 %v3310, %v3341
    %v3379 = vmul.f32 %v3311, %v3341
    %v3380 = vmul.f32 %v3312, %v3341
    %v3381 = vmul.f32 %v3313, %v3341
    %v3382 = vmul.f32 %v3314, %v3341
    %v3383 = vmul.f32 %v3315, %v3341
    %v3384 = vmul.f32 %v3316, %v3341
    %v3385 = vmul.f32 %v3317, %v3341
    %v3386 = vmul.f32 %v3318, %v3341
    %v3387 = vmul.f32 %v3319, %v3341
    %v3388 = vmul.f32 %v3320, %v3341
    %v3389 = vmul.f32 %v3321, %v3341
    %v3390 = vmul.f32 %v3322, %v3341
    %v3391 = vmul.f32 %v3323, %v3341
    %v3392 = vmul.f32 %v3324, %v3341
    %v3393 = vmul.f32 %v3325, %v3341
    %v3394 = vmul.f32 %v3326, %v3341
    %v3395 = vmul.f32 %v3327, %v3341
    %v3396 = vmul.f32 %v3328, %v3341
    %v3397 = vmul.f32 %v3329, %v3341
    %v3398 = vmul.f32 %v3330, %v3341
    %v3399 = vmul.f32 %v3331, %v3341
    %v3400 = vmul.f32 %v3332, %v3341
    %v3401 = vmul.f32 %v3333, %v3341
    %v3402 = vmul.f32 %v3334, %v3341
    %v3403 = vmul.f32 %v3335, %v3341
    %v3404 = vmul.f32 %v3336, %v3341
    %v3405 = vmul.f32 %v3337, %v3341
    %v3406 = vadd.f32 %v3210, %v3342
    %v3407 = vadd.f32 %v3211, %v3343
    %v3408 = vadd.f32 %v3212, %v3344
    %v3409 = vadd.f32 %v3213, %v3345
    %v3410 = vadd.f32 %v3214, %v3346
    %v3411 = vadd.f32 %v3215, %v3347
    %v3412 = vadd.f32 %v3216, %v3348
    %v3413 = vadd.f32 %v3217, %v3349
    %v3414 = vadd.f32 %v3218, %v3350
    %v3415 = vadd.f32 %v3219, %v3351
    %v3416 = vadd.f32 %v3220, %v3352
    %v3417 = vadd.f32 %v3221, %v3353
    %v3418 = vadd.f32 %v3222, %v3354
    %v3419 = vadd.f32 %v3223, %v3355
    %v3420 = vadd.f32 %v3224, %v3356
    %v3421 = vadd.f32 %v3225, %v3357
    %v3422 = vadd.f32 %v3226, %v3358
    %v3423 = vadd.f32 %v3227, %v3359
    %v3424 = vadd.f32 %v3228, %v3360
    %v3425 = vadd.f32 %v3229, %v3361
    %v3426 = vadd.f32 %v3230, %v3362
    %v3427 = vadd.f32 %v3231, %v3363
    %v3428 = vadd.f32 %v3232, %v3364
    %v3429 = vadd.f32 %v3233, %v3365
    %v3430 = vadd.f32 %v3234, %v3366
    %v3431 = vadd.f32 %v3235, %v3367
    %v3432 = vadd.f32 %v3236, %v3368
    %v3433 = vadd.f32 %v3237, %v3369
    %v3434 = vadd.f32 %v3238, %v3370
    %v3435 = vadd.f32 %v3239, %v3371
    %v3436 = vadd.f32 %v3240, %v3372
    %v3437 = vadd.f32 %v3241, %v3373
    %v3438 = vadd.f32 %v3242, %v3374
    %v3439 = vadd.f32 %v3243, %v3375
    %v3440 = vadd.f32 %v3244, %v3376
    %v3441 = vadd.f32 %v3245, %v3377
    %v3442 = vadd.f32 %v3246, %v3378
    %v3443 = vadd.f32 %v3247, %v3379
    %v3444 = vadd.f32 %v3248, %v3380
    %v3445 = vadd.f32 %v3249, %v3381
    %v3446 = vadd.f32 %v3250, %v3382
    %v3447 = vadd.f32 %v3251, %v3383
    %v3448 = vadd.f32 %v3252, %v3384
    %v3449 = vadd.f32 %v3253, %v3385
    %v3450 = vadd.f32 %v3254, %v3386
    %v3451 = vadd.f32 %v3255, %v3387
    %v3452 = vadd.f32 %v3256, %v3388
    %v3453 = vadd.f32 %v3257, %v3389
    %v3454 = vadd.f32 %v3258, %v3390
    %v3455 = vadd.f32 %v3259, %v3391
    %v3456 = vadd.f32 %v3260, %v3392
    %v3457 = vadd.f32 %v3261, %v3393
    %v3458 = vadd.f32 %v3262, %v3394
    %v3459 = vadd.f32 %v3263, %v3395
    %v3460 = vadd.f32 %v3264, %v3396
    %v3461 = vadd.f32 %v3265, %v3397
    %v3462 = vadd.f32 %v3266, %v3398
    %v3463 = vadd.f32 %v3267, %v3399
    %v3464 = vadd.f32 %v3268, %v3400
    %v3465 = vadd.f32 %v3269, %v3401
    %v3466 = vadd.f32 %v3270, %v3402
    %v3467 = vadd.f32 %v3271, %v3403
    %v3468 = vadd.f32 %v3272, %v3404
    %v3469 = vadd.f32 %v3273, %v3405
    %v3470 = vld [vmem:[%s3077 + $0x2] sm:$0xff]
    %v3471 = vld [vmem:[%s3077 + $0xa] sm:$0xff]
    %v3472 = vld [vmem:[%s3077 + $0x1a] sm:$0xff]
    %v3473 = vld [vmem:[%s3077 + $0x22] sm:$0xff]
    %v3474 = vld [vmem:[%s3077 + $0x32] sm:$0xff]
    %v3475 = vld [vmem:[%s3077 + $0x3a] sm:$0xff]
    %v3476 = vld [vmem:[%s3077 + $0x4a] sm:$0xff]
    %v3477 = vld [vmem:[%s3077 + $0x52] sm:$0xff]
    %v3478 = vld [vmem:[%s3077 + $0x62] sm:$0xff]
    %v3479 = vld [vmem:[%s3077 + $0x6a] sm:$0xff]
    %v3480 = vld [vmem:[%s3077 + $0x7a] sm:$0xff]
    %v3481 = vld [vmem:[%s3077 + $0x82] sm:$0xff]
    %v3482 = vld [vmem:[%s3077 + $0x92] sm:$0xff]
    %v3483 = vld [vmem:[%s3077 + $0x9a] sm:$0xff]
    %v3484 = vld [vmem:[%s3077 + $0xaa] sm:$0xff]
    %v3485 = vld [vmem:[%s3077 + $0xb2] sm:$0xff]
    %v3486 = vld [vmem:[%s3077 + $0xc2] sm:$0xff]
    %v3487 = vld [vmem:[%s3077 + $0xca] sm:$0xff]
    %v3488 = vld [vmem:[%s3077 + $0xda] sm:$0xff]
    %v3489 = vld [vmem:[%s3077 + $0xe2] sm:$0xff]
    %v3490 = vld [vmem:[%s3077 + $0xf2] sm:$0xff]
    %v3491 = vld [vmem:[%s3077 + $0xfa] sm:$0xff]
    %v3492 = vld [vmem:[%s3077 + $0x10a] sm:$0xff]
    %v3493 = vld [vmem:[%s3077 + $0x112] sm:$0xff]
    %v3494 = vld [vmem:[%s3077 + $0x122] sm:$0xff]
    %v3495 = vld [vmem:[%s3077 + $0x12a] sm:$0xff]
    %v3496 = vld [vmem:[%s3077 + $0x13a] sm:$0xff]
    %v3497 = vld [vmem:[%s3077 + $0x142] sm:$0xff]
    %v3498 = vld [vmem:[%s3077 + $0x152] sm:$0xff]
    %v3499 = vld [vmem:[%s3077 + $0x15a] sm:$0xff]
    %v3500 = vld [vmem:[%s3077 + $0x16a] sm:$0xff]
    %v3501 = vld [vmem:[%s3077 + $0x172] sm:$0xff]
    %v3502 = vld [vmem:[%s3077 + $0x1e2] sm:$0xff]
    %v3503 = vld [vmem:[%s3077 + $0x1ea] sm:$0xff]
    %v3504 = vld [vmem:[%s3077 + $0x1fa] sm:$0xff]
    %v3505 = vld [vmem:[%s3077 + $0x202] sm:$0xff]
    %v3506 = vld [vmem:[%s3077 + $0x212] sm:$0xff]
    %v3507 = vld [vmem:[%s3077 + $0x21a] sm:$0xff]
    %v3508 = vld [vmem:[%s3077 + $0x22a] sm:$0xff]
    %v3509 = vld [vmem:[%s3077 + $0x232] sm:$0xff]
    %v3510 = vld [vmem:[%s3077 + $0x242] sm:$0xff]
    %v3511 = vld [vmem:[%s3077 + $0x24a] sm:$0xff]
    %v3512 = vld [vmem:[%s3077 + $0x25a] sm:$0xff]
    %v3513 = vld [vmem:[%s3077 + $0x262] sm:$0xff]
    %v3514 = vld [vmem:[%s3077 + $0x272] sm:$0xff]
    %v3515 = vld [vmem:[%s3077 + $0x27a] sm:$0xff]
    %v3516 = vld [vmem:[%s3077 + $0x28a] sm:$0xff]
    %v3517 = vld [vmem:[%s3077 + $0x292] sm:$0xff]
    %v3518 = vld [vmem:[%s3077 + $0x2a2] sm:$0xff]
    %v3519 = vld [vmem:[%s3077 + $0x2aa] sm:$0xff]
    %v3520 = vld [vmem:[%s3077 + $0x2ba] sm:$0xff]
    %v3521 = vld [vmem:[%s3077 + $0x2c2] sm:$0xff]
    %v3522 = vld [vmem:[%s3077 + $0x2d2] sm:$0xff]
    %v3523 = vld [vmem:[%s3077 + $0x2da] sm:$0xff]
    %v3524 = vld [vmem:[%s3077 + $0x2ea] sm:$0xff]
    %v3525 = vld [vmem:[%s3077 + $0x2f2] sm:$0xff]
    %v3526 = vld [vmem:[%s3077 + $0x302] sm:$0xff]
    %v3527 = vld [vmem:[%s3077 + $0x30a] sm:$0xff]
    %v3528 = vld [vmem:[%s3077 + $0x31a] sm:$0xff]
    %v3529 = vld [vmem:[%s3077 + $0x322] sm:$0xff]
    %v3530 = vld [vmem:[%s3077 + $0x332] sm:$0xff]
    %v3531 = vld [vmem:[%s3077 + $0x33a] sm:$0xff]
    %v3532 = vld [vmem:[%s3077 + $0x34a] sm:$0xff]
    %v3533 = vld [vmem:[%s3077 + $0x352] sm:$0xff]
    %v3534 = vlaneseq
    %v3535 = vshrl.u32 %v3534, 7
    %v3536 = vsub.s32 0, %v3535
    %v3537 = vrot.slane %v1900, %v3536
    %v3538 = vmul.f32 %v3470, %v3537
    %v3539 = vmul.f32 %v3471, %v3537
    %v3540 = vmul.f32 %v3472, %v3537
    %v3541 = vmul.f32 %v3473, %v3537
    %v3542 = vmul.f32 %v3474, %v3537
    %v3543 = vmul.f32 %v3475, %v3537
    %v3544 = vmul.f32 %v3476, %v3537
    %v3545 = vmul.f32 %v3477, %v3537
    %v3546 = vmul.f32 %v3478, %v3537
    %v3547 = vmul.f32 %v3479, %v3537
    %v3548 = vmul.f32 %v3480, %v3537
    %v3549 = vmul.f32 %v3481, %v3537
    %v3550 = vmul.f32 %v3482, %v3537
    %v3551 = vmul.f32 %v3483, %v3537
    %v3552 = vmul.f32 %v3484, %v3537
    %v3553 = vmul.f32 %v3485, %v3537
    %v3554 = vmul.f32 %v3486, %v3537
    %v3555 = vmul.f32 %v3487, %v3537
    %v3556 = vmul.f32 %v3488, %v3537
    %v3557 = vmul.f32 %v3489, %v3537
    %v3558 = vmul.f32 %v3490, %v3537
    %v3559 = vmul.f32 %v3491, %v3537
    %v3560 = vmul.f32 %v3492, %v3537
    %v3561 = vmul.f32 %v3493, %v3537
    %v3562 = vmul.f32 %v3494, %v3537
    %v3563 = vmul.f32 %v3495, %v3537
    %v3564 = vmul.f32 %v3496, %v3537
    %v3565 = vmul.f32 %v3497, %v3537
    %v3566 = vmul.f32 %v3498, %v3537
    %v3567 = vmul.f32 %v3499, %v3537
    %v3568 = vmul.f32 %v3500, %v3537
    %v3569 = vmul.f32 %v3501, %v3537
    %v3570 = vmul.f32 %v3502, %v3537
    %v3571 = vmul.f32 %v3503, %v3537
    %v3572 = vmul.f32 %v3504, %v3537
    %v3573 = vmul.f32 %v3505, %v3537
    %v3574 = vmul.f32 %v3506, %v3537
    %v3575 = vmul.f32 %v3507, %v3537
    %v3576 = vmul.f32 %v3508, %v3537
    %v3577 = vmul.f32 %v3509, %v3537
    %v3578 = vmul.f32 %v3510, %v3537
    %v3579 = vmul.f32 %v3511, %v3537
    %v3580 = vmul.f32 %v3512, %v3537
    %v3581 = vmul.f32 %v3513, %v3537
    %v3582 = vmul.f32 %v3514, %v3537
    %v3583 = vmul.f32 %v3515, %v3537
    %v3584 = vmul.f32 %v3516, %v3537
    %v3585 = vmul.f32 %v3517, %v3537
    %v3586 = vmul.f32 %v3518, %v3537
    %v3587 = vmul.f32 %v3519, %v3537
    %v3588 = vmul.f32 %v3520, %v3537
    %v3589 = vmul.f32 %v3521, %v3537
    %v3590 = vmul.f32 %v3522, %v3537
    %v3591 = vmul.f32 %v3523, %v3537
    %v3592 = vmul.f32 %v3524, %v3537
    %v3593 = vmul.f32 %v3525, %v3537
    %v3594 = vmul.f32 %v3526, %v3537
    %v3595 = vmul.f32 %v3527, %v3537
    %v3596 = vmul.f32 %v3528, %v3537
    %v3597 = vmul.f32 %v3529, %v3537
    %v3598 = vmul.f32 %v3530, %v3537
    %v3599 = vmul.f32 %v3531, %v3537
    %v3600 = vmul.f32 %v3532, %v3537
    %v3601 = vmul.f32 %v3533, %v3537
    %v3602 = vadd.f32 %v3406, %v3538
    %v3603 = vadd.f32 %v3407, %v3539
    %v3604 = vadd.f32 %v3408, %v3540
    %v3605 = vadd.f32 %v3409, %v3541
    %v3606 = vadd.f32 %v3410, %v3542
    %v3607 = vadd.f32 %v3411, %v3543
    %v3608 = vadd.f32 %v3412, %v3544
    %v3609 = vadd.f32 %v3413, %v3545
    %v3610 = vadd.f32 %v3414, %v3546
    %v3611 = vadd.f32 %v3415, %v3547
    %v3612 = vadd.f32 %v3416, %v3548
    %v3613 = vadd.f32 %v3417, %v3549
    %v3614 = vadd.f32 %v3418, %v3550
    %v3615 = vadd.f32 %v3419, %v3551
    %v3616 = vadd.f32 %v3420, %v3552
    %v3617 = vadd.f32 %v3421, %v3553
    %v3618 = vadd.f32 %v3422, %v3554
    %v3619 = vadd.f32 %v3423, %v3555
    %v3620 = vadd.f32 %v3424, %v3556
    %v3621 = vadd.f32 %v3425, %v3557
    %v3622 = vadd.f32 %v3426, %v3558
    %v3623 = vadd.f32 %v3427, %v3559
    %v3624 = vadd.f32 %v3428, %v3560
    %v3625 = vadd.f32 %v3429, %v3561
    %v3626 = vadd.f32 %v3430, %v3562
    %v3627 = vadd.f32 %v3431, %v3563
    %v3628 = vadd.f32 %v3432, %v3564
    %v3629 = vadd.f32 %v3433, %v3565
    %v3630 = vadd.f32 %v3434, %v3566
    %v3631 = vadd.f32 %v3435, %v3567
    %v3632 = vadd.f32 %v3436, %v3568
    %v3633 = vadd.f32 %v3437, %v3569
    %v3634 = vadd.f32 %v3438, %v3570
    %v3635 = vadd.f32 %v3439, %v3571
    %v3636 = vadd.f32 %v3440, %v3572
    %v3637 = vadd.f32 %v3441, %v3573
    %v3638 = vadd.f32 %v3442, %v3574
    %v3639 = vadd.f32 %v3443, %v3575
    %v3640 = vadd.f32 %v3444, %v3576
    %v3641 = vadd.f32 %v3445, %v3577
    %v3642 = vadd.f32 %v3446, %v3578
    %v3643 = vadd.f32 %v3447, %v3579
    %v3644 = vadd.f32 %v3448, %v3580
    %v3645 = vadd.f32 %v3449, %v3581
    %v3646 = vadd.f32 %v3450, %v3582
    %v3647 = vadd.f32 %v3451, %v3583
    %v3648 = vadd.f32 %v3452, %v3584
    %v3649 = vadd.f32 %v3453, %v3585
    %v3650 = vadd.f32 %v3454, %v3586
    %v3651 = vadd.f32 %v3455, %v3587
    %v3652 = vadd.f32 %v3456, %v3588
    %v3653 = vadd.f32 %v3457, %v3589
    %v3654 = vadd.f32 %v3458, %v3590
    %v3655 = vadd.f32 %v3459, %v3591
    %v3656 = vadd.f32 %v3460, %v3592
    %v3657 = vadd.f32 %v3461, %v3593
    %v3658 = vadd.f32 %v3462, %v3594
    %v3659 = vadd.f32 %v3463, %v3595
    %v3660 = vadd.f32 %v3464, %v3596
    %v3661 = vadd.f32 %v3465, %v3597
    %v3662 = vadd.f32 %v3466, %v3598
    %v3663 = vadd.f32 %v3467, %v3599
    %v3664 = vadd.f32 %v3468, %v3600
    %v3665 = vadd.f32 %v3469, %v3601
    %v3667 = vlaneseq
    %v3668 = vshrl.u32 %v3667, 7
    %v3669 = vsub.s32 0, %v3668
    %v3670 = vrot.slane %v1753, %v3669
    %v3672 = vadd.f32 %v3602, %v3670
    %v3673 = vadd.f32 %v3603, %v3670
    %v3674 = vadd.f32 %v3604, %v3670
    %v3675 = vadd.f32 %v3605, %v3670
    %v3676 = vadd.f32 %v3606, %v3670
    %v3677 = vadd.f32 %v3607, %v3670
    %v3678 = vadd.f32 %v3608, %v3670
    %v3679 = vadd.f32 %v3609, %v3670
    %v3680 = vadd.f32 %v3610, %v3670
    %v3681 = vadd.f32 %v3611, %v3670
    %v3682 = vadd.f32 %v3612, %v3670
    %v3683 = vadd.f32 %v3613, %v3670
    %v3684 = vadd.f32 %v3614, %v3670
    %v3685 = vadd.f32 %v3615, %v3670
    %v3686 = vadd.f32 %v3616, %v3670
    %v3687 = vadd.f32 %v3617, %v3670
    %v3688 = vadd.f32 %v3618, %v3670
    %v3689 = vadd.f32 %v3619, %v3670
    %v3690 = vadd.f32 %v3620, %v3670
    %v3691 = vadd.f32 %v3621, %v3670
    %v3692 = vadd.f32 %v3622, %v3670
    %v3693 = vadd.f32 %v3623, %v3670
    %v3694 = vadd.f32 %v3624, %v3670
    %v3695 = vadd.f32 %v3625, %v3670
    %v3696 = vadd.f32 %v3626, %v3670
    %v3697 = vadd.f32 %v3627, %v3670
    %v3698 = vadd.f32 %v3628, %v3670
    %v3699 = vadd.f32 %v3629, %v3670
    %v3700 = vadd.f32 %v3630, %v3670
    %v3701 = vadd.f32 %v3631, %v3670
    %v3702 = vadd.f32 %v3632, %v3670
    %v3703 = vadd.f32 %v3633, %v3670
    %v3704 = vadd.f32 %v3634, %v3670
    %v3705 = vadd.f32 %v3635, %v3670
    %v3706 = vadd.f32 %v3636, %v3670
    %v3707 = vadd.f32 %v3637, %v3670
    %v3708 = vadd.f32 %v3638, %v3670
    %v3709 = vadd.f32 %v3639, %v3670
    %v3710 = vadd.f32 %v3640, %v3670
    %v3711 = vadd.f32 %v3641, %v3670
    %v3712 = vadd.f32 %v3642, %v3670
    %v3713 = vadd.f32 %v3643, %v3670
    %v3714 = vadd.f32 %v3644, %v3670
    %v3715 = vadd.f32 %v3645, %v3670
    %v3716 = vadd.f32 %v3646, %v3670
    %v3717 = vadd.f32 %v3647, %v3670
    %v3718 = vadd.f32 %v3648, %v3670
    %v3719 = vadd.f32 %v3649, %v3670
    %v3720 = vadd.f32 %v3650, %v3670
    %v3721 = vadd.f32 %v3651, %v3670
    %v3722 = vadd.f32 %v3652, %v3670
    %v3723 = vadd.f32 %v3653, %v3670
    %v3724 = vadd.f32 %v3654, %v3670
    %v3725 = vadd.f32 %v3655, %v3670
    %v3726 = vadd.f32 %v3656, %v3670
    %v3727 = vadd.f32 %v3657, %v3670
    %v3728 = vadd.f32 %v3658, %v3670
    %v3729 = vadd.f32 %v3659, %v3670
    %v3730 = vadd.f32 %v3660, %v3670
    %v3731 = vadd.f32 %v3661, %v3670
    %v3732 = vadd.f32 %v3662, %v3670
    %v3733 = vadd.f32 %v3663, %v3670
    %v3734 = vadd.f32 %v3664, %v3670
    %v3735 = vadd.f32 %v3665, %v3670
    %vm3736 = vcmp.ge.f32.partialorder %v3672, 0.0
    %vm3737 = vcmp.ge.f32.partialorder %v3673, 0.0
    %vm3738 = vcmp.ge.f32.partialorder %v3674, 0.0
    %vm3739 = vcmp.ge.f32.partialorder %v3675, 0.0
    %vm3740 = vcmp.ge.f32.partialorder %v3676, 0.0
    %vm3741 = vcmp.ge.f32.partialorder %v3677, 0.0
    %vm3742 = vcmp.ge.f32.partialorder %v3678, 0.0
    %vm3743 = vcmp.ge.f32.partialorder %v3679, 0.0
    %vm3744 = vcmp.ge.f32.partialorder %v3680, 0.0
    %vm3745 = vcmp.ge.f32.partialorder %v3681, 0.0
    %vm3746 = vcmp.ge.f32.partialorder %v3682, 0.0
    %vm3747 = vcmp.ge.f32.partialorder %v3683, 0.0
    %vm3748 = vcmp.ge.f32.partialorder %v3684, 0.0
    %vm3749 = vcmp.ge.f32.partialorder %v3685, 0.0
    %vm3750 = vcmp.ge.f32.partialorder %v3686, 0.0
    %vm3751 = vcmp.ge.f32.partialorder %v3687, 0.0
    %vm3752 = vcmp.ge.f32.partialorder %v3688, 0.0
    %vm3753 = vcmp.ge.f32.partialorder %v3689, 0.0
    %vm3754 = vcmp.ge.f32.partialorder %v3690, 0.0
    %vm3755 = vcmp.ge.f32.partialorder %v3691, 0.0
    %vm3756 = vcmp.ge.f32.partialorder %v3692, 0.0
    %vm3757 = vcmp.ge.f32.partialorder %v3693, 0.0
    %vm3758 = vcmp.ge.f32.partialorder %v3694, 0.0
    %vm3759 = vcmp.ge.f32.partialorder %v3695, 0.0
    %vm3760 = vcmp.ge.f32.partialorder %v3696, 0.0
    %vm3761 = vcmp.ge.f32.partialorder %v3697, 0.0
    %vm3762 = vcmp.ge.f32.partialorder %v3698, 0.0
    %vm3763 = vcmp.ge.f32.partialorder %v3699, 0.0
    %vm3764 = vcmp.ge.f32.partialorder %v3700, 0.0
    %vm3765 = vcmp.ge.f32.partialorder %v3701, 0.0
    %vm3766 = vcmp.ge.f32.partialorder %v3702, 0.0
    %vm3767 = vcmp.ge.f32.partialorder %v3703, 0.0
    %vm3768 = vcmp.ge.f32.partialorder %v3704, 0.0
    %vm3769 = vcmp.ge.f32.partialorder %v3705, 0.0
    %vm3770 = vcmp.ge.f32.partialorder %v3706, 0.0
    %vm3771 = vcmp.ge.f32.partialorder %v3707, 0.0
    %vm3772 = vcmp.ge.f32.partialorder %v3708, 0.0
    %vm3773 = vcmp.ge.f32.partialorder %v3709, 0.0
    %vm3774 = vcmp.ge.f32.partialorder %v3710, 0.0
    %vm3775 = vcmp.ge.f32.partialorder %v3711, 0.0
    %vm3776 = vcmp.ge.f32.partialorder %v3712, 0.0
    %vm3777 = vcmp.ge.f32.partialorder %v3713, 0.0
    %vm3778 = vcmp.ge.f32.partialorder %v3714, 0.0
    %vm3779 = vcmp.ge.f32.partialorder %v3715, 0.0
    %vm3780 = vcmp.ge.f32.partialorder %v3716, 0.0
    %vm3781 = vcmp.ge.f32.partialorder %v3717, 0.0
    %vm3782 = vcmp.ge.f32.partialorder %v3718, 0.0
    %vm3783 = vcmp.ge.f32.partialorder %v3719, 0.0
    %vm3784 = vcmp.ge.f32.partialorder %v3720, 0.0
    %vm3785 = vcmp.ge.f32.partialorder %v3721, 0.0
    %vm3786 = vcmp.ge.f32.partialorder %v3722, 0.0
    %vm3787 = vcmp.ge.f32.partialorder %v3723, 0.0
    %vm3788 = vcmp.ge.f32.partialorder %v3724, 0.0
    %vm3789 = vcmp.ge.f32.partialorder %v3725, 0.0
    %vm3790 = vcmp.ge.f32.partialorder %v3726, 0.0
    %vm3791 = vcmp.ge.f32.partialorder %v3727, 0.0
    %vm3792 = vcmp.ge.f32.partialorder %v3728, 0.0
    %vm3793 = vcmp.ge.f32.partialorder %v3729, 0.0
    %vm3794 = vcmp.ge.f32.partialorder %v3730, 0.0
    %vm3795 = vcmp.ge.f32.partialorder %v3731, 0.0
    %vm3796 = vcmp.ge.f32.partialorder %v3732, 0.0
    %vm3797 = vcmp.ge.f32.partialorder %v3733, 0.0
    %vm3798 = vcmp.ge.f32.partialorder %v3734, 0.0
    %vm3799 = vcmp.ge.f32.partialorder %v3735, 0.0
    %v3800 = vmul.f32 %v3672, 0.01
    %v3801 = vmul.f32 %v3673, 0.01
    %v3802 = vmul.f32 %v3674, 0.01
    %v3803 = vmul.f32 %v3675, 0.01
    %v3804 = vmul.f32 %v3676, 0.01
    %v3805 = vmul.f32 %v3677, 0.01
    %v3806 = vmul.f32 %v3678, 0.01
    %v3807 = vmul.f32 %v3679, 0.01
    %v3808 = vmul.f32 %v3680, 0.01
    %v3809 = vmul.f32 %v3681, 0.01
    %v3810 = vmul.f32 %v3682, 0.01
    %v3811 = vmul.f32 %v3683, 0.01
    %v3812 = vmul.f32 %v3684, 0.01
    %v3813 = vmul.f32 %v3685, 0.01
    %v3814 = vmul.f32 %v3686, 0.01
    %v3815 = vmul.f32 %v3687, 0.01
    %v3816 = vmul.f32 %v3688, 0.01
    %v3817 = vmul.f32 %v3689, 0.01
    %v3818 = vmul.f32 %v3690, 0.01
    %v3819 = vmul.f32 %v3691, 0.01
    %v3820 = vmul.f32 %v3692, 0.01
    %v3821 = vmul.f32 %v3693, 0.01
    %v3822 = vmul.f32 %v3694, 0.01
    %v3823 = vmul.f32 %v3695, 0.01
    %v3824 = vmul.f32 %v3696, 0.01
    %v3825 = vmul.f32 %v3697, 0.01
    %v3826 = vmul.f32 %v3698, 0.01
    %v3827 = vmul.f32 %v3699, 0.01
    %v3828 = vmul.f32 %v3700, 0.01
    %v3829 = vmul.f32 %v3701, 0.01
    %v3830 = vmul.f32 %v3702, 0.01
    %v3831 = vmul.f32 %v3703, 0.01
    %v3832 = vmul.f32 %v3704, 0.01
    %v3833 = vmul.f32 %v3705, 0.01
    %v3834 = vmul.f32 %v3706, 0.01
    %v3835 = vmul.f32 %v3707, 0.01
    %v3836 = vmul.f32 %v3708, 0.01
    %v3837 = vmul.f32 %v3709, 0.01
    %v3838 = vmul.f32 %v3710, 0.01
    %v3839 = vmul.f32 %v3711, 0.01
    %v3840 = vmul.f32 %v3712, 0.01
    %v3841 = vmul.f32 %v3713, 0.01
    %v3842 = vmul.f32 %v3714, 0.01
    %v3843 = vmul.f32 %v3715, 0.01
    %v3844 = vmul.f32 %v3716, 0.01
    %v3845 = vmul.f32 %v3717, 0.01
    %v3846 = vmul.f32 %v3718, 0.01
    %v3847 = vmul.f32 %v3719, 0.01
    %v3848 = vmul.f32 %v3720, 0.01
    %v3849 = vmul.f32 %v3721, 0.01
    %v3850 = vmul.f32 %v3722, 0.01
    %v3851 = vmul.f32 %v3723, 0.01
    %v3852 = vmul.f32 %v3724, 0.01
    %v3853 = vmul.f32 %v3725, 0.01
    %v3854 = vmul.f32 %v3726, 0.01
    %v3855 = vmul.f32 %v3727, 0.01
    %v3856 = vmul.f32 %v3728, 0.01
    %v3857 = vmul.f32 %v3729, 0.01
    %v3858 = vmul.f32 %v3730, 0.01
    %v3859 = vmul.f32 %v3731, 0.01
    %v3860 = vmul.f32 %v3732, 0.01
    %v3861 = vmul.f32 %v3733, 0.01
    %v3862 = vmul.f32 %v3734, 0.01
    %v3863 = vmul.f32 %v3735, 0.01
    %v3864 = vsel %vm3736, %v3672, %v3800
    %v3865 = vsel %vm3737, %v3673, %v3801
    %v3866 = vsel %vm3738, %v3674, %v3802
    %v3867 = vsel %vm3739, %v3675, %v3803
    %v3868 = vsel %vm3740, %v3676, %v3804
    %v3869 = vsel %vm3741, %v3677, %v3805
    %v3870 = vsel %vm3742, %v3678, %v3806
    %v3871 = vsel %vm3743, %v3679, %v3807
    %v3872 = vsel %vm3744, %v3680, %v3808
    %v3873 = vsel %vm3745, %v3681, %v3809
    %v3874 = vsel %vm3746, %v3682, %v3810
    %v3875 = vsel %vm3747, %v3683, %v3811
    %v3876 = vsel %vm3748, %v3684, %v3812
    %v3877 = vsel %vm3749, %v3685, %v3813
    %v3878 = vsel %vm3750, %v3686, %v3814
    %v3879 = vsel %vm3751, %v3687, %v3815
    %v3880 = vsel %vm3752, %v3688, %v3816
    %v3881 = vsel %vm3753, %v3689, %v3817
    %v3882 = vsel %vm3754, %v3690, %v3818
    %v3883 = vsel %vm3755, %v3691, %v3819
    %v3884 = vsel %vm3756, %v3692, %v3820
    %v3885 = vsel %vm3757, %v3693, %v3821
    %v3886 = vsel %vm3758, %v3694, %v3822
    %v3887 = vsel %vm3759, %v3695, %v3823
    %v3888 = vsel %vm3760, %v3696, %v3824
    %v3889 = vsel %vm3761, %v3697, %v3825
    %v3890 = vsel %vm3762, %v3698, %v3826
    %v3891 = vsel %vm3763, %v3699, %v3827
    %v3892 = vsel %vm3764, %v3700, %v3828
    %v3893 = vsel %vm3765, %v3701, %v3829
    %v3894 = vsel %vm3766, %v3702, %v3830
    %v3895 = vsel %vm3767, %v3703, %v3831
    %v3896 = vsel %vm3768, %v3704, %v3832
    %v3897 = vsel %vm3769, %v3705, %v3833
    %v3898 = vsel %vm3770, %v3706, %v3834
    %v3899 = vsel %vm3771, %v3707, %v3835
    %v3900 = vsel %vm3772, %v3708, %v3836
    %v3901 = vsel %vm3773, %v3709, %v3837
    %v3902 = vsel %vm3774, %v3710, %v3838
    %v3903 = vsel %vm3775, %v3711, %v3839
    %v3904 = vsel %vm3776, %v3712, %v3840
    %v3905 = vsel %vm3777, %v3713, %v3841
    %v3906 = vsel %vm3778, %v3714, %v3842
    %v3907 = vsel %vm3779, %v3715, %v3843
    %v3908 = vsel %vm3780, %v3716, %v3844
    %v3909 = vsel %vm3781, %v3717, %v3845
    %v3910 = vsel %vm3782, %v3718, %v3846
    %v3911 = vsel %vm3783, %v3719, %v3847
    %v3912 = vsel %vm3784, %v3720, %v3848
    %v3913 = vsel %vm3785, %v3721, %v3849
    %v3914 = vsel %vm3786, %v3722, %v3850
    %v3915 = vsel %vm3787, %v3723, %v3851
    %v3916 = vsel %vm3788, %v3724, %v3852
    %v3917 = vsel %vm3789, %v3725, %v3853
    %v3918 = vsel %vm3790, %v3726, %v3854
    %v3919 = vsel %vm3791, %v3727, %v3855
    %v3920 = vsel %vm3792, %v3728, %v3856
    %v3921 = vsel %vm3793, %v3729, %v3857
    %v3922 = vsel %vm3794, %v3730, %v3858
    %v3923 = vsel %vm3795, %v3731, %v3859
    %v3924 = vsel %vm3796, %v3732, %v3860
    %v3925 = vsel %vm3797, %v3733, %v3861
    %v3926 = vsel %vm3798, %v3734, %v3862
    %v3927 = vsel %vm3799, %v3735, %v3863
    %v3928 = vld [vmem:[%s9] sm:$0x1]
    %v3929 = vld [vmem:[%s10] sm:$0x1]
    %v3930 = vld [vmem:[%s11] sm:$0xff]
    %v3931 = vld [vmem:[%s11 + $0x8] sm:$0xff]
    %v3932 = vld [vmem:[%s12] sm:$0x1]
    %v3933 = vsel %vm1754, %v3864, 0.0
    %v3934 = vsel %vm1754, %v3865, 0.0
    %v3935 = vadd.f32 %v3933, %v3934
    %v3936 = vsel %vm1754, %v3866, 0.0
    %v3937 = vadd.f32 %v3935, %v3936
    %v3938 = vsel %vm1754, %v3867, 0.0
    %v3939 = vadd.f32 %v3937, %v3938
    %v3940 = vsel %vm1754, %v3868, 0.0
    %v3941 = vadd.f32 %v3939, %v3940
    %v3942 = vsel %vm1754, %v3869, 0.0
    %v3943 = vadd.f32 %v3941, %v3942
    %v3944 = vsel %vm1754, %v3870, 0.0
    %v3945 = vadd.f32 %v3943, %v3944
    %v3946 = vsel %vm1754, %v3871, 0.0
    %v3947 = vadd.f32 %v3945, %v3946
    %v3948 = vsel %vm1754, %v3872, 0.0
    %v3949 = vadd.f32 %v3947, %v3948
    %v3950 = vsel %vm1754, %v3873, 0.0
    %v3951 = vadd.f32 %v3949, %v3950
    %v3952 = vsel %vm1754, %v3874, 0.0
    %v3953 = vadd.f32 %v3951, %v3952
    %v3954 = vsel %vm1754, %v3875, 0.0
    %v3955 = vadd.f32 %v3953, %v3954
    %v3956 = vsel %vm1754, %v3876, 0.0
    %v3957 = vadd.f32 %v3955, %v3956
    %v3958 = vsel %vm1754, %v3877, 0.0
    %v3959 = vadd.f32 %v3957, %v3958
    %v3960 = vsel %vm1754, %v3878, 0.0
    %v3961 = vadd.f32 %v3959, %v3960
    %v3962 = vsel %vm1754, %v3879, 0.0
    %v3963 = vadd.f32 %v3961, %v3962
    %v3964 = vsel %vm1754, %v3880, 0.0
    %v3965 = vadd.f32 %v3963, %v3964
    %v3966 = vsel %vm1754, %v3881, 0.0
    %v3967 = vadd.f32 %v3965, %v3966
    %v3968 = vsel %vm1754, %v3882, 0.0
    %v3969 = vadd.f32 %v3967, %v3968
    %v3970 = vsel %vm1754, %v3883, 0.0
    %v3971 = vadd.f32 %v3969, %v3970
    %v3972 = vsel %vm1754, %v3884, 0.0
    %v3973 = vadd.f32 %v3971, %v3972
    %v3974 = vsel %vm1754, %v3885, 0.0
    %v3975 = vadd.f32 %v3973, %v3974
    %v3976 = vsel %vm1754, %v3886, 0.0
    %v3977 = vadd.f32 %v3975, %v3976
    %v3978 = vsel %vm1754, %v3887, 0.0
    %v3979 = vadd.f32 %v3977, %v3978
    %v3980 = vsel %vm1754, %v3888, 0.0
    %v3981 = vadd.f32 %v3979, %v3980
    %v3982 = vsel %vm1754, %v3889, 0.0
    %v3983 = vadd.f32 %v3981, %v3982
    %v3984 = vsel %vm1754, %v3890, 0.0
    %v3985 = vadd.f32 %v3983, %v3984
    %v3986 = vsel %vm1754, %v3891, 0.0
    %v3987 = vadd.f32 %v3985, %v3986
    %v3988 = vsel %vm1754, %v3892, 0.0
    %v3989 = vadd.f32 %v3987, %v3988
    %v3990 = vsel %vm1754, %v3893, 0.0
    %v3991 = vadd.f32 %v3989, %v3990
    %v3992 = vsel %vm1754, %v3894, 0.0
    %v3993 = vadd.f32 %v3991, %v3992
    %v3994 = vsel %vm1754, %v3895, 0.0
    %v3995 = vadd.f32 %v3993, %v3994
    %v3996 = vsel %vm1754, %v3896, 0.0
    %v3997 = vadd.f32 %v3995, %v3996
    %v3998 = vsel %vm1754, %v3897, 0.0
    %v3999 = vadd.f32 %v3997, %v3998
    %v4000 = vsel %vm1754, %v3898, 0.0
    %v4001 = vadd.f32 %v3999, %v4000
    %v4002 = vsel %vm1754, %v3899, 0.0
    %v4003 = vadd.f32 %v4001, %v4002
    %v4004 = vsel %vm1754, %v3900, 0.0
    %v4005 = vadd.f32 %v4003, %v4004
    %v4006 = vsel %vm1754, %v3901, 0.0
    %v4007 = vadd.f32 %v4005, %v4006
    %v4008 = vsel %vm1754, %v3902, 0.0
    %v4009 = vadd.f32 %v4007, %v4008
    %v4010 = vsel %vm1754, %v3903, 0.0
    %v4011 = vadd.f32 %v4009, %v4010
    %v4012 = vsel %vm1754, %v3904, 0.0
    %v4013 = vadd.f32 %v4011, %v4012
    %v4014 = vsel %vm1754, %v3905, 0.0
    %v4015 = vadd.f32 %v4013, %v4014
    %v4016 = vsel %vm1754, %v3906, 0.0
    %v4017 = vadd.f32 %v4015, %v4016
    %v4018 = vsel %vm1754, %v3907, 0.0
    %v4019 = vadd.f32 %v4017, %v4018
    %v4020 = vsel %vm1754, %v3908, 0.0
    %v4021 = vadd.f32 %v4019, %v4020
    %v4022 = vsel %vm1754, %v3909, 0.0
    %v4023 = vadd.f32 %v4021, %v4022
    %v4024 = vsel %vm1754, %v3910, 0.0
    %v4025 = vadd.f32 %v4023, %v4024
    %v4026 = vsel %vm1754, %v3911, 0.0
    %v4027 = vadd.f32 %v4025, %v4026
    %v4028 = vsel %vm1754, %v3912, 0.0
    %v4029 = vadd.f32 %v4027, %v4028
    %v4030 = vsel %vm1754, %v3913, 0.0
    %v4031 = vadd.f32 %v4029, %v4030
    %v4032 = vsel %vm1754, %v3914, 0.0
    %v4033 = vadd.f32 %v4031, %v4032
    %v4034 = vsel %vm1754, %v3915, 0.0
    %v4035 = vadd.f32 %v4033, %v4034
    %v4036 = vsel %vm1754, %v3916, 0.0
    %v4037 = vadd.f32 %v4035, %v4036
    %v4038 = vsel %vm1754, %v3917, 0.0
    %v4039 = vadd.f32 %v4037, %v4038
    %v4040 = vsel %vm1754, %v3918, 0.0
    %v4041 = vadd.f32 %v4039, %v4040
    %v4042 = vsel %vm1754, %v3919, 0.0
    %v4043 = vadd.f32 %v4041, %v4042
    %v4044 = vsel %vm1754, %v3920, 0.0
    %v4045 = vadd.f32 %v4043, %v4044
    %v4046 = vsel %vm1754, %v3921, 0.0
    %v4047 = vadd.f32 %v4045, %v4046
    %v4048 = vsel %vm1754, %v3922, 0.0
    %v4049 = vadd.f32 %v4047, %v4048
    %v4050 = vsel %vm1754, %v3923, 0.0
    %v4051 = vadd.f32 %v4049, %v4050
    %v4052 = vsel %vm1754, %v3924, 0.0
    %v4053 = vadd.f32 %v4051, %v4052
    %v4054 = vsel %vm1754, %v3925, 0.0
    %v4055 = vadd.f32 %v4053, %v4054
    %v4056 = vsel %vm1754, %v3926, 0.0
    %v4057 = vadd.f32 %v4055, %v4056
    %v4058 = vsel %vm1754, %v3927, 0.0
    %v4059 = vadd.f32 %v4057, %v4058
    %v4060 = vrot.slane %v4059, 4
    %v4061 = vadd.f32 %v4059, %v4060
    %v4062 = vrot.slane %v4061, 2
    %v4063 = vadd.f32 %v4061, %v4062
    %v4064 = vrot.slane %v4063, 1
    %v4065 = vadd.f32 %v4063, %v4064
    %v4066 = vmul.f32 %v3864, %v3864
    %v4067 = vmul.f32 %v3865, %v3865
    %v4068 = vmul.f32 %v3866, %v3866
    %v4069 = vmul.f32 %v3867, %v3867
    %v4070 = vmul.f32 %v3868, %v3868
    %v4071 = vmul.f32 %v3869, %v3869
    %v4072 = vmul.f32 %v3870, %v3870
    %v4073 = vmul.f32 %v3871, %v3871
    %v4074 = vmul.f32 %v3872, %v3872
    %v4075 = vmul.f32 %v3873, %v3873
    %v4076 = vmul.f32 %v3874, %v3874
    %v4077 = vmul.f32 %v3875, %v3875
    %v4078 = vmul.f32 %v3876, %v3876
    %v4079 = vmul.f32 %v3877, %v3877
    %v4080 = vmul.f32 %v3878, %v3878
    %v4081 = vmul.f32 %v3879, %v3879
    %v4082 = vmul.f32 %v3880, %v3880
    %v4083 = vmul.f32 %v3881, %v3881
    %v4084 = vmul.f32 %v3882, %v3882
    %v4085 = vmul.f32 %v3883, %v3883
    %v4086 = vmul.f32 %v3884, %v3884
    %v4087 = vmul.f32 %v3885, %v3885
    %v4088 = vmul.f32 %v3886, %v3886
    %v4089 = vmul.f32 %v3887, %v3887
    %v4090 = vmul.f32 %v3888, %v3888
    %v4091 = vmul.f32 %v3889, %v3889
    %v4092 = vmul.f32 %v3890, %v3890
    %v4093 = vmul.f32 %v3891, %v3891
    %v4094 = vmul.f32 %v3892, %v3892
    %v4095 = vmul.f32 %v3893, %v3893
    %v4096 = vmul.f32 %v3894, %v3894
    %v4097 = vmul.f32 %v3895, %v3895
    %v4098 = vmul.f32 %v3896, %v3896
    %v4099 = vmul.f32 %v3897, %v3897
    %v4100 = vmul.f32 %v3898, %v3898
    %v4101 = vmul.f32 %v3899, %v3899
    %v4102 = vmul.f32 %v3900, %v3900
    %v4103 = vmul.f32 %v3901, %v3901
    %v4104 = vmul.f32 %v3902, %v3902
    %v4105 = vmul.f32 %v3903, %v3903
    %v4106 = vmul.f32 %v3904, %v3904
    %v4107 = vmul.f32 %v3905, %v3905
    %v4108 = vmul.f32 %v3906, %v3906
    %v4109 = vmul.f32 %v3907, %v3907
    %v4110 = vmul.f32 %v3908, %v3908
    %v4111 = vmul.f32 %v3909, %v3909
    %v4112 = vmul.f32 %v3910, %v3910
    %v4113 = vmul.f32 %v3911, %v3911
    %v4114 = vmul.f32 %v3912, %v3912
    %v4115 = vmul.f32 %v3913, %v3913
    %v4116 = vmul.f32 %v3914, %v3914
    %v4117 = vmul.f32 %v3915, %v3915
    %v4118 = vmul.f32 %v3916, %v3916
    %v4119 = vmul.f32 %v3917, %v3917
    %v4120 = vmul.f32 %v3918, %v3918
    %v4121 = vmul.f32 %v3919, %v3919
    %v4122 = vmul.f32 %v3920, %v3920
    %v4123 = vmul.f32 %v3921, %v3921
    %v4124 = vmul.f32 %v3922, %v3922
    %v4125 = vmul.f32 %v3923, %v3923
    %v4126 = vmul.f32 %v3924, %v3924
    %v4127 = vmul.f32 %v3925, %v3925
    %v4128 = vmul.f32 %v3926, %v3926
    %v4129 = vmul.f32 %v3927, %v3927
    %v4130 = vsel %vm1754, %v4066, 0.0
    %v4131 = vsel %vm1754, %v4067, 0.0
    %v4132 = vadd.f32 %v4130, %v4131
    %v4133 = vsel %vm1754, %v4068, 0.0
    %v4134 = vadd.f32 %v4132, %v4133
    %v4135 = vsel %vm1754, %v4069, 0.0
    %v4136 = vadd.f32 %v4134, %v4135
    %v4137 = vsel %vm1754, %v4070, 0.0
    %v4138 = vadd.f32 %v4136, %v4137
    %v4139 = vsel %vm1754, %v4071, 0.0
    %v4140 = vadd.f32 %v4138, %v4139
    %v4141 = vsel %vm1754, %v4072, 0.0
    %v4142 = vadd.f32 %v4140, %v4141
    %v4143 = vsel %vm1754, %v4073, 0.0
    %v4144 = vadd.f32 %v4142, %v4143
    %v4145 = vsel %vm1754, %v4074, 0.0
    %v4146 = vadd.f32 %v4144, %v4145
    %v4147 = vsel %vm1754, %v4075, 0.0
    %v4148 = vadd.f32 %v4146, %v4147
    %v4149 = vsel %vm1754, %v4076, 0.0
    %v4150 = vadd.f32 %v4148, %v4149
    %v4151 = vsel %vm1754, %v4077, 0.0
    %v4152 = vadd.f32 %v4150, %v4151
    %v4153 = vsel %vm1754, %v4078, 0.0
    %v4154 = vadd.f32 %v4152, %v4153
    %v4155 = vsel %vm1754, %v4079, 0.0
    %v4156 = vadd.f32 %v4154, %v4155
    %v4157 = vsel %vm1754, %v4080, 0.0
    %v4158 = vadd.f32 %v4156, %v4157
    %v4159 = vsel %vm1754, %v4081, 0.0
    %v4160 = vadd.f32 %v4158, %v4159
    %v4161 = vsel %vm1754, %v4082, 0.0
    %v4162 = vadd.f32 %v4160, %v4161
    %v4163 = vsel %vm1754, %v4083, 0.0
    %v4164 = vadd.f32 %v4162, %v4163
    %v4165 = vsel %vm1754, %v4084, 0.0
    %v4166 = vadd.f32 %v4164, %v4165
    %v4167 = vsel %vm1754, %v4085, 0.0
    %v4168 = vadd.f32 %v4166, %v4167
    %v4169 = vsel %vm1754, %v4086, 0.0
    %v4170 = vadd.f32 %v4168, %v4169
    %v4171 = vsel %vm1754, %v4087, 0.0
    %v4172 = vadd.f32 %v4170, %v4171
    %v4173 = vsel %vm1754, %v4088, 0.0
    %v4174 = vadd.f32 %v4172, %v4173
    %v4175 = vsel %vm1754, %v4089, 0.0
    %v4176 = vadd.f32 %v4174, %v4175
    %v4177 = vsel %vm1754, %v4090, 0.0
    %v4178 = vadd.f32 %v4176, %v4177
    %v4179 = vsel %vm1754, %v4091, 0.0
    %v4180 = vadd.f32 %v4178, %v4179
    %v4181 = vsel %vm1754, %v4092, 0.0
    %v4182 = vadd.f32 %v4180, %v4181
    %v4183 = vsel %vm1754, %v4093, 0.0
    %v4184 = vadd.f32 %v4182, %v4183
    %v4185 = vsel %vm1754, %v4094, 0.0
    %v4186 = vadd.f32 %v4184, %v4185
    %v4187 = vsel %vm1754, %v4095, 0.0
    %v4188 = vadd.f32 %v4186, %v4187
    %v4189 = vsel %vm1754, %v4096, 0.0
    %v4190 = vadd.f32 %v4188, %v4189
    %v4191 = vsel %vm1754, %v4097, 0.0
    %v4192 = vadd.f32 %v4190, %v4191
    %v4193 = vsel %vm1754, %v4098, 0.0
    %v4194 = vadd.f32 %v4192, %v4193
    %v4195 = vsel %vm1754, %v4099, 0.0
    %v4196 = vadd.f32 %v4194, %v4195
    %v4197 = vsel %vm1754, %v4100, 0.0
    %v4198 = vadd.f32 %v4196, %v4197
    %v4199 = vsel %vm1754, %v4101, 0.0
    %v4200 = vadd.f32 %v4198, %v4199
    %v4201 = vsel %vm1754, %v4102, 0.0
    %v4202 = vadd.f32 %v4200, %v4201
    %v4203 = vsel %vm1754, %v4103, 0.0
    %v4204 = vadd.f32 %v4202, %v4203
    %v4205 = vsel %vm1754, %v4104, 0.0
    %v4206 = vadd.f32 %v4204, %v4205
    %v4207 = vsel %vm1754, %v4105, 0.0
    %v4208 = vadd.f32 %v4206, %v4207
    %v4209 = vsel %vm1754, %v4106, 0.0
    %v4210 = vadd.f32 %v4208, %v4209
    %v4211 = vsel %vm1754, %v4107, 0.0
    %v4212 = vadd.f32 %v4210, %v4211
    %v4213 = vsel %vm1754, %v4108, 0.0
    %v4214 = vadd.f32 %v4212, %v4213
    %v4215 = vsel %vm1754, %v4109, 0.0
    %v4216 = vadd.f32 %v4214, %v4215
    %v4217 = vsel %vm1754, %v4110, 0.0
    %v4218 = vadd.f32 %v4216, %v4217
    %v4219 = vsel %vm1754, %v4111, 0.0
    %v4220 = vadd.f32 %v4218, %v4219
    %v4221 = vsel %vm1754, %v4112, 0.0
    %v4222 = vadd.f32 %v4220, %v4221
    %v4223 = vsel %vm1754, %v4113, 0.0
    %v4224 = vadd.f32 %v4222, %v4223
    %v4225 = vsel %vm1754, %v4114, 0.0
    %v4226 = vadd.f32 %v4224, %v4225
    %v4227 = vsel %vm1754, %v4115, 0.0
    %v4228 = vadd.f32 %v4226, %v4227
    %v4229 = vsel %vm1754, %v4116, 0.0
    %v4230 = vadd.f32 %v4228, %v4229
    %v4231 = vsel %vm1754, %v4117, 0.0
    %v4232 = vadd.f32 %v4230, %v4231
    %v4233 = vsel %vm1754, %v4118, 0.0
    %v4234 = vadd.f32 %v4232, %v4233
    %v4235 = vsel %vm1754, %v4119, 0.0
    %v4236 = vadd.f32 %v4234, %v4235
    %v4237 = vsel %vm1754, %v4120, 0.0
    %v4238 = vadd.f32 %v4236, %v4237
    %v4239 = vsel %vm1754, %v4121, 0.0
    %v4240 = vadd.f32 %v4238, %v4239
    %v4241 = vsel %vm1754, %v4122, 0.0
    %v4242 = vadd.f32 %v4240, %v4241
    %v4243 = vsel %vm1754, %v4123, 0.0
    %v4244 = vadd.f32 %v4242, %v4243
    %v4245 = vsel %vm1754, %v4124, 0.0
    %v4246 = vadd.f32 %v4244, %v4245
    %v4247 = vsel %vm1754, %v4125, 0.0
    %v4248 = vadd.f32 %v4246, %v4247
    %v4249 = vsel %vm1754, %v4126, 0.0
    %v4250 = vadd.f32 %v4248, %v4249
    %v4251 = vsel %vm1754, %v4127, 0.0
    %v4252 = vadd.f32 %v4250, %v4251
    %v4253 = vsel %vm1754, %v4128, 0.0
    %v4254 = vadd.f32 %v4252, %v4253
    %v4255 = vsel %vm1754, %v4129, 0.0
    %v4256 = vadd.f32 %v4254, %v4255
    %v4257 = vrot.slane %v4256, 4
    %v4258 = vadd.f32 %v4256, %v4257
    %v4259 = vrot.slane %v4258, 2
    %v4260 = vadd.f32 %v4258, %v4259
    %v4261 = vrot.slane %v4260, 1
    %v4262 = vadd.f32 %v4260, %v4261
    %v4263 = vmul.f32 %v4065, 0.001953125
    %v4264 = vmul.f32 %v4262, 0.001953125
    %v4265 = vmul.f32 %v4263, %v4263
    %v4266 = vsub.f32 %v4264, %v4265
    %v4267 = vadd.f32 %v4266, 1e-05
    %v4268 = vrsqrt.pop %v4267
    %v4269 = vmul.f32 %v4268, %v3928
    %v4270 = vmul.f32 %v4263, %v4269
    %v4271 = vsub.f32 %v3929, %v4270
    %v4272 = vadd.s32 %v818, 8
    %vm4273 = vcmp.eq.s32.totalorder %v4272, %v820
    %v4274 = vsel %vm4273, 1, 0
    %v4275 = vcvt.s32.f32 %v4274
    %v4276 = vlaneseq
    %v4277 = vshrl.u32 %v4276, 7
    %v4278 = vsub.s32 0, %v4277
    %v4279 = vrot.slane %v4269, %v4278
    %v4280 = vmul.f32 %v823, %v4279
    %v4281 = vmul.f32 %v4275, %v4279
    %v4283 = vsel %vm1754, %v4280, 0
    %v4286 = vsel %vm1754, %v4281, 0
    %4288 = vmatprep.subr.mxu0 0.0
    %4289 = vmatpush1.msra.mxu0 %v3930
    %4290 = vmatprep.subr.mxu0 0.0
    %4291 = vmatpush1.msra.mxu0 %v3931
    %4292 = vmatprep.subr.mxu0 0.0
    %4293 = vmatpush1.msra.mxu0 0.0
    %4294 = vmatprep.subr.mxu0 0.0
    %4295 = vmatpush1.msra.mxu0 0.0
    %4296 = vmatprep.subr.mxu0 0.0
    %4297 = vmatpush1.msra.mxu0 0.0
    %4298 = vmatprep.subr.mxu0 0.0
    %4299 = vmatpush1.msra.mxu0 0.0
    %4300 = vmatprep.subr.mxu0 0.0
    %4301 = vmatpush1.msra.mxu0 0.0
    %4302 = vmatprep.subr.mxu0 0.0
    %4303 = vmatpush1.msra.mxu0 0.0
    %4304 = vmatprep.subr.mxu0 0.0
    %4305 = vmatpush1.msra.mxu0 0.0
    %4306 = vmatprep.subr.mxu0 0.0
    %4307 = vmatpush1.msra.mxu0 0.0
    %4308 = vmatprep.subr.mxu0 0.0
    %4309 = vmatpush1.msra.mxu0 0.0
    %4310 = vmatprep.subr.mxu0 0.0
    %4311 = vmatpush1.msra.mxu0 0.0
    %4312 = vmatprep.subr.mxu0 0.0
    %4313 = vmatpush1.msra.mxu0 0.0
    %4314 = vmatprep.subr.mxu0 0.0
    %4315 = vmatpush1.msra.mxu0 0.0
    %4316 = vmatprep.subr.mxu0 0.0
    %4317 = vmatpush1.msra.mxu0 0.0
    %4318 = vmatprep.subr.mxu0 0.0
    %4319 = vmatpush1.msra.mxu0 0.0
    %4320 = vmatprep.subr.mxu0 0.0
    %4321 = vmatpush1.msra.mxu0 0.0
    %4322 = vmatprep.subr.mxu0 0.0
    %4323 = vmatpush1.msra.mxu0 0.0
    %4324 = vmatprep.subr.mxu0 0.0
    %4325 = vmatpush1.msra.mxu0 0.0
    %4326 = vmatprep.subr.mxu0 0.0
    %4327 = vmatpush1.msra.mxu0 0.0
    %4328 = vmatprep.subr.mxu0 0.0
    %4329 = vmatpush1.msra.mxu0 0.0
    %4330 = vmatprep.subr.mxu0 0.0
    %4331 = vmatpush1.msra.mxu0 0.0
    %4332 = vmatprep.subr.mxu0 0.0
    %4333 = vmatpush1.msra.mxu0 0.0
    %4334 = vmatprep.subr.mxu0 0.0
    %4335 = vmatpush1.msra.mxu0 0.0
    %4336 = vmatprep.subr.mxu0 0.0
    %4337 = vmatpush1.msra.mxu0 0.0
    %4338 = vmatprep.subr.mxu0 0.0
    %4339 = vmatpush1.msra.mxu0 0.0
    %4340 = vmatprep.subr.mxu0 0.0
    %4341 = vmatpush1.msra.mxu0 0.0
    %4342 = vmatprep.subr.mxu0 0.0
    %4343 = vmatpush1.msra.mxu0 0.0
    %4344 = vmatprep.subr.mxu0 0.0
    %4345 = vmatpush1.msra.mxu0 0.0
    %4346 = vmatprep.subr.mxu0 0.0
    %4347 = vmatpush1.msra.mxu0 0.0
    %4348 = vmatprep.subr.mxu0 0.0
    %4349 = vmatpush1.msra.mxu0 0.0
    %4350 = vmatprep.subr.mxu0 0.0
    %4351 = vmatpush1.msra.mxu0 0.0
    %4352 = vmatprep.mubr.f32.mxu0 0.0
    %4353 = vmatmul.mubr.f32.gmra.mrb[0].mxu0 %v4283
    %v4354 = vpop.f32.mrb[0].mxu0
    %v4355 = vadd.f32 0.0, %v4354
    %v4356 = vpop.f32.mrb[0].mxu0
    %4357 = vmatprep.mubr.f32.mxu0 0.0
    %4358 = vmatmul.mubr.f32.gmra.mrb[0].mxu0 %v4286
    %v4359 = vpop.f32.mrb[0].mxu0
    %v4360 = vadd.f32 0.0, %v4359
    %v4361 = vpop.f32.mrb[0].mxu0
    %4362 = vdwg.mxu0
    %v4364 = vlaneseq
    %v4365 = vshrl.u32 %v4364, 7
    %v4366 = vsub.s32 0, %v4365
    %v4367 = vrot.slane %v4271, %v4366
    %v4368 = vsel %vm1754, %v4367, 0
    %4370 = vmatprep.subr.mxu0 0.0
    %4371 = vmatpush1.msra.mxu0 %v3930
    %4372 = vmatprep.subr.mxu0 0.0
    %4373 = vmatpush1.msra.mxu0 %v3931
    %4374 = vmatprep.subr.mxu0 0.0
    %4375 = vmatpush1.msra.mxu0 0.0
    %4376 = vmatprep.subr.mxu0 0.0
    %4377 = vmatpush1.msra.mxu0 0.0
    %4378 = vmatprep.subr.mxu0 0.0
    %4379 = vmatpush1.msra.mxu0 0.0
    %4380 = vmatprep.subr.mxu0 0.0
    %4381 = vmatpush1.msra.mxu0 0.0
    %4382 = vmatprep.subr.mxu0 0.0
    %4383 = vmatpush1.msra.mxu0 0.0
    %4384 = vmatprep.subr.mxu0 0.0
    %4385 = vmatpush1.msra.mxu0 0.0
    %4386 = vmatprep.subr.mxu0 0.0
    %4387 = vmatpush1.msra.mxu0 0.0
    %4388 = vmatprep.subr.mxu0 0.0
    %4389 = vmatpush1.msra.mxu0 0.0
    %4390 = vmatprep.subr.mxu0 0.0
    %4391 = vmatpush1.msra.mxu0 0.0
    %4392 = vmatprep.subr.mxu0 0.0
    %4393 = vmatpush1.msra.mxu0 0.0
    %4394 = vmatprep.subr.mxu0 0.0
    %4395 = vmatpush1.msra.mxu0 0.0
    %4396 = vmatprep.subr.mxu0 0.0
    %4397 = vmatpush1.msra.mxu0 0.0
    %4398 = vmatprep.subr.mxu0 0.0
    %4399 = vmatpush1.msra.mxu0 0.0
    %4400 = vmatprep.subr.mxu0 0.0
    %4401 = vmatpush1.msra.mxu0 0.0
    %4402 = vmatprep.subr.mxu0 0.0
    %4403 = vmatpush1.msra.mxu0 0.0
    %4404 = vmatprep.subr.mxu0 0.0
    %4405 = vmatpush1.msra.mxu0 0.0
    %4406 = vmatprep.subr.mxu0 0.0
    %4407 = vmatpush1.msra.mxu0 0.0
    %4408 = vmatprep.subr.mxu0 0.0
    %4409 = vmatpush1.msra.mxu0 0.0
    %4410 = vmatprep.subr.mxu0 0.0
    %4411 = vmatpush1.msra.mxu0 0.0
    %4412 = vmatprep.subr.mxu0 0.0
    %4413 = vmatpush1.msra.mxu0 0.0
    %4414 = vmatprep.subr.mxu0 0.0
    %4415 = vmatpush1.msra.mxu0 0.0
    %4416 = vmatprep.subr.mxu0 0.0
    %4417 = vmatpush1.msra.mxu0 0.0
    %4418 = vmatprep.subr.mxu0 0.0
    %4419 = vmatpush1.msra.mxu0 0.0
    %4420 = vmatprep.subr.mxu0 0.0
    %4421 = vmatpush1.msra.mxu0 0.0
    %4422 = vmatprep.subr.mxu0 0.0
    %4423 = vmatpush1.msra.mxu0 0.0
    %4424 = vmatprep.subr.mxu0 0.0
    %4425 = vmatpush1.msra.mxu0 0.0
    %4426 = vmatprep.subr.mxu0 0.0
    %4427 = vmatpush1.msra.mxu0 0.0
    %4428 = vmatprep.subr.mxu0 0.0
    %4429 = vmatpush1.msra.mxu0 0.0
    %4430 = vmatprep.subr.mxu0 0.0
    %4431 = vmatpush1.msra.mxu0 0.0
    %4432 = vmatprep.subr.mxu0 0.0
    %4433 = vmatpush1.msra.mxu0 0.0
    %4434 = vmatprep.mubr.f32.mxu0 0.0
    %4435 = vmatmul.mubr.f32.gmra.mrb[0].mxu0 %v4368
    %v4436 = vpop.f32.mrb[0].mxu0
    %v4437 = vadd.f32 0.0, %v4436
    %v4438 = vpop.f32.mrb[0].mxu0
    %4439 = vdwg.mxu0
    %v4440 = vadd.f32 %v4437, %v3932
    %v4441 = vlaneseq
    %v4442 = vshrl.u32 %v4441, 7
    %v4443 = vsub.s32 0, %v4442
    %v4444 = vrot.slane %v4440, %v4443
    %v4446 = vsel %vm1754, %v3864, 0
    %v4449 = vsel %vm1754, %v3865, 0
    %v4452 = vsel %vm1754, %v3866, 0
    %v4455 = vsel %vm1754, %v3867, 0
    %v4458 = vsel %vm1754, %v3868, 0
    %v4461 = vsel %vm1754, %v3869, 0
    %v4464 = vsel %vm1754, %v3870, 0
    %v4467 = vsel %vm1754, %v3871, 0
    %v4470 = vsel %vm1754, %v3872, 0
    %v4473 = vsel %vm1754, %v3873, 0
    %v4476 = vsel %vm1754, %v3874, 0
    %v4479 = vsel %vm1754, %v3875, 0
    %v4482 = vsel %vm1754, %v3876, 0
    %v4485 = vsel %vm1754, %v3877, 0
    %v4488 = vsel %vm1754, %v3878, 0
    %v4491 = vsel %vm1754, %v3879, 0
    %v4494 = vsel %vm1754, %v3880, 0
    %v4497 = vsel %vm1754, %v3881, 0
    %v4500 = vsel %vm1754, %v3882, 0
    %v4503 = vsel %vm1754, %v3883, 0
    %v4506 = vsel %vm1754, %v3884, 0
    %v4509 = vsel %vm1754, %v3885, 0
    %v4512 = vsel %vm1754, %v3886, 0
    %v4515 = vsel %vm1754, %v3887, 0
    %v4518 = vsel %vm1754, %v3888, 0
    %v4521 = vsel %vm1754, %v3889, 0
    %v4524 = vsel %vm1754, %v3890, 0
    %v4527 = vsel %vm1754, %v3891, 0
    %v4530 = vsel %vm1754, %v3892, 0
    %v4533 = vsel %vm1754, %v3893, 0
    %v4536 = vsel %vm1754, %v3894, 0
    %v4539 = vsel %vm1754, %v3895, 0
    %v4542 = vsel %vm1754, %v3896, 0
    %v4545 = vsel %vm1754, %v3897, 0
    %v4548 = vsel %vm1754, %v3898, 0
    %v4551 = vsel %vm1754, %v3899, 0
    %v4554 = vsel %vm1754, %v3900, 0
    %v4557 = vsel %vm1754, %v3901, 0
    %v4560 = vsel %vm1754, %v3902, 0
    %v4563 = vsel %vm1754, %v3903, 0
    %v4566 = vsel %vm1754, %v3904, 0
    %v4569 = vsel %vm1754, %v3905, 0
    %v4572 = vsel %vm1754, %v3906, 0
    %v4575 = vsel %vm1754, %v3907, 0
    %v4578 = vsel %vm1754, %v3908, 0
    %v4581 = vsel %vm1754, %v3909, 0
    %v4584 = vsel %vm1754, %v3910, 0
    %v4587 = vsel %vm1754, %v3911, 0
    %v4590 = vsel %vm1754, %v3912, 0
    %v4593 = vsel %vm1754, %v3913, 0
    %v4596 = vsel %vm1754, %v3914, 0
    %v4599 = vsel %vm1754, %v3915, 0
    %v4602 = vsel %vm1754, %v3916, 0
    %v4605 = vsel %vm1754, %v3917, 0
    %v4608 = vsel %vm1754, %v3918, 0
    %v4611 = vsel %vm1754, %v3919, 0
    %v4614 = vsel %vm1754, %v3920, 0
    %v4617 = vsel %vm1754, %v3921, 0
    %v4620 = vsel %vm1754, %v3922, 0
    %v4623 = vsel %vm1754, %v3923, 0
    %v4626 = vsel %vm1754, %v3924, 0
    %v4629 = vsel %vm1754, %v3925, 0
    %v4632 = vsel %vm1754, %v3926, 0
    %v4635 = vsel %vm1754, %v3927, 0
    %4637 = vmatprep.subr.mxu0 0.0
    %4638 = vmatpush1.msra.mxu0 %v4355
    %4639 = vmatprep.subr.mxu0 0.0
    %4640 = vmatpush1.msra.mxu0 %v4360
    %4641 = vmatprep.subr.mxu0 0.0
    %4642 = vmatpush1.msra.mxu0 0.0
    %4643 = vmatprep.subr.mxu0 0.0
    %4644 = vmatpush1.msra.mxu0 0.0
    %4645 = vmatprep.subr.mxu0 0.0
    %4646 = vmatpush1.msra.mxu0 0.0
    %4647 = vmatprep.subr.mxu0 0.0
    %4648 = vmatpush1.msra.mxu0 0.0
    %4649 = vmatprep.subr.mxu0 0.0
    %4650 = vmatpush1.msra.mxu0 0.0
    %4651 = vmatprep.subr.mxu0 0.0
    %4652 = vmatpush1.msra.mxu0 0.0
    %4653 = vmatprep.subr.mxu0 0.0
    %4654 = vmatpush1.msra.mxu0 0.0
    %4655 = vmatprep.subr.mxu0 0.0
    %4656 = vmatpush1.msra.mxu0 0.0
    %4657 = vmatprep.subr.mxu0 0.0
    %4658 = vmatpush1.msra.mxu0 0.0
    %4659 = vmatprep.subr.mxu0 0.0
    %4660 = vmatpush1.msra.mxu0 0.0
    %4661 = vmatprep.subr.mxu0 0.0
    %4662 = vmatpush1.msra.mxu0 0.0
    %4663 = vmatprep.subr.mxu0 0.0
    %4664 = vmatpush1.msra.mxu0 0.0
    %4665 = vmatprep.subr.mxu0 0.0
    %4666 = vmatpush1.msra.mxu0 0.0
    %4667 = vmatprep.subr.mxu0 0.0
    %4668 = vmatpush1.msra.mxu0 0.0
    %4669 = vmatprep.subr.mxu0 0.0
    %4670 = vmatpush1.msra.mxu0 0.0
    %4671 = vmatprep.subr.mxu0 0.0
    %4672 = vmatpush1.msra.mxu0 0.0
    %4673 = vmatprep.subr.mxu0 0.0
    %4674 = vmatpush1.msra.mxu0 0.0
    %4675 = vmatprep.subr.mxu0 0.0
    %4676 = vmatpush1.msra.mxu0 0.0
    %4677 = vmatprep.subr.mxu0 0.0
    %4678 = vmatpush1.msra.mxu0 0.0
    %4679 = vmatprep.subr.mxu0 0.0
    %4680 = vmatpush1.msra.mxu0 0.0
    %4681 = vmatprep.subr.mxu0 0.0
    %4682 = vmatpush1.msra.mxu0 0.0
    %4683 = vmatprep.subr.mxu0 0.0
    %4684 = vmatpush1.msra.mxu0 0.0
    %4685 = vmatprep.subr.mxu0 0.0
    %4686 = vmatpush1.msra.mxu0 0.0
    %4687 = vmatprep.subr.mxu0 0.0
    %4688 = vmatpush1.msra.mxu0 0.0
    %4689 = vmatprep.subr.mxu0 0.0
    %4690 = vmatpush1.msra.mxu0 0.0
    %4691 = vmatprep.subr.mxu0 0.0
    %4692 = vmatpush1.msra.mxu0 0.0
    %4693 = vmatprep.subr.mxu0 0.0
    %4694 = vmatpush1.msra.mxu0 0.0
    %4695 = vmatprep.subr.mxu0 0.0
    %4696 = vmatpush1.msra.mxu0 0.0
    %4697 = vmatprep.subr.mxu0 0.0
    %4698 = vmatpush1.msra.mxu0 0.0
    %4699 = vmatprep.subr.mxu0 0.0
    %4700 = vmatpush1.msra.mxu0 0.0
    %4701 = vmatprep.mubr.f32.mxu0 0.0
    %4702 = vmatmul.mubr.f32.gmra.mrb[0].mxu0 %v4446
    %v4703 = vpop.f32.mrb[0].mxu0
    %v4704 = vadd.f32 %v4444, %v4703
    %v4705 = vpop.f32.mrb[0].mxu0
    %4706 = vmatprep.mubr.f32.mxu0 0.0
    %4707 = vmatmul.mubr.f32.gmra.mrb[0].mxu0 %v4449
    %v4708 = vpop.f32.mrb[0].mxu0
    %v4709 = vadd.f32 %v4444, %v4708
    %v4710 = vpop.f32.mrb[0].mxu0
    %4711 = vmatprep.mubr.f32.mxu0 0.0
    %4712 = vmatmul.mubr.f32.gmra.mrb[0].mxu0 %v4452
    %v4713 = vpop.f32.mrb[0].mxu0
    %v4714 = vadd.f32 %v4444, %v4713
    %v4715 = vpop.f32.mrb[0].mxu0
    %4716 = vmatprep.mubr.f32.mxu0 0.0
    %4717 = vmatmul.mubr.f32.gmra.mrb[0].mxu0 %v4455
    %v4718 = vpop.f32.mrb[0].mxu0
    %v4719 = vadd.f32 %v4444, %v4718
    %v4720 = vpop.f32.mrb[0].mxu0
    %4721 = vmatprep.mubr.f32.mxu0 0.0
    %4722 = vmatmul.mubr.f32.gmra.mrb[0].mxu0 %v4458
    %v4723 = vpop.f32.mrb[0].mxu0
    %v4724 = vadd.f32 %v4444, %v4723
    %v4725 = vpop.f32.mrb[0].mxu0
    %4726 = vmatprep.mubr.f32.mxu0 0.0
    %4727 = vmatmul.mubr.f32.gmra.mrb[0].mxu0 %v4461
    %v4728 = vpop.f32.mrb[0].mxu0
    %v4729 = vadd.f32 %v4444, %v4728
    %v4730 = vpop.f32.mrb[0].mxu0
    %4731 = vmatprep.mubr.f32.mxu0 0.0
    %4732 = vmatmul.mubr.f32.gmra.mrb[0].mxu0 %v4464
    %v4733 = vpop.f32.mrb[0].mxu0
    %v4734 = vadd.f32 %v4444, %v4733
    %v4735 = vpop.f32.mrb[0].mxu0
    %4736 = vmatprep.mubr.f32.mxu0 0.0
    %4737 = vmatmul.mubr.f32.gmra.mrb[0].mxu0 %v4467
    %v4738 = vpop.f32.mrb[0].mxu0
    %v4739 = vadd.f32 %v4444, %v4738
    %v4740 = vpop.f32.mrb[0].mxu0
    %4741 = vmatprep.mubr.f32.mxu0 0.0
    %4742 = vmatmul.mubr.f32.gmra.mrb[0].mxu0 %v4470
    %v4743 = vpop.f32.mrb[0].mxu0
    %v4744 = vadd.f32 %v4444, %v4743
    %v4745 = vpop.f32.mrb[0].mxu0
    %4746 = vmatprep.mubr.f32.mxu0 0.0
    %4747 = vmatmul.mubr.f32.gmra.mrb[0].mxu0 %v4473
    %v4748 = vpop.f32.mrb[0].mxu0
    %v4749 = vadd.f32 %v4444, %v4748
    %v4750 = vpop.f32.mrb[0].mxu0
    %4751 = vmatprep.mubr.f32.mxu0 0.0
    %4752 = vmatmul.mubr.f32.gmra.mrb[0].mxu0 %v4476
    %v4753 = vpop.f32.mrb[0].mxu0
    %v4754 = vadd.f32 %v4444, %v4753
    %v4755 = vpop.f32.mrb[0].mxu0
    %4756 = vmatprep.mubr.f32.mxu0 0.0
    %4757 = vmatmul.mubr.f32.gmra.mrb[0].mxu0 %v4479
    %v4758 = vpop.f32.mrb[0].mxu0
    %v4759 = vadd.f32 %v4444, %v4758
    %v4760 = vpop.f32.mrb[0].mxu0
    %4761 = vmatprep.mubr.f32.mxu0 0.0
    %4762 = vmatmul.mubr.f32.gmra.mrb[0].mxu0 %v4482
    %v4763 = vpop.f32.mrb[0].mxu0
    %v4764 = vadd.f32 %v4444, %v4763
    %v4765 = vpop.f32.mrb[0].mxu0
    %4766 = vmatprep.mubr.f32.mxu0 0.0
    %4767 = vmatmul.mubr.f32.gmra.mrb[0].mxu0 %v4485
    %v4768 = vpop.f32.mrb[0].mxu0
    %v4769 = vadd.f32 %v4444, %v4768
    %v4770 = vpop.f32.mrb[0].mxu0
    %4771 = vmatprep.mubr.f32.mxu0 0.0
    %4772 = vmatmul.mubr.f32.gmra.mrb[0].mxu0 %v4488
    %v4773 = vpop.f32.mrb[0].mxu0
    %v4774 = vadd.f32 %v4444, %v4773
    %v4775 = vpop.f32.mrb[0].mxu0
    %4776 = vmatprep.mubr.f32.mxu0 0.0
    %4777 = vmatmul.mubr.f32.gmra.mrb[0].mxu0 %v4491
    %v4778 = vpop.f32.mrb[0].mxu0
    %v4779 = vadd.f32 %v4444, %v4778
    %v4780 = vpop.f32.mrb[0].mxu0
    %4781 = vmatprep.mubr.f32.mxu0 0.0
    %4782 = vmatmul.mubr.f32.gmra.mrb[0].mxu0 %v4494
    %v4783 = vpop.f32.mrb[0].mxu0
    %v4784 = vadd.f32 %v4444, %v4783
    %v4785 = vpop.f32.mrb[0].mxu0
    %4786 = vmatprep.mubr.f32.mxu0 0.0
    %4787 = vmatmul.mubr.f32.gmra.mrb[0].mxu0 %v4497
    %v4788 = vpop.f32.mrb[0].mxu0
    %v4789 = vadd.f32 %v4444, %v4788
    %v4790 = vpop.f32.mrb[0].mxu0
    %4791 = vmatprep.mubr.f32.mxu0 0.0
    %4792 = vmatmul.mubr.f32.gmra.mrb[0].mxu0 %v4500
    %v4793 = vpop.f32.mrb[0].mxu0
    %v4794 = vadd.f32 %v4444, %v4793
    %v4795 = vpop.f32.mrb[0].mxu0
    %4796 = vmatprep.mubr.f32.mxu0 0.0
    %4797 = vmatmul.mubr.f32.gmra.mrb[0].mxu0 %v4503
    %v4798 = vpop.f32.mrb[0].mxu0
    %v4799 = vadd.f32 %v4444, %v4798
    %v4800 = vpop.f32.mrb[0].mxu0
    %4801 = vmatprep.mubr.f32.mxu0 0.0
    %4802 = vmatmul.mubr.f32.gmra.mrb[0].mxu0 %v4506
    %v4803 = vpop.f32.mrb[0].mxu0
    %v4804 = vadd.f32 %v4444, %v4803
    %v4805 = vpop.f32.mrb[0].mxu0
    %4806 = vmatprep.mubr.f32.mxu0 0.0
    %4807 = vmatmul.mubr.f32.gmra.mrb[0].mxu0 %v4509
    %v4808 = vpop.f32.mrb[0].mxu0
    %v4809 = vadd.f32 %v4444, %v4808
    %v4810 = vpop.f32.mrb[0].mxu0
    %4811 = vmatprep.mubr.f32.mxu0 0.0
    %4812 = vmatmul.mubr.f32.gmra.mrb[0].mxu0 %v4512
    %v4813 = vpop.f32.mrb[0].mxu0
    %v4814 = vadd.f32 %v4444, %v4813
    %v4815 = vpop.f32.mrb[0].mxu0
    %4816 = vmatprep.mubr.f32.mxu0 0.0
    %4817 = vmatmul.mubr.f32.gmra.mrb[0].mxu0 %v4515
    %v4818 = vpop.f32.mrb[0].mxu0
    %v4819 = vadd.f32 %v4444, %v4818
    %v4820 = vpop.f32.mrb[0].mxu0
    %4821 = vmatprep.mubr.f32.mxu0 0.0
    %4822 = vmatmul.mubr.f32.gmra.mrb[0].mxu0 %v4518
    %v4823 = vpop.f32.mrb[0].mxu0
    %v4824 = vadd.f32 %v4444, %v4823
    %v4825 = vpop.f32.mrb[0].mxu0
    %4826 = vmatprep.mubr.f32.mxu0 0.0
    %4827 = vmatmul.mubr.f32.gmra.mrb[0].mxu0 %v4521
    %v4828 = vpop.f32.mrb[0].mxu0
    %v4829 = vadd.f32 %v4444, %v4828
    %v4830 = vpop.f32.mrb[0].mxu0
    %4831 = vmatprep.mubr.f32.mxu0 0.0
    %4832 = vmatmul.mubr.f32.gmra.mrb[0].mxu0 %v4524
    %v4833 = vpop.f32.mrb[0].mxu0
    %v4834 = vadd.f32 %v4444, %v4833
    %v4835 = vpop.f32.mrb[0].mxu0
    %4836 = vmatprep.mubr.f32.mxu0 0.0
    %4837 = vmatmul.mubr.f32.gmra.mrb[0].mxu0 %v4527
    %v4838 = vpop.f32.mrb[0].mxu0
    %v4839 = vadd.f32 %v4444, %v4838
    %v4840 = vpop.f32.mrb[0].mxu0
    %4841 = vmatprep.mubr.f32.mxu0 0.0
    %4842 = vmatmul.mubr.f32.gmra.mrb[0].mxu0 %v4530
    %v4843 = vpop.f32.mrb[0].mxu0
    %v4844 = vadd.f32 %v4444, %v4843
    %v4845 = vpop.f32.mrb[0].mxu0
    %4846 = vmatprep.mubr.f32.mxu0 0.0
    %4847 = vmatmul.mubr.f32.gmra.mrb[0].mxu0 %v4533
    %v4848 = vpop.f32.mrb[0].mxu0
    %v4849 = vadd.f32 %v4444, %v4848
    %v4850 = vpop.f32.mrb[0].mxu0
    %4851 = vmatprep.mubr.f32.mxu0 0.0
    %4852 = vmatmul.mubr.f32.gmra.mrb[0].mxu0 %v4536
    %v4853 = vpop.f32.mrb[0].mxu0
    %v4854 = vadd.f32 %v4444, %v4853
    %v4855 = vpop.f32.mrb[0].mxu0
    %4856 = vmatprep.mubr.f32.mxu0 0.0
    %4857 = vmatmul.mubr.f32.gmra.mrb[0].mxu0 %v4539
    %v4858 = vpop.f32.mrb[0].mxu0
    %v4859 = vadd.f32 %v4444, %v4858
    %v4860 = vpop.f32.mrb[0].mxu0
    %4861 = vmatprep.mubr.f32.mxu0 0.0
    %4862 = vmatmul.mubr.f32.gmra.mrb[0].mxu0 %v4542
    %v4863 = vpop.f32.mrb[0].mxu0
    %v4864 = vadd.f32 %v4444, %v4863
    %v4865 = vpop.f32.mrb[0].mxu0
    %4866 = vmatprep.mubr.f32.mxu0 0.0
    %4867 = vmatmul.mubr.f32.gmra.mrb[0].mxu0 %v4545
    %v4868 = vpop.f32.mrb[0].mxu0
    %v4869 = vadd.f32 %v4444, %v4868
    %v4870 = vpop.f32.mrb[0].mxu0
    %4871 = vmatprep.mubr.f32.mxu0 0.0
    %4872 = vmatmul.mubr.f32.gmra.mrb[0].mxu0 %v4548
    %v4873 = vpop.f32.mrb[0].mxu0
    %v4874 = vadd.f32 %v4444, %v4873
    %v4875 = vpop.f32.mrb[0].mxu0
    %4876 = vmatprep.mubr.f32.mxu0 0.0
    %4877 = vmatmul.mubr.f32.gmra.mrb[0].mxu0 %v4551
    %v4878 = vpop.f32.mrb[0].mxu0
    %v4879 = vadd.f32 %v4444, %v4878
    %v4880 = vpop.f32.mrb[0].mxu0
    %4881 = vmatprep.mubr.f32.mxu0 0.0
    %4882 = vmatmul.mubr.f32.gmra.mrb[0].mxu0 %v4554
    %v4883 = vpop.f32.mrb[0].mxu0
    %v4884 = vadd.f32 %v4444, %v4883
    %v4885 = vpop.f32.mrb[0].mxu0
    %4886 = vmatprep.mubr.f32.mxu0 0.0
    %4887 = vmatmul.mubr.f32.gmra.mrb[0].mxu0 %v4557
    %v4888 = vpop.f32.mrb[0].mxu0
    %v4889 = vadd.f32 %v4444, %v4888
    %v4890 = vpop.f32.mrb[0].mxu0
    %4891 = vmatprep.mubr.f32.mxu0 0.0
    %4892 = vmatmul.mubr.f32.gmra.mrb[0].mxu0 %v4560
    %v4893 = vpop.f32.mrb[0].mxu0
    %v4894 = vadd.f32 %v4444, %v4893
    %v4895 = vpop.f32.mrb[0].mxu0
    %4896 = vmatprep.mubr.f32.mxu0 0.0
    %4897 = vmatmul.mubr.f32.gmra.mrb[0].mxu0 %v4563
    %v4898 = vpop.f32.mrb[0].mxu0
    %v4899 = vadd.f32 %v4444, %v4898
    %v4900 = vpop.f32.mrb[0].mxu0
    %4901 = vmatprep.mubr.f32.mxu0 0.0
    %4902 = vmatmul.mubr.f32.gmra.mrb[0].mxu0 %v4566
    %v4903 = vpop.f32.mrb[0].mxu0
    %v4904 = vadd.f32 %v4444, %v4903
    %v4905 = vpop.f32.mrb[0].mxu0
    %4906 = vmatprep.mubr.f32.mxu0 0.0
    %4907 = vmatmul.mubr.f32.gmra.mrb[0].mxu0 %v4569
    %v4908 = vpop.f32.mrb[0].mxu0
    %v4909 = vadd.f32 %v4444, %v4908
    %v4910 = vpop.f32.mrb[0].mxu0
    %4911 = vmatprep.mubr.f32.mxu0 0.0
    %4912 = vmatmul.mubr.f32.gmra.mrb[0].mxu0 %v4572
    %v4913 = vpop.f32.mrb[0].mxu0
    %v4914 = vadd.f32 %v4444, %v4913
    %v4915 = vpop.f32.mrb[0].mxu0
    %4916 = vmatprep.mubr.f32.mxu0 0.0
    %4917 = vmatmul.mubr.f32.gmra.mrb[0].mxu0 %v4575
    %v4918 = vpop.f32.mrb[0].mxu0
    %v4919 = vadd.f32 %v4444, %v4918
    %v4920 = vpop.f32.mrb[0].mxu0
    %4921 = vmatprep.mubr.f32.mxu0 0.0
    %4922 = vmatmul.mubr.f32.gmra.mrb[0].mxu0 %v4578
    %v4923 = vpop.f32.mrb[0].mxu0
    %v4924 = vadd.f32 %v4444, %v4923
    %v4925 = vpop.f32.mrb[0].mxu0
    %4926 = vmatprep.mubr.f32.mxu0 0.0
    %4927 = vmatmul.mubr.f32.gmra.mrb[0].mxu0 %v4581
    %v4928 = vpop.f32.mrb[0].mxu0
    %v4929 = vadd.f32 %v4444, %v4928
    %v4930 = vpop.f32.mrb[0].mxu0
    %4931 = vmatprep.mubr.f32.mxu0 0.0
    %4932 = vmatmul.mubr.f32.gmra.mrb[0].mxu0 %v4584
    %v4933 = vpop.f32.mrb[0].mxu0
    %v4934 = vadd.f32 %v4444, %v4933
    %v4935 = vpop.f32.mrb[0].mxu0
    %4936 = vmatprep.mubr.f32.mxu0 0.0
    %4937 = vmatmul.mubr.f32.gmra.mrb[0].mxu0 %v4587
    %v4938 = vpop.f32.mrb[0].mxu0
    %v4939 = vadd.f32 %v4444, %v4938
    %v4940 = vpop.f32.mrb[0].mxu0
    %4941 = vmatprep.mubr.f32.mxu0 0.0
    %4942 = vmatmul.mubr.f32.gmra.mrb[0].mxu0 %v4590
    %v4943 = vpop.f32.mrb[0].mxu0
    %v4944 = vadd.f32 %v4444, %v4943
    %v4945 = vpop.f32.mrb[0].mxu0
    %4946 = vmatprep.mubr.f32.mxu0 0.0
    %4947 = vmatmul.mubr.f32.gmra.mrb[0].mxu0 %v4593
    %v4948 = vpop.f32.mrb[0].mxu0
    %v4949 = vadd.f32 %v4444, %v4948
    %v4950 = vpop.f32.mrb[0].mxu0
    %4951 = vmatprep.mubr.f32.mxu0 0.0
    %4952 = vmatmul.mubr.f32.gmra.mrb[0].mxu0 %v4596
    %v4953 = vpop.f32.mrb[0].mxu0
    %v4954 = vadd.f32 %v4444, %v4953
    %v4955 = vpop.f32.mrb[0].mxu0
    %4956 = vmatprep.mubr.f32.mxu0 0.0
    %4957 = vmatmul.mubr.f32.gmra.mrb[0].mxu0 %v4599
    %v4958 = vpop.f32.mrb[0].mxu0
    %v4959 = vadd.f32 %v4444, %v4958
    %v4960 = vpop.f32.mrb[0].mxu0
    %4961 = vmatprep.mubr.f32.mxu0 0.0
    %4962 = vmatmul.mubr.f32.gmra.mrb[0].mxu0 %v4602
    %v4963 = vpop.f32.mrb[0].mxu0
    %v4964 = vadd.f32 %v4444, %v4963
    %v4965 = vpop.f32.mrb[0].mxu0
    %4966 = vmatprep.mubr.f32.mxu0 0.0
    %4967 = vmatmul.mubr.f32.gmra.mrb[0].mxu0 %v4605
    %v4968 = vpop.f32.mrb[0].mxu0
    %v4969 = vadd.f32 %v4444, %v4968
    %v4970 = vpop.f32.mrb[0].mxu0
    %4971 = vmatprep.mubr.f32.mxu0 0.0
    %4972 = vmatmul.mubr.f32.gmra.mrb[0].mxu0 %v4608
    %v4973 = vpop.f32.mrb[0].mxu0
    %v4974 = vadd.f32 %v4444, %v4973
    %v4975 = vpop.f32.mrb[0].mxu0
    %4976 = vmatprep.mubr.f32.mxu0 0.0
    %4977 = vmatmul.mubr.f32.gmra.mrb[0].mxu0 %v4611
    %v4978 = vpop.f32.mrb[0].mxu0
    %v4979 = vadd.f32 %v4444, %v4978
    %v4980 = vpop.f32.mrb[0].mxu0
    %4981 = vmatprep.mubr.f32.mxu0 0.0
    %4982 = vmatmul.mubr.f32.gmra.mrb[0].mxu0 %v4614
    %v4983 = vpop.f32.mrb[0].mxu0
    %v4984 = vadd.f32 %v4444, %v4983
    %v4985 = vpop.f32.mrb[0].mxu0
    %4986 = vmatprep.mubr.f32.mxu0 0.0
    %4987 = vmatmul.mubr.f32.gmra.mrb[0].mxu0 %v4617
    %v4988 = vpop.f32.mrb[0].mxu0
    %v4989 = vadd.f32 %v4444, %v4988
    %v4990 = vpop.f32.mrb[0].mxu0
    %4991 = vmatprep.mubr.f32.mxu0 0.0
    %4992 = vmatmul.mubr.f32.gmra.mrb[0].mxu0 %v4620
    %v4993 = vpop.f32.mrb[0].mxu0
    %v4994 = vadd.f32 %v4444, %v4993
    %v4995 = vpop.f32.mrb[0].mxu0
    %4996 = vmatprep.mubr.f32.mxu0 0.0
    %4997 = vmatmul.mubr.f32.gmra.mrb[0].mxu0 %v4623
    %v4998 = vpop.f32.mrb[0].mxu0
    %v4999 = vadd.f32 %v4444, %v4998
    %v5000 = vpop.f32.mrb[0].mxu0
    %5001 = vmatprep.mubr.f32.mxu0 0.0
    %5002 = vmatmul.mubr.f32.gmra.mrb[0].mxu0 %v4626
    %v5003 = vpop.f32.mrb[0].mxu0
    %v5004 = vadd.f32 %v4444, %v5003
    %v5005 = vpop.f32.mrb[0].mxu0
    %5006 = vmatprep.mubr.f32.mxu0 0.0
    %5007 = vmatmul.mubr.f32.gmra.mrb[0].mxu0 %v4629
    %v5008 = vpop.f32.mrb[0].mxu0
    %v5009 = vadd.f32 %v4444, %v5008
    %v5010 = vpop.f32.mrb[0].mxu0
    %5011 = vmatprep.mubr.f32.mxu0 0.0
    %5012 = vmatmul.mubr.f32.gmra.mrb[0].mxu0 %v4632
    %v5013 = vpop.f32.mrb[0].mxu0
    %v5014 = vadd.f32 %v4444, %v5013
    %v5015 = vpop.f32.mrb[0].mxu0
    %5016 = vmatprep.mubr.f32.mxu0 0.0
    %5017 = vmatmul.mubr.f32.gmra.mrb[0].mxu0 %v4635
    %v5018 = vpop.f32.mrb[0].mxu0
    %v5019 = vadd.f32 %v4444, %v5018
    %v5020 = vpop.f32.mrb[0].mxu0
    %5021 = vdwg.mxu0
    %vm5022 = vcmp.ge.f32.partialorder %v4704, 0.0
    %vm5023 = vcmp.ge.f32.partialorder %v4709, 0.0
    %vm5024 = vcmp.ge.f32.partialorder %v4714, 0.0
    %vm5025 = vcmp.ge.f32.partialorder %v4719, 0.0
    %vm5026 = vcmp.ge.f32.partialorder %v4724, 0.0
    %vm5027 = vcmp.ge.f32.partialorder %v4729, 0.0
    %vm5028 = vcmp.ge.f32.partialorder %v4734, 0.0
    %vm5029 = vcmp.ge.f32.partialorder %v4739, 0.0
    %vm5030 = vcmp.ge.f32.partialorder %v4744, 0.0
    %vm5031 = vcmp.ge.f32.partialorder %v4749, 0.0
    %vm5032 = vcmp.ge.f32.partialorder %v4754, 0.0
    %vm5033 = vcmp.ge.f32.partialorder %v4759, 0.0
    %vm5034 = vcmp.ge.f32.partialorder %v4764, 0.0
    %vm5035 = vcmp.ge.f32.partialorder %v4769, 0.0
    %vm5036 = vcmp.ge.f32.partialorder %v4774, 0.0
    %vm5037 = vcmp.ge.f32.partialorder %v4779, 0.0
    %vm5038 = vcmp.ge.f32.partialorder %v4784, 0.0
    %vm5039 = vcmp.ge.f32.partialorder %v4789, 0.0
    %vm5040 = vcmp.ge.f32.partialorder %v4794, 0.0
    %vm5041 = vcmp.ge.f32.partialorder %v4799, 0.0
    %vm5042 = vcmp.ge.f32.partialorder %v4804, 0.0
    %vm5043 = vcmp.ge.f32.partialorder %v4809, 0.0
    %vm5044 = vcmp.ge.f32.partialorder %v4814, 0.0
    %vm5045 = vcmp.ge.f32.partialorder %v4819, 0.0
    %vm5046 = vcmp.ge.f32.partialorder %v4824, 0.0
    %vm5047 = vcmp.ge.f32.partialorder %v4829, 0.0
    %vm5048 = vcmp.ge.f32.partialorder %v4834, 0.0
    %vm5049 = vcmp.ge.f32.partialorder %v4839, 0.0
    %vm5050 = vcmp.ge.f32.partialorder %v4844, 0.0
    %vm5051 = vcmp.ge.f32.partialorder %v4849, 0.0
    %vm5052 = vcmp.ge.f32.partialorder %v4854, 0.0
    %vm5053 = vcmp.ge.f32.partialorder %v4859, 0.0
    %vm5054 = vcmp.ge.f32.partialorder %v4864, 0.0
    %vm5055 = vcmp.ge.f32.partialorder %v4869, 0.0
    %vm5056 = vcmp.ge.f32.partialorder %v4874, 0.0
    %vm5057 = vcmp.ge.f32.partialorder %v4879, 0.0
    %vm5058 = vcmp.ge.f32.partialorder %v4884, 0.0
    %vm5059 = vcmp.ge.f32.partialorder %v4889, 0.0
    %vm5060 = vcmp.ge.f32.partialorder %v4894, 0.0
    %vm5061 = vcmp.ge.f32.partialorder %v4899, 0.0
    %vm5062 = vcmp.ge.f32.partialorder %v4904, 0.0
    %vm5063 = vcmp.ge.f32.partialorder %v4909, 0.0
    %vm5064 = vcmp.ge.f32.partialorder %v4914, 0.0
    %vm5065 = vcmp.ge.f32.partialorder %v4919, 0.0
    %vm5066 = vcmp.ge.f32.partialorder %v4924, 0.0
    %vm5067 = vcmp.ge.f32.partialorder %v4929, 0.0
    %vm5068 = vcmp.ge.f32.partialorder %v4934, 0.0
    %vm5069 = vcmp.ge.f32.partialorder %v4939, 0.0
    %vm5070 = vcmp.ge.f32.partialorder %v4944, 0.0
    %vm5071 = vcmp.ge.f32.partialorder %v4949, 0.0
    %vm5072 = vcmp.ge.f32.partialorder %v4954, 0.0
    %vm5073 = vcmp.ge.f32.partialorder %v4959, 0.0
    %vm5074 = vcmp.ge.f32.partialorder %v4964, 0.0
    %vm5075 = vcmp.ge.f32.partialorder %v4969, 0.0
    %vm5076 = vcmp.ge.f32.partialorder %v4974, 0.0
    %vm5077 = vcmp.ge.f32.partialorder %v4979, 0.0
    %vm5078 = vcmp.ge.f32.partialorder %v4984, 0.0
    %vm5079 = vcmp.ge.f32.partialorder %v4989, 0.0
    %vm5080 = vcmp.ge.f32.partialorder %v4994, 0.0
    %vm5081 = vcmp.ge.f32.partialorder %v4999, 0.0
    %vm5082 = vcmp.ge.f32.partialorder %v5004, 0.0
    %vm5083 = vcmp.ge.f32.partialorder %v5009, 0.0
    %vm5084 = vcmp.ge.f32.partialorder %v5014, 0.0
    %vm5085 = vcmp.ge.f32.partialorder %v5019, 0.0
    %v5086 = vmul.f32 %v4704, 0.01
    %v5087 = vmul.f32 %v4709, 0.01
    %v5088 = vmul.f32 %v4714, 0.01
    %v5089 = vmul.f32 %v4719, 0.01
    %v5090 = vmul.f32 %v4724, 0.01
    %v5091 = vmul.f32 %v4729, 0.01
    %v5092 = vmul.f32 %v4734, 0.01
    %v5093 = vmul.f32 %v4739, 0.01
    %v5094 = vmul.f32 %v4744, 0.01
    %v5095 = vmul.f32 %v4749, 0.01
    %v5096 = vmul.f32 %v4754, 0.01
    %v5097 = vmul.f32 %v4759, 0.01
    %v5098 = vmul.f32 %v4764, 0.01
    %v5099 = vmul.f32 %v4769, 0.01
    %v5100 = vmul.f32 %v4774, 0.01
    %v5101 = vmul.f32 %v4779, 0.01
    %v5102 = vmul.f32 %v4784, 0.01
    %v5103 = vmul.f32 %v4789, 0.01
    %v5104 = vmul.f32 %v4794, 0.01
    %v5105 = vmul.f32 %v4799, 0.01
    %v5106 = vmul.f32 %v4804, 0.01
    %v5107 = vmul.f32 %v4809, 0.01
    %v5108 = vmul.f32 %v4814, 0.01
    %v5109 = vmul.f32 %v4819, 0.01
    %v5110 = vmul.f32 %v4824, 0.01
    %v5111 = vmul.f32 %v4829, 0.01
    %v5112 = vmul.f32 %v4834, 0.01
    %v5113 = vmul.f32 %v4839, 0.01
    %v5114 = vmul.f32 %v4844, 0.01
    %v5115 = vmul.f32 %v4849, 0.01
    %v5116 = vmul.f32 %v4854, 0.01
    %v5117 = vmul.f32 %v4859, 0.01
    %v5118 = vmul.f32 %v4864, 0.01
    %v5119 = vmul.f32 %v4869, 0.01
    %v5120 = vmul.f32 %v4874, 0.01
    %v5121 = vmul.f32 %v4879, 0.01
    %v5122 = vmul.f32 %v4884, 0.01
    %v5123 = vmul.f32 %v4889, 0.01
    %v5124 = vmul.f32 %v4894, 0.01
    %v5125 = vmul.f32 %v4899, 0.01
    %v5126 = vmul.f32 %v4904, 0.01
    %v5127 = vmul.f32 %v4909, 0.01
    %v5128 = vmul.f32 %v4914, 0.01
    %v5129 = vmul.f32 %v4919, 0.01
    %v5130 = vmul.f32 %v4924, 0.01
    %v5131 = vmul.f32 %v4929, 0.01
    %v5132 = vmul.f32 %v4934, 0.01
    %v5133 = vmul.f32 %v4939, 0.01
    %v5134 = vmul.f32 %v4944, 0.01
    %v5135 = vmul.f32 %v4949, 0.01
    %v5136 = vmul.f32 %v4954, 0.01
    %v5137 = vmul.f32 %v4959, 0.01
    %v5138 = vmul.f32 %v4964, 0.01
    %v5139 = vmul.f32 %v4969, 0.01
    %v5140 = vmul.f32 %v4974, 0.01
    %v5141 = vmul.f32 %v4979, 0.01
    %v5142 = vmul.f32 %v4984, 0.01
    %v5143 = vmul.f32 %v4989, 0.01
    %v5144 = vmul.f32 %v4994, 0.01
    %v5145 = vmul.f32 %v4999, 0.01
    %v5146 = vmul.f32 %v5004, 0.01
    %v5147 = vmul.f32 %v5009, 0.01
    %v5148 = vmul.f32 %v5014, 0.01
    %v5149 = vmul.f32 %v5019, 0.01
    %v5150 = vsel %vm5022, %v4704, %v5086
    %v5151 = vsel %vm5023, %v4709, %v5087
    %v5152 = vsel %vm5024, %v4714, %v5088
    %v5153 = vsel %vm5025, %v4719, %v5089
    %v5154 = vsel %vm5026, %v4724, %v5090
    %v5155 = vsel %vm5027, %v4729, %v5091
    %v5156 = vsel %vm5028, %v4734, %v5092
    %v5157 = vsel %vm5029, %v4739, %v5093
    %v5158 = vsel %vm5030, %v4744, %v5094
    %v5159 = vsel %vm5031, %v4749, %v5095
    %v5160 = vsel %vm5032, %v4754, %v5096
    %v5161 = vsel %vm5033, %v4759, %v5097
    %v5162 = vsel %vm5034, %v4764, %v5098
    %v5163 = vsel %vm5035, %v4769, %v5099
    %v5164 = vsel %vm5036, %v4774, %v5100
    %v5165 = vsel %vm5037, %v4779, %v5101
    %v5166 = vsel %vm5038, %v4784, %v5102
    %v5167 = vsel %vm5039, %v4789, %v5103
    %v5168 = vsel %vm5040, %v4794, %v5104
    %v5169 = vsel %vm5041, %v4799, %v5105
    %v5170 = vsel %vm5042, %v4804, %v5106
    %v5171 = vsel %vm5043, %v4809, %v5107
    %v5172 = vsel %vm5044, %v4814, %v5108
    %v5173 = vsel %vm5045, %v4819, %v5109
    %v5174 = vsel %vm5046, %v4824, %v5110
    %v5175 = vsel %vm5047, %v4829, %v5111
    %v5176 = vsel %vm5048, %v4834, %v5112
    %v5177 = vsel %vm5049, %v4839, %v5113
    %v5178 = vsel %vm5050, %v4844, %v5114
    %v5179 = vsel %vm5051, %v4849, %v5115
    %v5180 = vsel %vm5052, %v4854, %v5116
    %v5181 = vsel %vm5053, %v4859, %v5117
    %v5182 = vsel %vm5054, %v4864, %v5118
    %v5183 = vsel %vm5055, %v4869, %v5119
    %v5184 = vsel %vm5056, %v4874, %v5120
    %v5185 = vsel %vm5057, %v4879, %v5121
    %v5186 = vsel %vm5058, %v4884, %v5122
    %v5187 = vsel %vm5059, %v4889, %v5123
    %v5188 = vsel %vm5060, %v4894, %v5124
    %v5189 = vsel %vm5061, %v4899, %v5125
    %v5190 = vsel %vm5062, %v4904, %v5126
    %v5191 = vsel %vm5063, %v4909, %v5127
    %v5192 = vsel %vm5064, %v4914, %v5128
    %v5193 = vsel %vm5065, %v4919, %v5129
    %v5194 = vsel %vm5066, %v4924, %v5130
    %v5195 = vsel %vm5067, %v4929, %v5131
    %v5196 = vsel %vm5068, %v4934, %v5132
    %v5197 = vsel %vm5069, %v4939, %v5133
    %v5198 = vsel %vm5070, %v4944, %v5134
    %v5199 = vsel %vm5071, %v4949, %v5135
    %v5200 = vsel %vm5072, %v4954, %v5136
    %v5201 = vsel %vm5073, %v4959, %v5137
    %v5202 = vsel %vm5074, %v4964, %v5138
    %v5203 = vsel %vm5075, %v4969, %v5139
    %v5204 = vsel %vm5076, %v4974, %v5140
    %v5205 = vsel %vm5077, %v4979, %v5141
    %v5206 = vsel %vm5078, %v4984, %v5142
    %v5207 = vsel %vm5079, %v4989, %v5143
    %v5208 = vsel %vm5080, %v4994, %v5144
    %v5209 = vsel %vm5081, %v4999, %v5145
    %v5210 = vsel %vm5082, %v5004, %v5146
    %v5211 = vsel %vm5083, %v5009, %v5147
    %v5212 = vsel %vm5084, %v5014, %v5148
    %v5213 = vsel %vm5085, %v5019, %v5149
    %v5214 = vld [vmem:[%s19] sm:$0x1]
    %v5215 = vld [vmem:[%s20] sm:$0x1]
    %v5216 = vsel %vm1754, %v5150, 0.0
    %v5217 = vsel %vm1754, %v5151, 0.0
    %v5218 = vadd.f32 %v5216, %v5217
    %v5219 = vsel %vm1754, %v5152, 0.0
    %v5220 = vadd.f32 %v5218, %v5219
    %v5221 = vsel %vm1754, %v5153, 0.0
    %v5222 = vadd.f32 %v5220, %v5221
    %v5223 = vsel %vm1754, %v5154, 0.0
    %v5224 = vadd.f32 %v5222, %v5223
    %v5225 = vsel %vm1754, %v5155, 0.0
    %v5226 = vadd.f32 %v5224, %v5225
    %v5227 = vsel %vm1754, %v5156, 0.0
    %v5228 = vadd.f32 %v5226, %v5227
    %v5229 = vsel %vm1754, %v5157, 0.0
    %v5230 = vadd.f32 %v5228, %v5229
    %v5231 = vsel %vm1754, %v5158, 0.0
    %v5232 = vadd.f32 %v5230, %v5231
    %v5233 = vsel %vm1754, %v5159, 0.0
    %v5234 = vadd.f32 %v5232, %v5233
    %v5235 = vsel %vm1754, %v5160, 0.0
    %v5236 = vadd.f32 %v5234, %v5235
    %v5237 = vsel %vm1754, %v5161, 0.0
    %v5238 = vadd.f32 %v5236, %v5237
    %v5239 = vsel %vm1754, %v5162, 0.0
    %v5240 = vadd.f32 %v5238, %v5239
    %v5241 = vsel %vm1754, %v5163, 0.0
    %v5242 = vadd.f32 %v5240, %v5241
    %v5243 = vsel %vm1754, %v5164, 0.0
    %v5244 = vadd.f32 %v5242, %v5243
    %v5245 = vsel %vm1754, %v5165, 0.0
    %v5246 = vadd.f32 %v5244, %v5245
    %v5247 = vsel %vm1754, %v5166, 0.0
    %v5248 = vadd.f32 %v5246, %v5247
    %v5249 = vsel %vm1754, %v5167, 0.0
    %v5250 = vadd.f32 %v5248, %v5249
    %v5251 = vsel %vm1754, %v5168, 0.0
    %v5252 = vadd.f32 %v5250, %v5251
    %v5253 = vsel %vm1754, %v5169, 0.0
    %v5254 = vadd.f32 %v5252, %v5253
    %v5255 = vsel %vm1754, %v5170, 0.0
    %v5256 = vadd.f32 %v5254, %v5255
    %v5257 = vsel %vm1754, %v5171, 0.0
    %v5258 = vadd.f32 %v5256, %v5257
    %v5259 = vsel %vm1754, %v5172, 0.0
    %v5260 = vadd.f32 %v5258, %v5259
    %v5261 = vsel %vm1754, %v5173, 0.0
    %v5262 = vadd.f32 %v5260, %v5261
    %v5263 = vsel %vm1754, %v5174, 0.0
    %v5264 = vadd.f32 %v5262, %v5263
    %v5265 = vsel %vm1754, %v5175, 0.0
    %v5266 = vadd.f32 %v5264, %v5265
    %v5267 = vsel %vm1754, %v5176, 0.0
    %v5268 = vadd.f32 %v5266, %v5267
    %v5269 = vsel %vm1754, %v5177, 0.0
    %v5270 = vadd.f32 %v5268, %v5269
    %v5271 = vsel %vm1754, %v5178, 0.0
    %v5272 = vadd.f32 %v5270, %v5271
    %v5273 = vsel %vm1754, %v5179, 0.0
    %v5274 = vadd.f32 %v5272, %v5273
    %v5275 = vsel %vm1754, %v5180, 0.0
    %v5276 = vadd.f32 %v5274, %v5275
    %v5277 = vsel %vm1754, %v5181, 0.0
    %v5278 = vadd.f32 %v5276, %v5277
    %v5279 = vsel %vm1754, %v5182, 0.0
    %v5280 = vadd.f32 %v5278, %v5279
    %v5281 = vsel %vm1754, %v5183, 0.0
    %v5282 = vadd.f32 %v5280, %v5281
    %v5283 = vsel %vm1754, %v5184, 0.0
    %v5284 = vadd.f32 %v5282, %v5283
    %v5285 = vsel %vm1754, %v5185, 0.0
    %v5286 = vadd.f32 %v5284, %v5285
    %v5287 = vsel %vm1754, %v5186, 0.0
    %v5288 = vadd.f32 %v5286, %v5287
    %v5289 = vsel %vm1754, %v5187, 0.0
    %v5290 = vadd.f32 %v5288, %v5289
    %v5291 = vsel %vm1754, %v5188, 0.0
    %v5292 = vadd.f32 %v5290, %v5291
    %v5293 = vsel %vm1754, %v5189, 0.0
    %v5294 = vadd.f32 %v5292, %v5293
    %v5295 = vsel %vm1754, %v5190, 0.0
    %v5296 = vadd.f32 %v5294, %v5295
    %v5297 = vsel %vm1754, %v5191, 0.0
    %v5298 = vadd.f32 %v5296, %v5297
    %v5299 = vsel %vm1754, %v5192, 0.0
    %v5300 = vadd.f32 %v5298, %v5299
    %v5301 = vsel %vm1754, %v5193, 0.0
    %v5302 = vadd.f32 %v5300, %v5301
    %v5303 = vsel %vm1754, %v5194, 0.0
    %v5304 = vadd.f32 %v5302, %v5303
    %v5305 = vsel %vm1754, %v5195, 0.0
    %v5306 = vadd.f32 %v5304, %v5305
    %v5307 = vsel %vm1754, %v5196, 0.0
    %v5308 = vadd.f32 %v5306, %v5307
    %v5309 = vsel %vm1754, %v5197, 0.0
    %v5310 = vadd.f32 %v5308, %v5309
    %v5311 = vsel %vm1754, %v5198, 0.0
    %v5312 = vadd.f32 %v5310, %v5311
    %v5313 = vsel %vm1754, %v5199, 0.0
    %v5314 = vadd.f32 %v5312, %v5313
    %v5315 = vsel %vm1754, %v5200, 0.0
    %v5316 = vadd.f32 %v5314, %v5315
    %v5317 = vsel %vm1754, %v5201, 0.0
    %v5318 = vadd.f32 %v5316, %v5317
    %v5319 = vsel %vm1754, %v5202, 0.0
    %v5320 = vadd.f32 %v5318, %v5319
    %v5321 = vsel %vm1754, %v5203, 0.0
    %v5322 = vadd.f32 %v5320, %v5321
    %v5323 = vsel %vm1754, %v5204, 0.0
    %v5324 = vadd.f32 %v5322, %v5323
    %v5325 = vsel %vm1754, %v5205, 0.0
    %v5326 = vadd.f32 %v5324, %v5325
    %v5327 = vsel %vm1754, %v5206, 0.0
    %v5328 = vadd.f32 %v5326, %v5327
    %v5329 = vsel %vm1754, %v5207, 0.0
    %v5330 = vadd.f32 %v5328, %v5329
    %v5331 = vsel %vm1754, %v5208, 0.0
    %v5332 = vadd.f32 %v5330, %v5331
    %v5333 = vsel %vm1754, %v5209, 0.0
    %v5334 = vadd.f32 %v5332, %v5333
    %v5335 = vsel %vm1754, %v5210, 0.0
    %v5336 = vadd.f32 %v5334, %v5335
    %v5337 = vsel %vm1754, %v5211, 0.0
    %v5338 = vadd.f32 %v5336, %v5337
    %v5339 = vsel %vm1754, %v5212, 0.0
    %v5340 = vadd.f32 %v5338, %v5339
    %v5341 = vsel %vm1754, %v5213, 0.0
    %v5342 = vadd.f32 %v5340, %v5341
    %v5343 = vrot.slane %v5342, 4
    %v5344 = vadd.f32 %v5342, %v5343
    %v5345 = vrot.slane %v5344, 2
    %v5346 = vadd.f32 %v5344, %v5345
    %v5347 = vrot.slane %v5346, 1
    %v5348 = vadd.f32 %v5346, %v5347
    %v5349 = vmul.f32 %v5150, %v5150
    %v5350 = vmul.f32 %v5151, %v5151
    %v5351 = vmul.f32 %v5152, %v5152
    %v5352 = vmul.f32 %v5153, %v5153
    %v5353 = vmul.f32 %v5154, %v5154
    %v5354 = vmul.f32 %v5155, %v5155
    %v5355 = vmul.f32 %v5156, %v5156
    %v5356 = vmul.f32 %v5157, %v5157
    %v5357 = vmul.f32 %v5158, %v5158
    %v5358 = vmul.f32 %v5159, %v5159
    %v5359 = vmul.f32 %v5160, %v5160
    %v5360 = vmul.f32 %v5161, %v5161
    %v5361 = vmul.f32 %v5162, %v5162
    %v5362 = vmul.f32 %v5163, %v5163
    %v5363 = vmul.f32 %v5164, %v5164
    %v5364 = vmul.f32 %v5165, %v5165
    %v5365 = vmul.f32 %v5166, %v5166
    %v5366 = vmul.f32 %v5167, %v5167
    %v5367 = vmul.f32 %v5168, %v5168
    %v5368 = vmul.f32 %v5169, %v5169
    %v5369 = vmul.f32 %v5170, %v5170
    %v5370 = vmul.f32 %v5171, %v5171
    %v5371 = vmul.f32 %v5172, %v5172
    %v5372 = vmul.f32 %v5173, %v5173
    %v5373 = vmul.f32 %v5174, %v5174
    %v5374 = vmul.f32 %v5175, %v5175
    %v5375 = vmul.f32 %v5176, %v5176
    %v5376 = vmul.f32 %v5177, %v5177
    %v5377 = vmul.f32 %v5178, %v5178
    %v5378 = vmul.f32 %v5179, %v5179
    %v5379 = vmul.f32 %v5180, %v5180
    %v5380 = vmul.f32 %v5181, %v5181
    %v5381 = vmul.f32 %v5182, %v5182
    %v5382 = vmul.f32 %v5183, %v5183
    %v5383 = vmul.f32 %v5184, %v5184
    %v5384 = vmul.f32 %v5185, %v5185
    %v5385 = vmul.f32 %v5186, %v5186
    %v5386 = vmul.f32 %v5187, %v5187
    %v5387 = vmul.f32 %v5188, %v5188
    %v5388 = vmul.f32 %v5189, %v5189
    %v5389 = vmul.f32 %v5190, %v5190
    %v5390 = vmul.f32 %v5191, %v5191
    %v5391 = vmul.f32 %v5192, %v5192
    %v5392 = vmul.f32 %v5193, %v5193
    %v5393 = vmul.f32 %v5194, %v5194
    %v5394 = vmul.f32 %v5195, %v5195
    %v5395 = vmul.f32 %v5196, %v5196
    %v5396 = vmul.f32 %v5197, %v5197
    %v5397 = vmul.f32 %v5198, %v5198
    %v5398 = vmul.f32 %v5199, %v5199
    %v5399 = vmul.f32 %v5200, %v5200
    %v5400 = vmul.f32 %v5201, %v5201
    %v5401 = vmul.f32 %v5202, %v5202
    %v5402 = vmul.f32 %v5203, %v5203
    %v5403 = vmul.f32 %v5204, %v5204
    %v5404 = vmul.f32 %v5205, %v5205
    %v5405 = vmul.f32 %v5206, %v5206
    %v5406 = vmul.f32 %v5207, %v5207
    %v5407 = vmul.f32 %v5208, %v5208
    %v5408 = vmul.f32 %v5209, %v5209
    %v5409 = vmul.f32 %v5210, %v5210
    %v5410 = vmul.f32 %v5211, %v5211
    %v5411 = vmul.f32 %v5212, %v5212
    %v5412 = vmul.f32 %v5213, %v5213
    %v5413 = vsel %vm1754, %v5349, 0.0
    %v5414 = vsel %vm1754, %v5350, 0.0
    %v5415 = vadd.f32 %v5413, %v5414
    %v5416 = vsel %vm1754, %v5351, 0.0
    %v5417 = vadd.f32 %v5415, %v5416
    %v5418 = vsel %vm1754, %v5352, 0.0
    %v5419 = vadd.f32 %v5417, %v5418
    %v5420 = vsel %vm1754, %v5353, 0.0
    %v5421 = vadd.f32 %v5419, %v5420
    %v5422 = vsel %vm1754, %v5354, 0.0
    %v5423 = vadd.f32 %v5421, %v5422
    %v5424 = vsel %vm1754, %v5355, 0.0
    %v5425 = vadd.f32 %v5423, %v5424
    %v5426 = vsel %vm1754, %v5356, 0.0
    %v5427 = vadd.f32 %v5425, %v5426
    %v5428 = vsel %vm1754, %v5357, 0.0
    %v5429 = vadd.f32 %v5427, %v5428
    %v5430 = vsel %vm1754, %v5358, 0.0
    %v5431 = vadd.f32 %v5429, %v5430
    %v5432 = vsel %vm1754, %v5359, 0.0
    %v5433 = vadd.f32 %v5431, %v5432
    %v5434 = vsel %vm1754, %v5360, 0.0
    %v5435 = vadd.f32 %v5433, %v5434
    %v5436 = vsel %vm1754, %v5361, 0.0
    %v5437 = vadd.f32 %v5435, %v5436
    %v5438 = vsel %vm1754, %v5362, 0.0
    %v5439 = vadd.f32 %v5437, %v5438
    %v5440 = vsel %vm1754, %v5363, 0.0
    %v5441 = vadd.f32 %v5439, %v5440
    %v5442 = vsel %vm1754, %v5364, 0.0
    %v5443 = vadd.f32 %v5441, %v5442
    %v5444 = vsel %vm1754, %v5365, 0.0
    %v5445 = vadd.f32 %v5443, %v5444
    %v5446 = vsel %vm1754, %v5366, 0.0
    %v5447 = vadd.f32 %v5445, %v5446
    %v5448 = vsel %vm1754, %v5367, 0.0
    %v5449 = vadd.f32 %v5447, %v5448
    %v5450 = vsel %vm1754, %v5368, 0.0
    %v5451 = vadd.f32 %v5449, %v5450
    %v5452 = vsel %vm1754, %v5369, 0.0
    %v5453 = vadd.f32 %v5451, %v5452
    %v5454 = vsel %vm1754, %v5370, 0.0
    %v5455 = vadd.f32 %v5453, %v5454
    %v5456 = vsel %vm1754, %v5371, 0.0
    %v5457 = vadd.f32 %v5455, %v5456
    %v5458 = vsel %vm1754, %v5372, 0.0
    %v5459 = vadd.f32 %v5457, %v5458
    %v5460 = vsel %vm1754, %v5373, 0.0
    %v5461 = vadd.f32 %v5459, %v5460
    %v5462 = vsel %vm1754, %v5374, 0.0
    %v5463 = vadd.f32 %v5461, %v5462
    %v5464 = vsel %vm1754, %v5375, 0.0
    %v5465 = vadd.f32 %v5463, %v5464
    %v5466 = vsel %vm1754, %v5376, 0.0
    %v5467 = vadd.f32 %v5465, %v5466
    %v5468 = vsel %vm1754, %v5377, 0.0
    %v5469 = vadd.f32 %v5467, %v5468
    %v5470 = vsel %vm1754, %v5378, 0.0
    %v5471 = vadd.f32 %v5469, %v5470
    %v5472 = vsel %vm1754, %v5379, 0.0
    %v5473 = vadd.f32 %v5471, %v5472
    %v5474 = vsel %vm1754, %v5380, 0.0
    %v5475 = vadd.f32 %v5473, %v5474
    %v5476 = vsel %vm1754, %v5381, 0.0
    %v5477 = vadd.f32 %v5475, %v5476
    %v5478 = vsel %vm1754, %v5382, 0.0
    %v5479 = vadd.f32 %v5477, %v5478
    %v5480 = vsel %vm1754, %v5383, 0.0
    %v5481 = vadd.f32 %v5479, %v5480
    %v5482 = vsel %vm1754, %v5384, 0.0
    %v5483 = vadd.f32 %v5481, %v5482
    %v5484 = vsel %vm1754, %v5385, 0.0
    %v5485 = vadd.f32 %v5483, %v5484
    %v5486 = vsel %vm1754, %v5386, 0.0
    %v5487 = vadd.f32 %v5485, %v5486
    %v5488 = vsel %vm1754, %v5387, 0.0
    %v5489 = vadd.f32 %v5487, %v5488
    %v5490 = vsel %vm1754, %v5388, 0.0
    %v5491 = vadd.f32 %v5489, %v5490
    %v5492 = vsel %vm1754, %v5389, 0.0
    %v5493 = vadd.f32 %v5491, %v5492
    %v5494 = vsel %vm1754, %v5390, 0.0
    %v5495 = vadd.f32 %v5493, %v5494
    %v5496 = vsel %vm1754, %v5391, 0.0
    %v5497 = vadd.f32 %v5495, %v5496
    %v5498 = vsel %vm1754, %v5392, 0.0
    %v5499 = vadd.f32 %v5497, %v5498
    %v5500 = vsel %vm1754, %v5393, 0.0
    %v5501 = vadd.f32 %v5499, %v5500
    %v5502 = vsel %vm1754, %v5394, 0.0
    %v5503 = vadd.f32 %v5501, %v5502
    %v5504 = vsel %vm1754, %v5395, 0.0
    %v5505 = vadd.f32 %v5503, %v5504
    %v5506 = vsel %vm1754, %v5396, 0.0
    %v5507 = vadd.f32 %v5505, %v5506
    %v5508 = vsel %vm1754, %v5397, 0.0
    %v5509 = vadd.f32 %v5507, %v5508
    %v5510 = vsel %vm1754, %v5398, 0.0
    %v5511 = vadd.f32 %v5509, %v5510
    %v5512 = vsel %vm1754, %v5399, 0.0
    %v5513 = vadd.f32 %v5511, %v5512
    %v5514 = vsel %vm1754, %v5400, 0.0
    %v5515 = vadd.f32 %v5513, %v5514
    %v5516 = vsel %vm1754, %v5401, 0.0
    %v5517 = vadd.f32 %v5515, %v5516
    %v5518 = vsel %vm1754, %v5402, 0.0
    %v5519 = vadd.f32 %v5517, %v5518
    %v5520 = vsel %vm1754, %v5403, 0.0
    %v5521 = vadd.f32 %v5519, %v5520
    %v5522 = vsel %vm1754, %v5404, 0.0
    %v5523 = vadd.f32 %v5521, %v5522
    %v5524 = vsel %vm1754, %v5405, 0.0
    %v5525 = vadd.f32 %v5523, %v5524
    %v5526 = vsel %vm1754, %v5406, 0.0
    %v5527 = vadd.f32 %v5525, %v5526
    %v5528 = vsel %vm1754, %v5407, 0.0
    %v5529 = vadd.f32 %v5527, %v5528
    %v5530 = vsel %vm1754, %v5408, 0.0
    %v5531 = vadd.f32 %v5529, %v5530
    %v5532 = vsel %vm1754, %v5409, 0.0
    %v5533 = vadd.f32 %v5531, %v5532
    %v5534 = vsel %vm1754, %v5410, 0.0
    %v5535 = vadd.f32 %v5533, %v5534
    %v5536 = vsel %vm1754, %v5411, 0.0
    %v5537 = vadd.f32 %v5535, %v5536
    %v5538 = vsel %vm1754, %v5412, 0.0
    %v5539 = vadd.f32 %v5537, %v5538
    %v5540 = vrot.slane %v5539, 4
    %v5541 = vadd.f32 %v5539, %v5540
    %v5542 = vrot.slane %v5541, 2
    %v5543 = vadd.f32 %v5541, %v5542
    %v5544 = vrot.slane %v5543, 1
    %v5545 = vadd.f32 %v5543, %v5544
    %v5546 = vmul.f32 %v5348, 0.001953125
    %v5547 = vmul.f32 %v5545, 0.001953125
    %v5548 = vmul.f32 %v5546, %v5546
    %v5549 = vsub.f32 %v5547, %v5548
    %v5550 = vadd.f32 %v5549, 1e-05
    %v5551 = vrsqrt.pop %v5550
    %v5552 = vmul.f32 %v5551, %v5214
    %v5553 = vmul.f32 %v5546, %v5552
    %v5554 = vsub.f32 %v5215, %v5553
    %v5555 = vld [vmem:[%s14] sm:$0x1]
    %5556 = vst.msk [vmem:[#allocation2] sm:$0xff] %vm1754, 0.0
    %5557 = vst.msk [vmem:[#allocation2 + $0x8] sm:$0xff] %vm1754, 0.0
    %vm5558 = vcmask 125952
    %5559 = vst.msk [vmem:[#allocation2 + $0x10] sm:$0xf] %vm5558, 0.0
    %5560 = vst.msk [vmem:[#allocation2 + $0x18] sm:$0xff] %vm1754, 0.0
    %5561 = vst.msk [vmem:[#allocation2 + $0x20] sm:$0xff] %vm1754, 0.0
    %5562 = vst.msk [vmem:[#allocation2 + $0x28] sm:$0xf] %vm5558, 0.0
    %5563 = vst.msk [vmem:[#allocation2 + $0x1e0] sm:$0xff] %vm1754, 0.0
    %5564 = vst.msk [vmem:[#allocation2 + $0x1e8] sm:$0xff] %vm1754, 0.0
    %5565 = vst.msk [vmem:[#allocation2 + $0x1f0] sm:$0xf] %vm5558, 0.0
    %5566 = vst.msk [vmem:[#allocation2 + $0x1f8] sm:$0xff] %vm1754, 0.0
    %5567 = vst.msk [vmem:[#allocation2 + $0x200] sm:$0xff] %vm1754, 0.0
    %5568 = vst.msk [vmem:[#allocation2 + $0x208] sm:$0xf] %vm5558, 0.0
    %s5569 = scalar_lea.vmem [#allocation2], 432
    %5570 = vst.msk [vmem:[%s5569] sm:$0xff] %vm1754, 0.0
    %5571 = vst.msk [vmem:[%s5569 + $0x8] sm:$0xff] %vm1754, 0.0
    %5572 = vst.msk [vmem:[%s5569 + $0x10] sm:$0xf] %vm5558, 0.0
    %5573 = vst.msk [vmem:[%s5569 + $0x18] sm:$0xff] %vm1754, 0.0
    %5574 = vst.msk [vmem:[%s5569 + $0x20] sm:$0xff] %vm1754, 0.0
    %5575 = vst.msk [vmem:[%s5569 + $0x28] sm:$0xf] %vm5558, 0.0
    %5576 = vst.msk [vmem:[%s5569 + $0x1e0] sm:$0xff] %vm1754, 0.0
    %5577 = vst.msk [vmem:[%s5569 + $0x1e8] sm:$0xff] %vm1754, 0.0
    %5578 = vst.msk [vmem:[%s5569 + $0x1f0] sm:$0xf] %vm5558, 0.0
    %5579 = vst.msk [vmem:[%s5569 + $0x1f8] sm:$0xff] %vm1754, 0.0
    %5580 = vst.msk [vmem:[%s5569 + $0x200] sm:$0xff] %vm1754, 0.0
    %5581 = vst.msk [vmem:[%s5569 + $0x208] sm:$0xf] %vm5558, 0.0
    %5582 = vst.msk [vmem:[%s3077] sm:$0x3] %vm1757, 0.0
    %5583 = vst.msk [vmem:[%s3077 + $0x18] sm:$0x3] %vm1757, 0.0
    %5584 = vst.msk [vmem:[%s3077 + $0x30] sm:$0x3] %vm1757, 0.0
    %5585 = vst.msk [vmem:[%s3077 + $0x48] sm:$0x3] %vm1757, 0.0
    %5586 = vst.msk [vmem:[%s3077 + $0x60] sm:$0x3] %vm1757, 0.0
    %5587 = vst.msk [vmem:[%s3077 + $0x78] sm:$0x3] %vm1757, 0.0
    %5588 = vst.msk [vmem:[%s3077 + $0x90] sm:$0x3] %vm1757, 0.0
    %5589 = vst.msk [vmem:[%s3077 + $0xa8] sm:$0x3] %vm1757, 0.0
    %5590 = vst.msk [vmem:[%s3077 + $0xc0] sm:$0x3] %vm1757, 0.0
    %5591 = vst.msk [vmem:[%s3077 + $0xd8] sm:$0x3] %vm1757, 0.0
    %5592 = vst.msk [vmem:[%s3077 + $0xf0] sm:$0x3] %vm1757, 0.0
    %5593 = vst.msk [vmem:[%s3077 + $0x108] sm:$0x3] %vm1757, 0.0
    %5594 = vst.msk [vmem:[%s3077 + $0x120] sm:$0x3] %vm1757, 0.0
    %5595 = vst.msk [vmem:[%s3077 + $0x138] sm:$0x3] %vm1757, 0.0
    %5596 = vst.msk [vmem:[%s3077 + $0x150] sm:$0x3] %vm1757, 0.0
    %5597 = vst.msk [vmem:[%s3077 + $0x168] sm:$0x3] %vm1757, 0.0
    %5598 = vst.msk [vmem:[%s3077 + $0x1e0] sm:$0x3] %vm1757, 0.0
    %5599 = vst.msk [vmem:[%s3077 + $0x1f8] sm:$0x3] %vm1757, 0.0
    %5600 = vst.msk [vmem:[%s3077 + $0x210] sm:$0x3] %vm1757, 0.0
    %5601 = vst.msk [vmem:[%s3077 + $0x228] sm:$0x3] %vm1757, 0.0
    %5602 = vst.msk [vmem:[%s3077 + $0x240] sm:$0x3] %vm1757, 0.0
    %5603 = vst.msk [vmem:[%s3077 + $0x258] sm:$0x3] %vm1757, 0.0
    %5604 = vst.msk [vmem:[%s3077 + $0x270] sm:$0x3] %vm1757, 0.0
    %5605 = vst.msk [vmem:[%s3077 + $0x288] sm:$0x3] %vm1757, 0.0
    %5606 = vst.msk [vmem:[%s3077 + $0x2a0] sm:$0x3] %vm1757, 0.0
    %5607 = vst.msk [vmem:[%s3077 + $0x2b8] sm:$0x3] %vm1757, 0.0
    %5608 = vst.msk [vmem:[%s3077 + $0x2d0] sm:$0x3] %vm1757, 0.0
    %5609 = vst.msk [vmem:[%s3077 + $0x2e8] sm:$0x3] %vm1757, 0.0
    %5610 = vst.msk [vmem:[%s3077 + $0x300] sm:$0x3] %vm1757, 0.0
    %5611 = vst.msk [vmem:[%s3077 + $0x318] sm:$0x3] %vm1757, 0.0
    %5612 = vst.msk [vmem:[%s3077 + $0x330] sm:$0x3] %vm1757, 0.0
    %5613 = vst.msk [vmem:[%s3077 + $0x348] sm:$0x3] %vm1757, 0.0
    %5614 = vst.msk [vmem:[%s3077 + $0x12] sm:$0x3] %vm1757, 0.0
    %5615 = vst.msk [vmem:[%s3077 + $0x2a] sm:$0x3] %vm1757, 0.0
    %5616 = vst.msk [vmem:[%s3077 + $0x42] sm:$0x3] %vm1757, 0.0
    %5617 = vst.msk [vmem:[%s3077 + $0x5a] sm:$0x3] %vm1757, 0.0
    %5618 = vst.msk [vmem:[%s3077 + $0x72] sm:$0x3] %vm1757, 0.0
    %5619 = vst.msk [vmem:[%s3077 + $0x8a] sm:$0x3] %vm1757, 0.0
    %5620 = vst.msk [vmem:[%s3077 + $0xa2] sm:$0x3] %vm1757, 0.0
    %5621 = vst.msk [vmem:[%s3077 + $0xba] sm:$0x3] %vm1757, 0.0
    %5622 = vst.msk [vmem:[%s3077 + $0xd2] sm:$0x3] %vm1757, 0.0
    %5623 = vst.msk [vmem:[%s3077 + $0xea] sm:$0x3] %vm1757, 0.0
    %5624 = vst.msk [vmem:[%s3077 + $0x102] sm:$0x3] %vm1757, 0.0
    %5625 = vst.msk [vmem:[%s3077 + $0x11a] sm:$0x3] %vm1757, 0.0
    %5626 = vst.msk [vmem:[%s3077 + $0x132] sm:$0x3] %vm1757, 0.0
    %5627 = vst.msk [vmem:[%s3077 + $0x14a] sm:$0x3] %vm1757, 0.0
    %5628 = vst.msk [vmem:[%s3077 + $0x162] sm:$0x3] %vm1757, 0.0
    %5629 = vst.msk [vmem:[%s3077 + $0x17a] sm:$0x3] %vm1757, 0.0
    %5630 = vst.msk [vmem:[%s3077 + $0x1f2] sm:$0x3] %vm1757, 0.0
    %5631 = vst.msk [vmem:[%s3077 + $0x20a] sm:$0x3] %vm1757, 0.0
    %5632 = vst.msk [vmem:[%s3077 + $0x222] sm:$0x3] %vm1757, 0.0
    %5633 = vst.msk [vmem:[%s3077 + $0x23a] sm:$0x3] %vm1757, 0.0
    %5634 = vst.msk [vmem:[%s3077 + $0x252] sm:$0x3] %vm1757, 0.0
    %5635 = vst.msk [vmem:[%s3077 + $0x26a] sm:$0x3] %vm1757, 0.0
    %5636 = vst.msk [vmem:[%s3077 + $0x282] sm:$0x3] %vm1757, 0.0
    %5637 = vst.msk [vmem:[%s3077 + $0x29a] sm:$0x3] %vm1757, 0.0
    %5638 = vst.msk [vmem:[%s3077 + $0x2b2] sm:$0x3] %vm1757, 0.0
    %5639 = vst.msk [vmem:[%s3077 + $0x2ca] sm:$0x3] %vm1757, 0.0
    %5640 = vst.msk [vmem:[%s3077 + $0x2e2] sm:$0x3] %vm1757, 0.0
    %5641 = vst.msk [vmem:[%s3077 + $0x2fa] sm:$0x3] %vm1757, 0.0
    %5642 = vst.msk [vmem:[%s3077 + $0x312] sm:$0x3] %vm1757, 0.0
    %5643 = vst.msk [vmem:[%s3077 + $0x32a] sm:$0x3] %vm1757, 0.0
    %5644 = vst.msk [vmem:[%s3077 + $0x342] sm:$0x3] %vm1757, 0.0
    %5645 = vst.msk [vmem:[%s3077 + $0x35a] sm:$0x3] %vm1757, 0.0
    %v5646 = vlaneseq
    %v5647 = vshrl.u32 %v5646, 7
    %v5648 = vsub.s32 0, %v5647
    %v5649 = vrot.slane %v5552, %v5648
    %v5650 = vmul.f32 %v5150, %v5649
    %v5651 = vmul.f32 %v5151, %v5649
    %v5652 = vmul.f32 %v5152, %v5649
    %v5653 = vmul.f32 %v5153, %v5649
    %v5654 = vmul.f32 %v5154, %v5649
    %v5655 = vmul.f32 %v5155, %v5649
    %v5656 = vmul.f32 %v5156, %v5649
    %v5657 = vmul.f32 %v5157, %v5649
    %v5658 = vmul.f32 %v5158, %v5649
    %v5659 = vmul.f32 %v5159, %v5649
    %v5660 = vmul.f32 %v5160, %v5649
    %v5661 = vmul.f32 %v5161, %v5649
    %v5662 = vmul.f32 %v5162, %v5649
    %v5663 = vmul.f32 %v5163, %v5649
    %v5664 = vmul.f32 %v5164, %v5649
    %v5665 = vmul.f32 %v5165, %v5649
    %v5666 = vmul.f32 %v5166, %v5649
    %v5667 = vmul.f32 %v5167, %v5649
    %v5668 = vmul.f32 %v5168, %v5649
    %v5669 = vmul.f32 %v5169, %v5649
    %v5670 = vmul.f32 %v5170, %v5649
    %v5671 = vmul.f32 %v5171, %v5649
    %v5672 = vmul.f32 %v5172, %v5649
    %v5673 = vmul.f32 %v5173, %v5649
    %v5674 = vmul.f32 %v5174, %v5649
    %v5675 = vmul.f32 %v5175, %v5649
    %v5676 = vmul.f32 %v5176, %v5649
    %v5677 = vmul.f32 %v5177, %v5649
    %v5678 = vmul.f32 %v5178, %v5649
    %v5679 = vmul.f32 %v5179, %v5649
    %v5680 = vmul.f32 %v5180, %v5649
    %v5681 = vmul.f32 %v5181, %v5649
    %v5682 = vmul.f32 %v5182, %v5649
    %v5683 = vmul.f32 %v5183, %v5649
    %v5684 = vmul.f32 %v5184, %v5649
    %v5685 = vmul.f32 %v5185, %v5649
    %v5686 = vmul.f32 %v5186, %v5649
    %v5687 = vmul.f32 %v5187, %v5649
    %v5688 = vmul.f32 %v5188, %v5649
    %v5689 = vmul.f32 %v5189, %v5649
    %v5690 = vmul.f32 %v5190, %v5649
    %v5691 = vmul.f32 %v5191, %v5649
    %v5692 = vmul.f32 %v5192, %v5649
    %v5693 = vmul.f32 %v5193, %v5649
    %v5694 = vmul.f32 %v5194, %v5649
    %v5695 = vmul.f32 %v5195, %v5649
    %v5696 = vmul.f32 %v5196, %v5649
    %v5697 = vmul.f32 %v5197, %v5649
    %v5698 = vmul.f32 %v5198, %v5649
    %v5699 = vmul.f32 %v5199, %v5649
    %v5700 = vmul.f32 %v5200, %v5649
    %v5701 = vmul.f32 %v5201, %v5649
    %v5702 = vmul.f32 %v5202, %v5649
    %v5703 = vmul.f32 %v5203, %v5649
    %v5704 = vmul.f32 %v5204, %v5649
    %v5705 = vmul.f32 %v5205, %v5649
    %v5706 = vmul.f32 %v5206, %v5649
    %v5707 = vmul.f32 %v5207, %v5649
    %v5708 = vmul.f32 %v5208, %v5649
    %v5709 = vmul.f32 %v5209, %v5649
    %v5710 = vmul.f32 %v5210, %v5649
    %v5711 = vmul.f32 %v5211, %v5649
    %v5712 = vmul.f32 %v5212, %v5649
    %v5713 = vmul.f32 %v5213, %v5649
    %v5715 = vlaneseq
    %v5716 = vshrl.u32 %v5715, 7
    %v5717 = vsub.s32 0, %v5716
    %v5718 = vrot.slane %v5554, %v5717
    %v5720 = vadd.f32 %v5650, %v5718
    %v5721 = vadd.f32 %v5651, %v5718
    %v5722 = vadd.f32 %v5652, %v5718
    %v5723 = vadd.f32 %v5653, %v5718
    %v5724 = vadd.f32 %v5654, %v5718
    %v5725 = vadd.f32 %v5655, %v5718
    %v5726 = vadd.f32 %v5656, %v5718
    %v5727 = vadd.f32 %v5657, %v5718
    %v5728 = vadd.f32 %v5658, %v5718
    %v5729 = vadd.f32 %v5659, %v5718
    %v5730 = vadd.f32 %v5660, %v5718
    %v5731 = vadd.f32 %v5661, %v5718
    %v5732 = vadd.f32 %v5662, %v5718
    %v5733 = vadd.f32 %v5663, %v5718
    %v5734 = vadd.f32 %v5664, %v5718
    %v5735 = vadd.f32 %v5665, %v5718
    %v5736 = vadd.f32 %v5666, %v5718
    %v5737 = vadd.f32 %v5667, %v5718
    %v5738 = vadd.f32 %v5668, %v5718
    %v5739 = vadd.f32 %v5669, %v5718
    %v5740 = vadd.f32 %v5670, %v5718
    %v5741 = vadd.f32 %v5671, %v5718
    %v5742 = vadd.f32 %v5672, %v5718
    %v5743 = vadd.f32 %v5673, %v5718
    %v5744 = vadd.f32 %v5674, %v5718
    %v5745 = vadd.f32 %v5675, %v5718
    %v5746 = vadd.f32 %v5676, %v5718
    %v5747 = vadd.f32 %v5677, %v5718
    %v5748 = vadd.f32 %v5678, %v5718
    %v5749 = vadd.f32 %v5679, %v5718
    %v5750 = vadd.f32 %v5680, %v5718
    %v5751 = vadd.f32 %v5681, %v5718
    %v5752 = vadd.f32 %v5682, %v5718
    %v5753 = vadd.f32 %v5683, %v5718
    %v5754 = vadd.f32 %v5684, %v5718
    %v5755 = vadd.f32 %v5685, %v5718
    %v5756 = vadd.f32 %v5686, %v5718
    %v5757 = vadd.f32 %v5687, %v5718
    %v5758 = vadd.f32 %v5688, %v5718
    %v5759 = vadd.f32 %v5689, %v5718
    %v5760 = vadd.f32 %v5690, %v5718
    %v5761 = vadd.f32 %v5691, %v5718
    %v5762 = vadd.f32 %v5692, %v5718
    %v5763 = vadd.f32 %v5693, %v5718
    %v5764 = vadd.f32 %v5694, %v5718
    %v5765 = vadd.f32 %v5695, %v5718
    %v5766 = vadd.f32 %v5696, %v5718
    %v5767 = vadd.f32 %v5697, %v5718
    %v5768 = vadd.f32 %v5698, %v5718
    %v5769 = vadd.f32 %v5699, %v5718
    %v5770 = vadd.f32 %v5700, %v5718
    %v5771 = vadd.f32 %v5701, %v5718
    %v5772 = vadd.f32 %v5702, %v5718
    %v5773 = vadd.f32 %v5703, %v5718
    %v5774 = vadd.f32 %v5704, %v5718
    %v5775 = vadd.f32 %v5705, %v5718
    %v5776 = vadd.f32 %v5706, %v5718
    %v5777 = vadd.f32 %v5707, %v5718
    %v5778 = vadd.f32 %v5708, %v5718
    %v5779 = vadd.f32 %v5709, %v5718
    %v5780 = vadd.f32 %v5710, %v5718
    %v5781 = vadd.f32 %v5711, %v5718
    %v5782 = vadd.f32 %v5712, %v5718
    %v5783 = vadd.f32 %v5713, %v5718
    %5784 = vst.msk [vmem:[%s3077 + $0x2] sm:$0xff] %vm1754, %v5720
    %5785 = vst.msk [vmem:[%s3077 + $0xa] sm:$0xff] %vm1754, %v5721
    %5786 = vst.msk [vmem:[%s3077 + $0x1a] sm:$0xff] %vm1754, %v5722
    %5787 = vst.msk [vmem:[%s3077 + $0x22] sm:$0xff] %vm1754, %v5723
    %5788 = vst.msk [vmem:[%s3077 + $0x32] sm:$0xff] %vm1754, %v5724
    %5789 = vst.msk [vmem:[%s3077 + $0x3a] sm:$0xff] %vm1754, %v5725
    %5790 = vst.msk [vmem:[%s3077 + $0x4a] sm:$0xff] %vm1754, %v5726
    %5791 = vst.msk [vmem:[%s3077 + $0x52] sm:$0xff] %vm1754, %v5727
    %5792 = vst.msk [vmem:[%s3077 + $0x62] sm:$0xff] %vm1754, %v5728
    %5793 = vst.msk [vmem:[%s3077 + $0x6a] sm:$0xff] %vm1754, %v5729
    %5794 = vst.msk [vmem:[%s3077 + $0x7a] sm:$0xff] %vm1754, %v5730
    %5795 = vst.msk [vmem:[%s3077 + $0x82] sm:$0xff] %vm1754, %v5731
    %5796 = vst.msk [vmem:[%s3077 + $0x92] sm:$0xff] %vm1754, %v5732
    %5797 = vst.msk [vmem:[%s3077 + $0x9a] sm:$0xff] %vm1754, %v5733
    %5798 = vst.msk [vmem:[%s3077 + $0xaa] sm:$0xff] %vm1754, %v5734
    %5799 = vst.msk [vmem:[%s3077 + $0xb2] sm:$0xff] %vm1754, %v5735
    %5800 = vst.msk [vmem:[%s3077 + $0xc2] sm:$0xff] %vm1754, %v5736
    %5801 = vst.msk [vmem:[%s3077 + $0xca] sm:$0xff] %vm1754, %v5737
    %5802 = vst.msk [vmem:[%s3077 + $0xda] sm:$0xff] %vm1754, %v5738
    %5803 = vst.msk [vmem:[%s3077 + $0xe2] sm:$0xff] %vm1754, %v5739
    %5804 = vst.msk [vmem:[%s3077 + $0xf2] sm:$0xff] %vm1754, %v5740
    %5805 = vst.msk [vmem:[%s3077 + $0xfa] sm:$0xff] %vm1754, %v5741
    %5806 = vst.msk [vmem:[%s3077 + $0x10a] sm:$0xff] %vm1754, %v5742
    %5807 = vst.msk [vmem:[%s3077 + $0x112] sm:$0xff] %vm1754, %v5743
    %5808 = vst.msk [vmem:[%s3077 + $0x122] sm:$0xff] %vm1754, %v5744
    %5809 = vst.msk [vmem:[%s3077 + $0x12a] sm:$0xff] %vm1754, %v5745
    %5810 = vst.msk [vmem:[%s3077 + $0x13a] sm:$0xff] %vm1754, %v5746
    %5811 = vst.msk [vmem:[%s3077 + $0x142] sm:$0xff] %vm1754, %v5747
    %5812 = vst.msk [vmem:[%s3077 + $0x152] sm:$0xff] %vm1754, %v5748
    %5813 = vst.msk [vmem:[%s3077 + $0x15a] sm:$0xff] %vm1754, %v5749
    %5814 = vst.msk [vmem:[%s3077 + $0x16a] sm:$0xff] %vm1754, %v5750
    %5815 = vst.msk [vmem:[%s3077 + $0x172] sm:$0xff] %vm1754, %v5751
    %5816 = vst.msk [vmem:[%s3077 + $0x1e2] sm:$0xff] %vm1754, %v5752
    %5817 = vst.msk [vmem:[%s3077 + $0x1ea] sm:$0xff] %vm1754, %v5753
    %5818 = vst.msk [vmem:[%s3077 + $0x1fa] sm:$0xff] %vm1754, %v5754
    %5819 = vst.msk [vmem:[%s3077 + $0x202] sm:$0xff] %vm1754, %v5755
    %5820 = vst.msk [vmem:[%s3077 + $0x212] sm:$0xff] %vm1754, %v5756
    %5821 = vst.msk [vmem:[%s3077 + $0x21a] sm:$0xff] %vm1754, %v5757
    %5822 = vst.msk [vmem:[%s3077 + $0x22a] sm:$0xff] %vm1754, %v5758
    %5823 = vst.msk [vmem:[%s3077 + $0x232] sm:$0xff] %vm1754, %v5759
    %5824 = vst.msk [vmem:[%s3077 + $0x242] sm:$0xff] %vm1754, %v5760
    %5825 = vst.msk [vmem:[%s3077 + $0x24a] sm:$0xff] %vm1754, %v5761
    %5826 = vst.msk [vmem:[%s3077 + $0x25a] sm:$0xff] %vm1754, %v5762
    %5827 = vst.msk [vmem:[%s3077 + $0x262] sm:$0xff] %vm1754, %v5763
    %5828 = vst.msk [vmem:[%s3077 + $0x272] sm:$0xff] %vm1754, %v5764
    %5829 = vst.msk [vmem:[%s3077 + $0x27a] sm:$0xff] %vm1754, %v5765
    %5830 = vst.msk [vmem:[%s3077 + $0x28a] sm:$0xff] %vm1754, %v5766
    %5831 = vst.msk [vmem:[%s3077 + $0x292] sm:$0xff] %vm1754, %v5767
    %5832 = vst.msk [vmem:[%s3077 + $0x2a2] sm:$0xff] %vm1754, %v5768
    %5833 = vst.msk [vmem:[%s3077 + $0x2aa] sm:$0xff] %vm1754, %v5769
    %5834 = vst.msk [vmem:[%s3077 + $0x2ba] sm:$0xff] %vm1754, %v5770
    %5835 = vst.msk [vmem:[%s3077 + $0x2c2] sm:$0xff] %vm1754, %v5771
    %5836 = vst.msk [vmem:[%s3077 + $0x2d2] sm:$0xff] %vm1754, %v5772
    %5837 = vst.msk [vmem:[%s3077 + $0x2da] sm:$0xff] %vm1754, %v5773
    %5838 = vst.msk [vmem:[%s3077 + $0x2ea] sm:$0xff] %vm1754, %v5774
    %5839 = vst.msk [vmem:[%s3077 + $0x2f2] sm:$0xff] %vm1754, %v5775
    %5840 = vst.msk [vmem:[%s3077 + $0x302] sm:$0xff] %vm1754, %v5776
    %5841 = vst.msk [vmem:[%s3077 + $0x30a] sm:$0xff] %vm1754, %v5777
    %5842 = vst.msk [vmem:[%s3077 + $0x31a] sm:$0xff] %vm1754, %v5778
    %5843 = vst.msk [vmem:[%s3077 + $0x322] sm:$0xff] %vm1754, %v5779
    %5844 = vst.msk [vmem:[%s3077 + $0x332] sm:$0xff] %vm1754, %v5780
    %5845 = vst.msk [vmem:[%s3077 + $0x33a] sm:$0xff] %vm1754, %v5781
    %5846 = vst.msk [vmem:[%s3077 + $0x34a] sm:$0xff] %vm1754, %v5782
    %5847 = vst.msk [vmem:[%s3077 + $0x352] sm:$0xff] %vm1754, %v5783
    %v5848 = vld [vmem:[%s13] sm:$0xff]
    %v5849 = vld [vmem:[%s13 + $0x8] sm:$0x1]
    %v5850 = vld [vmem:[#allocation2] sm:$0xff]
    %v5851 = vld [vmem:[#allocation2 + $0x8] sm:$0xff]
    %v5852 = vld [vmem:[#allocation2 + $0x18] sm:$0xff]
    %v5853 = vld [vmem:[#allocation2 + $0x20] sm:$0xff]
    %v5854 = vld [vmem:[#allocation2 + $0x30] sm:$0xff]
    %v5855 = vld [vmem:[#allocation2 + $0x38] sm:$0xff]
    %v5856 = vld [vmem:[#allocation2 + $0x48] sm:$0xff]
    %v5857 = vld [vmem:[#allocation2 + $0x50] sm:$0xff]
    %v5858 = vld [vmem:[#allocation2 + $0x60] sm:$0xff]
    %v5859 = vld [vmem:[#allocation2 + $0x68] sm:$0xff]
    %v5860 = vld [vmem:[#allocation2 + $0x78] sm:$0xff]
    %v5861 = vld [vmem:[#allocation2 + $0x80] sm:$0xff]
    %v5862 = vld [vmem:[#allocation2 + $0x90] sm:$0xff]
    %v5863 = vld [vmem:[#allocation2 + $0x98] sm:$0xff]
    %v5864 = vld [vmem:[#allocation2 + $0xa8] sm:$0xff]
    %v5865 = vld [vmem:[#allocation2 + $0xb0] sm:$0xff]
    %v5866 = vld [vmem:[#allocation2 + $0xc0] sm:$0xff]
    %v5867 = vld [vmem:[#allocation2 + $0xc8] sm:$0xff]
    %v5868 = vld [vmem:[#allocation2 + $0xd8] sm:$0xff]
    %v5869 = vld [vmem:[#allocation2 + $0xe0] sm:$0xff]
    %v5870 = vld [vmem:[#allocation2 + $0xf0] sm:$0xff]
    %v5871 = vld [vmem:[#allocation2 + $0xf8] sm:$0xff]
    %v5872 = vld [vmem:[#allocation2 + $0x108] sm:$0xff]
    %v5873 = vld [vmem:[#allocation2 + $0x110] sm:$0xff]
    %v5874 = vld [vmem:[#allocation2 + $0x120] sm:$0xff]
    %v5875 = vld [vmem:[#allocation2 + $0x128] sm:$0xff]
    %v5876 = vld [vmem:[#allocation2 + $0x138] sm:$0xff]
    %v5877 = vld [vmem:[#allocation2 + $0x140] sm:$0xff]
    %v5878 = vld [vmem:[#allocation2 + $0x150] sm:$0xff]
    %v5879 = vld [vmem:[#allocation2 + $0x158] sm:$0xff]
    %v5880 = vld [vmem:[#allocation2 + $0x168] sm:$0xff]
    %v5881 = vld [vmem:[#allocation2 + $0x170] sm:$0xff]
    %v5882 = vld [vmem:[#allocation2 + $0x1e0] sm:$0xff]
    %v5883 = vld [vmem:[#allocation2 + $0x1e8] sm:$0xff]
    %v5884 = vld [vmem:[#allocation2 + $0x1f8] sm:$0xff]
    %v5885 = vld [vmem:[#allocation2 + $0x200] sm:$0xff]
    %v5886 = vld [vmem:[#allocation2 + $0x210] sm:$0xff]
    %v5887 = vld [vmem:[#allocation2 + $0x218] sm:$0xff]
    %v5888 = vld [vmem:[#allocation2 + $0x228] sm:$0xff]
    %v5889 = vld [vmem:[#allocation2 + $0x230] sm:$0xff]
    %v5890 = vld [vmem:[#allocation2 + $0x240] sm:$0xff]
    %v5891 = vld [vmem:[#allocation2 + $0x248] sm:$0xff]
    %v5892 = vld [vmem:[#allocation2 + $0x258] sm:$0xff]
    %v5893 = vld [vmem:[#allocation2 + $0x260] sm:$0xff]
    %v5894 = vld [vmem:[#allocation2 + $0x270] sm:$0xff]
    %v5895 = vld [vmem:[#allocation2 + $0x278] sm:$0xff]
    %v5896 = vld [vmem:[#allocation2 + $0x288] sm:$0xff]
    %v5897 = vld [vmem:[#allocation2 + $0x290] sm:$0xff]
    %v5898 = vld [vmem:[#allocation2 + $0x2a0] sm:$0xff]
    %v5899 = vld [vmem:[#allocation2 + $0x2a8] sm:$0xff]
    %v5900 = vld [vmem:[#allocation2 + $0x2b8] sm:$0xff]
    %v5901 = vld [vmem:[#allocation2 + $0x2c0] sm:$0xff]
    %v5902 = vld [vmem:[#allocation2 + $0x2d0] sm:$0xff]
    %v5903 = vld [vmem:[#allocation2 + $0x2d8] sm:$0xff]
    %v5904 = vld [vmem:[#allocation2 + $0x2e8] sm:$0xff]
    %v5905 = vld [vmem:[#allocation2 + $0x2f0] sm:$0xff]
    %v5906 = vld [vmem:[#allocation2 + $0x300] sm:$0xff]
    %v5907 = vld [vmem:[#allocation2 + $0x308] sm:$0xff]
    %v5908 = vld [vmem:[#allocation2 + $0x318] sm:$0xff]
    %v5909 = vld [vmem:[#allocation2 + $0x320] sm:$0xff]
    %v5910 = vld [vmem:[#allocation2 + $0x330] sm:$0xff]
    %v5911 = vld [vmem:[#allocation2 + $0x338] sm:$0xff]
    %v5912 = vld [vmem:[#allocation2 + $0x348] sm:$0xff]
    %v5913 = vld [vmem:[#allocation2 + $0x350] sm:$0xff]
    %v5914 = vlaneseq
    %v5915 = vshrl.u32 %v5914, 7
    %v5916 = vsub.s32 0, %v5915
    %v5917 = vrot.slane %v5848, %v5916
    %v5918 = vmul.f32 %v5850, %v5917
    %v5919 = vmul.f32 %v5851, %v5917
    %v5920 = vmul.f32 %v5852, %v5917
    %v5921 = vmul.f32 %v5853, %v5917
    %v5922 = vmul.f32 %v5854, %v5917
    %v5923 = vmul.f32 %v5855, %v5917
    %v5924 = vmul.f32 %v5856, %v5917
    %v5925 = vmul.f32 %v5857, %v5917
    %v5926 = vmul.f32 %v5858, %v5917
    %v5927 = vmul.f32 %v5859, %v5917
    %v5928 = vmul.f32 %v5860, %v5917
    %v5929 = vmul.f32 %v5861, %v5917
    %v5930 = vmul.f32 %v5862, %v5917
    %v5931 = vmul.f32 %v5863, %v5917
    %v5932 = vmul.f32 %v5864, %v5917
    %v5933 = vmul.f32 %v5865, %v5917
    %v5934 = vmul.f32 %v5866, %v5917
    %v5935 = vmul.f32 %v5867, %v5917
    %v5936 = vmul.f32 %v5868, %v5917
    %v5937 = vmul.f32 %v5869, %v5917
    %v5938 = vmul.f32 %v5870, %v5917
    %v5939 = vmul.f32 %v5871, %v5917
    %v5940 = vmul.f32 %v5872, %v5917
    %v5941 = vmul.f32 %v5873, %v5917
    %v5942 = vmul.f32 %v5874, %v5917
    %v5943 = vmul.f32 %v5875, %v5917
    %v5944 = vmul.f32 %v5876, %v5917
    %v5945 = vmul.f32 %v5877, %v5917
    %v5946 = vmul.f32 %v5878, %v5917
    %v5947 = vmul.f32 %v5879, %v5917
    %v5948 = vmul.f32 %v5880, %v5917
    %v5949 = vmul.f32 %v5881, %v5917
    %v5950 = vmul.f32 %v5882, %v5917
    %v5951 = vmul.f32 %v5883, %v5917
    %v5952 = vmul.f32 %v5884, %v5917
    %v5953 = vmul.f32 %v5885, %v5917
    %v5954 = vmul.f32 %v5886, %v5917
    %v5955 = vmul.f32 %v5887, %v5917
    %v5956 = vmul.f32 %v5888, %v5917
    %v5957 = vmul.f32 %v5889, %v5917
    %v5958 = vmul.f32 %v5890, %v5917
    %v5959 = vmul.f32 %v5891, %v5917
    %v5960 = vmul.f32 %v5892, %v5917
    %v5961 = vmul.f32 %v5893, %v5917
    %v5962 = vmul.f32 %v5894, %v5917
    %v5963 = vmul.f32 %v5895, %v5917
    %v5964 = vmul.f32 %v5896, %v5917
    %v5965 = vmul.f32 %v5897, %v5917
    %v5966 = vmul.f32 %v5898, %v5917
    %v5967 = vmul.f32 %v5899, %v5917
    %v5968 = vmul.f32 %v5900, %v5917
    %v5969 = vmul.f32 %v5901, %v5917
    %v5970 = vmul.f32 %v5902, %v5917
    %v5971 = vmul.f32 %v5903, %v5917
    %v5972 = vmul.f32 %v5904, %v5917
    %v5973 = vmul.f32 %v5905, %v5917
    %v5974 = vmul.f32 %v5906, %v5917
    %v5975 = vmul.f32 %v5907, %v5917
    %v5976 = vmul.f32 %v5908, %v5917
    %v5977 = vmul.f32 %v5909, %v5917
    %v5978 = vmul.f32 %v5910, %v5917
    %v5979 = vmul.f32 %v5911, %v5917
    %v5980 = vmul.f32 %v5912, %v5917
    %v5981 = vmul.f32 %v5913, %v5917
    %v5982 = vadd.f32 %v5918, 0.0
    %v5983 = vadd.f32 %v5919, 0.0
    %v5984 = vadd.f32 %v5920, 0.0
    %v5985 = vadd.f32 %v5921, 0.0
    %v5986 = vadd.f32 %v5922, 0.0
    %v5987 = vadd.f32 %v5923, 0.0
    %v5988 = vadd.f32 %v5924, 0.0
    %v5989 = vadd.f32 %v5925, 0.0
    %v5990 = vadd.f32 %v5926, 0.0
    %v5991 = vadd.f32 %v5927, 0.0
    %v5992 = vadd.f32 %v5928, 0.0
    %v5993 = vadd.f32 %v5929, 0.0
    %v5994 = vadd.f32 %v5930, 0.0
    %v5995 = vadd.f32 %v5931, 0.0
    %v5996 = vadd.f32 %v5932, 0.0
    %v5997 = vadd.f32 %v5933, 0.0
    %v5998 = vadd.f32 %v5934, 0.0
    %v5999 = vadd.f32 %v5935, 0.0
    %v6000 = vadd.f32 %v5936, 0.0
    %v6001 = vadd.f32 %v5937, 0.0
    %v6002 = vadd.f32 %v5938, 0.0
    %v6003 = vadd.f32 %v5939, 0.0
    %v6004 = vadd.f32 %v5940, 0.0
    %v6005 = vadd.f32 %v5941, 0.0
    %v6006 = vadd.f32 %v5942, 0.0
    %v6007 = vadd.f32 %v5943, 0.0
    %v6008 = vadd.f32 %v5944, 0.0
    %v6009 = vadd.f32 %v5945, 0.0
    %v6010 = vadd.f32 %v5946, 0.0
    %v6011 = vadd.f32 %v5947, 0.0
    %v6012 = vadd.f32 %v5948, 0.0
    %v6013 = vadd.f32 %v5949, 0.0
    %v6014 = vadd.f32 %v5950, 0.0
    %v6015 = vadd.f32 %v5951, 0.0
    %v6016 = vadd.f32 %v5952, 0.0
    %v6017 = vadd.f32 %v5953, 0.0
    %v6018 = vadd.f32 %v5954, 0.0
    %v6019 = vadd.f32 %v5955, 0.0
    %v6020 = vadd.f32 %v5956, 0.0
    %v6021 = vadd.f32 %v5957, 0.0
    %v6022 = vadd.f32 %v5958, 0.0
    %v6023 = vadd.f32 %v5959, 0.0
    %v6024 = vadd.f32 %v5960, 0.0
    %v6025 = vadd.f32 %v5961, 0.0
    %v6026 = vadd.f32 %v5962, 0.0
    %v6027 = vadd.f32 %v5963, 0.0
    %v6028 = vadd.f32 %v5964, 0.0
    %v6029 = vadd.f32 %v5965, 0.0
    %v6030 = vadd.f32 %v5966, 0.0
    %v6031 = vadd.f32 %v5967, 0.0
    %v6032 = vadd.f32 %v5968, 0.0
    %v6033 = vadd.f32 %v5969, 0.0
    %v6034 = vadd.f32 %v5970, 0.0
    %v6035 = vadd.f32 %v5971, 0.0
    %v6036 = vadd.f32 %v5972, 0.0
    %v6037 = vadd.f32 %v5973, 0.0
    %v6038 = vadd.f32 %v5974, 0.0
    %v6039 = vadd.f32 %v5975, 0.0
    %v6040 = vadd.f32 %v5976, 0.0
    %v6041 = vadd.f32 %v5977, 0.0
    %v6042 = vadd.f32 %v5978, 0.0
    %v6043 = vadd.f32 %v5979, 0.0
    %v6044 = vadd.f32 %v5980, 0.0
    %v6045 = vadd.f32 %v5981, 0.0
    %v6046 = vld [vmem:[#allocation2 + $0x2] sm:$0xff]
    %v6047 = vld [vmem:[#allocation2 + $0xa] sm:$0xff]
    %v6048 = vld [vmem:[#allocation2 + $0x1a] sm:$0xff]
    %v6049 = vld [vmem:[#allocation2 + $0x22] sm:$0xff]
    %v6050 = vld [vmem:[#allocation2 + $0x32] sm:$0xff]
    %v6051 = vld [vmem:[#allocation2 + $0x3a] sm:$0xff]
    %v6052 = vld [vmem:[#allocation2 + $0x4a] sm:$0xff]
    %v6053 = vld [vmem:[#allocation2 + $0x52] sm:$0xff]
    %v6054 = vld [vmem:[#allocation2 + $0x62] sm:$0xff]
    %v6055 = vld [vmem:[#allocation2 + $0x6a] sm:$0xff]
    %v6056 = vld [vmem:[#allocation2 + $0x7a] sm:$0xff]
    %v6057 = vld [vmem:[#allocation2 + $0x82] sm:$0xff]
    %v6058 = vld [vmem:[#allocation2 + $0x92] sm:$0xff]
    %v6059 = vld [vmem:[#allocation2 + $0x9a] sm:$0xff]
    %v6060 = vld [vmem:[#allocation2 + $0xaa] sm:$0xff]
    %v6061 = vld [vmem:[#allocation2 + $0xb2] sm:$0xff]
    %v6062 = vld [vmem:[#allocation2 + $0xc2] sm:$0xff]
    %v6063 = vld [vmem:[#allocation2 + $0xca] sm:$0xff]
    %v6064 = vld [vmem:[#allocation2 + $0xda] sm:$0xff]
    %v6065 = vld [vmem:[#allocation2 + $0xe2] sm:$0xff]
    %v6066 = vld [vmem:[#allocation2 + $0xf2] sm:$0xff]
    %v6067 = vld [vmem:[#allocation2 + $0xfa] sm:$0xff]
    %v6068 = vld [vmem:[#allocation2 + $0x10a] sm:$0xff]
    %v6069 = vld [vmem:[#allocation2 + $0x112] sm:$0xff]
    %v6070 = vld [vmem:[#allocation2 + $0x122] sm:$0xff]
    %v6071 = vld [vmem:[#allocation2 + $0x12a] sm:$0xff]
    %v6072 = vld [vmem:[#allocation2 + $0x13a] sm:$0xff]
    %v6073 = vld [vmem:[#allocation2 + $0x142] sm:$0xff]
    %v6074 = vld [vmem:[#allocation2 + $0x152] sm:$0xff]
    %v6075 = vld [vmem:[#allocation2 + $0x15a] sm:$0xff]
    %v6076 = vld [vmem:[#allocation2 + $0x16a] sm:$0xff]
    %v6077 = vld [vmem:[#allocation2 + $0x172] sm:$0xff]
    %v6078 = vld [vmem:[#allocation2 + $0x1e2] sm:$0xff]
    %v6079 = vld [vmem:[#allocation2 + $0x1ea] sm:$0xff]
    %v6080 = vld [vmem:[#allocation2 + $0x1fa] sm:$0xff]
    %v6081 = vld [vmem:[#allocation2 + $0x202] sm:$0xff]
    %v6082 = vld [vmem:[#allocation2 + $0x212] sm:$0xff]
    %v6083 = vld [vmem:[#allocation2 + $0x21a] sm:$0xff]
    %v6084 = vld [vmem:[#allocation2 + $0x22a] sm:$0xff]
    %v6085 = vld [vmem:[#allocation2 + $0x232] sm:$0xff]
    %v6086 = vld [vmem:[#allocation2 + $0x242] sm:$0xff]
    %v6087 = vld [vmem:[#allocation2 + $0x24a] sm:$0xff]
    %v6088 = vld [vmem:[#allocation2 + $0x25a] sm:$0xff]
    %v6089 = vld [vmem:[#allocation2 + $0x262] sm:$0xff]
    %v6090 = vld [vmem:[#allocation2 + $0x272] sm:$0xff]
    %v6091 = vld [vmem:[#allocation2 + $0x27a] sm:$0xff]
    %v6092 = vld [vmem:[#allocation2 + $0x28a] sm:$0xff]
    %v6093 = vld [vmem:[#allocation2 + $0x292] sm:$0xff]
    %v6094 = vld [vmem:[#allocation2 + $0x2a2] sm:$0xff]
    %v6095 = vld [vmem:[#allocation2 + $0x2aa] sm:$0xff]
    %v6096 = vld [vmem:[#allocation2 + $0x2ba] sm:$0xff]
    %v6097 = vld [vmem:[#allocation2 + $0x2c2] sm:$0xff]
    %v6098 = vld [vmem:[#allocation2 + $0x2d2] sm:$0xff]
    %v6099 = vld [vmem:[#allocation2 + $0x2da] sm:$0xff]
    %v6100 = vld [vmem:[#allocation2 + $0x2ea] sm:$0xff]
    %v6101 = vld [vmem:[#allocation2 + $0x2f2] sm:$0xff]
    %v6102 = vld [vmem:[#allocation2 + $0x302] sm:$0xff]
    %v6103 = vld [vmem:[#allocation2 + $0x30a] sm:$0xff]
    %v6104 = vld [vmem:[#allocation2 + $0x31a] sm:$0xff]
    %v6105 = vld [vmem:[#allocation2 + $0x322] sm:$0xff]
    %v6106 = vld [vmem:[#allocation2 + $0x332] sm:$0xff]
    %v6107 = vld [vmem:[#allocation2 + $0x33a] sm:$0xff]
    %v6108 = vld [vmem:[#allocation2 + $0x34a] sm:$0xff]
    %v6109 = vld [vmem:[#allocation2 + $0x352] sm:$0xff]
    %v6110 = vlaneseq
    %v6111 = vshrl.u32 %v6110, 7
    %v6112 = vsub.s32 1, %v6111
    %v6113 = vrot.slane %v5848, %v6112
    %v6114 = vmul.f32 %v6046, %v6113
    %v6115 = vmul.f32 %v6047, %v6113
    %v6116 = vmul.f32 %v6048, %v6113
    %v6117 = vmul.f32 %v6049, %v6113
    %v6118 = vmul.f32 %v6050, %v6113
    %v6119 = vmul.f32 %v6051, %v6113
    %v6120 = vmul.f32 %v6052, %v6113
    %v6121 = vmul.f32 %v6053, %v6113
    %v6122 = vmul.f32 %v6054, %v6113
    %v6123 = vmul.f32 %v6055, %v6113
    %v6124 = vmul.f32 %v6056, %v6113
    %v6125 = vmul.f32 %v6057, %v6113
    %v6126 = vmul.f32 %v6058, %v6113
    %v6127 = vmul.f32 %v6059, %v6113
    %v6128 = vmul.f32 %v6060, %v6113
    %v6129 = vmul.f32 %v6061, %v6113
    %v6130 = vmul.f32 %v6062, %v6113
    %v6131 = vmul.f32 %v6063, %v6113
    %v6132 = vmul.f32 %v6064, %v6113
    %v6133 = vmul.f32 %v6065, %v6113
    %v6134 = vmul.f32 %v6066, %v6113
    %v6135 = vmul.f32 %v6067, %v6113
    %v6136 = vmul.f32 %v6068, %v6113
    %v6137 = vmul.f32 %v6069, %v6113
    %v6138 = vmul.f32 %v6070, %v6113
    %v6139 = vmul.f32 %v6071, %v6113
    %v6140 = vmul.f32 %v6072, %v6113
    %v6141 = vmul.f32 %v6073, %v6113
    %v6142 = vmul.f32 %v6074, %v6113
    %v6143 = vmul.f32 %v6075, %v6113
    %v6144 = vmul.f32 %v6076, %v6113
    %v6145 = vmul.f32 %v6077, %v6113
    %v6146 = vmul.f32 %v6078, %v6113
    %v6147 = vmul.f32 %v6079, %v6113
    %v6148 = vmul.f32 %v6080, %v6113
    %v6149 = vmul.f32 %v6081, %v6113
    %v6150 = vmul.f32 %v6082, %v6113
    %v6151 = vmul.f32 %v6083, %v6113
    %v6152 = vmul.f32 %v6084, %v6113
    %v6153 = vmul.f32 %v6085, %v6113
    %v6154 = vmul.f32 %v6086, %v6113
    %v6155 = vmul.f32 %v6087, %v6113
    %v6156 = vmul.f32 %v6088, %v6113
    %v6157 = vmul.f32 %v6089, %v6113
    %v6158 = vmul.f32 %v6090, %v6113
    %v6159 = vmul.f32 %v6091, %v6113
    %v6160 = vmul.f32 %v6092, %v6113
    %v6161 = vmul.f32 %v6093, %v6113
    %v6162 = vmul.f32 %v6094, %v6113
    %v6163 = vmul.f32 %v6095, %v6113
    %v6164 = vmul.f32 %v6096, %v6113
    %v6165 = vmul.f32 %v6097, %v6113
    %v6166 = vmul.f32 %v6098, %v6113
    %v6167 = vmul.f32 %v6099, %v6113
    %v6168 = vmul.f32 %v6100, %v6113
    %v6169 = vmul.f32 %v6101, %v6113
    %v6170 = vmul.f32 %v6102, %v6113
    %v6171 = vmul.f32 %v6103, %v6113
    %v6172 = vmul.f32 %v6104, %v6113
    %v6173 = vmul.f32 %v6105, %v6113
    %v6174 = vmul.f32 %v6106, %v6113
    %v6175 = vmul.f32 %v6107, %v6113
    %v6176 = vmul.f32 %v6108, %v6113
    %v6177 = vmul.f32 %v6109, %v6113
    %v6178 = vadd.f32 %v5982, %v6114
    %v6179 = vadd.f32 %v5983, %v6115
    %v6180 = vadd.f32 %v5984, %v6116
    %v6181 = vadd.f32 %v5985, %v6117
    %v6182 = vadd.f32 %v5986, %v6118
    %v6183 = vadd.f32 %v5987, %v6119
    %v6184 = vadd.f32 %v5988, %v6120
    %v6185 = vadd.f32 %v5989, %v6121
    %v6186 = vadd.f32 %v5990, %v6122
    %v6187 = vadd.f32 %v5991, %v6123
    %v6188 = vadd.f32 %v5992, %v6124
    %v6189 = vadd.f32 %v5993, %v6125
    %v6190 = vadd.f32 %v5994, %v6126
    %v6191 = vadd.f32 %v5995, %v6127
    %v6192 = vadd.f32 %v5996, %v6128
    %v6193 = vadd.f32 %v5997, %v6129
    %v6194 = vadd.f32 %v5998, %v6130
    %v6195 = vadd.f32 %v5999, %v6131
    %v6196 = vadd.f32 %v6000, %v6132
    %v6197 = vadd.f32 %v6001, %v6133
    %v6198 = vadd.f32 %v6002, %v6134
    %v6199 = vadd.f32 %v6003, %v6135
    %v6200 = vadd.f32 %v6004, %v6136
    %v6201 = vadd.f32 %v6005, %v6137
    %v6202 = vadd.f32 %v6006, %v6138
    %v6203 = vadd.f32 %v6007, %v6139
    %v6204 = vadd.f32 %v6008, %v6140
    %v6205 = vadd.f32 %v6009, %v6141
    %v6206 = vadd.f32 %v6010, %v6142
    %v6207 = vadd.f32 %v6011, %v6143
    %v6208 = vadd.f32 %v6012, %v6144
    %v6209 = vadd.f32 %v6013, %v6145
    %v6210 = vadd.f32 %v6014, %v6146
    %v6211 = vadd.f32 %v6015, %v6147
    %v6212 = vadd.f32 %v6016, %v6148
    %v6213 = vadd.f32 %v6017, %v6149
    %v6214 = vadd.f32 %v6018, %v6150
    %v6215 = vadd.f32 %v6019, %v6151
    %v6216 = vadd.f32 %v6020, %v6152
    %v6217 = vadd.f32 %v6021, %v6153
    %v6218 = vadd.f32 %v6022, %v6154
    %v6219 = vadd.f32 %v6023, %v6155
    %v6220 = vadd.f32 %v6024, %v6156
    %v6221 = vadd.f32 %v6025, %v6157
    %v6222 = vadd.f32 %v6026, %v6158
    %v6223 = vadd.f32 %v6027, %v6159
    %v6224 = vadd.f32 %v6028, %v6160
    %v6225 = vadd.f32 %v6029, %v6161
    %v6226 = vadd.f32 %v6030, %v6162
    %v6227 = vadd.f32 %v6031, %v6163
    %v6228 = vadd.f32 %v6032, %v6164
    %v6229 = vadd.f32 %v6033, %v6165
    %v6230 = vadd.f32 %v6034, %v6166
    %v6231 = vadd.f32 %v6035, %v6167
    %v6232 = vadd.f32 %v6036, %v6168
    %v6233 = vadd.f32 %v6037, %v6169
    %v6234 = vadd.f32 %v6038, %v6170
    %v6235 = vadd.f32 %v6039, %v6171
    %v6236 = vadd.f32 %v6040, %v6172
    %v6237 = vadd.f32 %v6041, %v6173
    %v6238 = vadd.f32 %v6042, %v6174
    %v6239 = vadd.f32 %v6043, %v6175
    %v6240 = vadd.f32 %v6044, %v6176
    %v6241 = vadd.f32 %v6045, %v6177
    %v6242 = vld [vmem:[#allocation2 + $0x4] sm:$0xff]
    %v6243 = vld [vmem:[#allocation2 + $0xc] sm:$0xff]
    %v6244 = vld [vmem:[#allocation2 + $0x1c] sm:$0xff]
    %v6245 = vld [vmem:[#allocation2 + $0x24] sm:$0xff]
    %v6246 = vld [vmem:[#allocation2 + $0x34] sm:$0xff]
    %v6247 = vld [vmem:[#allocation2 + $0x3c] sm:$0xff]
    %v6248 = vld [vmem:[#allocation2 + $0x4c] sm:$0xff]
    %v6249 = vld [vmem:[#allocation2 + $0x54] sm:$0xff]
    %v6250 = vld [vmem:[#allocation2 + $0x64] sm:$0xff]
    %v6251 = vld [vmem:[#allocation2 + $0x6c] sm:$0xff]
    %v6252 = vld [vmem:[#allocation2 + $0x7c] sm:$0xff]
    %v6253 = vld [vmem:[#allocation2 + $0x84] sm:$0xff]
    %v6254 = vld [vmem:[#allocation2 + $0x94] sm:$0xff]
    %v6255 = vld [vmem:[#allocation2 + $0x9c] sm:$0xff]
    %v6256 = vld [vmem:[#allocation2 + $0xac] sm:$0xff]
    %v6257 = vld [vmem:[#allocation2 + $0xb4] sm:$0xff]
    %v6258 = vld [vmem:[#allocation2 + $0xc4] sm:$0xff]
    %v6259 = vld [vmem:[#allocation2 + $0xcc] sm:$0xff]
    %v6260 = vld [vmem:[#allocation2 + $0xdc] sm:$0xff]
    %v6261 = vld [vmem:[#allocation2 + $0xe4] sm:$0xff]
    %v6262 = vld [vmem:[#allocation2 + $0xf4] sm:$0xff]
    %v6263 = vld [vmem:[#allocation2 + $0xfc] sm:$0xff]
    %v6264 = vld [vmem:[#allocation2 + $0x10c] sm:$0xff]
    %v6265 = vld [vmem:[#allocation2 + $0x114] sm:$0xff]
    %v6266 = vld [vmem:[#allocation2 + $0x124] sm:$0xff]
    %v6267 = vld [vmem:[#allocation2 + $0x12c] sm:$0xff]
    %v6268 = vld [vmem:[#allocation2 + $0x13c] sm:$0xff]
    %v6269 = vld [vmem:[#allocation2 + $0x144] sm:$0xff]
    %v6270 = vld [vmem:[#allocation2 + $0x154] sm:$0xff]
    %v6271 = vld [vmem:[#allocation2 + $0x15c] sm:$0xff]
    %v6272 = vld [vmem:[#allocation2 + $0x16c] sm:$0xff]
    %v6273 = vld [vmem:[#allocation2 + $0x174] sm:$0xff]
    %v6274 = vld [vmem:[#allocation2 + $0x1e4] sm:$0xff]
    %v6275 = vld [vmem:[#allocation2 + $0x1ec] sm:$0xff]
    %v6276 = vld [vmem:[#allocation2 + $0x1fc] sm:$0xff]
    %v6277 = vld [vmem:[#allocation2 + $0x204] sm:$0xff]
    %v6278 = vld [vmem:[#allocation2 + $0x214] sm:$0xff]
    %v6279 = vld [vmem:[#allocation2 + $0x21c] sm:$0xff]
    %v6280 = vld [vmem:[#allocation2 + $0x22c] sm:$0xff]
    %v6281 = vld [vmem:[#allocation2 + $0x234] sm:$0xff]
    %v6282 = vld [vmem:[#allocation2 + $0x244] sm:$0xff]
    %v6283 = vld [vmem:[#allocation2 + $0x24c] sm:$0xff]
    %v6284 = vld [vmem:[#allocation2 + $0x25c] sm:$0xff]
    %v6285 = vld [vmem:[#allocation2 + $0x264] sm:$0xff]
    %v6286 = vld [vmem:[#allocation2 + $0x274] sm:$0xff]
    %v6287 = vld [vmem:[#allocation2 + $0x27c] sm:$0xff]
    %v6288 = vld [vmem:[#allocation2 + $0x28c] sm:$0xff]
    %v6289 = vld [vmem:[#allocation2 + $0x294] sm:$0xff]
    %v6290 = vld [vmem:[#allocation2 + $0x2a4] sm:$0xff]
    %v6291 = vld [vmem:[#allocation2 + $0x2ac] sm:$0xff]
    %v6292 = vld [vmem:[#allocation2 + $0x2bc] sm:$0xff]
    %v6293 = vld [vmem:[#allocation2 + $0x2c4] sm:$0xff]
    %v6294 = vld [vmem:[#allocation2 + $0x2d4] sm:$0xff]
    %v6295 = vld [vmem:[#allocation2 + $0x2dc] sm:$0xff]
    %v6296 = vld [vmem:[#allocation2 + $0x2ec] sm:$0xff]
    %v6297 = vld [vmem:[#allocation2 + $0x2f4] sm:$0xff]
    %v6298 = vld [vmem:[#allocation2 + $0x304] sm:$0xff]
    %v6299 = vld [vmem:[#allocation2 + $0x30c] sm:$0xff]
    %v6300 = vld [vmem:[#allocation2 + $0x31c] sm:$0xff]
    %v6301 = vld [vmem:[#allocation2 + $0x324] sm:$0xff]
    %v6302 = vld [vmem:[#allocation2 + $0x334] sm:$0xff]
    %v6303 = vld [vmem:[#allocation2 + $0x33c] sm:$0xff]
    %v6304 = vld [vmem:[#allocation2 + $0x34c] sm:$0xff]
    %v6305 = vld [vmem:[#allocation2 + $0x354] sm:$0xff]
    %v6306 = vlaneseq
    %v6307 = vshrl.u32 %v6306, 7
    %v6308 = vsub.s32 2, %v6307
    %v6309 = vrot.slane %v5848, %v6308
    %v6310 = vmul.f32 %v6242, %v6309
    %v6311 = vmul.f32 %v6243, %v6309
    %v6312 = vmul.f32 %v6244, %v6309
    %v6313 = vmul.f32 %v6245, %v6309
    %v6314 = vmul.f32 %v6246, %v6309
    %v6315 = vmul.f32 %v6247, %v6309
    %v6316 = vmul.f32 %v6248, %v6309
    %v6317 = vmul.f32 %v6249, %v6309
    %v6318 = vmul.f32 %v6250, %v6309
    %v6319 = vmul.f32 %v6251, %v6309
    %v6320 = vmul.f32 %v6252, %v6309
    %v6321 = vmul.f32 %v6253, %v6309
    %v6322 = vmul.f32 %v6254, %v6309
    %v6323 = vmul.f32 %v6255, %v6309
    %v6324 = vmul.f32 %v6256, %v6309
    %v6325 = vmul.f32 %v6257, %v6309
    %v6326 = vmul.f32 %v6258, %v6309
    %v6327 = vmul.f32 %v6259, %v6309
    %v6328 = vmul.f32 %v6260, %v6309
    %v6329 = vmul.f32 %v6261, %v6309
    %v6330 = vmul.f32 %v6262, %v6309
    %v6331 = vmul.f32 %v6263, %v6309
    %v6332 = vmul.f32 %v6264, %v6309
    %v6333 = vmul.f32 %v6265, %v6309
    %v6334 = vmul.f32 %v6266, %v6309
    %v6335 = vmul.f32 %v6267, %v6309
    %v6336 = vmul.f32 %v6268, %v6309
    %v6337 = vmul.f32 %v6269, %v6309
    %v6338 = vmul.f32 %v6270, %v6309
    %v6339 = vmul.f32 %v6271, %v6309
    %v6340 = vmul.f32 %v6272, %v6309
    %v6341 = vmul.f32 %v6273, %v6309
    %v6342 = vmul.f32 %v6274, %v6309
    %v6343 = vmul.f32 %v6275, %v6309
    %v6344 = vmul.f32 %v6276, %v6309
    %v6345 = vmul.f32 %v6277, %v6309
    %v6346 = vmul.f32 %v6278, %v6309
    %v6347 = vmul.f32 %v6279, %v6309
    %v6348 = vmul.f32 %v6280, %v6309
    %v6349 = vmul.f32 %v6281, %v6309
    %v6350 = vmul.f32 %v6282, %v6309
    %v6351 = vmul.f32 %v6283, %v6309
    %v6352 = vmul.f32 %v6284, %v6309
    %v6353 = vmul.f32 %v6285, %v6309
    %v6354 = vmul.f32 %v6286, %v6309
    %v6355 = vmul.f32 %v6287, %v6309
    %v6356 = vmul.f32 %v6288, %v6309
    %v6357 = vmul.f32 %v6289, %v6309
    %v6358 = vmul.f32 %v6290, %v6309
    %v6359 = vmul.f32 %v6291, %v6309
    %v6360 = vmul.f32 %v6292, %v6309
    %v6361 = vmul.f32 %v6293, %v6309
    %v6362 = vmul.f32 %v6294, %v6309
    %v6363 = vmul.f32 %v6295, %v6309
    %v6364 = vmul.f32 %v6296, %v6309
    %v6365 = vmul.f32 %v6297, %v6309
    %v6366 = vmul.f32 %v6298, %v6309
    %v6367 = vmul.f32 %v6299, %v6309
    %v6368 = vmul.f32 %v6300, %v6309
    %v6369 = vmul.f32 %v6301, %v6309
    %v6370 = vmul.f32 %v6302, %v6309
    %v6371 = vmul.f32 %v6303, %v6309
    %v6372 = vmul.f32 %v6304, %v6309
    %v6373 = vmul.f32 %v6305, %v6309
    %v6374 = vadd.f32 %v6178, %v6310
    %v6375 = vadd.f32 %v6179, %v6311
    %v6376 = vadd.f32 %v6180, %v6312
    %v6377 = vadd.f32 %v6181, %v6313
    %v6378 = vadd.f32 %v6182, %v6314
    %v6379 = vadd.f32 %v6183, %v6315
    %v6380 = vadd.f32 %v6184, %v6316
    %v6381 = vadd.f32 %v6185, %v6317
    %v6382 = vadd.f32 %v6186, %v6318
    %v6383 = vadd.f32 %v6187, %v6319
    %v6384 = vadd.f32 %v6188, %v6320
    %v6385 = vadd.f32 %v6189, %v6321
    %v6386 = vadd.f32 %v6190, %v6322
    %v6387 = vadd.f32 %v6191, %v6323
    %v6388 = vadd.f32 %v6192, %v6324
    %v6389 = vadd.f32 %v6193, %v6325
    %v6390 = vadd.f32 %v6194, %v6326
    %v6391 = vadd.f32 %v6195, %v6327
    %v6392 = vadd.f32 %v6196, %v6328
    %v6393 = vadd.f32 %v6197, %v6329
    %v6394 = vadd.f32 %v6198, %v6330
    %v6395 = vadd.f32 %v6199, %v6331
    %v6396 = vadd.f32 %v6200, %v6332
    %v6397 = vadd.f32 %v6201, %v6333
    %v6398 = vadd.f32 %v6202, %v6334
    %v6399 = vadd.f32 %v6203, %v6335
    %v6400 = vadd.f32 %v6204, %v6336
    %v6401 = vadd.f32 %v6205, %v6337
    %v6402 = vadd.f32 %v6206, %v6338
    %v6403 = vadd.f32 %v6207, %v6339
    %v6404 = vadd.f32 %v6208, %v6340
    %v6405 = vadd.f32 %v6209, %v6341
    %v6406 = vadd.f32 %v6210, %v6342
    %v6407 = vadd.f32 %v6211, %v6343
    %v6408 = vadd.f32 %v6212, %v6344
    %v6409 = vadd.f32 %v6213, %v6345
    %v6410 = vadd.f32 %v6214, %v6346
    %v6411 = vadd.f32 %v6215, %v6347
    %v6412 = vadd.f32 %v6216, %v6348
    %v6413 = vadd.f32 %v6217, %v6349
    %v6414 = vadd.f32 %v6218, %v6350
    %v6415 = vadd.f32 %v6219, %v6351
    %v6416 = vadd.f32 %v6220, %v6352
    %v6417 = vadd.f32 %v6221, %v6353
    %v6418 = vadd.f32 %v6222, %v6354
    %v6419 = vadd.f32 %v6223, %v6355
    %v6420 = vadd.f32 %v6224, %v6356
    %v6421 = vadd.f32 %v6225, %v6357
    %v6422 = vadd.f32 %v6226, %v6358
    %v6423 = vadd.f32 %v6227, %v6359
    %v6424 = vadd.f32 %v6228, %v6360
    %v6425 = vadd.f32 %v6229, %v6361
    %v6426 = vadd.f32 %v6230, %v6362
    %v6427 = vadd.f32 %v6231, %v6363
    %v6428 = vadd.f32 %v6232, %v6364
    %v6429 = vadd.f32 %v6233, %v6365
    %v6430 = vadd.f32 %v6234, %v6366
    %v6431 = vadd.f32 %v6235, %v6367
    %v6432 = vadd.f32 %v6236, %v6368
    %v6433 = vadd.f32 %v6237, %v6369
    %v6434 = vadd.f32 %v6238, %v6370
    %v6435 = vadd.f32 %v6239, %v6371
    %v6436 = vadd.f32 %v6240, %v6372
    %v6437 = vadd.f32 %v6241, %v6373
    %v6438 = vld [vmem:[%s3077] sm:$0xff]
    %v6439 = vld [vmem:[%s3077 + $0x8] sm:$0xff]
    %v6440 = vld [vmem:[%s3077 + $0x18] sm:$0xff]
    %v6441 = vld [vmem:[%s3077 + $0x20] sm:$0xff]
    %v6442 = vld [vmem:[%s3077 + $0x30] sm:$0xff]
    %v6443 = vld [vmem:[%s3077 + $0x38] sm:$0xff]
    %v6444 = vld [vmem:[%s3077 + $0x48] sm:$0xff]
    %v6445 = vld [vmem:[%s3077 + $0x50] sm:$0xff]
    %v6446 = vld [vmem:[%s3077 + $0x60] sm:$0xff]
    %v6447 = vld [vmem:[%s3077 + $0x68] sm:$0xff]
    %v6448 = vld [vmem:[%s3077 + $0x78] sm:$0xff]
    %v6449 = vld [vmem:[%s3077 + $0x80] sm:$0xff]
    %v6450 = vld [vmem:[%s3077 + $0x90] sm:$0xff]
    %v6451 = vld [vmem:[%s3077 + $0x98] sm:$0xff]
    %v6452 = vld [vmem:[%s3077 + $0xa8] sm:$0xff]
    %v6453 = vld [vmem:[%s3077 + $0xb0] sm:$0xff]
    %v6454 = vld [vmem:[%s3077 + $0xc0] sm:$0xff]
    %v6455 = vld [vmem:[%s3077 + $0xc8] sm:$0xff]
    %v6456 = vld [vmem:[%s3077 + $0xd8] sm:$0xff]
    %v6457 = vld [vmem:[%s3077 + $0xe0] sm:$0xff]
    %v6458 = vld [vmem:[%s3077 + $0xf0] sm:$0xff]
    %v6459 = vld [vmem:[%s3077 + $0xf8] sm:$0xff]
    %v6460 = vld [vmem:[%s3077 + $0x108] sm:$0xff]
    %v6461 = vld [vmem:[%s3077 + $0x110] sm:$0xff]
    %v6462 = vld [vmem:[%s3077 + $0x120] sm:$0xff]
    %v6463 = vld [vmem:[%s3077 + $0x128] sm:$0xff]
    %v6464 = vld [vmem:[%s3077 + $0x138] sm:$0xff]
    %v6465 = vld [vmem:[%s3077 + $0x140] sm:$0xff]
    %v6466 = vld [vmem:[%s3077 + $0x150] sm:$0xff]
    %v6467 = vld [vmem:[%s3077 + $0x158] sm:$0xff]
    %v6468 = vld [vmem:[%s3077 + $0x168] sm:$0xff]
    %v6469 = vld [vmem:[%s3077 + $0x170] sm:$0xff]
    %v6470 = vld [vmem:[%s3077 + $0x1e0] sm:$0xff]
    %v6471 = vld [vmem:[%s3077 + $0x1e8] sm:$0xff]
    %v6472 = vld [vmem:[%s3077 + $0x1f8] sm:$0xff]
    %v6473 = vld [vmem:[%s3077 + $0x200] sm:$0xff]
    %v6474 = vld [vmem:[%s3077 + $0x210] sm:$0xff]
    %v6475 = vld [vmem:[%s3077 + $0x218] sm:$0xff]
    %v6476 = vld [vmem:[%s3077 + $0x228] sm:$0xff]
    %v6477 = vld [vmem:[%s3077 + $0x230] sm:$0xff]
    %v6478 = vld [vmem:[%s3077 + $0x240] sm:$0xff]
    %v6479 = vld [vmem:[%s3077 + $0x248] sm:$0xff]
    %v6480 = vld [vmem:[%s3077 + $0x258] sm:$0xff]
    %v6481 = vld [vmem:[%s3077 + $0x260] sm:$0xff]
    %v6482 = vld [vmem:[%s3077 + $0x270] sm:$0xff]
    %v6483 = vld [vmem:[%s3077 + $0x278] sm:$0xff]
    %v6484 = vld [vmem:[%s3077 + $0x288] sm:$0xff]
    %v6485 = vld [vmem:[%s3077 + $0x290] sm:$0xff]
    %v6486 = vld [vmem:[%s3077 + $0x2a0] sm:$0xff]
    %v6487 = vld [vmem:[%s3077 + $0x2a8] sm:$0xff]
    %v6488 = vld [vmem:[%s3077 + $0x2b8] sm:$0xff]
    %v6489 = vld [vmem:[%s3077 + $0x2c0] sm:$0xff]
    %v6490 = vld [vmem:[%s3077 + $0x2d0] sm:$0xff]
    %v6491 = vld [vmem:[%s3077 + $0x2d8] sm:$0xff]
    %v6492 = vld [vmem:[%s3077 + $0x2e8] sm:$0xff]
    %v6493 = vld [vmem:[%s3077 + $0x2f0] sm:$0xff]
    %v6494 = vld [vmem:[%s3077 + $0x300] sm:$0xff]
    %v6495 = vld [vmem:[%s3077 + $0x308] sm:$0xff]
    %v6496 = vld [vmem:[%s3077 + $0x318] sm:$0xff]
    %v6497 = vld [vmem:[%s3077 + $0x320] sm:$0xff]
    %v6498 = vld [vmem:[%s3077 + $0x330] sm:$0xff]
    %v6499 = vld [vmem:[%s3077 + $0x338] sm:$0xff]
    %v6500 = vld [vmem:[%s3077 + $0x348] sm:$0xff]
    %v6501 = vld [vmem:[%s3077 + $0x350] sm:$0xff]
    %v6502 = vlaneseq
    %v6503 = vshrl.u32 %v6502, 7
    %v6504 = vsub.s32 3, %v6503
    %v6505 = vrot.slane %v5848, %v6504
    %v6506 = vmul.f32 %v6438, %v6505
    %v6507 = vmul.f32 %v6439, %v6505
    %v6508 = vmul.f32 %v6440, %v6505
    %v6509 = vmul.f32 %v6441, %v6505
    %v6510 = vmul.f32 %v6442, %v6505
    %v6511 = vmul.f32 %v6443, %v6505
    %v6512 = vmul.f32 %v6444, %v6505
    %v6513 = vmul.f32 %v6445, %v6505
    %v6514 = vmul.f32 %v6446, %v6505
    %v6515 = vmul.f32 %v6447, %v6505
    %v6516 = vmul.f32 %v6448, %v6505
    %v6517 = vmul.f32 %v6449, %v6505
    %v6518 = vmul.f32 %v6450, %v6505
    %v6519 = vmul.f32 %v6451, %v6505
    %v6520 = vmul.f32 %v6452, %v6505
    %v6521 = vmul.f32 %v6453, %v6505
    %v6522 = vmul.f32 %v6454, %v6505
    %v6523 = vmul.f32 %v6455, %v6505
    %v6524 = vmul.f32 %v6456, %v6505
    %v6525 = vmul.f32 %v6457, %v6505
    %v6526 = vmul.f32 %v6458, %v6505
    %v6527 = vmul.f32 %v6459, %v6505
    %v6528 = vmul.f32 %v6460, %v6505
    %v6529 = vmul.f32 %v6461, %v6505
    %v6530 = vmul.f32 %v6462, %v6505
    %v6531 = vmul.f32 %v6463, %v6505
    %v6532 = vmul.f32 %v6464, %v6505
    %v6533 = vmul.f32 %v6465, %v6505
    %v6534 = vmul.f32 %v6466, %v6505
    %v6535 = vmul.f32 %v6467, %v6505
    %v6536 = vmul.f32 %v6468, %v6505
    %v6537 = vmul.f32 %v6469, %v6505
    %v6538 = vmul.f32 %v6470, %v6505
    %v6539 = vmul.f32 %v6471, %v6505
    %v6540 = vmul.f32 %v6472, %v6505
    %v6541 = vmul.f32 %v6473, %v6505
    %v6542 = vmul.f32 %v6474, %v6505
    %v6543 = vmul.f32 %v6475, %v6505
    %v6544 = vmul.f32 %v6476, %v6505
    %v6545 = vmul.f32 %v6477, %v6505
    %v6546 = vmul.f32 %v6478, %v6505
    %v6547 = vmul.f32 %v6479, %v6505
    %v6548 = vmul.f32 %v6480, %v6505
    %v6549 = vmul.f32 %v6481, %v6505
    %v6550 = vmul.f32 %v6482, %v6505
    %v6551 = vmul.f32 %v6483, %v6505
    %v6552 = vmul.f32 %v6484, %v6505
    %v6553 = vmul.f32 %v6485, %v6505
    %v6554 = vmul.f32 %v6486, %v6505
    %v6555 = vmul.f32 %v6487, %v6505
    %v6556 = vmul.f32 %v6488, %v6505
    %v6557 = vmul.f32 %v6489, %v6505
    %v6558 = vmul.f32 %v6490, %v6505
    %v6559 = vmul.f32 %v6491, %v6505
    %v6560 = vmul.f32 %v6492, %v6505
    %v6561 = vmul.f32 %v6493, %v6505
    %v6562 = vmul.f32 %v6494, %v6505
    %v6563 = vmul.f32 %v6495, %v6505
    %v6564 = vmul.f32 %v6496, %v6505
    %v6565 = vmul.f32 %v6497, %v6505
    %v6566 = vmul.f32 %v6498, %v6505
    %v6567 = vmul.f32 %v6499, %v6505
    %v6568 = vmul.f32 %v6500, %v6505
    %v6569 = vmul.f32 %v6501, %v6505
    %v6570 = vadd.f32 %v6374, %v6506
    %v6571 = vadd.f32 %v6375, %v6507
    %v6572 = vadd.f32 %v6376, %v6508
    %v6573 = vadd.f32 %v6377, %v6509
    %v6574 = vadd.f32 %v6378, %v6510
    %v6575 = vadd.f32 %v6379, %v6511
    %v6576 = vadd.f32 %v6380, %v6512
    %v6577 = vadd.f32 %v6381, %v6513
    %v6578 = vadd.f32 %v6382, %v6514
    %v6579 = vadd.f32 %v6383, %v6515
    %v6580 = vadd.f32 %v6384, %v6516
    %v6581 = vadd.f32 %v6385, %v6517
    %v6582 = vadd.f32 %v6386, %v6518
    %v6583 = vadd.f32 %v6387, %v6519
    %v6584 = vadd.f32 %v6388, %v6520
    %v6585 = vadd.f32 %v6389, %v6521
    %v6586 = vadd.f32 %v6390, %v6522
    %v6587 = vadd.f32 %v6391, %v6523
    %v6588 = vadd.f32 %v6392, %v6524
    %v6589 = vadd.f32 %v6393, %v6525
    %v6590 = vadd.f32 %v6394, %v6526
    %v6591 = vadd.f32 %v6395, %v6527
    %v6592 = vadd.f32 %v6396, %v6528
    %v6593 = vadd.f32 %v6397, %v6529
    %v6594 = vadd.f32 %v6398, %v6530
    %v6595 = vadd.f32 %v6399, %v6531
    %v6596 = vadd.f32 %v6400, %v6532
    %v6597 = vadd.f32 %v6401, %v6533
    %v6598 = vadd.f32 %v6402, %v6534
    %v6599 = vadd.f32 %v6403, %v6535
    %v6600 = vadd.f32 %v6404, %v6536
    %v6601 = vadd.f32 %v6405, %v6537
    %v6602 = vadd.f32 %v6406, %v6538
    %v6603 = vadd.f32 %v6407, %v6539
    %v6604 = vadd.f32 %v6408, %v6540
    %v6605 = vadd.f32 %v6409, %v6541
    %v6606 = vadd.f32 %v6410, %v6542
    %v6607 = vadd.f32 %v6411, %v6543
    %v6608 = vadd.f32 %v6412, %v6544
    %v6609 = vadd.f32 %v6413, %v6545
    %v6610 = vadd.f32 %v6414, %v6546
    %v6611 = vadd.f32 %v6415, %v6547
    %v6612 = vadd.f32 %v6416, %v6548
    %v6613 = vadd.f32 %v6417, %v6549
    %v6614 = vadd.f32 %v6418, %v6550
    %v6615 = vadd.f32 %v6419, %v6551
    %v6616 = vadd.f32 %v6420, %v6552
    %v6617 = vadd.f32 %v6421, %v6553
    %v6618 = vadd.f32 %v6422, %v6554
    %v6619 = vadd.f32 %v6423, %v6555
    %v6620 = vadd.f32 %v6424, %v6556
    %v6621 = vadd.f32 %v6425, %v6557
    %v6622 = vadd.f32 %v6426, %v6558
    %v6623 = vadd.f32 %v6427, %v6559
    %v6624 = vadd.f32 %v6428, %v6560
    %v6625 = vadd.f32 %v6429, %v6561
    %v6626 = vadd.f32 %v6430, %v6562
    %v6627 = vadd.f32 %v6431, %v6563
    %v6628 = vadd.f32 %v6432, %v6564
    %v6629 = vadd.f32 %v6433, %v6565
    %v6630 = vadd.f32 %v6434, %v6566
    %v6631 = vadd.f32 %v6435, %v6567
    %v6632 = vadd.f32 %v6436, %v6568
    %v6633 = vadd.f32 %v6437, %v6569
    %v6634 = vld [vmem:[%s3077 + $0x2] sm:$0xff]
    %v6635 = vld [vmem:[%s3077 + $0xa] sm:$0xff]
    %v6636 = vld [vmem:[%s3077 + $0x1a] sm:$0xff]
    %v6637 = vld [vmem:[%s3077 + $0x22] sm:$0xff]
    %v6638 = vld [vmem:[%s3077 + $0x32] sm:$0xff]
    %v6639 = vld [vmem:[%s3077 + $0x3a] sm:$0xff]
    %v6640 = vld [vmem:[%s3077 + $0x4a] sm:$0xff]
    %v6641 = vld [vmem:[%s3077 + $0x52] sm:$0xff]
    %v6642 = vld [vmem:[%s3077 + $0x62] sm:$0xff]
    %v6643 = vld [vmem:[%s3077 + $0x6a] sm:$0xff]
    %v6644 = vld [vmem:[%s3077 + $0x7a] sm:$0xff]
    %v6645 = vld [vmem:[%s3077 + $0x82] sm:$0xff]
    %v6646 = vld [vmem:[%s3077 + $0x92] sm:$0xff]
    %v6647 = vld [vmem:[%s3077 + $0x9a] sm:$0xff]
    %v6648 = vld [vmem:[%s3077 + $0xaa] sm:$0xff]
    %v6649 = vld [vmem:[%s3077 + $0xb2] sm:$0xff]
    %v6650 = vld [vmem:[%s3077 + $0xc2] sm:$0xff]
    %v6651 = vld [vmem:[%s3077 + $0xca] sm:$0xff]
    %v6652 = vld [vmem:[%s3077 + $0xda] sm:$0xff]
    %v6653 = vld [vmem:[%s3077 + $0xe2] sm:$0xff]
    %v6654 = vld [vmem:[%s3077 + $0xf2] sm:$0xff]
    %v6655 = vld [vmem:[%s3077 + $0xfa] sm:$0xff]
    %v6656 = vld [vmem:[%s3077 + $0x10a] sm:$0xff]
    %v6657 = vld [vmem:[%s3077 + $0x112] sm:$0xff]
    %v6658 = vld [vmem:[%s3077 + $0x122] sm:$0xff]
    %v6659 = vld [vmem:[%s3077 + $0x12a] sm:$0xff]
    %v6660 = vld [vmem:[%s3077 + $0x13a] sm:$0xff]
    %v6661 = vld [vmem:[%s3077 + $0x142] sm:$0xff]
    %v6662 = vld [vmem:[%s3077 + $0x152] sm:$0xff]
    %v6663 = vld [vmem:[%s3077 + $0x15a] sm:$0xff]
    %v6664 = vld [vmem:[%s3077 + $0x16a] sm:$0xff]
    %v6665 = vld [vmem:[%s3077 + $0x172] sm:$0xff]
    %v6666 = vld [vmem:[%s3077 + $0x1e2] sm:$0xff]
    %v6667 = vld [vmem:[%s3077 + $0x1ea] sm:$0xff]
    %v6668 = vld [vmem:[%s3077 + $0x1fa] sm:$0xff]
    %v6669 = vld [vmem:[%s3077 + $0x202] sm:$0xff]
    %v6670 = vld [vmem:[%s3077 + $0x212] sm:$0xff]
    %v6671 = vld [vmem:[%s3077 + $0x21a] sm:$0xff]
    %v6672 = vld [vmem:[%s3077 + $0x22a] sm:$0xff]
    %v6673 = vld [vmem:[%s3077 + $0x232] sm:$0xff]
    %v6674 = vld [vmem:[%s3077 + $0x242] sm:$0xff]
    %v6675 = vld [vmem:[%s3077 + $0x24a] sm:$0xff]
    %v6676 = vld [vmem:[%s3077 + $0x25a] sm:$0xff]
    %v6677 = vld [vmem:[%s3077 + $0x262] sm:$0xff]
    %v6678 = vld [vmem:[%s3077 + $0x272] sm:$0xff]
    %v6679 = vld [vmem:[%s3077 + $0x27a] sm:$0xff]
    %v6680 = vld [vmem:[%s3077 + $0x28a] sm:$0xff]
    %v6681 = vld [vmem:[%s3077 + $0x292] sm:$0xff]
    %v6682 = vld [vmem:[%s3077 + $0x2a2] sm:$0xff]
    %v6683 = vld [vmem:[%s3077 + $0x2aa] sm:$0xff]
    %v6684 = vld [vmem:[%s3077 + $0x2ba] sm:$0xff]
    %v6685 = vld [vmem:[%s3077 + $0x2c2] sm:$0xff]
    %v6686 = vld [vmem:[%s3077 + $0x2d2] sm:$0xff]
    %v6687 = vld [vmem:[%s3077 + $0x2da] sm:$0xff]
    %v6688 = vld [vmem:[%s3077 + $0x2ea] sm:$0xff]
    %v6689 = vld [vmem:[%s3077 + $0x2f2] sm:$0xff]
    %v6690 = vld [vmem:[%s3077 + $0x302] sm:$0xff]
    %v6691 = vld [vmem:[%s3077 + $0x30a] sm:$0xff]
    %v6692 = vld [vmem:[%s3077 + $0x31a] sm:$0xff]
    %v6693 = vld [vmem:[%s3077 + $0x322] sm:$0xff]
    %v6694 = vld [vmem:[%s3077 + $0x332] sm:$0xff]
    %v6695 = vld [vmem:[%s3077 + $0x33a] sm:$0xff]
    %v6696 = vld [vmem:[%s3077 + $0x34a] sm:$0xff]
    %v6697 = vld [vmem:[%s3077 + $0x352] sm:$0xff]
    %v6698 = vlaneseq
    %v6699 = vshrl.u32 %v6698, 7
    %v6700 = vsub.s32 4, %v6699
    %v6701 = vrot.slane %v5848, %v6700
    %v6702 = vmul.f32 %v6634, %v6701
    %v6703 = vmul.f32 %v6635, %v6701
    %v6704 = vmul.f32 %v6636, %v6701
    %v6705 = vmul.f32 %v6637, %v6701
    %v6706 = vmul.f32 %v6638, %v6701
    %v6707 = vmul.f32 %v6639, %v6701
    %v6708 = vmul.f32 %v6640, %v6701
    %v6709 = vmul.f32 %v6641, %v6701
    %v6710 = vmul.f32 %v6642, %v6701
    %v6711 = vmul.f32 %v6643, %v6701
    %v6712 = vmul.f32 %v6644, %v6701
    %v6713 = vmul.f32 %v6645, %v6701
    %v6714 = vmul.f32 %v6646, %v6701
    %v6715 = vmul.f32 %v6647, %v6701
    %v6716 = vmul.f32 %v6648, %v6701
    %v6717 = vmul.f32 %v6649, %v6701
    %v6718 = vmul.f32 %v6650, %v6701
    %v6719 = vmul.f32 %v6651, %v6701
    %v6720 = vmul.f32 %v6652, %v6701
    %v6721 = vmul.f32 %v6653, %v6701
    %v6722 = vmul.f32 %v6654, %v6701
    %v6723 = vmul.f32 %v6655, %v6701
    %v6724 = vmul.f32 %v6656, %v6701
    %v6725 = vmul.f32 %v6657, %v6701
    %v6726 = vmul.f32 %v6658, %v6701
    %v6727 = vmul.f32 %v6659, %v6701
    %v6728 = vmul.f32 %v6660, %v6701
    %v6729 = vmul.f32 %v6661, %v6701
    %v6730 = vmul.f32 %v6662, %v6701
    %v6731 = vmul.f32 %v6663, %v6701
    %v6732 = vmul.f32 %v6664, %v6701
    %v6733 = vmul.f32 %v6665, %v6701
    %v6734 = vmul.f32 %v6666, %v6701
    %v6735 = vmul.f32 %v6667, %v6701
    %v6736 = vmul.f32 %v6668, %v6701
    %v6737 = vmul.f32 %v6669, %v6701
    %v6738 = vmul.f32 %v6670, %v6701
    %v6739 = vmul.f32 %v6671, %v6701
    %v6740 = vmul.f32 %v6672, %v6701
    %v6741 = vmul.f32 %v6673, %v6701
    %v6742 = vmul.f32 %v6674, %v6701
    %v6743 = vmul.f32 %v6675, %v6701
    %v6744 = vmul.f32 %v6676, %v6701
    %v6745 = vmul.f32 %v6677, %v6701
    %v6746 = vmul.f32 %v6678, %v6701
    %v6747 = vmul.f32 %v6679, %v6701
    %v6748 = vmul.f32 %v6680, %v6701
    %v6749 = vmul.f32 %v6681, %v6701
    %v6750 = vmul.f32 %v6682, %v6701
    %v6751 = vmul.f32 %v6683, %v6701
    %v6752 = vmul.f32 %v6684, %v6701
    %v6753 = vmul.f32 %v6685, %v6701
    %v6754 = vmul.f32 %v6686, %v6701
    %v6755 = vmul.f32 %v6687, %v6701
    %v6756 = vmul.f32 %v6688, %v6701
    %v6757 = vmul.f32 %v6689, %v6701
    %v6758 = vmul.f32 %v6690, %v6701
    %v6759 = vmul.f32 %v6691, %v6701
    %v6760 = vmul.f32 %v6692, %v6701
    %v6761 = vmul.f32 %v6693, %v6701
    %v6762 = vmul.f32 %v6694, %v6701
    %v6763 = vmul.f32 %v6695, %v6701
    %v6764 = vmul.f32 %v6696, %v6701
    %v6765 = vmul.f32 %v6697, %v6701
    %v6766 = vadd.f32 %v6570, %v6702
    %v6767 = vadd.f32 %v6571, %v6703
    %v6768 = vadd.f32 %v6572, %v6704
    %v6769 = vadd.f32 %v6573, %v6705
    %v6770 = vadd.f32 %v6574, %v6706
    %v6771 = vadd.f32 %v6575, %v6707
    %v6772 = vadd.f32 %v6576, %v6708
    %v6773 = vadd.f32 %v6577, %v6709
    %v6774 = vadd.f32 %v6578, %v6710
    %v6775 = vadd.f32 %v6579, %v6711
    %v6776 = vadd.f32 %v6580, %v6712
    %v6777 = vadd.f32 %v6581, %v6713
    %v6778 = vadd.f32 %v6582, %v6714
    %v6779 = vadd.f32 %v6583, %v6715
    %v6780 = vadd.f32 %v6584, %v6716
    %v6781 = vadd.f32 %v6585, %v6717
    %v6782 = vadd.f32 %v6586, %v6718
    %v6783 = vadd.f32 %v6587, %v6719
    %v6784 = vadd.f32 %v6588, %v6720
    %v6785 = vadd.f32 %v6589, %v6721
    %v6786 = vadd.f32 %v6590, %v6722
    %v6787 = vadd.f32 %v6591, %v6723
    %v6788 = vadd.f32 %v6592, %v6724
    %v6789 = vadd.f32 %v6593, %v6725
    %v6790 = vadd.f32 %v6594, %v6726
    %v6791 = vadd.f32 %v6595, %v6727
    %v6792 = vadd.f32 %v6596, %v6728
    %v6793 = vadd.f32 %v6597, %v6729
    %v6794 = vadd.f32 %v6598, %v6730
    %v6795 = vadd.f32 %v6599, %v6731
    %v6796 = vadd.f32 %v6600, %v6732
    %v6797 = vadd.f32 %v6601, %v6733
    %v6798 = vadd.f32 %v6602, %v6734
    %v6799 = vadd.f32 %v6603, %v6735
    %v6800 = vadd.f32 %v6604, %v6736
    %v6801 = vadd.f32 %v6605, %v6737
    %v6802 = vadd.f32 %v6606, %v6738
    %v6803 = vadd.f32 %v6607, %v6739
    %v6804 = vadd.f32 %v6608, %v6740
    %v6805 = vadd.f32 %v6609, %v6741
    %v6806 = vadd.f32 %v6610, %v6742
    %v6807 = vadd.f32 %v6611, %v6743
    %v6808 = vadd.f32 %v6612, %v6744
    %v6809 = vadd.f32 %v6613, %v6745
    %v6810 = vadd.f32 %v6614, %v6746
    %v6811 = vadd.f32 %v6615, %v6747
    %v6812 = vadd.f32 %v6616, %v6748
    %v6813 = vadd.f32 %v6617, %v6749
    %v6814 = vadd.f32 %v6618, %v6750
    %v6815 = vadd.f32 %v6619, %v6751
    %v6816 = vadd.f32 %v6620, %v6752
    %v6817 = vadd.f32 %v6621, %v6753
    %v6818 = vadd.f32 %v6622, %v6754
    %v6819 = vadd.f32 %v6623, %v6755
    %v6820 = vadd.f32 %v6624, %v6756
    %v6821 = vadd.f32 %v6625, %v6757
    %v6822 = vadd.f32 %v6626, %v6758
    %v6823 = vadd.f32 %v6627, %v6759
    %v6824 = vadd.f32 %v6628, %v6760
    %v6825 = vadd.f32 %v6629, %v6761
    %v6826 = vadd.f32 %v6630, %v6762
    %v6827 = vadd.f32 %v6631, %v6763
    %v6828 = vadd.f32 %v6632, %v6764
    %v6829 = vadd.f32 %v6633, %v6765
    %v6830 = vld [vmem:[%s3077 + $0x4] sm:$0xff]
    %v6831 = vld [vmem:[%s3077 + $0xc] sm:$0xff]
    %v6832 = vld [vmem:[%s3077 + $0x1c] sm:$0xff]
    %v6833 = vld [vmem:[%s3077 + $0x24] sm:$0xff]
    %v6834 = vld [vmem:[%s3077 + $0x34] sm:$0xff]
    %v6835 = vld [vmem:[%s3077 + $0x3c] sm:$0xff]
    %v6836 = vld [vmem:[%s3077 + $0x4c] sm:$0xff]
    %v6837 = vld [vmem:[%s3077 + $0x54] sm:$0xff]
    %v6838 = vld [vmem:[%s3077 + $0x64] sm:$0xff]
    %v6839 = vld [vmem:[%s3077 + $0x6c] sm:$0xff]
    %v6840 = vld [vmem:[%s3077 + $0x7c] sm:$0xff]
    %v6841 = vld [vmem:[%s3077 + $0x84] sm:$0xff]
    %v6842 = vld [vmem:[%s3077 + $0x94] sm:$0xff]
    %v6843 = vld [vmem:[%s3077 + $0x9c] sm:$0xff]
    %v6844 = vld [vmem:[%s3077 + $0xac] sm:$0xff]
    %v6845 = vld [vmem:[%s3077 + $0xb4] sm:$0xff]
    %v6846 = vld [vmem:[%s3077 + $0xc4] sm:$0xff]
    %v6847 = vld [vmem:[%s3077 + $0xcc] sm:$0xff]
    %v6848 = vld [vmem:[%s3077 + $0xdc] sm:$0xff]
    %v6849 = vld [vmem:[%s3077 + $0xe4] sm:$0xff]
    %v6850 = vld [vmem:[%s3077 + $0xf4] sm:$0xff]
    %v6851 = vld [vmem:[%s3077 + $0xfc] sm:$0xff]
    %v6852 = vld [vmem:[%s3077 + $0x10c] sm:$0xff]
    %v6853 = vld [vmem:[%s3077 + $0x114] sm:$0xff]
    %v6854 = vld [vmem:[%s3077 + $0x124] sm:$0xff]
    %v6855 = vld [vmem:[%s3077 + $0x12c] sm:$0xff]
    %v6856 = vld [vmem:[%s3077 + $0x13c] sm:$0xff]
    %v6857 = vld [vmem:[%s3077 + $0x144] sm:$0xff]
    %v6858 = vld [vmem:[%s3077 + $0x154] sm:$0xff]
    %v6859 = vld [vmem:[%s3077 + $0x15c] sm:$0xff]
    %v6860 = vld [vmem:[%s3077 + $0x16c] sm:$0xff]
    %v6861 = vld [vmem:[%s3077 + $0x174] sm:$0xff]
    %v6862 = vld [vmem:[%s3077 + $0x1e4] sm:$0xff]
    %v6863 = vld [vmem:[%s3077 + $0x1ec] sm:$0xff]
    %v6864 = vld [vmem:[%s3077 + $0x1fc] sm:$0xff]
    %v6865 = vld [vmem:[%s3077 + $0x204] sm:$0xff]
    %v6866 = vld [vmem:[%s3077 + $0x214] sm:$0xff]
    %v6867 = vld [vmem:[%s3077 + $0x21c] sm:$0xff]
    %v6868 = vld [vmem:[%s3077 + $0x22c] sm:$0xff]
    %v6869 = vld [vmem:[%s3077 + $0x234] sm:$0xff]
    %v6870 = vld [vmem:[%s3077 + $0x244] sm:$0xff]
    %v6871 = vld [vmem:[%s3077 + $0x24c] sm:$0xff]
    %v6872 = vld [vmem:[%s3077 + $0x25c] sm:$0xff]
    %v6873 = vld [vmem:[%s3077 + $0x264] sm:$0xff]
    %v6874 = vld [vmem:[%s3077 + $0x274] sm:$0xff]
    %v6875 = vld [vmem:[%s3077 + $0x27c] sm:$0xff]
    %v6876 = vld [vmem:[%s3077 + $0x28c] sm:$0xff]
    %v6877 = vld [vmem:[%s3077 + $0x294] sm:$0xff]
    %v6878 = vld [vmem:[%s3077 + $0x2a4] sm:$0xff]
    %v6879 = vld [vmem:[%s3077 + $0x2ac] sm:$0xff]
    %v6880 = vld [vmem:[%s3077 + $0x2bc] sm:$0xff]
    %v6881 = vld [vmem:[%s3077 + $0x2c4] sm:$0xff]
    %v6882 = vld [vmem:[%s3077 + $0x2d4] sm:$0xff]
    %v6883 = vld [vmem:[%s3077 + $0x2dc] sm:$0xff]
    %v6884 = vld [vmem:[%s3077 + $0x2ec] sm:$0xff]
    %v6885 = vld [vmem:[%s3077 + $0x2f4] sm:$0xff]
    %v6886 = vld [vmem:[%s3077 + $0x304] sm:$0xff]
    %v6887 = vld [vmem:[%s3077 + $0x30c] sm:$0xff]
    %v6888 = vld [vmem:[%s3077 + $0x31c] sm:$0xff]
    %v6889 = vld [vmem:[%s3077 + $0x324] sm:$0xff]
    %v6890 = vld [vmem:[%s3077 + $0x334] sm:$0xff]
    %v6891 = vld [vmem:[%s3077 + $0x33c] sm:$0xff]
    %v6892 = vld [vmem:[%s3077 + $0x34c] sm:$0xff]
    %v6893 = vld [vmem:[%s3077 + $0x354] sm:$0xff]
    %v6894 = vlaneseq
    %v6895 = vshrl.u32 %v6894, 7
    %v6896 = vsub.s32 5, %v6895
    %v6897 = vrot.slane %v5848, %v6896
    %v6898 = vmul.f32 %v6830, %v6897
    %v6899 = vmul.f32 %v6831, %v6897
    %v6900 = vmul.f32 %v6832, %v6897
    %v6901 = vmul.f32 %v6833, %v6897
    %v6902 = vmul.f32 %v6834, %v6897
    %v6903 = vmul.f32 %v6835, %v6897
    %v6904 = vmul.f32 %v6836, %v6897
    %v6905 = vmul.f32 %v6837, %v6897
    %v6906 = vmul.f32 %v6838, %v6897
    %v6907 = vmul.f32 %v6839, %v6897
    %v6908 = vmul.f32 %v6840, %v6897
    %v6909 = vmul.f32 %v6841, %v6897
    %v6910 = vmul.f32 %v6842, %v6897
    %v6911 = vmul.f32 %v6843, %v6897
    %v6912 = vmul.f32 %v6844, %v6897
    %v6913 = vmul.f32 %v6845, %v6897
    %v6914 = vmul.f32 %v6846, %v6897
    %v6915 = vmul.f32 %v6847, %v6897
    %v6916 = vmul.f32 %v6848, %v6897
    %v6917 = vmul.f32 %v6849, %v6897
    %v6918 = vmul.f32 %v6850, %v6897
    %v6919 = vmul.f32 %v6851, %v6897
    %v6920 = vmul.f32 %v6852, %v6897
    %v6921 = vmul.f32 %v6853, %v6897
    %v6922 = vmul.f32 %v6854, %v6897
    %v6923 = vmul.f32 %v6855, %v6897
    %v6924 = vmul.f32 %v6856, %v6897
    %v6925 = vmul.f32 %v6857, %v6897
    %v6926 = vmul.f32 %v6858, %v6897
    %v6927 = vmul.f32 %v6859, %v6897
    %v6928 = vmul.f32 %v6860, %v6897
    %v6929 = vmul.f32 %v6861, %v6897
    %v6930 = vmul.f32 %v6862, %v6897
    %v6931 = vmul.f32 %v6863, %v6897
    %v6932 = vmul.f32 %v6864, %v6897
    %v6933 = vmul.f32 %v6865, %v6897
    %v6934 = vmul.f32 %v6866, %v6897
    %v6935 = vmul.f32 %v6867, %v6897
    %v6936 = vmul.f32 %v6868, %v6897
    %v6937 = vmul.f32 %v6869, %v6897
    %v6938 = vmul.f32 %v6870, %v6897
    %v6939 = vmul.f32 %v6871, %v6897
    %v6940 = vmul.f32 %v6872, %v6897
    %v6941 = vmul.f32 %v6873, %v6897
    %v6942 = vmul.f32 %v6874, %v6897
    %v6943 = vmul.f32 %v6875, %v6897
    %v6944 = vmul.f32 %v6876, %v6897
    %v6945 = vmul.f32 %v6877, %v6897
    %v6946 = vmul.f32 %v6878, %v6897
    %v6947 = vmul.f32 %v6879, %v6897
    %v6948 = vmul.f32 %v6880, %v6897
    %v6949 = vmul.f32 %v6881, %v6897
    %v6950 = vmul.f32 %v6882, %v6897
    %v6951 = vmul.f32 %v6883, %v6897
    %v6952 = vmul.f32 %v6884, %v6897
    %v6953 = vmul.f32 %v6885, %v6897
    %v6954 = vmul.f32 %v6886, %v6897
    %v6955 = vmul.f32 %v6887, %v6897
    %v6956 = vmul.f32 %v6888, %v6897
    %v6957 = vmul.f32 %v6889, %v6897
    %v6958 = vmul.f32 %v6890, %v6897
    %v6959 = vmul.f32 %v6891, %v6897
    %v6960 = vmul.f32 %v6892, %v6897
    %v6961 = vmul.f32 %v6893, %v6897
    %v6962 = vadd.f32 %v6766, %v6898
    %v6963 = vadd.f32 %v6767, %v6899
    %v6964 = vadd.f32 %v6768, %v6900
    %v6965 = vadd.f32 %v6769, %v6901
    %v6966 = vadd.f32 %v6770, %v6902
    %v6967 = vadd.f32 %v6771, %v6903
    %v6968 = vadd.f32 %v6772, %v6904
    %v6969 = vadd.f32 %v6773, %v6905
    %v6970 = vadd.f32 %v6774, %v6906
    %v6971 = vadd.f32 %v6775, %v6907
    %v6972 = vadd.f32 %v6776, %v6908
    %v6973 = vadd.f32 %v6777, %v6909
    %v6974 = vadd.f32 %v6778, %v6910
    %v6975 = vadd.f32 %v6779, %v6911
    %v6976 = vadd.f32 %v6780, %v6912
    %v6977 = vadd.f32 %v6781, %v6913
    %v6978 = vadd.f32 %v6782, %v6914
    %v6979 = vadd.f32 %v6783, %v6915
    %v6980 = vadd.f32 %v6784, %v6916
    %v6981 = vadd.f32 %v6785, %v6917
    %v6982 = vadd.f32 %v6786, %v6918
    %v6983 = vadd.f32 %v6787, %v6919
    %v6984 = vadd.f32 %v6788, %v6920
    %v6985 = vadd.f32 %v6789, %v6921
    %v6986 = vadd.f32 %v6790, %v6922
    %v6987 = vadd.f32 %v6791, %v6923
    %v6988 = vadd.f32 %v6792, %v6924
    %v6989 = vadd.f32 %v6793, %v6925
    %v6990 = vadd.f32 %v6794, %v6926
    %v6991 = vadd.f32 %v6795, %v6927
    %v6992 = vadd.f32 %v6796, %v6928
    %v6993 = vadd.f32 %v6797, %v6929
    %v6994 = vadd.f32 %v6798, %v6930
    %v6995 = vadd.f32 %v6799, %v6931
    %v6996 = vadd.f32 %v6800, %v6932
    %v6997 = vadd.f32 %v6801, %v6933
    %v6998 = vadd.f32 %v6802, %v6934
    %v6999 = vadd.f32 %v6803, %v6935
    %v7000 = vadd.f32 %v6804, %v6936
    %v7001 = vadd.f32 %v6805, %v6937
    %v7002 = vadd.f32 %v6806, %v6938
    %v7003 = vadd.f32 %v6807, %v6939
    %v7004 = vadd.f32 %v6808, %v6940
    %v7005 = vadd.f32 %v6809, %v6941
    %v7006 = vadd.f32 %v6810, %v6942
    %v7007 = vadd.f32 %v6811, %v6943
    %v7008 = vadd.f32 %v6812, %v6944
    %v7009 = vadd.f32 %v6813, %v6945
    %v7010 = vadd.f32 %v6814, %v6946
    %v7011 = vadd.f32 %v6815, %v6947
    %v7012 = vadd.f32 %v6816, %v6948
    %v7013 = vadd.f32 %v6817, %v6949
    %v7014 = vadd.f32 %v6818, %v6950
    %v7015 = vadd.f32 %v6819, %v6951
    %v7016 = vadd.f32 %v6820, %v6952
    %v7017 = vadd.f32 %v6821, %v6953
    %v7018 = vadd.f32 %v6822, %v6954
    %v7019 = vadd.f32 %v6823, %v6955
    %v7020 = vadd.f32 %v6824, %v6956
    %v7021 = vadd.f32 %v6825, %v6957
    %v7022 = vadd.f32 %v6826, %v6958
    %v7023 = vadd.f32 %v6827, %v6959
    %v7024 = vadd.f32 %v6828, %v6960
    %v7025 = vadd.f32 %v6829, %v6961
    %s7026 = scalar_lea.vmem [#allocation2], 96
    %v7027 = vld [vmem:[%s7026] sm:$0xff]
    %v7028 = vld [vmem:[%s7026 + $0x8] sm:$0xff]
    %v7029 = vld [vmem:[%s7026 + $0x18] sm:$0xff]
    %v7030 = vld [vmem:[%s7026 + $0x20] sm:$0xff]
    %v7031 = vld [vmem:[%s7026 + $0x30] sm:$0xff]
    %v7032 = vld [vmem:[%s7026 + $0x38] sm:$0xff]
    %v7033 = vld [vmem:[%s7026 + $0x48] sm:$0xff]
    %v7034 = vld [vmem:[%s7026 + $0x50] sm:$0xff]
    %v7035 = vld [vmem:[%s7026 + $0x60] sm:$0xff]
    %v7036 = vld [vmem:[%s7026 + $0x68] sm:$0xff]
    %v7037 = vld [vmem:[%s7026 + $0x78] sm:$0xff]
    %v7038 = vld [vmem:[%s7026 + $0x80] sm:$0xff]
    %v7039 = vld [vmem:[%s7026 + $0x90] sm:$0xff]
    %v7040 = vld [vmem:[%s7026 + $0x98] sm:$0xff]
    %v7041 = vld [vmem:[%s7026 + $0xa8] sm:$0xff]
    %v7042 = vld [vmem:[%s7026 + $0xb0] sm:$0xff]
    %v7043 = vld [vmem:[%s7026 + $0xc0] sm:$0xff]
    %v7044 = vld [vmem:[%s7026 + $0xc8] sm:$0xff]
    %v7045 = vld [vmem:[%s7026 + $0xd8] sm:$0xff]
    %v7046 = vld [vmem:[%s7026 + $0xe0] sm:$0xff]
    %v7047 = vld [vmem:[%s7026 + $0xf0] sm:$0xff]
    %v7048 = vld [vmem:[%s7026 + $0xf8] sm:$0xff]
    %v7049 = vld [vmem:[%s7026 + $0x108] sm:$0xff]
    %v7050 = vld [vmem:[%s7026 + $0x110] sm:$0xff]
    %v7051 = vld [vmem:[%s7026 + $0x120] sm:$0xff]
    %v7052 = vld [vmem:[%s7026 + $0x128] sm:$0xff]
    %v7053 = vld [vmem:[%s7026 + $0x138] sm:$0xff]
    %v7054 = vld [vmem:[%s7026 + $0x140] sm:$0xff]
    %v7055 = vld [vmem:[%s7026 + $0x150] sm:$0xff]
    %v7056 = vld [vmem:[%s7026 + $0x158] sm:$0xff]
    %v7057 = vld [vmem:[%s7026 + $0x168] sm:$0xff]
    %v7058 = vld [vmem:[%s7026 + $0x170] sm:$0xff]
    %v7059 = vld [vmem:[%s7026 + $0x1e0] sm:$0xff]
    %v7060 = vld [vmem:[%s7026 + $0x1e8] sm:$0xff]
    %v7061 = vld [vmem:[%s7026 + $0x1f8] sm:$0xff]
    %v7062 = vld [vmem:[%s7026 + $0x200] sm:$0xff]
    %v7063 = vld [vmem:[%s7026 + $0x210] sm:$0xff]
    %v7064 = vld [vmem:[%s7026 + $0x218] sm:$0xff]
    %v7065 = vld [vmem:[%s7026 + $0x228] sm:$0xff]
    %v7066 = vld [vmem:[%s7026 + $0x230] sm:$0xff]
    %v7067 = vld [vmem:[%s7026 + $0x240] sm:$0xff]
    %v7068 = vld [vmem:[%s7026 + $0x248] sm:$0xff]
    %v7069 = vld [vmem:[%s7026 + $0x258] sm:$0xff]
    %v7070 = vld [vmem:[%s7026 + $0x260] sm:$0xff]
    %v7071 = vld [vmem:[%s7026 + $0x270] sm:$0xff]
    %v7072 = vld [vmem:[%s7026 + $0x278] sm:$0xff]
    %v7073 = vld [vmem:[%s7026 + $0x288] sm:$0xff]
    %v7074 = vld [vmem:[%s7026 + $0x290] sm:$0xff]
    %v7075 = vld [vmem:[%s7026 + $0x2a0] sm:$0xff]
    %v7076 = vld [vmem:[%s7026 + $0x2a8] sm:$0xff]
    %v7077 = vld [vmem:[%s7026 + $0x2b8] sm:$0xff]
    %v7078 = vld [vmem:[%s7026 + $0x2c0] sm:$0xff]
    %v7079 = vld [vmem:[%s7026 + $0x2d0] sm:$0xff]
    %v7080 = vld [vmem:[%s7026 + $0x2d8] sm:$0xff]
    %v7081 = vld [vmem:[%s7026 + $0x2e8] sm:$0xff]
    %v7082 = vld [vmem:[%s7026 + $0x2f0] sm:$0xff]
    %v7083 = vld [vmem:[%s7026 + $0x300] sm:$0xff]
    %v7084 = vld [vmem:[%s7026 + $0x308] sm:$0xff]
    %v7085 = vld [vmem:[%s7026 + $0x318] sm:$0xff]
    %v7086 = vld [vmem:[%s7026 + $0x320] sm:$0xff]
    %v7087 = vld [vmem:[%s7026 + $0x330] sm:$0xff]
    %v7088 = vld [vmem:[%s7026 + $0x338] sm:$0xff]
    %v7089 = vld [vmem:[%s7026 + $0x348] sm:$0xff]
    %v7090 = vld [vmem:[%s7026 + $0x350] sm:$0xff]
    %v7091 = vlaneseq
    %v7092 = vshrl.u32 %v7091, 7
    %v7093 = vsub.s32 6, %v7092
    %v7094 = vrot.slane %v5848, %v7093
    %v7095 = vmul.f32 %v7027, %v7094
    %v7096 = vmul.f32 %v7028, %v7094
    %v7097 = vmul.f32 %v7029, %v7094
    %v7098 = vmul.f32 %v7030, %v7094
    %v7099 = vmul.f32 %v7031, %v7094
    %v7100 = vmul.f32 %v7032, %v7094
    %v7101 = vmul.f32 %v7033, %v7094
    %v7102 = vmul.f32 %v7034, %v7094
    %v7103 = vmul.f32 %v7035, %v7094
    %v7104 = vmul.f32 %v7036, %v7094
    %v7105 = vmul.f32 %v7037, %v7094
    %v7106 = vmul.f32 %v7038, %v7094
    %v7107 = vmul.f32 %v7039, %v7094
    %v7108 = vmul.f32 %v7040, %v7094
    %v7109 = vmul.f32 %v7041, %v7094
    %v7110 = vmul.f32 %v7042, %v7094
    %v7111 = vmul.f32 %v7043, %v7094
    %v7112 = vmul.f32 %v7044, %v7094
    %v7113 = vmul.f32 %v7045, %v7094
    %v7114 = vmul.f32 %v7046, %v7094
    %v7115 = vmul.f32 %v7047, %v7094
    %v7116 = vmul.f32 %v7048, %v7094
    %v7117 = vmul.f32 %v7049, %v7094
    %v7118 = vmul.f32 %v7050, %v7094
    %v7119 = vmul.f32 %v7051, %v7094
    %v7120 = vmul.f32 %v7052, %v7094
    %v7121 = vmul.f32 %v7053, %v7094
    %v7122 = vmul.f32 %v7054, %v7094
    %v7123 = vmul.f32 %v7055, %v7094
    %v7124 = vmul.f32 %v7056, %v7094
    %v7125 = vmul.f32 %v7057, %v7094
    %v7126 = vmul.f32 %v7058, %v7094
    %v7127 = vmul.f32 %v7059, %v7094
    %v7128 = vmul.f32 %v7060, %v7094
    %v7129 = vmul.f32 %v7061, %v7094
    %v7130 = vmul.f32 %v7062, %v7094
    %v7131 = vmul.f32 %v7063, %v7094
    %v7132 = vmul.f32 %v7064, %v7094
    %v7133 = vmul.f32 %v7065, %v7094
    %v7134 = vmul.f32 %v7066, %v7094
    %v7135 = vmul.f32 %v7067, %v7094
    %v7136 = vmul.f32 %v7068, %v7094
    %v7137 = vmul.f32 %v7069, %v7094
    %v7138 = vmul.f32 %v7070, %v7094
    %v7139 = vmul.f32 %v7071, %v7094
    %v7140 = vmul.f32 %v7072, %v7094
    %v7141 = vmul.f32 %v7073, %v7094
    %v7142 = vmul.f32 %v7074, %v7094
    %v7143 = vmul.f32 %v7075, %v7094
    %v7144 = vmul.f32 %v7076, %v7094
    %v7145 = vmul.f32 %v7077, %v7094
    %v7146 = vmul.f32 %v7078, %v7094
    %v7147 = vmul.f32 %v7079, %v7094
    %v7148 = vmul.f32 %v7080, %v7094
    %v7149 = vmul.f32 %v7081, %v7094
    %v7150 = vmul.f32 %v7082, %v7094
    %v7151 = vmul.f32 %v7083, %v7094
    %v7152 = vmul.f32 %v7084, %v7094
    %v7153 = vmul.f32 %v7085, %v7094
    %v7154 = vmul.f32 %v7086, %v7094
    %v7155 = vmul.f32 %v7087, %v7094
    %v7156 = vmul.f32 %v7088, %v7094
    %v7157 = vmul.f32 %v7089, %v7094
    %v7158 = vmul.f32 %v7090, %v7094
    %v7159 = vadd.f32 %v6962, %v7095
    %v7160 = vadd.f32 %v6963, %v7096
    %v7161 = vadd.f32 %v6964, %v7097
    %v7162 = vadd.f32 %v6965, %v7098
    %v7163 = vadd.f32 %v6966, %v7099
    %v7164 = vadd.f32 %v6967, %v7100
    %v7165 = vadd.f32 %v6968, %v7101
    %v7166 = vadd.f32 %v6969, %v7102
    %v7167 = vadd.f32 %v6970, %v7103
    %v7168 = vadd.f32 %v6971, %v7104
    %v7169 = vadd.f32 %v6972, %v7105
    %v7170 = vadd.f32 %v6973, %v7106
    %v7171 = vadd.f32 %v6974, %v7107
    %v7172 = vadd.f32 %v6975, %v7108
    %v7173 = vadd.f32 %v6976, %v7109
    %v7174 = vadd.f32 %v6977, %v7110
    %v7175 = vadd.f32 %v6978, %v7111
    %v7176 = vadd.f32 %v6979, %v7112
    %v7177 = vadd.f32 %v6980, %v7113
    %v7178 = vadd.f32 %v6981, %v7114
    %v7179 = vadd.f32 %v6982, %v7115
    %v7180 = vadd.f32 %v6983, %v7116
    %v7181 = vadd.f32 %v6984, %v7117
    %v7182 = vadd.f32 %v6985, %v7118
    %v7183 = vadd.f32 %v6986, %v7119
    %v7184 = vadd.f32 %v6987, %v7120
    %v7185 = vadd.f32 %v6988, %v7121
    %v7186 = vadd.f32 %v6989, %v7122
    %v7187 = vadd.f32 %v6990, %v7123
    %v7188 = vadd.f32 %v6991, %v7124
    %v7189 = vadd.f32 %v6992, %v7125
    %v7190 = vadd.f32 %v6993, %v7126
    %v7191 = vadd.f32 %v6994, %v7127
    %v7192 = vadd.f32 %v6995, %v7128
    %v7193 = vadd.f32 %v6996, %v7129
    %v7194 = vadd.f32 %v6997, %v7130
    %v7195 = vadd.f32 %v6998, %v7131
    %v7196 = vadd.f32 %v6999, %v7132
    %v7197 = vadd.f32 %v7000, %v7133
    %v7198 = vadd.f32 %v7001, %v7134
    %v7199 = vadd.f32 %v7002, %v7135
    %v7200 = vadd.f32 %v7003, %v7136
    %v7201 = vadd.f32 %v7004, %v7137
    %v7202 = vadd.f32 %v7005, %v7138
    %v7203 = vadd.f32 %v7006, %v7139
    %v7204 = vadd.f32 %v7007, %v7140
    %v7205 = vadd.f32 %v7008, %v7141
    %v7206 = vadd.f32 %v7009, %v7142
    %v7207 = vadd.f32 %v7010, %v7143
    %v7208 = vadd.f32 %v7011, %v7144
    %v7209 = vadd.f32 %v7012, %v7145
    %v7210 = vadd.f32 %v7013, %v7146
    %v7211 = vadd.f32 %v7014, %v7147
    %v7212 = vadd.f32 %v7015, %v7148
    %v7213 = vadd.f32 %v7016, %v7149
    %v7214 = vadd.f32 %v7017, %v7150
    %v7215 = vadd.f32 %v7018, %v7151
    %v7216 = vadd.f32 %v7019, %v7152
    %v7217 = vadd.f32 %v7020, %v7153
    %v7218 = vadd.f32 %v7021, %v7154
    %v7219 = vadd.f32 %v7022, %v7155
    %v7220 = vadd.f32 %v7023, %v7156
    %v7221 = vadd.f32 %v7024, %v7157
    %v7222 = vadd.f32 %v7025, %v7158
    %v7223 = vld [vmem:[%s7026 + $0x2] sm:$0xff]
    %v7224 = vld [vmem:[%s7026 + $0xa] sm:$0xff]
    %v7225 = vld [vmem:[%s7026 + $0x1a] sm:$0xff]
    %v7226 = vld [vmem:[%s7026 + $0x22] sm:$0xff]
    %v7227 = vld [vmem:[%s7026 + $0x32] sm:$0xff]
    %v7228 = vld [vmem:[%s7026 + $0x3a] sm:$0xff]
    %v7229 = vld [vmem:[%s7026 + $0x4a] sm:$0xff]
    %v7230 = vld [vmem:[%s7026 + $0x52] sm:$0xff]
    %v7231 = vld [vmem:[%s7026 + $0x62] sm:$0xff]
    %v7232 = vld [vmem:[%s7026 + $0x6a] sm:$0xff]
    %v7233 = vld [vmem:[%s7026 + $0x7a] sm:$0xff]
    %v7234 = vld [vmem:[%s7026 + $0x82] sm:$0xff]
    %v7235 = vld [vmem:[%s7026 + $0x92] sm:$0xff]
    %v7236 = vld [vmem:[%s7026 + $0x9a] sm:$0xff]
    %v7237 = vld [vmem:[%s7026 + $0xaa] sm:$0xff]
    %v7238 = vld [vmem:[%s7026 + $0xb2] sm:$0xff]
    %v7239 = vld [vmem:[%s7026 + $0xc2] sm:$0xff]
    %v7240 = vld [vmem:[%s7026 + $0xca] sm:$0xff]
    %v7241 = vld [vmem:[%s7026 + $0xda] sm:$0xff]
    %v7242 = vld [vmem:[%s7026 + $0xe2] sm:$0xff]
    %v7243 = vld [vmem:[%s7026 + $0xf2] sm:$0xff]
    %v7244 = vld [vmem:[%s7026 + $0xfa] sm:$0xff]
    %v7245 = vld [vmem:[%s7026 + $0x10a] sm:$0xff]
    %v7246 = vld [vmem:[%s7026 + $0x112] sm:$0xff]
    %v7247 = vld [vmem:[%s7026 + $0x122] sm:$0xff]
    %v7248 = vld [vmem:[%s7026 + $0x12a] sm:$0xff]
    %v7249 = vld [vmem:[%s7026 + $0x13a] sm:$0xff]
    %v7250 = vld [vmem:[%s7026 + $0x142] sm:$0xff]
    %v7251 = vld [vmem:[%s7026 + $0x152] sm:$0xff]
    %v7252 = vld [vmem:[%s7026 + $0x15a] sm:$0xff]
    %v7253 = vld [vmem:[%s7026 + $0x16a] sm:$0xff]
    %v7254 = vld [vmem:[%s7026 + $0x172] sm:$0xff]
    %v7255 = vld [vmem:[%s7026 + $0x1e2] sm:$0xff]
    %v7256 = vld [vmem:[%s7026 + $0x1ea] sm:$0xff]
    %v7257 = vld [vmem:[%s7026 + $0x1fa] sm:$0xff]
    %v7258 = vld [vmem:[%s7026 + $0x202] sm:$0xff]
    %v7259 = vld [vmem:[%s7026 + $0x212] sm:$0xff]
    %v7260 = vld [vmem:[%s7026 + $0x21a] sm:$0xff]
    %v7261 = vld [vmem:[%s7026 + $0x22a] sm:$0xff]
    %v7262 = vld [vmem:[%s7026 + $0x232] sm:$0xff]
    %v7263 = vld [vmem:[%s7026 + $0x242] sm:$0xff]
    %v7264 = vld [vmem:[%s7026 + $0x24a] sm:$0xff]
    %v7265 = vld [vmem:[%s7026 + $0x25a] sm:$0xff]
    %v7266 = vld [vmem:[%s7026 + $0x262] sm:$0xff]
    %v7267 = vld [vmem:[%s7026 + $0x272] sm:$0xff]
    %v7268 = vld [vmem:[%s7026 + $0x27a] sm:$0xff]
    %v7269 = vld [vmem:[%s7026 + $0x28a] sm:$0xff]
    %v7270 = vld [vmem:[%s7026 + $0x292] sm:$0xff]
    %v7271 = vld [vmem:[%s7026 + $0x2a2] sm:$0xff]
    %v7272 = vld [vmem:[%s7026 + $0x2aa] sm:$0xff]
    %v7273 = vld [vmem:[%s7026 + $0x2ba] sm:$0xff]
    %v7274 = vld [vmem:[%s7026 + $0x2c2] sm:$0xff]
    %v7275 = vld [vmem:[%s7026 + $0x2d2] sm:$0xff]
    %v7276 = vld [vmem:[%s7026 + $0x2da] sm:$0xff]
    %v7277 = vld [vmem:[%s7026 + $0x2ea] sm:$0xff]
    %v7278 = vld [vmem:[%s7026 + $0x2f2] sm:$0xff]
    %v7279 = vld [vmem:[%s7026 + $0x302] sm:$0xff]
    %v7280 = vld [vmem:[%s7026 + $0x30a] sm:$0xff]
    %v7281 = vld [vmem:[%s7026 + $0x31a] sm:$0xff]
    %v7282 = vld [vmem:[%s7026 + $0x322] sm:$0xff]
    %v7283 = vld [vmem:[%s7026 + $0x332] sm:$0xff]
    %v7284 = vld [vmem:[%s7026 + $0x33a] sm:$0xff]
    %v7285 = vld [vmem:[%s7026 + $0x34a] sm:$0xff]
    %v7286 = vld [vmem:[%s7026 + $0x352] sm:$0xff]
    %v7287 = vlaneseq
    %v7288 = vshrl.u32 %v7287, 7
    %v7289 = vsub.s32 7, %v7288
    %v7290 = vrot.slane %v5848, %v7289
    %v7291 = vmul.f32 %v7223, %v7290
    %v7292 = vmul.f32 %v7224, %v7290
    %v7293 = vmul.f32 %v7225, %v7290
    %v7294 = vmul.f32 %v7226, %v7290
    %v7295 = vmul.f32 %v7227, %v7290
    %v7296 = vmul.f32 %v7228, %v7290
    %v7297 = vmul.f32 %v7229, %v7290
    %v7298 = vmul.f32 %v7230, %v7290
    %v7299 = vmul.f32 %v7231, %v7290
    %v7300 = vmul.f32 %v7232, %v7290
    %v7301 = vmul.f32 %v7233, %v7290
    %v7302 = vmul.f32 %v7234, %v7290
    %v7303 = vmul.f32 %v7235, %v7290
    %v7304 = vmul.f32 %v7236, %v7290
    %v7305 = vmul.f32 %v7237, %v7290
    %v7306 = vmul.f32 %v7238, %v7290
    %v7307 = vmul.f32 %v7239, %v7290
    %v7308 = vmul.f32 %v7240, %v7290
    %v7309 = vmul.f32 %v7241, %v7290
    %v7310 = vmul.f32 %v7242, %v7290
    %v7311 = vmul.f32 %v7243, %v7290
    %v7312 = vmul.f32 %v7244, %v7290
    %v7313 = vmul.f32 %v7245, %v7290
    %v7314 = vmul.f32 %v7246, %v7290
    %v7315 = vmul.f32 %v7247, %v7290
    %v7316 = vmul.f32 %v7248, %v7290
    %v7317 = vmul.f32 %v7249, %v7290
    %v7318 = vmul.f32 %v7250, %v7290
    %v7319 = vmul.f32 %v7251, %v7290
    %v7320 = vmul.f32 %v7252, %v7290
    %v7321 = vmul.f32 %v7253, %v7290
    %v7322 = vmul.f32 %v7254, %v7290
    %v7323 = vmul.f32 %v7255, %v7290
    %v7324 = vmul.f32 %v7256, %v7290
    %v7325 = vmul.f32 %v7257, %v7290
    %v7326 = vmul.f32 %v7258, %v7290
    %v7327 = vmul.f32 %v7259, %v7290
    %v7328 = vmul.f32 %v7260, %v7290
    %v7329 = vmul.f32 %v7261, %v7290
    %v7330 = vmul.f32 %v7262, %v7290
    %v7331 = vmul.f32 %v7263, %v7290
    %v7332 = vmul.f32 %v7264, %v7290
    %v7333 = vmul.f32 %v7265, %v7290
    %v7334 = vmul.f32 %v7266, %v7290
    %v7335 = vmul.f32 %v7267, %v7290
    %v7336 = vmul.f32 %v7268, %v7290
    %v7337 = vmul.f32 %v7269, %v7290
    %v7338 = vmul.f32 %v7270, %v7290
    %v7339 = vmul.f32 %v7271, %v7290
    %v7340 = vmul.f32 %v7272, %v7290
    %v7341 = vmul.f32 %v7273, %v7290
    %v7342 = vmul.f32 %v7274, %v7290
    %v7343 = vmul.f32 %v7275, %v7290
    %v7344 = vmul.f32 %v7276, %v7290
    %v7345 = vmul.f32 %v7277, %v7290
    %v7346 = vmul.f32 %v7278, %v7290
    %v7347 = vmul.f32 %v7279, %v7290
    %v7348 = vmul.f32 %v7280, %v7290
    %v7349 = vmul.f32 %v7281, %v7290
    %v7350 = vmul.f32 %v7282, %v7290
    %v7351 = vmul.f32 %v7283, %v7290
    %v7352 = vmul.f32 %v7284, %v7290
    %v7353 = vmul.f32 %v7285, %v7290
    %v7354 = vmul.f32 %v7286, %v7290
    %v7355 = vadd.f32 %v7159, %v7291
    %v7356 = vadd.f32 %v7160, %v7292
    %v7357 = vadd.f32 %v7161, %v7293
    %v7358 = vadd.f32 %v7162, %v7294
    %v7359 = vadd.f32 %v7163, %v7295
    %v7360 = vadd.f32 %v7164, %v7296
    %v7361 = vadd.f32 %v7165, %v7297
    %v7362 = vadd.f32 %v7166, %v7298
    %v7363 = vadd.f32 %v7167, %v7299
    %v7364 = vadd.f32 %v7168, %v7300
    %v7365 = vadd.f32 %v7169, %v7301
    %v7366 = vadd.f32 %v7170, %v7302
    %v7367 = vadd.f32 %v7171, %v7303
    %v7368 = vadd.f32 %v7172, %v7304
    %v7369 = vadd.f32 %v7173, %v7305
    %v7370 = vadd.f32 %v7174, %v7306
    %v7371 = vadd.f32 %v7175, %v7307
    %v7372 = vadd.f32 %v7176, %v7308
    %v7373 = vadd.f32 %v7177, %v7309
    %v7374 = vadd.f32 %v7178, %v7310
    %v7375 = vadd.f32 %v7179, %v7311
    %v7376 = vadd.f32 %v7180, %v7312
    %v7377 = vadd.f32 %v7181, %v7313
    %v7378 = vadd.f32 %v7182, %v7314
    %v7379 = vadd.f32 %v7183, %v7315
    %v7380 = vadd.f32 %v7184, %v7316
    %v7381 = vadd.f32 %v7185, %v7317
    %v7382 = vadd.f32 %v7186, %v7318
    %v7383 = vadd.f32 %v7187, %v7319
    %v7384 = vadd.f32 %v7188, %v7320
    %v7385 = vadd.f32 %v7189, %v7321
    %v7386 = vadd.f32 %v7190, %v7322
    %v7387 = vadd.f32 %v7191, %v7323
    %v7388 = vadd.f32 %v7192, %v7324
    %v7389 = vadd.f32 %v7193, %v7325
    %v7390 = vadd.f32 %v7194, %v7326
    %v7391 = vadd.f32 %v7195, %v7327
    %v7392 = vadd.f32 %v7196, %v7328
    %v7393 = vadd.f32 %v7197, %v7329
    %v7394 = vadd.f32 %v7198, %v7330
    %v7395 = vadd.f32 %v7199, %v7331
    %v7396 = vadd.f32 %v7200, %v7332
    %v7397 = vadd.f32 %v7201, %v7333
    %v7398 = vadd.f32 %v7202, %v7334
    %v7399 = vadd.f32 %v7203, %v7335
    %v7400 = vadd.f32 %v7204, %v7336
    %v7401 = vadd.f32 %v7205, %v7337
    %v7402 = vadd.f32 %v7206, %v7338
    %v7403 = vadd.f32 %v7207, %v7339
    %v7404 = vadd.f32 %v7208, %v7340
    %v7405 = vadd.f32 %v7209, %v7341
    %v7406 = vadd.f32 %v7210, %v7342
    %v7407 = vadd.f32 %v7211, %v7343
    %v7408 = vadd.f32 %v7212, %v7344
    %v7409 = vadd.f32 %v7213, %v7345
    %v7410 = vadd.f32 %v7214, %v7346
    %v7411 = vadd.f32 %v7215, %v7347
    %v7412 = vadd.f32 %v7216, %v7348
    %v7413 = vadd.f32 %v7217, %v7349
    %v7414 = vadd.f32 %v7218, %v7350
    %v7415 = vadd.f32 %v7219, %v7351
    %v7416 = vadd.f32 %v7220, %v7352
    %v7417 = vadd.f32 %v7221, %v7353
    %v7418 = vadd.f32 %v7222, %v7354
    %v7419 = vld [vmem:[%s7026 + $0x4] sm:$0xff]
    %v7420 = vld [vmem:[%s7026 + $0xc] sm:$0xff]
    %v7421 = vld [vmem:[%s7026 + $0x1c] sm:$0xff]
    %v7422 = vld [vmem:[%s7026 + $0x24] sm:$0xff]
    %v7423 = vld [vmem:[%s7026 + $0x34] sm:$0xff]
    %v7424 = vld [vmem:[%s7026 + $0x3c] sm:$0xff]
    %v7425 = vld [vmem:[%s7026 + $0x4c] sm:$0xff]
    %v7426 = vld [vmem:[%s7026 + $0x54] sm:$0xff]
    %v7427 = vld [vmem:[%s7026 + $0x64] sm:$0xff]
    %v7428 = vld [vmem:[%s7026 + $0x6c] sm:$0xff]
    %v7429 = vld [vmem:[%s7026 + $0x7c] sm:$0xff]
    %v7430 = vld [vmem:[%s7026 + $0x84] sm:$0xff]
    %v7431 = vld [vmem:[%s7026 + $0x94] sm:$0xff]
    %v7432 = vld [vmem:[%s7026 + $0x9c] sm:$0xff]
    %v7433 = vld [vmem:[%s7026 + $0xac] sm:$0xff]
    %v7434 = vld [vmem:[%s7026 + $0xb4] sm:$0xff]
    %v7435 = vld [vmem:[%s7026 + $0xc4] sm:$0xff]
    %v7436 = vld [vmem:[%s7026 + $0xcc] sm:$0xff]
    %v7437 = vld [vmem:[%s7026 + $0xdc] sm:$0xff]
    %v7438 = vld [vmem:[%s7026 + $0xe4] sm:$0xff]
    %v7439 = vld [vmem:[%s7026 + $0xf4] sm:$0xff]
    %v7440 = vld [vmem:[%s7026 + $0xfc] sm:$0xff]
    %v7441 = vld [vmem:[%s7026 + $0x10c] sm:$0xff]
    %v7442 = vld [vmem:[%s7026 + $0x114] sm:$0xff]
    %v7443 = vld [vmem:[%s7026 + $0x124] sm:$0xff]
    %v7444 = vld [vmem:[%s7026 + $0x12c] sm:$0xff]
    %v7445 = vld [vmem:[%s7026 + $0x13c] sm:$0xff]
    %v7446 = vld [vmem:[%s7026 + $0x144] sm:$0xff]
    %v7447 = vld [vmem:[%s7026 + $0x154] sm:$0xff]
    %v7448 = vld [vmem:[%s7026 + $0x15c] sm:$0xff]
    %v7449 = vld [vmem:[%s7026 + $0x16c] sm:$0xff]
    %v7450 = vld [vmem:[%s7026 + $0x174] sm:$0xff]
    %v7451 = vld [vmem:[%s7026 + $0x1e4] sm:$0xff]
    %v7452 = vld [vmem:[%s7026 + $0x1ec] sm:$0xff]
    %v7453 = vld [vmem:[%s7026 + $0x1fc] sm:$0xff]
    %v7454 = vld [vmem:[%s7026 + $0x204] sm:$0xff]
    %v7455 = vld [vmem:[%s7026 + $0x214] sm:$0xff]
    %v7456 = vld [vmem:[%s7026 + $0x21c] sm:$0xff]
    %v7457 = vld [vmem:[%s7026 + $0x22c] sm:$0xff]
    %v7458 = vld [vmem:[%s7026 + $0x234] sm:$0xff]
    %v7459 = vld [vmem:[%s7026 + $0x244] sm:$0xff]
    %v7460 = vld [vmem:[%s7026 + $0x24c] sm:$0xff]
    %v7461 = vld [vmem:[%s7026 + $0x25c] sm:$0xff]
    %v7462 = vld [vmem:[%s7026 + $0x264] sm:$0xff]
    %v7463 = vld [vmem:[%s7026 + $0x274] sm:$0xff]
    %v7464 = vld [vmem:[%s7026 + $0x27c] sm:$0xff]
    %v7465 = vld [vmem:[%s7026 + $0x28c] sm:$0xff]
    %v7466 = vld [vmem:[%s7026 + $0x294] sm:$0xff]
    %v7467 = vld [vmem:[%s7026 + $0x2a4] sm:$0xff]
    %v7468 = vld [vmem:[%s7026 + $0x2ac] sm:$0xff]
    %v7469 = vld [vmem:[%s7026 + $0x2bc] sm:$0xff]
    %v7470 = vld [vmem:[%s7026 + $0x2c4] sm:$0xff]
    %v7471 = vld [vmem:[%s7026 + $0x2d4] sm:$0xff]
    %v7472 = vld [vmem:[%s7026 + $0x2dc] sm:$0xff]
    %v7473 = vld [vmem:[%s7026 + $0x2ec] sm:$0xff]
    %v7474 = vld [vmem:[%s7026 + $0x2f4] sm:$0xff]
    %v7475 = vld [vmem:[%s7026 + $0x304] sm:$0xff]
    %v7476 = vld [vmem:[%s7026 + $0x30c] sm:$0xff]
    %v7477 = vld [vmem:[%s7026 + $0x31c] sm:$0xff]
    %v7478 = vld [vmem:[%s7026 + $0x324] sm:$0xff]
    %v7479 = vld [vmem:[%s7026 + $0x334] sm:$0xff]
    %v7480 = vld [vmem:[%s7026 + $0x33c] sm:$0xff]
    %v7481 = vld [vmem:[%s7026 + $0x34c] sm:$0xff]
    %v7482 = vld [vmem:[%s7026 + $0x354] sm:$0xff]
    %v7483 = vlaneseq
    %v7484 = vshrl.u32 %v7483, 7
    %v7485 = vsub.s32 0, %v7484
    %v7486 = vrot.slane %v5849, %v7485
    %v7487 = vmul.f32 %v7419, %v7486
    %v7488 = vmul.f32 %v7420, %v7486
    %v7489 = vmul.f32 %v7421, %v7486
    %v7490 = vmul.f32 %v7422, %v7486
    %v7491 = vmul.f32 %v7423, %v7486
    %v7492 = vmul.f32 %v7424, %v7486
    %v7493 = vmul.f32 %v7425, %v7486
    %v7494 = vmul.f32 %v7426, %v7486
    %v7495 = vmul.f32 %v7427, %v7486
    %v7496 = vmul.f32 %v7428, %v7486
    %v7497 = vmul.f32 %v7429, %v7486
    %v7498 = vmul.f32 %v7430, %v7486
    %v7499 = vmul.f32 %v7431, %v7486
    %v7500 = vmul.f32 %v7432, %v7486
    %v7501 = vmul.f32 %v7433, %v7486
    %v7502 = vmul.f32 %v7434, %v7486
    %v7503 = vmul.f32 %v7435, %v7486
    %v7504 = vmul.f32 %v7436, %v7486
    %v7505 = vmul.f32 %v7437, %v7486
    %v7506 = vmul.f32 %v7438, %v7486
    %v7507 = vmul.f32 %v7439, %v7486
    %v7508 = vmul.f32 %v7440, %v7486
    %v7509 = vmul.f32 %v7441, %v7486
    %v7510 = vmul.f32 %v7442, %v7486
    %v7511 = vmul.f32 %v7443, %v7486
    %v7512 = vmul.f32 %v7444, %v7486
    %v7513 = vmul.f32 %v7445, %v7486
    %v7514 = vmul.f32 %v7446, %v7486
    %v7515 = vmul.f32 %v7447, %v7486
    %v7516 = vmul.f32 %v7448, %v7486
    %v7517 = vmul.f32 %v7449, %v7486
    %v7518 = vmul.f32 %v7450, %v7486
    %v7519 = vmul.f32 %v7451, %v7486
    %v7520 = vmul.f32 %v7452, %v7486
    %v7521 = vmul.f32 %v7453, %v7486
    %v7522 = vmul.f32 %v7454, %v7486
    %v7523 = vmul.f32 %v7455, %v7486
    %v7524 = vmul.f32 %v7456, %v7486
    %v7525 = vmul.f32 %v7457, %v7486
    %v7526 = vmul.f32 %v7458, %v7486
    %v7527 = vmul.f32 %v7459, %v7486
    %v7528 = vmul.f32 %v7460, %v7486
    %v7529 = vmul.f32 %v7461, %v7486
    %v7530 = vmul.f32 %v7462, %v7486
    %v7531 = vmul.f32 %v7463, %v7486
    %v7532 = vmul.f32 %v7464, %v7486
    %v7533 = vmul.f32 %v7465, %v7486
    %v7534 = vmul.f32 %v7466, %v7486
    %v7535 = vmul.f32 %v7467, %v7486
    %v7536 = vmul.f32 %v7468, %v7486
    %v7537 = vmul.f32 %v7469, %v7486
    %v7538 = vmul.f32 %v7470, %v7486
    %v7539 = vmul.f32 %v7471, %v7486
    %v7540 = vmul.f32 %v7472, %v7486
    %v7541 = vmul.f32 %v7473, %v7486
    %v7542 = vmul.f32 %v7474, %v7486
    %v7543 = vmul.f32 %v7475, %v7486
    %v7544 = vmul.f32 %v7476, %v7486
    %v7545 = vmul.f32 %v7477, %v7486
    %v7546 = vmul.f32 %v7478, %v7486
    %v7547 = vmul.f32 %v7479, %v7486
    %v7548 = vmul.f32 %v7480, %v7486
    %v7549 = vmul.f32 %v7481, %v7486
    %v7550 = vmul.f32 %v7482, %v7486
    %v7551 = vadd.f32 %v7355, %v7487
    %v7552 = vadd.f32 %v7356, %v7488
    %v7553 = vadd.f32 %v7357, %v7489
    %v7554 = vadd.f32 %v7358, %v7490
    %v7555 = vadd.f32 %v7359, %v7491
    %v7556 = vadd.f32 %v7360, %v7492
    %v7557 = vadd.f32 %v7361, %v7493
    %v7558 = vadd.f32 %v7362, %v7494
    %v7559 = vadd.f32 %v7363, %v7495
    %v7560 = vadd.f32 %v7364, %v7496
    %v7561 = vadd.f32 %v7365, %v7497
    %v7562 = vadd.f32 %v7366, %v7498
    %v7563 = vadd.f32 %v7367, %v7499
    %v7564 = vadd.f32 %v7368, %v7500
    %v7565 = vadd.f32 %v7369, %v7501
    %v7566 = vadd.f32 %v7370, %v7502
    %v7567 = vadd.f32 %v7371, %v7503
    %v7568 = vadd.f32 %v7372, %v7504
    %v7569 = vadd.f32 %v7373, %v7505
    %v7570 = vadd.f32 %v7374, %v7506
    %v7571 = vadd.f32 %v7375, %v7507
    %v7572 = vadd.f32 %v7376, %v7508
    %v7573 = vadd.f32 %v7377, %v7509
    %v7574 = vadd.f32 %v7378, %v7510
    %v7575 = vadd.f32 %v7379, %v7511
    %v7576 = vadd.f32 %v7380, %v7512
    %v7577 = vadd.f32 %v7381, %v7513
    %v7578 = vadd.f32 %v7382, %v7514
    %v7579 = vadd.f32 %v7383, %v7515
    %v7580 = vadd.f32 %v7384, %v7516
    %v7581 = vadd.f32 %v7385, %v7517
    %v7582 = vadd.f32 %v7386, %v7518
    %v7583 = vadd.f32 %v7387, %v7519
    %v7584 = vadd.f32 %v7388, %v7520
    %v7585 = vadd.f32 %v7389, %v7521
    %v7586 = vadd.f32 %v7390, %v7522
    %v7587 = vadd.f32 %v7391, %v7523
    %v7588 = vadd.f32 %v7392, %v7524
    %v7589 = vadd.f32 %v7393, %v7525
    %v7590 = vadd.f32 %v7394, %v7526
    %v7591 = vadd.f32 %v7395, %v7527
    %v7592 = vadd.f32 %v7396, %v7528
    %v7593 = vadd.f32 %v7397, %v7529
    %v7594 = vadd.f32 %v7398, %v7530
    %v7595 = vadd.f32 %v7399, %v7531
    %v7596 = vadd.f32 %v7400, %v7532
    %v7597 = vadd.f32 %v7401, %v7533
    %v7598 = vadd.f32 %v7402, %v7534
    %v7599 = vadd.f32 %v7403, %v7535
    %v7600 = vadd.f32 %v7404, %v7536
    %v7601 = vadd.f32 %v7405, %v7537
    %v7602 = vadd.f32 %v7406, %v7538
    %v7603 = vadd.f32 %v7407, %v7539
    %v7604 = vadd.f32 %v7408, %v7540
    %v7605 = vadd.f32 %v7409, %v7541
    %v7606 = vadd.f32 %v7410, %v7542
    %v7607 = vadd.f32 %v7411, %v7543
    %v7608 = vadd.f32 %v7412, %v7544
    %v7609 = vadd.f32 %v7413, %v7545
    %v7610 = vadd.f32 %v7414, %v7546
    %v7611 = vadd.f32 %v7415, %v7547
    %v7612 = vadd.f32 %v7416, %v7548
    %v7613 = vadd.f32 %v7417, %v7549
    %v7614 = vadd.f32 %v7418, %v7550
    %v7616 = vlaneseq
    %v7617 = vshrl.u32 %v7616, 7
    %v7618 = vsub.s32 0, %v7617
    %v7619 = vrot.slane %v5555, %v7618
    %v7621 = vadd.f32 %v7551, %v7619
    %v7622 = vadd.f32 %v7552, %v7619
    %v7623 = vadd.f32 %v7553, %v7619
    %v7624 = vadd.f32 %v7554, %v7619
    %v7625 = vadd.f32 %v7555, %v7619
    %v7626 = vadd.f32 %v7556, %v7619
    %v7627 = vadd.f32 %v7557, %v7619
    %v7628 = vadd.f32 %v7558, %v7619
    %v7629 = vadd.f32 %v7559, %v7619
    %v7630 = vadd.f32 %v7560, %v7619
    %v7631 = vadd.f32 %v7561, %v7619
    %v7632 = vadd.f32 %v7562, %v7619
    %v7633 = vadd.f32 %v7563, %v7619
    %v7634 = vadd.f32 %v7564, %v7619
    %v7635 = vadd.f32 %v7565, %v7619
    %v7636 = vadd.f32 %v7566, %v7619
    %v7637 = vadd.f32 %v7567, %v7619
    %v7638 = vadd.f32 %v7568, %v7619
    %v7639 = vadd.f32 %v7569, %v7619
    %v7640 = vadd.f32 %v7570, %v7619
    %v7641 = vadd.f32 %v7571, %v7619
    %v7642 = vadd.f32 %v7572, %v7619
    %v7643 = vadd.f32 %v7573, %v7619
    %v7644 = vadd.f32 %v7574, %v7619
    %v7645 = vadd.f32 %v7575, %v7619
    %v7646 = vadd.f32 %v7576, %v7619
    %v7647 = vadd.f32 %v7577, %v7619
    %v7648 = vadd.f32 %v7578, %v7619
    %v7649 = vadd.f32 %v7579, %v7619
    %v7650 = vadd.f32 %v7580, %v7619
    %v7651 = vadd.f32 %v7581, %v7619
    %v7652 = vadd.f32 %v7582, %v7619
    %v7653 = vadd.f32 %v7583, %v7619
    %v7654 = vadd.f32 %v7584, %v7619
    %v7655 = vadd.f32 %v7585, %v7619
    %v7656 = vadd.f32 %v7586, %v7619
    %v7657 = vadd.f32 %v7587, %v7619
    %v7658 = vadd.f32 %v7588, %v7619
    %v7659 = vadd.f32 %v7589, %v7619
    %v7660 = vadd.f32 %v7590, %v7619
    %v7661 = vadd.f32 %v7591, %v7619
    %v7662 = vadd.f32 %v7592, %v7619
    %v7663 = vadd.f32 %v7593, %v7619
    %v7664 = vadd.f32 %v7594, %v7619
    %v7665 = vadd.f32 %v7595, %v7619
    %v7666 = vadd.f32 %v7596, %v7619
    %v7667 = vadd.f32 %v7597, %v7619
    %v7668 = vadd.f32 %v7598, %v7619
    %v7669 = vadd.f32 %v7599, %v7619
    %v7670 = vadd.f32 %v7600, %v7619
    %v7671 = vadd.f32 %v7601, %v7619
    %v7672 = vadd.f32 %v7602, %v7619
    %v7673 = vadd.f32 %v7603, %v7619
    %v7674 = vadd.f32 %v7604, %v7619
    %v7675 = vadd.f32 %v7605, %v7619
    %v7676 = vadd.f32 %v7606, %v7619
    %v7677 = vadd.f32 %v7607, %v7619
    %v7678 = vadd.f32 %v7608, %v7619
    %v7679 = vadd.f32 %v7609, %v7619
    %v7680 = vadd.f32 %v7610, %v7619
    %v7681 = vadd.f32 %v7611, %v7619
    %v7682 = vadd.f32 %v7612, %v7619
    %v7683 = vadd.f32 %v7613, %v7619
    %v7684 = vadd.f32 %v7614, %v7619
    %vm7685 = vcmp.ge.f32.partialorder %v7621, 0.0
    %vm7686 = vcmp.ge.f32.partialorder %v7622, 0.0
    %vm7687 = vcmp.ge.f32.partialorder %v7623, 0.0
    %vm7688 = vcmp.ge.f32.partialorder %v7624, 0.0
    %vm7689 = vcmp.ge.f32.partialorder %v7625, 0.0
    %vm7690 = vcmp.ge.f32.partialorder %v7626, 0.0
    %vm7691 = vcmp.ge.f32.partialorder %v7627, 0.0
    %vm7692 = vcmp.ge.f32.partialorder %v7628, 0.0
    %vm7693 = vcmp.ge.f32.partialorder %v7629, 0.0
    %vm7694 = vcmp.ge.f32.partialorder %v7630, 0.0
    %vm7695 = vcmp.ge.f32.partialorder %v7631, 0.0
    %vm7696 = vcmp.ge.f32.partialorder %v7632, 0.0
    %vm7697 = vcmp.ge.f32.partialorder %v7633, 0.0
    %vm7698 = vcmp.ge.f32.partialorder %v7634, 0.0
    %vm7699 = vcmp.ge.f32.partialorder %v7635, 0.0
    %vm7700 = vcmp.ge.f32.partialorder %v7636, 0.0
    %vm7701 = vcmp.ge.f32.partialorder %v7637, 0.0
    %vm7702 = vcmp.ge.f32.partialorder %v7638, 0.0
    %vm7703 = vcmp.ge.f32.partialorder %v7639, 0.0
    %vm7704 = vcmp.ge.f32.partialorder %v7640, 0.0
    %vm7705 = vcmp.ge.f32.partialorder %v7641, 0.0
    %vm7706 = vcmp.ge.f32.partialorder %v7642, 0.0
    %vm7707 = vcmp.ge.f32.partialorder %v7643, 0.0
    %vm7708 = vcmp.ge.f32.partialorder %v7644, 0.0
    %vm7709 = vcmp.ge.f32.partialorder %v7645, 0.0
    %vm7710 = vcmp.ge.f32.partialorder %v7646, 0.0
    %vm7711 = vcmp.ge.f32.partialorder %v7647, 0.0
    %vm7712 = vcmp.ge.f32.partialorder %v7648, 0.0
    %vm7713 = vcmp.ge.f32.partialorder %v7649, 0.0
    %vm7714 = vcmp.ge.f32.partialorder %v7650, 0.0
    %vm7715 = vcmp.ge.f32.partialorder %v7651, 0.0
    %vm7716 = vcmp.ge.f32.partialorder %v7652, 0.0
    %vm7717 = vcmp.ge.f32.partialorder %v7653, 0.0
    %vm7718 = vcmp.ge.f32.partialorder %v7654, 0.0
    %vm7719 = vcmp.ge.f32.partialorder %v7655, 0.0
    %vm7720 = vcmp.ge.f32.partialorder %v7656, 0.0
    %vm7721 = vcmp.ge.f32.partialorder %v7657, 0.0
    %vm7722 = vcmp.ge.f32.partialorder %v7658, 0.0
    %vm7723 = vcmp.ge.f32.partialorder %v7659, 0.0
    %vm7724 = vcmp.ge.f32.partialorder %v7660, 0.0
    %vm7725 = vcmp.ge.f32.partialorder %v7661, 0.0
    %vm7726 = vcmp.ge.f32.partialorder %v7662, 0.0
    %vm7727 = vcmp.ge.f32.partialorder %v7663, 0.0
    %vm7728 = vcmp.ge.f32.partialorder %v7664, 0.0
    %vm7729 = vcmp.ge.f32.partialorder %v7665, 0.0
    %vm7730 = vcmp.ge.f32.partialorder %v7666, 0.0
    %vm7731 = vcmp.ge.f32.partialorder %v7667, 0.0
    %vm7732 = vcmp.ge.f32.partialorder %v7668, 0.0
    %vm7733 = vcmp.ge.f32.partialorder %v7669, 0.0
    %vm7734 = vcmp.ge.f32.partialorder %v7670, 0.0
    %vm7735 = vcmp.ge.f32.partialorder %v7671, 0.0
    %vm7736 = vcmp.ge.f32.partialorder %v7672, 0.0
    %vm7737 = vcmp.ge.f32.partialorder %v7673, 0.0
    %vm7738 = vcmp.ge.f32.partialorder %v7674, 0.0
    %vm7739 = vcmp.ge.f32.partialorder %v7675, 0.0
    %vm7740 = vcmp.ge.f32.partialorder %v7676, 0.0
    %vm7741 = vcmp.ge.f32.partialorder %v7677, 0.0
    %vm7742 = vcmp.ge.f32.partialorder %v7678, 0.0
    %vm7743 = vcmp.ge.f32.partialorder %v7679, 0.0
    %vm7744 = vcmp.ge.f32.partialorder %v7680, 0.0
    %vm7745 = vcmp.ge.f32.partialorder %v7681, 0.0
    %vm7746 = vcmp.ge.f32.partialorder %v7682, 0.0
    %vm7747 = vcmp.ge.f32.partialorder %v7683, 0.0
    %vm7748 = vcmp.ge.f32.partialorder %v7684, 0.0
    %v7749 = vmul.f32 %v7621, 0.01
    %v7750 = vmul.f32 %v7622, 0.01
    %v7751 = vmul.f32 %v7623, 0.01
    %v7752 = vmul.f32 %v7624, 0.01
    %v7753 = vmul.f32 %v7625, 0.01
    %v7754 = vmul.f32 %v7626, 0.01
    %v7755 = vmul.f32 %v7627, 0.01
    %v7756 = vmul.f32 %v7628, 0.01
    %v7757 = vmul.f32 %v7629, 0.01
    %v7758 = vmul.f32 %v7630, 0.01
    %v7759 = vmul.f32 %v7631, 0.01
    %v7760 = vmul.f32 %v7632, 0.01
    %v7761 = vmul.f32 %v7633, 0.01
    %v7762 = vmul.f32 %v7634, 0.01
    %v7763 = vmul.f32 %v7635, 0.01
    %v7764 = vmul.f32 %v7636, 0.01
    %v7765 = vmul.f32 %v7637, 0.01
    %v7766 = vmul.f32 %v7638, 0.01
    %v7767 = vmul.f32 %v7639, 0.01
    %v7768 = vmul.f32 %v7640, 0.01
    %v7769 = vmul.f32 %v7641, 0.01
    %v7770 = vmul.f32 %v7642, 0.01
    %v7771 = vmul.f32 %v7643, 0.01
    %v7772 = vmul.f32 %v7644, 0.01
    %v7773 = vmul.f32 %v7645, 0.01
    %v7774 = vmul.f32 %v7646, 0.01
    %v7775 = vmul.f32 %v7647, 0.01
    %v7776 = vmul.f32 %v7648, 0.01
    %v7777 = vmul.f32 %v7649, 0.01
    %v7778 = vmul.f32 %v7650, 0.01
    %v7779 = vmul.f32 %v7651, 0.01
    %v7780 = vmul.f32 %v7652, 0.01
    %v7781 = vmul.f32 %v7653, 0.01
    %v7782 = vmul.f32 %v7654, 0.01
    %v7783 = vmul.f32 %v7655, 0.01
    %v7784 = vmul.f32 %v7656, 0.01
    %v7785 = vmul.f32 %v7657, 0.01
    %v7786 = vmul.f32 %v7658, 0.01
    %v7787 = vmul.f32 %v7659, 0.01
    %v7788 = vmul.f32 %v7660, 0.01
    %v7789 = vmul.f32 %v7661, 0.01
    %v7790 = vmul.f32 %v7662, 0.01
    %v7791 = vmul.f32 %v7663, 0.01
    %v7792 = vmul.f32 %v7664, 0.01
    %v7793 = vmul.f32 %v7665, 0.01
    %v7794 = vmul.f32 %v7666, 0.01
    %v7795 = vmul.f32 %v7667, 0.01
    %v7796 = vmul.f32 %v7668, 0.01
    %v7797 = vmul.f32 %v7669, 0.01
    %v7798 = vmul.f32 %v7670, 0.01
    %v7799 = vmul.f32 %v7671, 0.01
    %v7800 = vmul.f32 %v7672, 0.01
    %v7801 = vmul.f32 %v7673, 0.01
    %v7802 = vmul.f32 %v7674, 0.01
    %v7803 = vmul.f32 %v7675, 0.01
    %v7804 = vmul.f32 %v7676, 0.01
    %v7805 = vmul.f32 %v7677, 0.01
    %v7806 = vmul.f32 %v7678, 0.01
    %v7807 = vmul.f32 %v7679, 0.01
    %v7808 = vmul.f32 %v7680, 0.01
    %v7809 = vmul.f32 %v7681, 0.01
    %v7810 = vmul.f32 %v7682, 0.01
    %v7811 = vmul.f32 %v7683, 0.01
    %v7812 = vmul.f32 %v7684, 0.01
    %v7813 = vsel %vm7685, %v7621, %v7749
    %v7814 = vsel %vm7686, %v7622, %v7750
    %v7815 = vsel %vm7687, %v7623, %v7751
    %v7816 = vsel %vm7688, %v7624, %v7752
    %v7817 = vsel %vm7689, %v7625, %v7753
    %v7818 = vsel %vm7690, %v7626, %v7754
    %v7819 = vsel %vm7691, %v7627, %v7755
    %v7820 = vsel %vm7692, %v7628, %v7756
    %v7821 = vsel %vm7693, %v7629, %v7757
    %v7822 = vsel %vm7694, %v7630, %v7758
    %v7823 = vsel %vm7695, %v7631, %v7759
    %v7824 = vsel %vm7696, %v7632, %v7760
    %v7825 = vsel %vm7697, %v7633, %v7761
    %v7826 = vsel %vm7698, %v7634, %v7762
    %v7827 = vsel %vm7699, %v7635, %v7763
    %v7828 = vsel %vm7700, %v7636, %v7764
    %v7829 = vsel %vm7701, %v7637, %v7765
    %v7830 = vsel %vm7702, %v7638, %v7766
    %v7831 = vsel %vm7703, %v7639, %v7767
    %v7832 = vsel %vm7704, %v7640, %v7768
    %v7833 = vsel %vm7705, %v7641, %v7769
    %v7834 = vsel %vm7706, %v7642, %v7770
    %v7835 = vsel %vm7707, %v7643, %v7771
    %v7836 = vsel %vm7708, %v7644, %v7772
    %v7837 = vsel %vm7709, %v7645, %v7773
    %v7838 = vsel %vm7710, %v7646, %v7774
    %v7839 = vsel %vm7711, %v7647, %v7775
    %v7840 = vsel %vm7712, %v7648, %v7776
    %v7841 = vsel %vm7713, %v7649, %v7777
    %v7842 = vsel %vm7714, %v7650, %v7778
    %v7843 = vsel %vm7715, %v7651, %v7779
    %v7844 = vsel %vm7716, %v7652, %v7780
    %v7845 = vsel %vm7717, %v7653, %v7781
    %v7846 = vsel %vm7718, %v7654, %v7782
    %v7847 = vsel %vm7719, %v7655, %v7783
    %v7848 = vsel %vm7720, %v7656, %v7784
    %v7849 = vsel %vm7721, %v7657, %v7785
    %v7850 = vsel %vm7722, %v7658, %v7786
    %v7851 = vsel %vm7723, %v7659, %v7787
    %v7852 = vsel %vm7724, %v7660, %v7788
    %v7853 = vsel %vm7725, %v7661, %v7789
    %v7854 = vsel %vm7726, %v7662, %v7790
    %v7855 = vsel %vm7727, %v7663, %v7791
    %v7856 = vsel %vm7728, %v7664, %v7792
    %v7857 = vsel %vm7729, %v7665, %v7793
    %v7858 = vsel %vm7730, %v7666, %v7794
    %v7859 = vsel %vm7731, %v7667, %v7795
    %v7860 = vsel %vm7732, %v7668, %v7796
    %v7861 = vsel %vm7733, %v7669, %v7797
    %v7862 = vsel %vm7734, %v7670, %v7798
    %v7863 = vsel %vm7735, %v7671, %v7799
    %v7864 = vsel %vm7736, %v7672, %v7800
    %v7865 = vsel %vm7737, %v7673, %v7801
    %v7866 = vsel %vm7738, %v7674, %v7802
    %v7867 = vsel %vm7739, %v7675, %v7803
    %v7868 = vsel %vm7740, %v7676, %v7804
    %v7869 = vsel %vm7741, %v7677, %v7805
    %v7870 = vsel %vm7742, %v7678, %v7806
    %v7871 = vsel %vm7743, %v7679, %v7807
    %v7872 = vsel %vm7744, %v7680, %v7808
    %v7873 = vsel %vm7745, %v7681, %v7809
    %v7874 = vsel %vm7746, %v7682, %v7810
    %v7875 = vsel %vm7747, %v7683, %v7811
    %v7876 = vsel %vm7748, %v7684, %v7812
    %v7877 = vld [vmem:[%s15] sm:$0x1]
    %v7878 = vld [vmem:[%s16] sm:$0x1]
    %v7879 = vld [vmem:[%s17] sm:$0xff]
    %v7880 = vld [vmem:[%s17 + $0x8] sm:$0xff]
    %v7881 = vld [vmem:[%s18] sm:$0x1]
    %v7882 = vsel %vm1754, %v7813, 0.0
    %v7883 = vsel %vm1754, %v7814, 0.0
    %v7884 = vadd.f32 %v7882, %v7883
    %v7885 = vsel %vm1754, %v7815, 0.0
    %v7886 = vadd.f32 %v7884, %v7885
    %v7887 = vsel %vm1754, %v7816, 0.0
    %v7888 = vadd.f32 %v7886, %v7887
    %v7889 = vsel %vm1754, %v7817, 0.0
    %v7890 = vadd.f32 %v7888, %v7889
    %v7891 = vsel %vm1754, %v7818, 0.0
    %v7892 = vadd.f32 %v7890, %v7891
    %v7893 = vsel %vm1754, %v7819, 0.0
    %v7894 = vadd.f32 %v7892, %v7893
    %v7895 = vsel %vm1754, %v7820, 0.0
    %v7896 = vadd.f32 %v7894, %v7895
    %v7897 = vsel %vm1754, %v7821, 0.0
    %v7898 = vadd.f32 %v7896, %v7897
    %v7899 = vsel %vm1754, %v7822, 0.0
    %v7900 = vadd.f32 %v7898, %v7899
    %v7901 = vsel %vm1754, %v7823, 0.0
    %v7902 = vadd.f32 %v7900, %v7901
    %v7903 = vsel %vm1754, %v7824, 0.0
    %v7904 = vadd.f32 %v7902, %v7903
    %v7905 = vsel %vm1754, %v7825, 0.0
    %v7906 = vadd.f32 %v7904, %v7905
    %v7907 = vsel %vm1754, %v7826, 0.0
    %v7908 = vadd.f32 %v7906, %v7907
    %v7909 = vsel %vm1754, %v7827, 0.0
    %v7910 = vadd.f32 %v7908, %v7909
    %v7911 = vsel %vm1754, %v7828, 0.0
    %v7912 = vadd.f32 %v7910, %v7911
    %v7913 = vsel %vm1754, %v7829, 0.0
    %v7914 = vadd.f32 %v7912, %v7913
    %v7915 = vsel %vm1754, %v7830, 0.0
    %v7916 = vadd.f32 %v7914, %v7915
    %v7917 = vsel %vm1754, %v7831, 0.0
    %v7918 = vadd.f32 %v7916, %v7917
    %v7919 = vsel %vm1754, %v7832, 0.0
    %v7920 = vadd.f32 %v7918, %v7919
    %v7921 = vsel %vm1754, %v7833, 0.0
    %v7922 = vadd.f32 %v7920, %v7921
    %v7923 = vsel %vm1754, %v7834, 0.0
    %v7924 = vadd.f32 %v7922, %v7923
    %v7925 = vsel %vm1754, %v7835, 0.0
    %v7926 = vadd.f32 %v7924, %v7925
    %v7927 = vsel %vm1754, %v7836, 0.0
    %v7928 = vadd.f32 %v7926, %v7927
    %v7929 = vsel %vm1754, %v7837, 0.0
    %v7930 = vadd.f32 %v7928, %v7929
    %v7931 = vsel %vm1754, %v7838, 0.0
    %v7932 = vadd.f32 %v7930, %v7931
    %v7933 = vsel %vm1754, %v7839, 0.0
    %v7934 = vadd.f32 %v7932, %v7933
    %v7935 = vsel %vm1754, %v7840, 0.0
    %v7936 = vadd.f32 %v7934, %v7935
    %v7937 = vsel %vm1754, %v7841, 0.0
    %v7938 = vadd.f32 %v7936, %v7937
    %v7939 = vsel %vm1754, %v7842, 0.0
    %v7940 = vadd.f32 %v7938, %v7939
    %v7941 = vsel %vm1754, %v7843, 0.0
    %v7942 = vadd.f32 %v7940, %v7941
    %v7943 = vsel %vm1754, %v7844, 0.0
    %v7944 = vadd.f32 %v7942, %v7943
    %v7945 = vsel %vm1754, %v7845, 0.0
    %v7946 = vadd.f32 %v7944, %v7945
    %v7947 = vsel %vm1754, %v7846, 0.0
    %v7948 = vadd.f32 %v7946, %v7947
    %v7949 = vsel %vm1754, %v7847, 0.0
    %v7950 = vadd.f32 %v7948, %v7949
    %v7951 = vsel %vm1754, %v7848, 0.0
    %v7952 = vadd.f32 %v7950, %v7951
    %v7953 = vsel %vm1754, %v7849, 0.0
    %v7954 = vadd.f32 %v7952, %v7953
    %v7955 = vsel %vm1754, %v7850, 0.0
    %v7956 = vadd.f32 %v7954, %v7955
    %v7957 = vsel %vm1754, %v7851, 0.0
    %v7958 = vadd.f32 %v7956, %v7957
    %v7959 = vsel %vm1754, %v7852, 0.0
    %v7960 = vadd.f32 %v7958, %v7959
    %v7961 = vsel %vm1754, %v7853, 0.0
    %v7962 = vadd.f32 %v7960, %v7961
    %v7963 = vsel %vm1754, %v7854, 0.0
    %v7964 = vadd.f32 %v7962, %v7963
    %v7965 = vsel %vm1754, %v7855, 0.0
    %v7966 = vadd.f32 %v7964, %v7965
    %v7967 = vsel %vm1754, %v7856, 0.0
    %v7968 = vadd.f32 %v7966, %v7967
    %v7969 = vsel %vm1754, %v7857, 0.0
    %v7970 = vadd.f32 %v7968, %v7969
    %v7971 = vsel %vm1754, %v7858, 0.0
    %v7972 = vadd.f32 %v7970, %v7971
    %v7973 = vsel %vm1754, %v7859, 0.0
    %v7974 = vadd.f32 %v7972, %v7973
    %v7975 = vsel %vm1754, %v7860, 0.0
    %v7976 = vadd.f32 %v7974, %v7975
    %v7977 = vsel %vm1754, %v7861, 0.0
    %v7978 = vadd.f32 %v7976, %v7977
    %v7979 = vsel %vm1754, %v7862, 0.0
    %v7980 = vadd.f32 %v7978, %v7979
    %v7981 = vsel %vm1754, %v7863, 0.0
    %v7982 = vadd.f32 %v7980, %v7981
    %v7983 = vsel %vm1754, %v7864, 0.0
    %v7984 = vadd.f32 %v7982, %v7983
    %v7985 = vsel %vm1754, %v7865, 0.0
    %v7986 = vadd.f32 %v7984, %v7985
    %v7987 = vsel %vm1754, %v7866, 0.0
    %v7988 = vadd.f32 %v7986, %v7987
    %v7989 = vsel %vm1754, %v7867, 0.0
    %v7990 = vadd.f32 %v7988, %v7989
    %v7991 = vsel %vm1754, %v7868, 0.0
    %v7992 = vadd.f32 %v7990, %v7991
    %v7993 = vsel %vm1754, %v7869, 0.0
    %v7994 = vadd.f32 %v7992, %v7993
    %v7995 = vsel %vm1754, %v7870, 0.0
    %v7996 = vadd.f32 %v7994, %v7995
    %v7997 = vsel %vm1754, %v7871, 0.0
    %v7998 = vadd.f32 %v7996, %v7997
    %v7999 = vsel %vm1754, %v7872, 0.0
    %v8000 = vadd.f32 %v7998, %v7999
    %v8001 = vsel %vm1754, %v7873, 0.0
    %v8002 = vadd.f32 %v8000, %v8001
    %v8003 = vsel %vm1754, %v7874, 0.0
    %v8004 = vadd.f32 %v8002, %v8003
    %v8005 = vsel %vm1754, %v7875, 0.0
    %v8006 = vadd.f32 %v8004, %v8005
    %v8007 = vsel %vm1754, %v7876, 0.0
    %v8008 = vadd.f32 %v8006, %v8007
    %v8009 = vrot.slane %v8008, 4
    %v8010 = vadd.f32 %v8008, %v8009
    %v8011 = vrot.slane %v8010, 2
    %v8012 = vadd.f32 %v8010, %v8011
    %v8013 = vrot.slane %v8012, 1
    %v8014 = vadd.f32 %v8012, %v8013
    %v8015 = vmul.f32 %v7813, %v7813
    %v8016 = vmul.f32 %v7814, %v7814
    %v8017 = vmul.f32 %v7815, %v7815
    %v8018 = vmul.f32 %v7816, %v7816
    %v8019 = vmul.f32 %v7817, %v7817
    %v8020 = vmul.f32 %v7818, %v7818
    %v8021 = vmul.f32 %v7819, %v7819
    %v8022 = vmul.f32 %v7820, %v7820
    %v8023 = vmul.f32 %v7821, %v7821
    %v8024 = vmul.f32 %v7822, %v7822
    %v8025 = vmul.f32 %v7823, %v7823
    %v8026 = vmul.f32 %v7824, %v7824
    %v8027 = vmul.f32 %v7825, %v7825
    %v8028 = vmul.f32 %v7826, %v7826
    %v8029 = vmul.f32 %v7827, %v7827
    %v8030 = vmul.f32 %v7828, %v7828
    %v8031 = vmul.f32 %v7829, %v7829
    %v8032 = vmul.f32 %v7830, %v7830
    %v8033 = vmul.f32 %v7831, %v7831
    %v8034 = vmul.f32 %v7832, %v7832
    %v8035 = vmul.f32 %v7833, %v7833
    %v8036 = vmul.f32 %v7834, %v7834
    %v8037 = vmul.f32 %v7835, %v7835
    %v8038 = vmul.f32 %v7836, %v7836
    %v8039 = vmul.f32 %v7837, %v7837
    %v8040 = vmul.f32 %v7838, %v7838
    %v8041 = vmul.f32 %v7839, %v7839
    %v8042 = vmul.f32 %v7840, %v7840
    %v8043 = vmul.f32 %v7841, %v7841
    %v8044 = vmul.f32 %v7842, %v7842
    %v8045 = vmul.f32 %v7843, %v7843
    %v8046 = vmul.f32 %v7844, %v7844
    %v8047 = vmul.f32 %v7845, %v7845
    %v8048 = vmul.f32 %v7846, %v7846
    %v8049 = vmul.f32 %v7847, %v7847
    %v8050 = vmul.f32 %v7848, %v7848
    %v8051 = vmul.f32 %v7849, %v7849
    %v8052 = vmul.f32 %v7850, %v7850
    %v8053 = vmul.f32 %v7851, %v7851
    %v8054 = vmul.f32 %v7852, %v7852
    %v8055 = vmul.f32 %v7853, %v7853
    %v8056 = vmul.f32 %v7854, %v7854
    %v8057 = vmul.f32 %v7855, %v7855
    %v8058 = vmul.f32 %v7856, %v7856
    %v8059 = vmul.f32 %v7857, %v7857
    %v8060 = vmul.f32 %v7858, %v7858
    %v8061 = vmul.f32 %v7859, %v7859
    %v8062 = vmul.f32 %v7860, %v7860
    %v8063 = vmul.f32 %v7861, %v7861
    %v8064 = vmul.f32 %v7862, %v7862
    %v8065 = vmul.f32 %v7863, %v7863
    %v8066 = vmul.f32 %v7864, %v7864
    %v8067 = vmul.f32 %v7865, %v7865
    %v8068 = vmul.f32 %v7866, %v7866
    %v8069 = vmul.f32 %v7867, %v7867
    %v8070 = vmul.f32 %v7868, %v7868
    %v8071 = vmul.f32 %v7869, %v7869
    %v8072 = vmul.f32 %v7870, %v7870
    %v8073 = vmul.f32 %v7871, %v7871
    %v8074 = vmul.f32 %v7872, %v7872
    %v8075 = vmul.f32 %v7873, %v7873
    %v8076 = vmul.f32 %v7874, %v7874
    %v8077 = vmul.f32 %v7875, %v7875
    %v8078 = vmul.f32 %v7876, %v7876
    %v8079 = vsel %vm1754, %v8015, 0.0
    %v8080 = vsel %vm1754, %v8016, 0.0
    %v8081 = vadd.f32 %v8079, %v8080
    %v8082 = vsel %vm1754, %v8017, 0.0
    %v8083 = vadd.f32 %v8081, %v8082
    %v8084 = vsel %vm1754, %v8018, 0.0
    %v8085 = vadd.f32 %v8083, %v8084
    %v8086 = vsel %vm1754, %v8019, 0.0
    %v8087 = vadd.f32 %v8085, %v8086
    %v8088 = vsel %vm1754, %v8020, 0.0
    %v8089 = vadd.f32 %v8087, %v8088
    %v8090 = vsel %vm1754, %v8021, 0.0
    %v8091 = vadd.f32 %v8089, %v8090
    %v8092 = vsel %vm1754, %v8022, 0.0
    %v8093 = vadd.f32 %v8091, %v8092
    %v8094 = vsel %vm1754, %v8023, 0.0
    %v8095 = vadd.f32 %v8093, %v8094
    %v8096 = vsel %vm1754, %v8024, 0.0
    %v8097 = vadd.f32 %v8095, %v8096
    %v8098 = vsel %vm1754, %v8025, 0.0
    %v8099 = vadd.f32 %v8097, %v8098
    %v8100 = vsel %vm1754, %v8026, 0.0
    %v8101 = vadd.f32 %v8099, %v8100
    %v8102 = vsel %vm1754, %v8027, 0.0
    %v8103 = vadd.f32 %v8101, %v8102
    %v8104 = vsel %vm1754, %v8028, 0.0
    %v8105 = vadd.f32 %v8103, %v8104
    %v8106 = vsel %vm1754, %v8029, 0.0
    %v8107 = vadd.f32 %v8105, %v8106
    %v8108 = vsel %vm1754, %v8030, 0.0
    %v8109 = vadd.f32 %v8107, %v8108
    %v8110 = vsel %vm1754, %v8031, 0.0
    %v8111 = vadd.f32 %v8109, %v8110
    %v8112 = vsel %vm1754, %v8032, 0.0
    %v8113 = vadd.f32 %v8111, %v8112
    %v8114 = vsel %vm1754, %v8033, 0.0
    %v8115 = vadd.f32 %v8113, %v8114
    %v8116 = vsel %vm1754, %v8034, 0.0
    %v8117 = vadd.f32 %v8115, %v8116
    %v8118 = vsel %vm1754, %v8035, 0.0
    %v8119 = vadd.f32 %v8117, %v8118
    %v8120 = vsel %vm1754, %v8036, 0.0
    %v8121 = vadd.f32 %v8119, %v8120
    %v8122 = vsel %vm1754, %v8037, 0.0
    %v8123 = vadd.f32 %v8121, %v8122
    %v8124 = vsel %vm1754, %v8038, 0.0
    %v8125 = vadd.f32 %v8123, %v8124
    %v8126 = vsel %vm1754, %v8039, 0.0
    %v8127 = vadd.f32 %v8125, %v8126
    %v8128 = vsel %vm1754, %v8040, 0.0
    %v8129 = vadd.f32 %v8127, %v8128
    %v8130 = vsel %vm1754, %v8041, 0.0
    %v8131 = vadd.f32 %v8129, %v8130
    %v8132 = vsel %vm1754, %v8042, 0.0
    %v8133 = vadd.f32 %v8131, %v8132
    %v8134 = vsel %vm1754, %v8043, 0.0
    %v8135 = vadd.f32 %v8133, %v8134
    %v8136 = vsel %vm1754, %v8044, 0.0
    %v8137 = vadd.f32 %v8135, %v8136
    %v8138 = vsel %vm1754, %v8045, 0.0
    %v8139 = vadd.f32 %v8137, %v8138
    %v8140 = vsel %vm1754, %v8046, 0.0
    %v8141 = vadd.f32 %v8139, %v8140
    %v8142 = vsel %vm1754, %v8047, 0.0
    %v8143 = vadd.f32 %v8141, %v8142
    %v8144 = vsel %vm1754, %v8048, 0.0
    %v8145 = vadd.f32 %v8143, %v8144
    %v8146 = vsel %vm1754, %v8049, 0.0
    %v8147 = vadd.f32 %v8145, %v8146
    %v8148 = vsel %vm1754, %v8050, 0.0
    %v8149 = vadd.f32 %v8147, %v8148
    %v8150 = vsel %vm1754, %v8051, 0.0
    %v8151 = vadd.f32 %v8149, %v8150
    %v8152 = vsel %vm1754, %v8052, 0.0
    %v8153 = vadd.f32 %v8151, %v8152
    %v8154 = vsel %vm1754, %v8053, 0.0
    %v8155 = vadd.f32 %v8153, %v8154
    %v8156 = vsel %vm1754, %v8054, 0.0
    %v8157 = vadd.f32 %v8155, %v8156
    %v8158 = vsel %vm1754, %v8055, 0.0
    %v8159 = vadd.f32 %v8157, %v8158
    %v8160 = vsel %vm1754, %v8056, 0.0
    %v8161 = vadd.f32 %v8159, %v8160
    %v8162 = vsel %vm1754, %v8057, 0.0
    %v8163 = vadd.f32 %v8161, %v8162
    %v8164 = vsel %vm1754, %v8058, 0.0
    %v8165 = vadd.f32 %v8163, %v8164
    %v8166 = vsel %vm1754, %v8059, 0.0
    %v8167 = vadd.f32 %v8165, %v8166
    %v8168 = vsel %vm1754, %v8060, 0.0
    %v8169 = vadd.f32 %v8167, %v8168
    %v8170 = vsel %vm1754, %v8061, 0.0
    %v8171 = vadd.f32 %v8169, %v8170
    %v8172 = vsel %vm1754, %v8062, 0.0
    %v8173 = vadd.f32 %v8171, %v8172
    %v8174 = vsel %vm1754, %v8063, 0.0
    %v8175 = vadd.f32 %v8173, %v8174
    %v8176 = vsel %vm1754, %v8064, 0.0
    %v8177 = vadd.f32 %v8175, %v8176
    %v8178 = vsel %vm1754, %v8065, 0.0
    %v8179 = vadd.f32 %v8177, %v8178
    %v8180 = vsel %vm1754, %v8066, 0.0
    %v8181 = vadd.f32 %v8179, %v8180
    %v8182 = vsel %vm1754, %v8067, 0.0
    %v8183 = vadd.f32 %v8181, %v8182
    %v8184 = vsel %vm1754, %v8068, 0.0
    %v8185 = vadd.f32 %v8183, %v8184
    %v8186 = vsel %vm1754, %v8069, 0.0
    %v8187 = vadd.f32 %v8185, %v8186
    %v8188 = vsel %vm1754, %v8070, 0.0
    %v8189 = vadd.f32 %v8187, %v8188
    %v8190 = vsel %vm1754, %v8071, 0.0
    %v8191 = vadd.f32 %v8189, %v8190
    %v8192 = vsel %vm1754, %v8072, 0.0
    %v8193 = vadd.f32 %v8191, %v8192
    %v8194 = vsel %vm1754, %v8073, 0.0
    %v8195 = vadd.f32 %v8193, %v8194
    %v8196 = vsel %vm1754, %v8074, 0.0
    %v8197 = vadd.f32 %v8195, %v8196
    %v8198 = vsel %vm1754, %v8075, 0.0
    %v8199 = vadd.f32 %v8197, %v8198
    %v8200 = vsel %vm1754, %v8076, 0.0
    %v8201 = vadd.f32 %v8199, %v8200
    %v8202 = vsel %vm1754, %v8077, 0.0
    %v8203 = vadd.f32 %v8201, %v8202
    %v8204 = vsel %vm1754, %v8078, 0.0
    %v8205 = vadd.f32 %v8203, %v8204
    %v8206 = vrot.slane %v8205, 4
    %v8207 = vadd.f32 %v8205, %v8206
    %v8208 = vrot.slane %v8207, 2
    %v8209 = vadd.f32 %v8207, %v8208
    %v8210 = vrot.slane %v8209, 1
    %v8211 = vadd.f32 %v8209, %v8210
    %v8212 = vmul.f32 %v8014, 0.001953125
    %v8213 = vmul.f32 %v8211, 0.001953125
    %v8214 = vmul.f32 %v8212, %v8212
    %v8215 = vsub.f32 %v8213, %v8214
    %v8216 = vadd.f32 %v8215, 1e-05
    %v8217 = vrsqrt.pop %v8216
    %v8218 = vmul.f32 %v8217, %v7877
    %v8219 = vmul.f32 %v8212, %v8218
    %v8220 = vsub.f32 %v7878, %v8219
    %v8221 = vlaneseq
    %v8222 = vshrl.u32 %v8221, 7
    %v8223 = vsub.s32 0, %v8222
    %v8224 = vrot.slane %v8218, %v8223
    %v8225 = vmul.f32 %v823, %v8224
    %v8226 = vmul.f32 %v4275, %v8224
    %v8228 = vsel %vm1754, %v8225, 0
    %v8231 = vsel %vm1754, %v8226, 0
    %8233 = vmatprep.subr.mxu0 0.0
    %8234 = vmatpush1.msra.mxu0 %v7879
    %8235 = vmatprep.subr.mxu0 0.0
    %8236 = vmatpush1.msra.mxu0 %v7880
    %8237 = vmatprep.subr.mxu0 0.0
    %8238 = vmatpush1.msra.mxu0 0.0
    %8239 = vmatprep.subr.mxu0 0.0
    %8240 = vmatpush1.msra.mxu0 0.0
    %8241 = vmatprep.subr.mxu0 0.0
    %8242 = vmatpush1.msra.mxu0 0.0
    %8243 = vmatprep.subr.mxu0 0.0
    %8244 = vmatpush1.msra.mxu0 0.0
    %8245 = vmatprep.subr.mxu0 0.0
    %8246 = vmatpush1.msra.mxu0 0.0
    %8247 = vmatprep.subr.mxu0 0.0
    %8248 = vmatpush1.msra.mxu0 0.0
    %8249 = vmatprep.subr.mxu0 0.0
    %8250 = vmatpush1.msra.mxu0 0.0
    %8251 = vmatprep.subr.mxu0 0.0
    %8252 = vmatpush1.msra.mxu0 0.0
    %8253 = vmatprep.subr.mxu0 0.0
    %8254 = vmatpush1.msra.mxu0 0.0
    %8255 = vmatprep.subr.mxu0 0.0
    %8256 = vmatpush1.msra.mxu0 0.0
    %8257 = vmatprep.subr.mxu0 0.0
    %8258 = vmatpush1.msra.mxu0 0.0
    %8259 = vmatprep.subr.mxu0 0.0
    %8260 = vmatpush1.msra.mxu0 0.0
    %8261 = vmatprep.subr.mxu0 0.0
    %8262 = vmatpush1.msra.mxu0 0.0
    %8263 = vmatprep.subr.mxu0 0.0
    %8264 = vmatpush1.msra.mxu0 0.0
    %8265 = vmatprep.subr.mxu0 0.0
    %8266 = vmatpush1.msra.mxu0 0.0
    %8267 = vmatprep.subr.mxu0 0.0
    %8268 = vmatpush1.msra.mxu0 0.0
    %8269 = vmatprep.subr.mxu0 0.0
    %8270 = vmatpush1.msra.mxu0 0.0
    %8271 = vmatprep.subr.mxu0 0.0
    %8272 = vmatpush1.msra.mxu0 0.0
    %8273 = vmatprep.subr.mxu0 0.0
    %8274 = vmatpush1.msra.mxu0 0.0
    %8275 = vmatprep.subr.mxu0 0.0
    %8276 = vmatpush1.msra.mxu0 0.0
    %8277 = vmatprep.subr.mxu0 0.0
    %8278 = vmatpush1.msra.mxu0 0.0
    %8279 = vmatprep.subr.mxu0 0.0
    %8280 = vmatpush1.msra.mxu0 0.0
    %8281 = vmatprep.subr.mxu0 0.0
    %8282 = vmatpush1.msra.mxu0 0.0
    %8283 = vmatprep.subr.mxu0 0.0
    %8284 = vmatpush1.msra.mxu0 0.0
    %8285 = vmatprep.subr.mxu0 0.0
    %8286 = vmatpush1.msra.mxu0 0.0
    %8287 = vmatprep.subr.mxu0 0.0
    %8288 = vmatpush1.msra.mxu0 0.0
    %8289 = vmatprep.subr.mxu0 0.0
    %8290 = vmatpush1.msra.mxu0 0.0
    %8291 = vmatprep.subr.mxu0 0.0
    %8292 = vmatpush1.msra.mxu0 0.0
    %8293 = vmatprep.subr.mxu0 0.0
    %8294 = vmatpush1.msra.mxu0 0.0
    %8295 = vmatprep.subr.mxu0 0.0
    %8296 = vmatpush1.msra.mxu0 0.0
    %8297 = vmatprep.mubr.f32.mxu0 0.0
    %8298 = vmatmul.mubr.f32.gmra.mrb[0].mxu0 %v8228
    %v8299 = vpop.f32.mrb[0].mxu0
    %v8300 = vadd.f32 0.0, %v8299
    %v8301 = vpop.f32.mrb[0].mxu0
    %8302 = vmatprep.mubr.f32.mxu0 0.0
    %8303 = vmatmul.mubr.f32.gmra.mrb[0].mxu0 %v8231
    %v8304 = vpop.f32.mrb[0].mxu0
    %v8305 = vadd.f32 0.0, %v8304
    %v8306 = vpop.f32.mrb[0].mxu0
    %8307 = vdwg.mxu0
    %v8309 = vlaneseq
    %v8310 = vshrl.u32 %v8309, 7
    %v8311 = vsub.s32 0, %v8310
    %v8312 = vrot.slane %v8220, %v8311
    %v8313 = vsel %vm1754, %v8312, 0
    %8315 = vmatprep.subr.mxu0 0.0
    %8316 = vmatpush1.msra.mxu0 %v7879
    %8317 = vmatprep.subr.mxu0 0.0
    %8318 = vmatpush1.msra.mxu0 %v7880
    %8319 = vmatprep.subr.mxu0 0.0
    %8320 = vmatpush1.msra.mxu0 0.0
    %8321 = vmatprep.subr.mxu0 0.0
    %8322 = vmatpush1.msra.mxu0 0.0
    %8323 = vmatprep.subr.mxu0 0.0
    %8324 = vmatpush1.msra.mxu0 0.0
    %8325 = vmatprep.subr.mxu0 0.0
    %8326 = vmatpush1.msra.mxu0 0.0
    %8327 = vmatprep.subr.mxu0 0.0
    %8328 = vmatpush1.msra.mxu0 0.0
    %8329 = vmatprep.subr.mxu0 0.0
    %8330 = vmatpush1.msra.mxu0 0.0
    %8331 = vmatprep.subr.mxu0 0.0
    %8332 = vmatpush1.msra.mxu0 0.0
    %8333 = vmatprep.subr.mxu0 0.0
    %8334 = vmatpush1.msra.mxu0 0.0
    %8335 = vmatprep.subr.mxu0 0.0
    %8336 = vmatpush1.msra.mxu0 0.0
    %8337 = vmatprep.subr.mxu0 0.0
    %8338 = vmatpush1.msra.mxu0 0.0
    %8339 = vmatprep.subr.mxu0 0.0
    %8340 = vmatpush1.msra.mxu0 0.0
    %8341 = vmatprep.subr.mxu0 0.0
    %8342 = vmatpush1.msra.mxu0 0.0
    %8343 = vmatprep.subr.mxu0 0.0
    %8344 = vmatpush1.msra.mxu0 0.0
    %8345 = vmatprep.subr.mxu0 0.0
    %8346 = vmatpush1.msra.mxu0 0.0
    %8347 = vmatprep.subr.mxu0 0.0
    %8348 = vmatpush1.msra.mxu0 0.0
    %8349 = vmatprep.subr.mxu0 0.0
    %8350 = vmatpush1.msra.mxu0 0.0
    %8351 = vmatprep.subr.mxu0 0.0
    %8352 = vmatpush1.msra.mxu0 0.0
    %8353 = vmatprep.subr.mxu0 0.0
    %8354 = vmatpush1.msra.mxu0 0.0
    %8355 = vmatprep.subr.mxu0 0.0
    %8356 = vmatpush1.msra.mxu0 0.0
    %8357 = vmatprep.subr.mxu0 0.0
    %8358 = vmatpush1.msra.mxu0 0.0
    %8359 = vmatprep.subr.mxu0 0.0
    %8360 = vmatpush1.msra.mxu0 0.0
    %8361 = vmatprep.subr.mxu0 0.0
    %8362 = vmatpush1.msra.mxu0 0.0
    %8363 = vmatprep.subr.mxu0 0.0
    %8364 = vmatpush1.msra.mxu0 0.0
    %8365 = vmatprep.subr.mxu0 0.0
    %8366 = vmatpush1.msra.mxu0 0.0
    %8367 = vmatprep.subr.mxu0 0.0
    %8368 = vmatpush1.msra.mxu0 0.0
    %8369 = vmatprep.subr.mxu0 0.0
    %8370 = vmatpush1.msra.mxu0 0.0
    %8371 = vmatprep.subr.mxu0 0.0
    %8372 = vmatpush1.msra.mxu0 0.0
    %8373 = vmatprep.subr.mxu0 0.0
    %8374 = vmatpush1.msra.mxu0 0.0
    %8375 = vmatprep.subr.mxu0 0.0
    %8376 = vmatpush1.msra.mxu0 0.0
    %8377 = vmatprep.subr.mxu0 0.0
    %8378 = vmatpush1.msra.mxu0 0.0
    %8379 = vmatprep.mubr.f32.mxu0 0.0
    %8380 = vmatmul.mubr.f32.gmra.mrb[0].mxu0 %v8313
    %v8381 = vpop.f32.mrb[0].mxu0
    %v8382 = vadd.f32 0.0, %v8381
    %v8383 = vpop.f32.mrb[0].mxu0
    %8384 = vdwg.mxu0
    %v8385 = vadd.f32 %v8382, %v7881
    %v8386 = vlaneseq
    %v8387 = vshrl.u32 %v8386, 7
    %v8388 = vsub.s32 0, %v8387
    %v8389 = vrot.slane %v8385, %v8388
    %v8391 = vsel %vm1754, %v7813, 0
    %v8394 = vsel %vm1754, %v7814, 0
    %v8397 = vsel %vm1754, %v7815, 0
    %v8400 = vsel %vm1754, %v7816, 0
    %v8403 = vsel %vm1754, %v7817, 0
    %v8406 = vsel %vm1754, %v7818, 0
    %v8409 = vsel %vm1754, %v7819, 0
    %v8412 = vsel %vm1754, %v7820, 0
    %v8415 = vsel %vm1754, %v7821, 0
    %v8418 = vsel %vm1754, %v7822, 0
    %v8421 = vsel %vm1754, %v7823, 0
    %v8424 = vsel %vm1754, %v7824, 0
    %v8427 = vsel %vm1754, %v7825, 0
    %v8430 = vsel %vm1754, %v7826, 0
    %v8433 = vsel %vm1754, %v7827, 0
    %v8436 = vsel %vm1754, %v7828, 0
    %v8439 = vsel %vm1754, %v7829, 0
    %v8442 = vsel %vm1754, %v7830, 0
    %v8445 = vsel %vm1754, %v7831, 0
    %v8448 = vsel %vm1754, %v7832, 0
    %v8451 = vsel %vm1754, %v7833, 0
    %v8454 = vsel %vm1754, %v7834, 0
    %v8457 = vsel %vm1754, %v7835, 0
    %v8460 = vsel %vm1754, %v7836, 0
    %v8463 = vsel %vm1754, %v7837, 0
    %v8466 = vsel %vm1754, %v7838, 0
    %v8469 = vsel %vm1754, %v7839, 0
    %v8472 = vsel %vm1754, %v7840, 0
    %v8475 = vsel %vm1754, %v7841, 0
    %v8478 = vsel %vm1754, %v7842, 0
    %v8481 = vsel %vm1754, %v7843, 0
    %v8484 = vsel %vm1754, %v7844, 0
    %v8487 = vsel %vm1754, %v7845, 0
    %v8490 = vsel %vm1754, %v7846, 0
    %v8493 = vsel %vm1754, %v7847, 0
    %v8496 = vsel %vm1754, %v7848, 0
    %v8499 = vsel %vm1754, %v7849, 0
    %v8502 = vsel %vm1754, %v7850, 0
    %v8505 = vsel %vm1754, %v7851, 0
    %v8508 = vsel %vm1754, %v7852, 0
    %v8511 = vsel %vm1754, %v7853, 0
    %v8514 = vsel %vm1754, %v7854, 0
    %v8517 = vsel %vm1754, %v7855, 0
    %v8520 = vsel %vm1754, %v7856, 0
    %v8523 = vsel %vm1754, %v7857, 0
    %v8526 = vsel %vm1754, %v7858, 0
    %v8529 = vsel %vm1754, %v7859, 0
    %v8532 = vsel %vm1754, %v7860, 0
    %v8535 = vsel %vm1754, %v7861, 0
    %v8538 = vsel %vm1754, %v7862, 0
    %v8541 = vsel %vm1754, %v7863, 0
    %v8544 = vsel %vm1754, %v7864, 0
    %v8547 = vsel %vm1754, %v7865, 0
    %v8550 = vsel %vm1754, %v7866, 0
    %v8553 = vsel %vm1754, %v7867, 0
    %v8556 = vsel %vm1754, %v7868, 0
    %v8559 = vsel %vm1754, %v7869, 0
    %v8562 = vsel %vm1754, %v7870, 0
    %v8565 = vsel %vm1754, %v7871, 0
    %v8568 = vsel %vm1754, %v7872, 0
    %v8571 = vsel %vm1754, %v7873, 0
    %v8574 = vsel %vm1754, %v7874, 0
    %v8577 = vsel %vm1754, %v7875, 0
    %v8580 = vsel %vm1754, %v7876, 0
    %8582 = vmatprep.subr.mxu0 0.0
    %8583 = vmatpush1.msra.mxu0 %v8300
    %8584 = vmatprep.subr.mxu0 0.0
    %8585 = vmatpush1.msra.mxu0 %v8305
    %8586 = vmatprep.subr.mxu0 0.0
    %8587 = vmatpush1.msra.mxu0 0.0
    %8588 = vmatprep.subr.mxu0 0.0
    %8589 = vmatpush1.msra.mxu0 0.0
    %8590 = vmatprep.subr.mxu0 0.0
    %8591 = vmatpush1.msra.mxu0 0.0
    %8592 = vmatprep.subr.mxu0 0.0
    %8593 = vmatpush1.msra.mxu0 0.0
    %8594 = vmatprep.subr.mxu0 0.0
    %8595 = vmatpush1.msra.mxu0 0.0
    %8596 = vmatprep.subr.mxu0 0.0
    %8597 = vmatpush1.msra.mxu0 0.0
    %8598 = vmatprep.subr.mxu0 0.0
    %8599 = vmatpush1.msra.mxu0 0.0
    %8600 = vmatprep.subr.mxu0 0.0
    %8601 = vmatpush1.msra.mxu0 0.0
    %8602 = vmatprep.subr.mxu0 0.0
    %8603 = vmatpush1.msra.mxu0 0.0
    %8604 = vmatprep.subr.mxu0 0.0
    %8605 = vmatpush1.msra.mxu0 0.0
    %8606 = vmatprep.subr.mxu0 0.0
    %8607 = vmatpush1.msra.mxu0 0.0
    %8608 = vmatprep.subr.mxu0 0.0
    %8609 = vmatpush1.msra.mxu0 0.0
    %8610 = vmatprep.subr.mxu0 0.0
    %8611 = vmatpush1.msra.mxu0 0.0
    %8612 = vmatprep.subr.mxu0 0.0
    %8613 = vmatpush1.msra.mxu0 0.0
    %8614 = vmatprep.subr.mxu0 0.0
    %8615 = vmatpush1.msra.mxu0 0.0
    %8616 = vmatprep.subr.mxu0 0.0
    %8617 = vmatpush1.msra.mxu0 0.0
    %8618 = vmatprep.subr.mxu0 0.0
    %8619 = vmatpush1.msra.mxu0 0.0
    %8620 = vmatprep.subr.mxu0 0.0
    %8621 = vmatpush1.msra.mxu0 0.0
    %8622 = vmatprep.subr.mxu0 0.0
    %8623 = vmatpush1.msra.mxu0 0.0
    %8624 = vmatprep.subr.mxu0 0.0
    %8625 = vmatpush1.msra.mxu0 0.0
    %8626 = vmatprep.subr.mxu0 0.0
    %8627 = vmatpush1.msra.mxu0 0.0
    %8628 = vmatprep.subr.mxu0 0.0
    %8629 = vmatpush1.msra.mxu0 0.0
    %8630 = vmatprep.subr.mxu0 0.0
    %8631 = vmatpush1.msra.mxu0 0.0
    %8632 = vmatprep.subr.mxu0 0.0
    %8633 = vmatpush1.msra.mxu0 0.0
    %8634 = vmatprep.subr.mxu0 0.0
    %8635 = vmatpush1.msra.mxu0 0.0
    %8636 = vmatprep.subr.mxu0 0.0
    %8637 = vmatpush1.msra.mxu0 0.0
    %8638 = vmatprep.subr.mxu0 0.0
    %8639 = vmatpush1.msra.mxu0 0.0
    %8640 = vmatprep.subr.mxu0 0.0
    %8641 = vmatpush1.msra.mxu0 0.0
    %8642 = vmatprep.subr.mxu0 0.0
    %8643 = vmatpush1.msra.mxu0 0.0
    %8644 = vmatprep.subr.mxu0 0.0
    %8645 = vmatpush1.msra.mxu0 0.0
    %8646 = vmatprep.mubr.f32.mxu0 0.0
    %8647 = vmatmul.mubr.f32.gmra.mrb[0].mxu0 %v8391
    %v8648 = vpop.f32.mrb[0].mxu0
    %v8649 = vadd.f32 %v8389, %v8648
    %v8650 = vpop.f32.mrb[0].mxu0
    %8651 = vmatprep.mubr.f32.mxu0 0.0
    %8652 = vmatmul.mubr.f32.gmra.mrb[0].mxu0 %v8394
    %v8653 = vpop.f32.mrb[0].mxu0
    %v8654 = vadd.f32 %v8389, %v8653
    %v8655 = vpop.f32.mrb[0].mxu0
    %8656 = vmatprep.mubr.f32.mxu0 0.0
    %8657 = vmatmul.mubr.f32.gmra.mrb[0].mxu0 %v8397
    %v8658 = vpop.f32.mrb[0].mxu0
    %v8659 = vadd.f32 %v8389, %v8658
    %v8660 = vpop.f32.mrb[0].mxu0
    %8661 = vmatprep.mubr.f32.mxu0 0.0
    %8662 = vmatmul.mubr.f32.gmra.mrb[0].mxu0 %v8400
    %v8663 = vpop.f32.mrb[0].mxu0
    %v8664 = vadd.f32 %v8389, %v8663
    %v8665 = vpop.f32.mrb[0].mxu0
    %8666 = vmatprep.mubr.f32.mxu0 0.0
    %8667 = vmatmul.mubr.f32.gmra.mrb[0].mxu0 %v8403
    %v8668 = vpop.f32.mrb[0].mxu0
    %v8669 = vadd.f32 %v8389, %v8668
    %v8670 = vpop.f32.mrb[0].mxu0
    %8671 = vmatprep.mubr.f32.mxu0 0.0
    %8672 = vmatmul.mubr.f32.gmra.mrb[0].mxu0 %v8406
    %v8673 = vpop.f32.mrb[0].mxu0
    %v8674 = vadd.f32 %v8389, %v8673
    %v8675 = vpop.f32.mrb[0].mxu0
    %8676 = vmatprep.mubr.f32.mxu0 0.0
    %8677 = vmatmul.mubr.f32.gmra.mrb[0].mxu0 %v8409
    %v8678 = vpop.f32.mrb[0].mxu0
    %v8679 = vadd.f32 %v8389, %v8678
    %v8680 = vpop.f32.mrb[0].mxu0
    %8681 = vmatprep.mubr.f32.mxu0 0.0
    %8682 = vmatmul.mubr.f32.gmra.mrb[0].mxu0 %v8412
    %v8683 = vpop.f32.mrb[0].mxu0
    %v8684 = vadd.f32 %v8389, %v8683
    %v8685 = vpop.f32.mrb[0].mxu0
    %8686 = vmatprep.mubr.f32.mxu0 0.0
    %8687 = vmatmul.mubr.f32.gmra.mrb[0].mxu0 %v8415
    %v8688 = vpop.f32.mrb[0].mxu0
    %v8689 = vadd.f32 %v8389, %v8688
    %v8690 = vpop.f32.mrb[0].mxu0
    %8691 = vmatprep.mubr.f32.mxu0 0.0
    %8692 = vmatmul.mubr.f32.gmra.mrb[0].mxu0 %v8418
    %v8693 = vpop.f32.mrb[0].mxu0
    %v8694 = vadd.f32 %v8389, %v8693
    %v8695 = vpop.f32.mrb[0].mxu0
    %8696 = vmatprep.mubr.f32.mxu0 0.0
    %8697 = vmatmul.mubr.f32.gmra.mrb[0].mxu0 %v8421
    %v8698 = vpop.f32.mrb[0].mxu0
    %v8699 = vadd.f32 %v8389, %v8698
    %v8700 = vpop.f32.mrb[0].mxu0
    %8701 = vmatprep.mubr.f32.mxu0 0.0
    %8702 = vmatmul.mubr.f32.gmra.mrb[0].mxu0 %v8424
    %v8703 = vpop.f32.mrb[0].mxu0
    %v8704 = vadd.f32 %v8389, %v8703
    %v8705 = vpop.f32.mrb[0].mxu0
    %8706 = vmatprep.mubr.f32.mxu0 0.0
    %8707 = vmatmul.mubr.f32.gmra.mrb[0].mxu0 %v8427
    %v8708 = vpop.f32.mrb[0].mxu0
    %v8709 = vadd.f32 %v8389, %v8708
    %v8710 = vpop.f32.mrb[0].mxu0
    %8711 = vmatprep.mubr.f32.mxu0 0.0
    %8712 = vmatmul.mubr.f32.gmra.mrb[0].mxu0 %v8430
    %v8713 = vpop.f32.mrb[0].mxu0
    %v8714 = vadd.f32 %v8389, %v8713
    %v8715 = vpop.f32.mrb[0].mxu0
    %8716 = vmatprep.mubr.f32.mxu0 0.0
    %8717 = vmatmul.mubr.f32.gmra.mrb[0].mxu0 %v8433
    %v8718 = vpop.f32.mrb[0].mxu0
    %v8719 = vadd.f32 %v8389, %v8718
    %v8720 = vpop.f32.mrb[0].mxu0
    %8721 = vmatprep.mubr.f32.mxu0 0.0
    %8722 = vmatmul.mubr.f32.gmra.mrb[0].mxu0 %v8436
    %v8723 = vpop.f32.mrb[0].mxu0
    %v8724 = vadd.f32 %v8389, %v8723
    %v8725 = vpop.f32.mrb[0].mxu0
    %8726 = vmatprep.mubr.f32.mxu0 0.0
    %8727 = vmatmul.mubr.f32.gmra.mrb[0].mxu0 %v8439
    %v8728 = vpop.f32.mrb[0].mxu0
    %v8729 = vadd.f32 %v8389, %v8728
    %v8730 = vpop.f32.mrb[0].mxu0
    %8731 = vmatprep.mubr.f32.mxu0 0.0
    %8732 = vmatmul.mubr.f32.gmra.mrb[0].mxu0 %v8442
    %v8733 = vpop.f32.mrb[0].mxu0
    %v8734 = vadd.f32 %v8389, %v8733
    %v8735 = vpop.f32.mrb[0].mxu0
    %8736 = vmatprep.mubr.f32.mxu0 0.0
    %8737 = vmatmul.mubr.f32.gmra.mrb[0].mxu0 %v8445
    %v8738 = vpop.f32.mrb[0].mxu0
    %v8739 = vadd.f32 %v8389, %v8738
    %v8740 = vpop.f32.mrb[0].mxu0
    %8741 = vmatprep.mubr.f32.mxu0 0.0
    %8742 = vmatmul.mubr.f32.gmra.mrb[0].mxu0 %v8448
    %v8743 = vpop.f32.mrb[0].mxu0
    %v8744 = vadd.f32 %v8389, %v8743
    %v8745 = vpop.f32.mrb[0].mxu0
    %8746 = vmatprep.mubr.f32.mxu0 0.0
    %8747 = vmatmul.mubr.f32.gmra.mrb[0].mxu0 %v8451
    %v8748 = vpop.f32.mrb[0].mxu0
    %v8749 = vadd.f32 %v8389, %v8748
    %v8750 = vpop.f32.mrb[0].mxu0
    %8751 = vmatprep.mubr.f32.mxu0 0.0
    %8752 = vmatmul.mubr.f32.gmra.mrb[0].mxu0 %v8454
    %v8753 = vpop.f32.mrb[0].mxu0
    %v8754 = vadd.f32 %v8389, %v8753
    %v8755 = vpop.f32.mrb[0].mxu0
    %8756 = vmatprep.mubr.f32.mxu0 0.0
    %8757 = vmatmul.mubr.f32.gmra.mrb[0].mxu0 %v8457
    %v8758 = vpop.f32.mrb[0].mxu0
    %v8759 = vadd.f32 %v8389, %v8758
    %v8760 = vpop.f32.mrb[0].mxu0
    %8761 = vmatprep.mubr.f32.mxu0 0.0
    %8762 = vmatmul.mubr.f32.gmra.mrb[0].mxu0 %v8460
    %v8763 = vpop.f32.mrb[0].mxu0
    %v8764 = vadd.f32 %v8389, %v8763
    %v8765 = vpop.f32.mrb[0].mxu0
    %8766 = vmatprep.mubr.f32.mxu0 0.0
    %8767 = vmatmul.mubr.f32.gmra.mrb[0].mxu0 %v8463
    %v8768 = vpop.f32.mrb[0].mxu0
    %v8769 = vadd.f32 %v8389, %v8768
    %v8770 = vpop.f32.mrb[0].mxu0
    %8771 = vmatprep.mubr.f32.mxu0 0.0
    %8772 = vmatmul.mubr.f32.gmra.mrb[0].mxu0 %v8466
    %v8773 = vpop.f32.mrb[0].mxu0
    %v8774 = vadd.f32 %v8389, %v8773
    %v8775 = vpop.f32.mrb[0].mxu0
    %8776 = vmatprep.mubr.f32.mxu0 0.0
    %8777 = vmatmul.mubr.f32.gmra.mrb[0].mxu0 %v8469
    %v8778 = vpop.f32.mrb[0].mxu0
    %v8779 = vadd.f32 %v8389, %v8778
    %v8780 = vpop.f32.mrb[0].mxu0
    %8781 = vmatprep.mubr.f32.mxu0 0.0
    %8782 = vmatmul.mubr.f32.gmra.mrb[0].mxu0 %v8472
    %v8783 = vpop.f32.mrb[0].mxu0
    %v8784 = vadd.f32 %v8389, %v8783
    %v8785 = vpop.f32.mrb[0].mxu0
    %8786 = vmatprep.mubr.f32.mxu0 0.0
    %8787 = vmatmul.mubr.f32.gmra.mrb[0].mxu0 %v8475
    %v8788 = vpop.f32.mrb[0].mxu0
    %v8789 = vadd.f32 %v8389, %v8788
    %v8790 = vpop.f32.mrb[0].mxu0
    %8791 = vmatprep.mubr.f32.mxu0 0.0
    %8792 = vmatmul.mubr.f32.gmra.mrb[0].mxu0 %v8478
    %v8793 = vpop.f32.mrb[0].mxu0
    %v8794 = vadd.f32 %v8389, %v8793
    %v8795 = vpop.f32.mrb[0].mxu0
    %8796 = vmatprep.mubr.f32.mxu0 0.0
    %8797 = vmatmul.mubr.f32.gmra.mrb[0].mxu0 %v8481
    %v8798 = vpop.f32.mrb[0].mxu0
    %v8799 = vadd.f32 %v8389, %v8798
    %v8800 = vpop.f32.mrb[0].mxu0
    %8801 = vmatprep.mubr.f32.mxu0 0.0
    %8802 = vmatmul.mubr.f32.gmra.mrb[0].mxu0 %v8484
    %v8803 = vpop.f32.mrb[0].mxu0
    %v8804 = vadd.f32 %v8389, %v8803
    %v8805 = vpop.f32.mrb[0].mxu0
    %8806 = vmatprep.mubr.f32.mxu0 0.0
    %8807 = vmatmul.mubr.f32.gmra.mrb[0].mxu0 %v8487
    %v8808 = vpop.f32.mrb[0].mxu0
    %v8809 = vadd.f32 %v8389, %v8808
    %v8810 = vpop.f32.mrb[0].mxu0
    %8811 = vmatprep.mubr.f32.mxu0 0.0
    %8812 = vmatmul.mubr.f32.gmra.mrb[0].mxu0 %v8490
    %v8813 = vpop.f32.mrb[0].mxu0
    %v8814 = vadd.f32 %v8389, %v8813
    %v8815 = vpop.f32.mrb[0].mxu0
    %8816 = vmatprep.mubr.f32.mxu0 0.0
    %8817 = vmatmul.mubr.f32.gmra.mrb[0].mxu0 %v8493
    %v8818 = vpop.f32.mrb[0].mxu0
    %v8819 = vadd.f32 %v8389, %v8818
    %v8820 = vpop.f32.mrb[0].mxu0
    %8821 = vmatprep.mubr.f32.mxu0 0.0
    %8822 = vmatmul.mubr.f32.gmra.mrb[0].mxu0 %v8496
    %v8823 = vpop.f32.mrb[0].mxu0
    %v8824 = vadd.f32 %v8389, %v8823
    %v8825 = vpop.f32.mrb[0].mxu0
    %8826 = vmatprep.mubr.f32.mxu0 0.0
    %8827 = vmatmul.mubr.f32.gmra.mrb[0].mxu0 %v8499
    %v8828 = vpop.f32.mrb[0].mxu0
    %v8829 = vadd.f32 %v8389, %v8828
    %v8830 = vpop.f32.mrb[0].mxu0
    %8831 = vmatprep.mubr.f32.mxu0 0.0
    %8832 = vmatmul.mubr.f32.gmra.mrb[0].mxu0 %v8502
    %v8833 = vpop.f32.mrb[0].mxu0
    %v8834 = vadd.f32 %v8389, %v8833
    %v8835 = vpop.f32.mrb[0].mxu0
    %8836 = vmatprep.mubr.f32.mxu0 0.0
    %8837 = vmatmul.mubr.f32.gmra.mrb[0].mxu0 %v8505
    %v8838 = vpop.f32.mrb[0].mxu0
    %v8839 = vadd.f32 %v8389, %v8838
    %v8840 = vpop.f32.mrb[0].mxu0
    %8841 = vmatprep.mubr.f32.mxu0 0.0
    %8842 = vmatmul.mubr.f32.gmra.mrb[0].mxu0 %v8508
    %v8843 = vpop.f32.mrb[0].mxu0
    %v8844 = vadd.f32 %v8389, %v8843
    %v8845 = vpop.f32.mrb[0].mxu0
    %8846 = vmatprep.mubr.f32.mxu0 0.0
    %8847 = vmatmul.mubr.f32.gmra.mrb[0].mxu0 %v8511
    %v8848 = vpop.f32.mrb[0].mxu0
    %v8849 = vadd.f32 %v8389, %v8848
    %v8850 = vpop.f32.mrb[0].mxu0
    %8851 = vmatprep.mubr.f32.mxu0 0.0
    %8852 = vmatmul.mubr.f32.gmra.mrb[0].mxu0 %v8514
    %v8853 = vpop.f32.mrb[0].mxu0
    %v8854 = vadd.f32 %v8389, %v8853
    %v8855 = vpop.f32.mrb[0].mxu0
    %8856 = vmatprep.mubr.f32.mxu0 0.0
    %8857 = vmatmul.mubr.f32.gmra.mrb[0].mxu0 %v8517
    %v8858 = vpop.f32.mrb[0].mxu0
    %v8859 = vadd.f32 %v8389, %v8858
    %v8860 = vpop.f32.mrb[0].mxu0
    %8861 = vmatprep.mubr.f32.mxu0 0.0
    %8862 = vmatmul.mubr.f32.gmra.mrb[0].mxu0 %v8520
    %v8863 = vpop.f32.mrb[0].mxu0
    %v8864 = vadd.f32 %v8389, %v8863
    %v8865 = vpop.f32.mrb[0].mxu0
    %8866 = vmatprep.mubr.f32.mxu0 0.0
    %8867 = vmatmul.mubr.f32.gmra.mrb[0].mxu0 %v8523
    %v8868 = vpop.f32.mrb[0].mxu0
    %v8869 = vadd.f32 %v8389, %v8868
    %v8870 = vpop.f32.mrb[0].mxu0
    %8871 = vmatprep.mubr.f32.mxu0 0.0
    %8872 = vmatmul.mubr.f32.gmra.mrb[0].mxu0 %v8526
    %v8873 = vpop.f32.mrb[0].mxu0
    %v8874 = vadd.f32 %v8389, %v8873
    %v8875 = vpop.f32.mrb[0].mxu0
    %8876 = vmatprep.mubr.f32.mxu0 0.0
    %8877 = vmatmul.mubr.f32.gmra.mrb[0].mxu0 %v8529
    %v8878 = vpop.f32.mrb[0].mxu0
    %v8879 = vadd.f32 %v8389, %v8878
    %v8880 = vpop.f32.mrb[0].mxu0
    %8881 = vmatprep.mubr.f32.mxu0 0.0
    %8882 = vmatmul.mubr.f32.gmra.mrb[0].mxu0 %v8532
    %v8883 = vpop.f32.mrb[0].mxu0
    %v8884 = vadd.f32 %v8389, %v8883
    %v8885 = vpop.f32.mrb[0].mxu0
    %8886 = vmatprep.mubr.f32.mxu0 0.0
    %8887 = vmatmul.mubr.f32.gmra.mrb[0].mxu0 %v8535
    %v8888 = vpop.f32.mrb[0].mxu0
    %v8889 = vadd.f32 %v8389, %v8888
    %v8890 = vpop.f32.mrb[0].mxu0
    %8891 = vmatprep.mubr.f32.mxu0 0.0
    %8892 = vmatmul.mubr.f32.gmra.mrb[0].mxu0 %v8538
    %v8893 = vpop.f32.mrb[0].mxu0
    %v8894 = vadd.f32 %v8389, %v8893
    %v8895 = vpop.f32.mrb[0].mxu0
    %8896 = vmatprep.mubr.f32.mxu0 0.0
    %8897 = vmatmul.mubr.f32.gmra.mrb[0].mxu0 %v8541
    %v8898 = vpop.f32.mrb[0].mxu0
    %v8899 = vadd.f32 %v8389, %v8898
    %v8900 = vpop.f32.mrb[0].mxu0
    %8901 = vmatprep.mubr.f32.mxu0 0.0
    %8902 = vmatmul.mubr.f32.gmra.mrb[0].mxu0 %v8544
    %v8903 = vpop.f32.mrb[0].mxu0
    %v8904 = vadd.f32 %v8389, %v8903
    %v8905 = vpop.f32.mrb[0].mxu0
    %8906 = vmatprep.mubr.f32.mxu0 0.0
    %8907 = vmatmul.mubr.f32.gmra.mrb[0].mxu0 %v8547
    %v8908 = vpop.f32.mrb[0].mxu0
    %v8909 = vadd.f32 %v8389, %v8908
    %v8910 = vpop.f32.mrb[0].mxu0
    %8911 = vmatprep.mubr.f32.mxu0 0.0
    %8912 = vmatmul.mubr.f32.gmra.mrb[0].mxu0 %v8550
    %v8913 = vpop.f32.mrb[0].mxu0
    %v8914 = vadd.f32 %v8389, %v8913
    %v8915 = vpop.f32.mrb[0].mxu0
    %8916 = vmatprep.mubr.f32.mxu0 0.0
    %8917 = vmatmul.mubr.f32.gmra.mrb[0].mxu0 %v8553
    %v8918 = vpop.f32.mrb[0].mxu0
    %v8919 = vadd.f32 %v8389, %v8918
    %v8920 = vpop.f32.mrb[0].mxu0
    %8921 = vmatprep.mubr.f32.mxu0 0.0
    %8922 = vmatmul.mubr.f32.gmra.mrb[0].mxu0 %v8556
    %v8923 = vpop.f32.mrb[0].mxu0
    %v8924 = vadd.f32 %v8389, %v8923
    %v8925 = vpop.f32.mrb[0].mxu0
    %8926 = vmatprep.mubr.f32.mxu0 0.0
    %8927 = vmatmul.mubr.f32.gmra.mrb[0].mxu0 %v8559
    %v8928 = vpop.f32.mrb[0].mxu0
    %v8929 = vadd.f32 %v8389, %v8928
    %v8930 = vpop.f32.mrb[0].mxu0
    %8931 = vmatprep.mubr.f32.mxu0 0.0
    %8932 = vmatmul.mubr.f32.gmra.mrb[0].mxu0 %v8562
    %v8933 = vpop.f32.mrb[0].mxu0
    %v8934 = vadd.f32 %v8389, %v8933
    %v8935 = vpop.f32.mrb[0].mxu0
    %8936 = vmatprep.mubr.f32.mxu0 0.0
    %8937 = vmatmul.mubr.f32.gmra.mrb[0].mxu0 %v8565
    %v8938 = vpop.f32.mrb[0].mxu0
    %v8939 = vadd.f32 %v8389, %v8938
    %v8940 = vpop.f32.mrb[0].mxu0
    %8941 = vmatprep.mubr.f32.mxu0 0.0
    %8942 = vmatmul.mubr.f32.gmra.mrb[0].mxu0 %v8568
    %v8943 = vpop.f32.mrb[0].mxu0
    %v8944 = vadd.f32 %v8389, %v8943
    %v8945 = vpop.f32.mrb[0].mxu0
    %8946 = vmatprep.mubr.f32.mxu0 0.0
    %8947 = vmatmul.mubr.f32.gmra.mrb[0].mxu0 %v8571
    %v8948 = vpop.f32.mrb[0].mxu0
    %v8949 = vadd.f32 %v8389, %v8948
    %v8950 = vpop.f32.mrb[0].mxu0
    %8951 = vmatprep.mubr.f32.mxu0 0.0
    %8952 = vmatmul.mubr.f32.gmra.mrb[0].mxu0 %v8574
    %v8953 = vpop.f32.mrb[0].mxu0
    %v8954 = vadd.f32 %v8389, %v8953
    %v8955 = vpop.f32.mrb[0].mxu0
    %8956 = vmatprep.mubr.f32.mxu0 0.0
    %8957 = vmatmul.mubr.f32.gmra.mrb[0].mxu0 %v8577
    %v8958 = vpop.f32.mrb[0].mxu0
    %v8959 = vadd.f32 %v8389, %v8958
    %v8960 = vpop.f32.mrb[0].mxu0
    %8961 = vmatprep.mubr.f32.mxu0 0.0
    %8962 = vmatmul.mubr.f32.gmra.mrb[0].mxu0 %v8580
    %v8963 = vpop.f32.mrb[0].mxu0
    %v8964 = vadd.f32 %v8389, %v8963
    %v8965 = vpop.f32.mrb[0].mxu0
    %8966 = vdwg.mxu0
    %vm8967 = vcmp.ge.f32.partialorder %v8649, 0.0
    %vm8968 = vcmp.ge.f32.partialorder %v8654, 0.0
    %vm8969 = vcmp.ge.f32.partialorder %v8659, 0.0
    %vm8970 = vcmp.ge.f32.partialorder %v8664, 0.0
    %vm8971 = vcmp.ge.f32.partialorder %v8669, 0.0
    %vm8972 = vcmp.ge.f32.partialorder %v8674, 0.0
    %vm8973 = vcmp.ge.f32.partialorder %v8679, 0.0
    %vm8974 = vcmp.ge.f32.partialorder %v8684, 0.0
    %vm8975 = vcmp.ge.f32.partialorder %v8689, 0.0
    %vm8976 = vcmp.ge.f32.partialorder %v8694, 0.0
    %vm8977 = vcmp.ge.f32.partialorder %v8699, 0.0
    %vm8978 = vcmp.ge.f32.partialorder %v8704, 0.0
    %vm8979 = vcmp.ge.f32.partialorder %v8709, 0.0
    %vm8980 = vcmp.ge.f32.partialorder %v8714, 0.0
    %vm8981 = vcmp.ge.f32.partialorder %v8719, 0.0
    %vm8982 = vcmp.ge.f32.partialorder %v8724, 0.0
    %vm8983 = vcmp.ge.f32.partialorder %v8729, 0.0
    %vm8984 = vcmp.ge.f32.partialorder %v8734, 0.0
    %vm8985 = vcmp.ge.f32.partialorder %v8739, 0.0
    %vm8986 = vcmp.ge.f32.partialorder %v8744, 0.0
    %vm8987 = vcmp.ge.f32.partialorder %v8749, 0.0
    %vm8988 = vcmp.ge.f32.partialorder %v8754, 0.0
    %vm8989 = vcmp.ge.f32.partialorder %v8759, 0.0
    %vm8990 = vcmp.ge.f32.partialorder %v8764, 0.0
    %vm8991 = vcmp.ge.f32.partialorder %v8769, 0.0
    %vm8992 = vcmp.ge.f32.partialorder %v8774, 0.0
    %vm8993 = vcmp.ge.f32.partialorder %v8779, 0.0
    %vm8994 = vcmp.ge.f32.partialorder %v8784, 0.0
    %vm8995 = vcmp.ge.f32.partialorder %v8789, 0.0
    %vm8996 = vcmp.ge.f32.partialorder %v8794, 0.0
    %vm8997 = vcmp.ge.f32.partialorder %v8799, 0.0
    %vm8998 = vcmp.ge.f32.partialorder %v8804, 0.0
    %vm8999 = vcmp.ge.f32.partialorder %v8809, 0.0
    %vm9000 = vcmp.ge.f32.partialorder %v8814, 0.0
    %vm9001 = vcmp.ge.f32.partialorder %v8819, 0.0
    %vm9002 = vcmp.ge.f32.partialorder %v8824, 0.0
    %vm9003 = vcmp.ge.f32.partialorder %v8829, 0.0
    %vm9004 = vcmp.ge.f32.partialorder %v8834, 0.0
    %vm9005 = vcmp.ge.f32.partialorder %v8839, 0.0
    %vm9006 = vcmp.ge.f32.partialorder %v8844, 0.0
    %vm9007 = vcmp.ge.f32.partialorder %v8849, 0.0
    %vm9008 = vcmp.ge.f32.partialorder %v8854, 0.0
    %vm9009 = vcmp.ge.f32.partialorder %v8859, 0.0
    %vm9010 = vcmp.ge.f32.partialorder %v8864, 0.0
    %vm9011 = vcmp.ge.f32.partialorder %v8869, 0.0
    %vm9012 = vcmp.ge.f32.partialorder %v8874, 0.0
    %vm9013 = vcmp.ge.f32.partialorder %v8879, 0.0
    %vm9014 = vcmp.ge.f32.partialorder %v8884, 0.0
    %vm9015 = vcmp.ge.f32.partialorder %v8889, 0.0
    %vm9016 = vcmp.ge.f32.partialorder %v8894, 0.0
    %vm9017 = vcmp.ge.f32.partialorder %v8899, 0.0
    %vm9018 = vcmp.ge.f32.partialorder %v8904, 0.0
    %vm9019 = vcmp.ge.f32.partialorder %v8909, 0.0
    %vm9020 = vcmp.ge.f32.partialorder %v8914, 0.0
    %vm9021 = vcmp.ge.f32.partialorder %v8919, 0.0
    %vm9022 = vcmp.ge.f32.partialorder %v8924, 0.0
    %vm9023 = vcmp.ge.f32.partialorder %v8929, 0.0
    %vm9024 = vcmp.ge.f32.partialorder %v8934, 0.0
    %vm9025 = vcmp.ge.f32.partialorder %v8939, 0.0
    %vm9026 = vcmp.ge.f32.partialorder %v8944, 0.0
    %vm9027 = vcmp.ge.f32.partialorder %v8949, 0.0
    %vm9028 = vcmp.ge.f32.partialorder %v8954, 0.0
    %vm9029 = vcmp.ge.f32.partialorder %v8959, 0.0
    %vm9030 = vcmp.ge.f32.partialorder %v8964, 0.0
    %v9031 = vmul.f32 %v8649, 0.01
    %v9032 = vmul.f32 %v8654, 0.01
    %v9033 = vmul.f32 %v8659, 0.01
    %v9034 = vmul.f32 %v8664, 0.01
    %v9035 = vmul.f32 %v8669, 0.01
    %v9036 = vmul.f32 %v8674, 0.01
    %v9037 = vmul.f32 %v8679, 0.01
    %v9038 = vmul.f32 %v8684, 0.01
    %v9039 = vmul.f32 %v8689, 0.01
    %v9040 = vmul.f32 %v8694, 0.01
    %v9041 = vmul.f32 %v8699, 0.01
    %v9042 = vmul.f32 %v8704, 0.01
    %v9043 = vmul.f32 %v8709, 0.01
    %v9044 = vmul.f32 %v8714, 0.01
    %v9045 = vmul.f32 %v8719, 0.01
    %v9046 = vmul.f32 %v8724, 0.01
    %v9047 = vmul.f32 %v8729, 0.01
    %v9048 = vmul.f32 %v8734, 0.01
    %v9049 = vmul.f32 %v8739, 0.01
    %v9050 = vmul.f32 %v8744, 0.01
    %v9051 = vmul.f32 %v8749, 0.01
    %v9052 = vmul.f32 %v8754, 0.01
    %v9053 = vmul.f32 %v8759, 0.01
    %v9054 = vmul.f32 %v8764, 0.01
    %v9055 = vmul.f32 %v8769, 0.01
    %v9056 = vmul.f32 %v8774, 0.01
    %v9057 = vmul.f32 %v8779, 0.01
    %v9058 = vmul.f32 %v8784, 0.01
    %v9059 = vmul.f32 %v8789, 0.01
    %v9060 = vmul.f32 %v8794, 0.01
    %v9061 = vmul.f32 %v8799, 0.01
    %v9062 = vmul.f32 %v8804, 0.01
    %v9063 = vmul.f32 %v8809, 0.01
    %v9064 = vmul.f32 %v8814, 0.01
    %v9065 = vmul.f32 %v8819, 0.01
    %v9066 = vmul.f32 %v8824, 0.01
    %v9067 = vmul.f32 %v8829, 0.01
    %v9068 = vmul.f32 %v8834, 0.01
    %v9069 = vmul.f32 %v8839, 0.01
    %v9070 = vmul.f32 %v8844, 0.01
    %v9071 = vmul.f32 %v8849, 0.01
    %v9072 = vmul.f32 %v8854, 0.01
    %v9073 = vmul.f32 %v8859, 0.01
    %v9074 = vmul.f32 %v8864, 0.01
    %v9075 = vmul.f32 %v8869, 0.01
    %v9076 = vmul.f32 %v8874, 0.01
    %v9077 = vmul.f32 %v8879, 0.01
    %v9078 = vmul.f32 %v8884, 0.01
    %v9079 = vmul.f32 %v8889, 0.01
    %v9080 = vmul.f32 %v8894, 0.01
    %v9081 = vmul.f32 %v8899, 0.01
    %v9082 = vmul.f32 %v8904, 0.01
    %v9083 = vmul.f32 %v8909, 0.01
    %v9084 = vmul.f32 %v8914, 0.01
    %v9085 = vmul.f32 %v8919, 0.01
    %v9086 = vmul.f32 %v8924, 0.01
    %v9087 = vmul.f32 %v8929, 0.01
    %v9088 = vmul.f32 %v8934, 0.01
    %v9089 = vmul.f32 %v8939, 0.01
    %v9090 = vmul.f32 %v8944, 0.01
    %v9091 = vmul.f32 %v8949, 0.01
    %v9092 = vmul.f32 %v8954, 0.01
    %v9093 = vmul.f32 %v8959, 0.01
    %v9094 = vmul.f32 %v8964, 0.01
    %v9095 = vsel %vm8967, %v8649, %v9031
    %v9096 = vsel %vm8968, %v8654, %v9032
    %v9097 = vsel %vm8969, %v8659, %v9033
    %v9098 = vsel %vm8970, %v8664, %v9034
    %v9099 = vsel %vm8971, %v8669, %v9035
    %v9100 = vsel %vm8972, %v8674, %v9036
    %v9101 = vsel %vm8973, %v8679, %v9037
    %v9102 = vsel %vm8974, %v8684, %v9038
    %v9103 = vsel %vm8975, %v8689, %v9039
    %v9104 = vsel %vm8976, %v8694, %v9040
    %v9105 = vsel %vm8977, %v8699, %v9041
    %v9106 = vsel %vm8978, %v8704, %v9042
    %v9107 = vsel %vm8979, %v8709, %v9043
    %v9108 = vsel %vm8980, %v8714, %v9044
    %v9109 = vsel %vm8981, %v8719, %v9045
    %v9110 = vsel %vm8982, %v8724, %v9046
    %v9111 = vsel %vm8983, %v8729, %v9047
    %v9112 = vsel %vm8984, %v8734, %v9048
    %v9113 = vsel %vm8985, %v8739, %v9049
    %v9114 = vsel %vm8986, %v8744, %v9050
    %v9115 = vsel %vm8987, %v8749, %v9051
    %v9116 = vsel %vm8988, %v8754, %v9052
    %v9117 = vsel %vm8989, %v8759, %v9053
    %v9118 = vsel %vm8990, %v8764, %v9054
    %v9119 = vsel %vm8991, %v8769, %v9055
    %v9120 = vsel %vm8992, %v8774, %v9056
    %v9121 = vsel %vm8993, %v8779, %v9057
    %v9122 = vsel %vm8994, %v8784, %v9058
    %v9123 = vsel %vm8995, %v8789, %v9059
    %v9124 = vsel %vm8996, %v8794, %v9060
    %v9125 = vsel %vm8997, %v8799, %v9061
    %v9126 = vsel %vm8998, %v8804, %v9062
    %v9127 = vsel %vm8999, %v8809, %v9063
    %v9128 = vsel %vm9000, %v8814, %v9064
    %v9129 = vsel %vm9001, %v8819, %v9065
    %v9130 = vsel %vm9002, %v8824, %v9066
    %v9131 = vsel %vm9003, %v8829, %v9067
    %v9132 = vsel %vm9004, %v8834, %v9068
    %v9133 = vsel %vm9005, %v8839, %v9069
    %v9134 = vsel %vm9006, %v8844, %v9070
    %v9135 = vsel %vm9007, %v8849, %v9071
    %v9136 = vsel %vm9008, %v8854, %v9072
    %v9137 = vsel %vm9009, %v8859, %v9073
    %v9138 = vsel %vm9010, %v8864, %v9074
    %v9139 = vsel %vm9011, %v8869, %v9075
    %v9140 = vsel %vm9012, %v8874, %v9076
    %v9141 = vsel %vm9013, %v8879, %v9077
    %v9142 = vsel %vm9014, %v8884, %v9078
    %v9143 = vsel %vm9015, %v8889, %v9079
    %v9144 = vsel %vm9016, %v8894, %v9080
    %v9145 = vsel %vm9017, %v8899, %v9081
    %v9146 = vsel %vm9018, %v8904, %v9082
    %v9147 = vsel %vm9019, %v8909, %v9083
    %v9148 = vsel %vm9020, %v8914, %v9084
    %v9149 = vsel %vm9021, %v8919, %v9085
    %v9150 = vsel %vm9022, %v8924, %v9086
    %v9151 = vsel %vm9023, %v8929, %v9087
    %v9152 = vsel %vm9024, %v8934, %v9088
    %v9153 = vsel %vm9025, %v8939, %v9089
    %v9154 = vsel %vm9026, %v8944, %v9090
    %v9155 = vsel %vm9027, %v8949, %v9091
    %v9156 = vsel %vm9028, %v8954, %v9092
    %v9157 = vsel %vm9029, %v8959, %v9093
    %v9158 = vsel %vm9030, %v8964, %v9094
    %v9159 = vld [vmem:[%s21] sm:$0x1]
    %v9160 = vld [vmem:[%s22] sm:$0x1]
    %v9161 = vsel %vm1754, %v9095, 0.0
    %v9162 = vsel %vm1754, %v9096, 0.0
    %v9163 = vadd.f32 %v9161, %v9162
    %v9164 = vsel %vm1754, %v9097, 0.0
    %v9165 = vadd.f32 %v9163, %v9164
    %v9166 = vsel %vm1754, %v9098, 0.0
    %v9167 = vadd.f32 %v9165, %v9166
    %v9168 = vsel %vm1754, %v9099, 0.0
    %v9169 = vadd.f32 %v9167, %v9168
    %v9170 = vsel %vm1754, %v9100, 0.0
    %v9171 = vadd.f32 %v9169, %v9170
    %v9172 = vsel %vm1754, %v9101, 0.0
    %v9173 = vadd.f32 %v9171, %v9172
    %v9174 = vsel %vm1754, %v9102, 0.0
    %v9175 = vadd.f32 %v9173, %v9174
    %v9176 = vsel %vm1754, %v9103, 0.0
    %v9177 = vadd.f32 %v9175, %v9176
    %v9178 = vsel %vm1754, %v9104, 0.0
    %v9179 = vadd.f32 %v9177, %v9178
    %v9180 = vsel %vm1754, %v9105, 0.0
    %v9181 = vadd.f32 %v9179, %v9180
    %v9182 = vsel %vm1754, %v9106, 0.0
    %v9183 = vadd.f32 %v9181, %v9182
    %v9184 = vsel %vm1754, %v9107, 0.0
    %v9185 = vadd.f32 %v9183, %v9184
    %v9186 = vsel %vm1754, %v9108, 0.0
    %v9187 = vadd.f32 %v9185, %v9186
    %v9188 = vsel %vm1754, %v9109, 0.0
    %v9189 = vadd.f32 %v9187, %v9188
    %v9190 = vsel %vm1754, %v9110, 0.0
    %v9191 = vadd.f32 %v9189, %v9190
    %v9192 = vsel %vm1754, %v9111, 0.0
    %v9193 = vadd.f32 %v9191, %v9192
    %v9194 = vsel %vm1754, %v9112, 0.0
    %v9195 = vadd.f32 %v9193, %v9194
    %v9196 = vsel %vm1754, %v9113, 0.0
    %v9197 = vadd.f32 %v9195, %v9196
    %v9198 = vsel %vm1754, %v9114, 0.0
    %v9199 = vadd.f32 %v9197, %v9198
    %v9200 = vsel %vm1754, %v9115, 0.0
    %v9201 = vadd.f32 %v9199, %v9200
    %v9202 = vsel %vm1754, %v9116, 0.0
    %v9203 = vadd.f32 %v9201, %v9202
    %v9204 = vsel %vm1754, %v9117, 0.0
    %v9205 = vadd.f32 %v9203, %v9204
    %v9206 = vsel %vm1754, %v9118, 0.0
    %v9207 = vadd.f32 %v9205, %v9206
    %v9208 = vsel %vm1754, %v9119, 0.0
    %v9209 = vadd.f32 %v9207, %v9208
    %v9210 = vsel %vm1754, %v9120, 0.0
    %v9211 = vadd.f32 %v9209, %v9210
    %v9212 = vsel %vm1754, %v9121, 0.0
    %v9213 = vadd.f32 %v9211, %v9212
    %v9214 = vsel %vm1754, %v9122, 0.0
    %v9215 = vadd.f32 %v9213, %v9214
    %v9216 = vsel %vm1754, %v9123, 0.0
    %v9217 = vadd.f32 %v9215, %v9216
    %v9218 = vsel %vm1754, %v9124, 0.0
    %v9219 = vadd.f32 %v9217, %v9218
    %v9220 = vsel %vm1754, %v9125, 0.0
    %v9221 = vadd.f32 %v9219, %v9220
    %v9222 = vsel %vm1754, %v9126, 0.0
    %v9223 = vadd.f32 %v9221, %v9222
    %v9224 = vsel %vm1754, %v9127, 0.0
    %v9225 = vadd.f32 %v9223, %v9224
    %v9226 = vsel %vm1754, %v9128, 0.0
    %v9227 = vadd.f32 %v9225, %v9226
    %v9228 = vsel %vm1754, %v9129, 0.0
    %v9229 = vadd.f32 %v9227, %v9228
    %v9230 = vsel %vm1754, %v9130, 0.0
    %v9231 = vadd.f32 %v9229, %v9230
    %v9232 = vsel %vm1754, %v9131, 0.0
    %v9233 = vadd.f32 %v9231, %v9232
    %v9234 = vsel %vm1754, %v9132, 0.0
    %v9235 = vadd.f32 %v9233, %v9234
    %v9236 = vsel %vm1754, %v9133, 0.0
    %v9237 = vadd.f32 %v9235, %v9236
    %v9238 = vsel %vm1754, %v9134, 0.0
    %v9239 = vadd.f32 %v9237, %v9238
    %v9240 = vsel %vm1754, %v9135, 0.0
    %v9241 = vadd.f32 %v9239, %v9240
    %v9242 = vsel %vm1754, %v9136, 0.0
    %v9243 = vadd.f32 %v9241, %v9242
    %v9244 = vsel %vm1754, %v9137, 0.0
    %v9245 = vadd.f32 %v9243, %v9244
    %v9246 = vsel %vm1754, %v9138, 0.0
    %v9247 = vadd.f32 %v9245, %v9246
    %v9248 = vsel %vm1754, %v9139, 0.0
    %v9249 = vadd.f32 %v9247, %v9248
    %v9250 = vsel %vm1754, %v9140, 0.0
    %v9251 = vadd.f32 %v9249, %v9250
    %v9252 = vsel %vm1754, %v9141, 0.0
    %v9253 = vadd.f32 %v9251, %v9252
    %v9254 = vsel %vm1754, %v9142, 0.0
    %v9255 = vadd.f32 %v9253, %v9254
    %v9256 = vsel %vm1754, %v9143, 0.0
    %v9257 = vadd.f32 %v9255, %v9256
    %v9258 = vsel %vm1754, %v9144, 0.0
    %v9259 = vadd.f32 %v9257, %v9258
    %v9260 = vsel %vm1754, %v9145, 0.0
    %v9261 = vadd.f32 %v9259, %v9260
    %v9262 = vsel %vm1754, %v9146, 0.0
    %v9263 = vadd.f32 %v9261, %v9262
    %v9264 = vsel %vm1754, %v9147, 0.0
    %v9265 = vadd.f32 %v9263, %v9264
    %v9266 = vsel %vm1754, %v9148, 0.0
    %v9267 = vadd.f32 %v9265, %v9266
    %v9268 = vsel %vm1754, %v9149, 0.0
    %v9269 = vadd.f32 %v9267, %v9268
    %v9270 = vsel %vm1754, %v9150, 0.0
    %v9271 = vadd.f32 %v9269, %v9270
    %v9272 = vsel %vm1754, %v9151, 0.0
    %v9273 = vadd.f32 %v9271, %v9272
    %v9274 = vsel %vm1754, %v9152, 0.0
    %v9275 = vadd.f32 %v9273, %v9274
    %v9276 = vsel %vm1754, %v9153, 0.0
    %v9277 = vadd.f32 %v9275, %v9276
    %v9278 = vsel %vm1754, %v9154, 0.0
    %v9279 = vadd.f32 %v9277, %v9278
    %v9280 = vsel %vm1754, %v9155, 0.0
    %v9281 = vadd.f32 %v9279, %v9280
    %v9282 = vsel %vm1754, %v9156, 0.0
    %v9283 = vadd.f32 %v9281, %v9282
    %v9284 = vsel %vm1754, %v9157, 0.0
    %v9285 = vadd.f32 %v9283, %v9284
    %v9286 = vsel %vm1754, %v9158, 0.0
    %v9287 = vadd.f32 %v9285, %v9286
    %v9288 = vrot.slane %v9287, 4
    %v9289 = vadd.f32 %v9287, %v9288
    %v9290 = vrot.slane %v9289, 2
    %v9291 = vadd.f32 %v9289, %v9290
    %v9292 = vrot.slane %v9291, 1
    %v9293 = vadd.f32 %v9291, %v9292
    %v9294 = vmul.f32 %v9095, %v9095
    %v9295 = vmul.f32 %v9096, %v9096
    %v9296 = vmul.f32 %v9097, %v9097
    %v9297 = vmul.f32 %v9098, %v9098
    %v9298 = vmul.f32 %v9099, %v9099
    %v9299 = vmul.f32 %v9100, %v9100
    %v9300 = vmul.f32 %v9101, %v9101
    %v9301 = vmul.f32 %v9102, %v9102
    %v9302 = vmul.f32 %v9103, %v9103
    %v9303 = vmul.f32 %v9104, %v9104
    %v9304 = vmul.f32 %v9105, %v9105
    %v9305 = vmul.f32 %v9106, %v9106
    %v9306 = vmul.f32 %v9107, %v9107
    %v9307 = vmul.f32 %v9108, %v9108
    %v9308 = vmul.f32 %v9109, %v9109
    %v9309 = vmul.f32 %v9110, %v9110
    %v9310 = vmul.f32 %v9111, %v9111
    %v9311 = vmul.f32 %v9112, %v9112
    %v9312 = vmul.f32 %v9113, %v9113
    %v9313 = vmul.f32 %v9114, %v9114
    %v9314 = vmul.f32 %v9115, %v9115
    %v9315 = vmul.f32 %v9116, %v9116
    %v9316 = vmul.f32 %v9117, %v9117
    %v9317 = vmul.f32 %v9118, %v9118
    %v9318 = vmul.f32 %v9119, %v9119
    %v9319 = vmul.f32 %v9120, %v9120
    %v9320 = vmul.f32 %v9121, %v9121
    %v9321 = vmul.f32 %v9122, %v9122
    %v9322 = vmul.f32 %v9123, %v9123
    %v9323 = vmul.f32 %v9124, %v9124
    %v9324 = vmul.f32 %v9125, %v9125
    %v9325 = vmul.f32 %v9126, %v9126
    %v9326 = vmul.f32 %v9127, %v9127
    %v9327 = vmul.f32 %v9128, %v9128
    %v9328 = vmul.f32 %v9129, %v9129
    %v9329 = vmul.f32 %v9130, %v9130
    %v9330 = vmul.f32 %v9131, %v9131
    %v9331 = vmul.f32 %v9132, %v9132
    %v9332 = vmul.f32 %v9133, %v9133
    %v9333 = vmul.f32 %v9134, %v9134
    %v9334 = vmul.f32 %v9135, %v9135
    %v9335 = vmul.f32 %v9136, %v9136
    %v9336 = vmul.f32 %v9137, %v9137
    %v9337 = vmul.f32 %v9138, %v9138
    %v9338 = vmul.f32 %v9139, %v9139
    %v9339 = vmul.f32 %v9140, %v9140
    %v9340 = vmul.f32 %v9141, %v9141
    %v9341 = vmul.f32 %v9142, %v9142
    %v9342 = vmul.f32 %v9143, %v9143
    %v9343 = vmul.f32 %v9144, %v9144
    %v9344 = vmul.f32 %v9145, %v9145
    %v9345 = vmul.f32 %v9146, %v9146
    %v9346 = vmul.f32 %v9147, %v9147
    %v9347 = vmul.f32 %v9148, %v9148
    %v9348 = vmul.f32 %v9149, %v9149
    %v9349 = vmul.f32 %v9150, %v9150
    %v9350 = vmul.f32 %v9151, %v9151
    %v9351 = vmul.f32 %v9152, %v9152
    %v9352 = vmul.f32 %v9153, %v9153
    %v9353 = vmul.f32 %v9154, %v9154
    %v9354 = vmul.f32 %v9155, %v9155
    %v9355 = vmul.f32 %v9156, %v9156
    %v9356 = vmul.f32 %v9157, %v9157
    %v9357 = vmul.f32 %v9158, %v9158
    %v9358 = vsel %vm1754, %v9294, 0.0
    %v9359 = vsel %vm1754, %v9295, 0.0
    %v9360 = vadd.f32 %v9358, %v9359
    %v9361 = vsel %vm1754, %v9296, 0.0
    %v9362 = vadd.f32 %v9360, %v9361
    %v9363 = vsel %vm1754, %v9297, 0.0
    %v9364 = vadd.f32 %v9362, %v9363
    %v9365 = vsel %vm1754, %v9298, 0.0
    %v9366 = vadd.f32 %v9364, %v9365
    %v9367 = vsel %vm1754, %v9299, 0.0
    %v9368 = vadd.f32 %v9366, %v9367
    %v9369 = vsel %vm1754, %v9300, 0.0
    %v9370 = vadd.f32 %v9368, %v9369
    %v9371 = vsel %vm1754, %v9301, 0.0
    %v9372 = vadd.f32 %v9370, %v9371
    %v9373 = vsel %vm1754, %v9302, 0.0
    %v9374 = vadd.f32 %v9372, %v9373
    %v9375 = vsel %vm1754, %v9303, 0.0
    %v9376 = vadd.f32 %v9374, %v9375
    %v9377 = vsel %vm1754, %v9304, 0.0
    %v9378 = vadd.f32 %v9376, %v9377
    %v9379 = vsel %vm1754, %v9305, 0.0
    %v9380 = vadd.f32 %v9378, %v9379
    %v9381 = vsel %vm1754, %v9306, 0.0
    %v9382 = vadd.f32 %v9380, %v9381
    %v9383 = vsel %vm1754, %v9307, 0.0
    %v9384 = vadd.f32 %v9382, %v9383
    %v9385 = vsel %vm1754, %v9308, 0.0
    %v9386 = vadd.f32 %v9384, %v9385
    %v9387 = vsel %vm1754, %v9309, 0.0
    %v9388 = vadd.f32 %v9386, %v9387
    %v9389 = vsel %vm1754, %v9310, 0.0
    %v9390 = vadd.f32 %v9388, %v9389
    %v9391 = vsel %vm1754, %v9311, 0.0
    %v9392 = vadd.f32 %v9390, %v9391
    %v9393 = vsel %vm1754, %v9312, 0.0
    %v9394 = vadd.f32 %v9392, %v9393
    %v9395 = vsel %vm1754, %v9313, 0.0
    %v9396 = vadd.f32 %v9394, %v9395
    %v9397 = vsel %vm1754, %v9314, 0.0
    %v9398 = vadd.f32 %v9396, %v9397
    %v9399 = vsel %vm1754, %v9315, 0.0
    %v9400 = vadd.f32 %v9398, %v9399
    %v9401 = vsel %vm1754, %v9316, 0.0
    %v9402 = vadd.f32 %v9400, %v9401
    %v9403 = vsel %vm1754, %v9317, 0.0
    %v9404 = vadd.f32 %v9402, %v9403
    %v9405 = vsel %vm1754, %v9318, 0.0
    %v9406 = vadd.f32 %v9404, %v9405
    %v9407 = vsel %vm1754, %v9319, 0.0
    %v9408 = vadd.f32 %v9406, %v9407
    %v9409 = vsel %vm1754, %v9320, 0.0
    %v9410 = vadd.f32 %v9408, %v9409
    %v9411 = vsel %vm1754, %v9321, 0.0
    %v9412 = vadd.f32 %v9410, %v9411
    %v9413 = vsel %vm1754, %v9322, 0.0
    %v9414 = vadd.f32 %v9412, %v9413
    %v9415 = vsel %vm1754, %v9323, 0.0
    %v9416 = vadd.f32 %v9414, %v9415
    %v9417 = vsel %vm1754, %v9324, 0.0
    %v9418 = vadd.f32 %v9416, %v9417
    %v9419 = vsel %vm1754, %v9325, 0.0
    %v9420 = vadd.f32 %v9418, %v9419
    %v9421 = vsel %vm1754, %v9326, 0.0
    %v9422 = vadd.f32 %v9420, %v9421
    %v9423 = vsel %vm1754, %v9327, 0.0
    %v9424 = vadd.f32 %v9422, %v9423
    %v9425 = vsel %vm1754, %v9328, 0.0
    %v9426 = vadd.f32 %v9424, %v9425
    %v9427 = vsel %vm1754, %v9329, 0.0
    %v9428 = vadd.f32 %v9426, %v9427
    %v9429 = vsel %vm1754, %v9330, 0.0
    %v9430 = vadd.f32 %v9428, %v9429
    %v9431 = vsel %vm1754, %v9331, 0.0
    %v9432 = vadd.f32 %v9430, %v9431
    %v9433 = vsel %vm1754, %v9332, 0.0
    %v9434 = vadd.f32 %v9432, %v9433
    %v9435 = vsel %vm1754, %v9333, 0.0
    %v9436 = vadd.f32 %v9434, %v9435
    %v9437 = vsel %vm1754, %v9334, 0.0
    %v9438 = vadd.f32 %v9436, %v9437
    %v9439 = vsel %vm1754, %v9335, 0.0
    %v9440 = vadd.f32 %v9438, %v9439
    %v9441 = vsel %vm1754, %v9336, 0.0
    %v9442 = vadd.f32 %v9440, %v9441
    %v9443 = vsel %vm1754, %v9337, 0.0
    %v9444 = vadd.f32 %v9442, %v9443
    %v9445 = vsel %vm1754, %v9338, 0.0
    %v9446 = vadd.f32 %v9444, %v9445
    %v9447 = vsel %vm1754, %v9339, 0.0
    %v9448 = vadd.f32 %v9446, %v9447
    %v9449 = vsel %vm1754, %v9340, 0.0
    %v9450 = vadd.f32 %v9448, %v9449
    %v9451 = vsel %vm1754, %v9341, 0.0
    %v9452 = vadd.f32 %v9450, %v9451
    %v9453 = vsel %vm1754, %v9342, 0.0
    %v9454 = vadd.f32 %v9452, %v9453
    %v9455 = vsel %vm1754, %v9343, 0.0
    %v9456 = vadd.f32 %v9454, %v9455
    %v9457 = vsel %vm1754, %v9344, 0.0
    %v9458 = vadd.f32 %v9456, %v9457
    %v9459 = vsel %vm1754, %v9345, 0.0
    %v9460 = vadd.f32 %v9458, %v9459
    %v9461 = vsel %vm1754, %v9346, 0.0
    %v9462 = vadd.f32 %v9460, %v9461
    %v9463 = vsel %vm1754, %v9347, 0.0
    %v9464 = vadd.f32 %v9462, %v9463
    %v9465 = vsel %vm1754, %v9348, 0.0
    %v9466 = vadd.f32 %v9464, %v9465
    %v9467 = vsel %vm1754, %v9349, 0.0
    %v9468 = vadd.f32 %v9466, %v9467
    %v9469 = vsel %vm1754, %v9350, 0.0
    %v9470 = vadd.f32 %v9468, %v9469
    %v9471 = vsel %vm1754, %v9351, 0.0
    %v9472 = vadd.f32 %v9470, %v9471
    %v9473 = vsel %vm1754, %v9352, 0.0
    %v9474 = vadd.f32 %v9472, %v9473
    %v9475 = vsel %vm1754, %v9353, 0.0
    %v9476 = vadd.f32 %v9474, %v9475
    %v9477 = vsel %vm1754, %v9354, 0.0
    %v9478 = vadd.f32 %v9476, %v9477
    %v9479 = vsel %vm1754, %v9355, 0.0
    %v9480 = vadd.f32 %v9478, %v9479
    %v9481 = vsel %vm1754, %v9356, 0.0
    %v9482 = vadd.f32 %v9480, %v9481
    %v9483 = vsel %vm1754, %v9357, 0.0
    %v9484 = vadd.f32 %v9482, %v9483
    %v9485 = vrot.slane %v9484, 4
    %v9486 = vadd.f32 %v9484, %v9485
    %v9487 = vrot.slane %v9486, 2
    %v9488 = vadd.f32 %v9486, %v9487
    %v9489 = vrot.slane %v9488, 1
    %v9490 = vadd.f32 %v9488, %v9489
    %v9491 = vmul.f32 %v9293, 0.001953125
    %v9492 = vmul.f32 %v9490, 0.001953125
    %v9493 = vmul.f32 %v9491, %v9491
    %v9494 = vsub.f32 %v9492, %v9493
    %v9495 = vadd.f32 %v9494, 1e-05
    %v9496 = vrsqrt.pop %v9495
    %v9497 = vmul.f32 %v9496, %v9159
    %v9498 = vmul.f32 %v9491, %v9497
    %v9499 = vsub.f32 %v9160, %v9498
    %v9500 = vlaneseq
    %v9501 = vshrl.u32 %v9500, 7
    %v9502 = vsub.s32 0, %v9501
    %v9503 = vrot.slane %v9497, %v9502
    %v9504 = vmul.f32 %v9095, %v9503
    %v9505 = vmul.f32 %v9096, %v9503
    %v9506 = vmul.f32 %v9097, %v9503
    %v9507 = vmul.f32 %v9098, %v9503
    %v9508 = vmul.f32 %v9099, %v9503
    %v9509 = vmul.f32 %v9100, %v9503
    %v9510 = vmul.f32 %v9101, %v9503
    %v9511 = vmul.f32 %v9102, %v9503
    %v9512 = vmul.f32 %v9103, %v9503
    %v9513 = vmul.f32 %v9104, %v9503
    %v9514 = vmul.f32 %v9105, %v9503
    %v9515 = vmul.f32 %v9106, %v9503
    %v9516 = vmul.f32 %v9107, %v9503
    %v9517 = vmul.f32 %v9108, %v9503
    %v9518 = vmul.f32 %v9109, %v9503
    %v9519 = vmul.f32 %v9110, %v9503
    %v9520 = vmul.f32 %v9111, %v9503
    %v9521 = vmul.f32 %v9112, %v9503
    %v9522 = vmul.f32 %v9113, %v9503
    %v9523 = vmul.f32 %v9114, %v9503
    %v9524 = vmul.f32 %v9115, %v9503
    %v9525 = vmul.f32 %v9116, %v9503
    %v9526 = vmul.f32 %v9117, %v9503
    %v9527 = vmul.f32 %v9118, %v9503
    %v9528 = vmul.f32 %v9119, %v9503
    %v9529 = vmul.f32 %v9120, %v9503
    %v9530 = vmul.f32 %v9121, %v9503
    %v9531 = vmul.f32 %v9122, %v9503
    %v9532 = vmul.f32 %v9123, %v9503
    %v9533 = vmul.f32 %v9124, %v9503
    %v9534 = vmul.f32 %v9125, %v9503
    %v9535 = vmul.f32 %v9126, %v9503
    %v9536 = vmul.f32 %v9127, %v9503
    %v9537 = vmul.f32 %v9128, %v9503
    %v9538 = vmul.f32 %v9129, %v9503
    %v9539 = vmul.f32 %v9130, %v9503
    %v9540 = vmul.f32 %v9131, %v9503
    %v9541 = vmul.f32 %v9132, %v9503
    %v9542 = vmul.f32 %v9133, %v9503
    %v9543 = vmul.f32 %v9134, %v9503
    %v9544 = vmul.f32 %v9135, %v9503
    %v9545 = vmul.f32 %v9136, %v9503
    %v9546 = vmul.f32 %v9137, %v9503
    %v9547 = vmul.f32 %v9138, %v9503
    %v9548 = vmul.f32 %v9139, %v9503
    %v9549 = vmul.f32 %v9140, %v9503
    %v9550 = vmul.f32 %v9141, %v9503
    %v9551 = vmul.f32 %v9142, %v9503
    %v9552 = vmul.f32 %v9143, %v9503
    %v9553 = vmul.f32 %v9144, %v9503
    %v9554 = vmul.f32 %v9145, %v9503
    %v9555 = vmul.f32 %v9146, %v9503
    %v9556 = vmul.f32 %v9147, %v9503
    %v9557 = vmul.f32 %v9148, %v9503
    %v9558 = vmul.f32 %v9149, %v9503
    %v9559 = vmul.f32 %v9150, %v9503
    %v9560 = vmul.f32 %v9151, %v9503
    %v9561 = vmul.f32 %v9152, %v9503
    %v9562 = vmul.f32 %v9153, %v9503
    %v9563 = vmul.f32 %v9154, %v9503
    %v9564 = vmul.f32 %v9155, %v9503
    %v9565 = vmul.f32 %v9156, %v9503
    %v9566 = vmul.f32 %v9157, %v9503
    %v9567 = vmul.f32 %v9158, %v9503
    %v9568 = vadd.f32 %v1689, %v9504
    %v9569 = vadd.f32 %v1690, %v9505
    %v9570 = vadd.f32 %v1691, %v9506
    %v9571 = vadd.f32 %v1692, %v9507
    %v9572 = vadd.f32 %v1693, %v9508
    %v9573 = vadd.f32 %v1694, %v9509
    %v9574 = vadd.f32 %v1695, %v9510
    %v9575 = vadd.f32 %v1696, %v9511
    %v9576 = vadd.f32 %v1697, %v9512
    %v9577 = vadd.f32 %v1698, %v9513
    %v9578 = vadd.f32 %v1699, %v9514
    %v9579 = vadd.f32 %v1700, %v9515
    %v9580 = vadd.f32 %v1701, %v9516
    %v9581 = vadd.f32 %v1702, %v9517
    %v9582 = vadd.f32 %v1703, %v9518
    %v9583 = vadd.f32 %v1704, %v9519
    %v9584 = vadd.f32 %v1705, %v9520
    %v9585 = vadd.f32 %v1706, %v9521
    %v9586 = vadd.f32 %v1707, %v9522
    %v9587 = vadd.f32 %v1708, %v9523
    %v9588 = vadd.f32 %v1709, %v9524
    %v9589 = vadd.f32 %v1710, %v9525
    %v9590 = vadd.f32 %v1711, %v9526
    %v9591 = vadd.f32 %v1712, %v9527
    %v9592 = vadd.f32 %v1713, %v9528
    %v9593 = vadd.f32 %v1714, %v9529
    %v9594 = vadd.f32 %v1715, %v9530
    %v9595 = vadd.f32 %v1716, %v9531
    %v9596 = vadd.f32 %v1717, %v9532
    %v9597 = vadd.f32 %v1718, %v9533
    %v9598 = vadd.f32 %v1719, %v9534
    %v9599 = vadd.f32 %v1720, %v9535
    %v9600 = vadd.f32 %v1721, %v9536
    %v9601 = vadd.f32 %v1722, %v9537
    %v9602 = vadd.f32 %v1723, %v9538
    %v9603 = vadd.f32 %v1724, %v9539
    %v9604 = vadd.f32 %v1725, %v9540
    %v9605 = vadd.f32 %v1726, %v9541
    %v9606 = vadd.f32 %v1727, %v9542
    %v9607 = vadd.f32 %v1728, %v9543
    %v9608 = vadd.f32 %v1729, %v9544
    %v9609 = vadd.f32 %v1730, %v9545
    %v9610 = vadd.f32 %v1731, %v9546
    %v9611 = vadd.f32 %v1732, %v9547
    %v9612 = vadd.f32 %v1733, %v9548
    %v9613 = vadd.f32 %v1734, %v9549
    %v9614 = vadd.f32 %v1735, %v9550
    %v9615 = vadd.f32 %v1736, %v9551
    %v9616 = vadd.f32 %v1737, %v9552
    %v9617 = vadd.f32 %v1738, %v9553
    %v9618 = vadd.f32 %v1739, %v9554
    %v9619 = vadd.f32 %v1740, %v9555
    %v9620 = vadd.f32 %v1741, %v9556
    %v9621 = vadd.f32 %v1742, %v9557
    %v9622 = vadd.f32 %v1743, %v9558
    %v9623 = vadd.f32 %v1744, %v9559
    %v9624 = vadd.f32 %v1745, %v9560
    %v9625 = vadd.f32 %v1746, %v9561
    %v9626 = vadd.f32 %v1747, %v9562
    %v9627 = vadd.f32 %v1748, %v9563
    %v9628 = vadd.f32 %v1749, %v9564
    %v9629 = vadd.f32 %v1750, %v9565
    %v9630 = vadd.f32 %v1751, %v9566
    %v9631 = vadd.f32 %v1752, %v9567
    %v9633 = vlaneseq
    %v9634 = vshrl.u32 %v9633, 7
    %v9635 = vsub.s32 0, %v9634
    %v9636 = vrot.slane %v9499, %v9635
    %v9638 = vadd.f32 %v9568, %v9636
    %v9639 = vadd.f32 %v9569, %v9636
    %v9640 = vadd.f32 %v9570, %v9636
    %v9641 = vadd.f32 %v9571, %v9636
    %v9642 = vadd.f32 %v9572, %v9636
    %v9643 = vadd.f32 %v9573, %v9636
    %v9644 = vadd.f32 %v9574, %v9636
    %v9645 = vadd.f32 %v9575, %v9636
    %v9646 = vadd.f32 %v9576, %v9636
    %v9647 = vadd.f32 %v9577, %v9636
    %v9648 = vadd.f32 %v9578, %v9636
    %v9649 = vadd.f32 %v9579, %v9636
    %v9650 = vadd.f32 %v9580, %v9636
    %v9651 = vadd.f32 %v9581, %v9636
    %v9652 = vadd.f32 %v9582, %v9636
    %v9653 = vadd.f32 %v9583, %v9636
    %v9654 = vadd.f32 %v9584, %v9636
    %v9655 = vadd.f32 %v9585, %v9636
    %v9656 = vadd.f32 %v9586, %v9636
    %v9657 = vadd.f32 %v9587, %v9636
    %v9658 = vadd.f32 %v9588, %v9636
    %v9659 = vadd.f32 %v9589, %v9636
    %v9660 = vadd.f32 %v9590, %v9636
    %v9661 = vadd.f32 %v9591, %v9636
    %v9662 = vadd.f32 %v9592, %v9636
    %v9663 = vadd.f32 %v9593, %v9636
    %v9664 = vadd.f32 %v9594, %v9636
    %v9665 = vadd.f32 %v9595, %v9636
    %v9666 = vadd.f32 %v9596, %v9636
    %v9667 = vadd.f32 %v9597, %v9636
    %v9668 = vadd.f32 %v9598, %v9636
    %v9669 = vadd.f32 %v9599, %v9636
    %v9670 = vadd.f32 %v9600, %v9636
    %v9671 = vadd.f32 %v9601, %v9636
    %v9672 = vadd.f32 %v9602, %v9636
    %v9673 = vadd.f32 %v9603, %v9636
    %v9674 = vadd.f32 %v9604, %v9636
    %v9675 = vadd.f32 %v9605, %v9636
    %v9676 = vadd.f32 %v9606, %v9636
    %v9677 = vadd.f32 %v9607, %v9636
    %v9678 = vadd.f32 %v9608, %v9636
    %v9679 = vadd.f32 %v9609, %v9636
    %v9680 = vadd.f32 %v9610, %v9636
    %v9681 = vadd.f32 %v9611, %v9636
    %v9682 = vadd.f32 %v9612, %v9636
    %v9683 = vadd.f32 %v9613, %v9636
    %v9684 = vadd.f32 %v9614, %v9636
    %v9685 = vadd.f32 %v9615, %v9636
    %v9686 = vadd.f32 %v9616, %v9636
    %v9687 = vadd.f32 %v9617, %v9636
    %v9688 = vadd.f32 %v9618, %v9636
    %v9689 = vadd.f32 %v9619, %v9636
    %v9690 = vadd.f32 %v9620, %v9636
    %v9691 = vadd.f32 %v9621, %v9636
    %v9692 = vadd.f32 %v9622, %v9636
    %v9693 = vadd.f32 %v9623, %v9636
    %v9694 = vadd.f32 %v9624, %v9636
    %v9695 = vadd.f32 %v9625, %v9636
    %v9696 = vadd.f32 %v9626, %v9636
    %v9697 = vadd.f32 %v9627, %v9636
    %v9698 = vadd.f32 %v9628, %v9636
    %v9699 = vadd.f32 %v9629, %v9636
    %v9700 = vadd.f32 %v9630, %v9636
    %v9701 = vadd.f32 %v9631, %v9636
    %9702 = vst.msk [vmem:[#allocation3] sm:$0xff] %vm1754, %v9638
    %9703 = vst.msk [vmem:[#allocation3 + $0x8] sm:$0xff] %vm1754, %v9639
    %9704 = vst.msk [vmem:[#allocation3 + $0x10] sm:$0xff] %vm1754, %v9640
    %9705 = vst.msk [vmem:[#allocation3 + $0x18] sm:$0xff] %vm1754, %v9641
    %9706 = vst.msk [vmem:[#allocation3 + $0x20] sm:$0xff] %vm1754, %v9642
    %9707 = vst.msk [vmem:[#allocation3 + $0x28] sm:$0xff] %vm1754, %v9643
    %9708 = vst.msk [vmem:[#allocation3 + $0x30] sm:$0xff] %vm1754, %v9644
    %9709 = vst.msk [vmem:[#allocation3 + $0x38] sm:$0xff] %vm1754, %v9645
    %9710 = vst.msk [vmem:[#allocation3 + $0x40] sm:$0xff] %vm1754, %v9646
    %9711 = vst.msk [vmem:[#allocation3 + $0x48] sm:$0xff] %vm1754, %v9647
    %9712 = vst.msk [vmem:[#allocation3 + $0x50] sm:$0xff] %vm1754, %v9648
    %9713 = vst.msk [vmem:[#allocation3 + $0x58] sm:$0xff] %vm1754, %v9649
    %9714 = vst.msk [vmem:[#allocation3 + $0x60] sm:$0xff] %vm1754, %v9650
    %9715 = vst.msk [vmem:[#allocation3 + $0x68] sm:$0xff] %vm1754, %v9651
    %9716 = vst.msk [vmem:[#allocation3 + $0x70] sm:$0xff] %vm1754, %v9652
    %9717 = vst.msk [vmem:[#allocation3 + $0x78] sm:$0xff] %vm1754, %v9653
    %9718 = vst.msk [vmem:[#allocation3 + $0x80] sm:$0xff] %vm1754, %v9654
    %9719 = vst.msk [vmem:[#allocation3 + $0x88] sm:$0xff] %vm1754, %v9655
    %9720 = vst.msk [vmem:[#allocation3 + $0x90] sm:$0xff] %vm1754, %v9656
    %9721 = vst.msk [vmem:[#allocation3 + $0x98] sm:$0xff] %vm1754, %v9657
    %9722 = vst.msk [vmem:[#allocation3 + $0xa0] sm:$0xff] %vm1754, %v9658
    %9723 = vst.msk [vmem:[#allocation3 + $0xa8] sm:$0xff] %vm1754, %v9659
    %9724 = vst.msk [vmem:[#allocation3 + $0xb0] sm:$0xff] %vm1754, %v9660
    %9725 = vst.msk [vmem:[#allocation3 + $0xb8] sm:$0xff] %vm1754, %v9661
    %9726 = vst.msk [vmem:[#allocation3 + $0xc0] sm:$0xff] %vm1754, %v9662
    %9727 = vst.msk [vmem:[#allocation3 + $0xc8] sm:$0xff] %vm1754, %v9663
    %9728 = vst.msk [vmem:[#allocation3 + $0xd0] sm:$0xff] %vm1754, %v9664
    %9729 = vst.msk [vmem:[#allocation3 + $0xd8] sm:$0xff] %vm1754, %v9665
    %9730 = vst.msk [vmem:[#allocation3 + $0xe0] sm:$0xff] %vm1754, %v9666
    %9731 = vst.msk [vmem:[#allocation3 + $0xe8] sm:$0xff] %vm1754, %v9667
    %9732 = vst.msk [vmem:[#allocation3 + $0xf0] sm:$0xff] %vm1754, %v9668
    %9733 = vst.msk [vmem:[#allocation3 + $0xf8] sm:$0xff] %vm1754, %v9669
    %9734 = vst.msk [vmem:[#allocation3 + $0x100] sm:$0xff] %vm1754, %v9670
    %9735 = vst.msk [vmem:[#allocation3 + $0x108] sm:$0xff] %vm1754, %v9671
    %9736 = vst.msk [vmem:[#allocation3 + $0x110] sm:$0xff] %vm1754, %v9672
    %9737 = vst.msk [vmem:[#allocation3 + $0x118] sm:$0xff] %vm1754, %v9673
    %9738 = vst.msk [vmem:[#allocation3 + $0x120] sm:$0xff] %vm1754, %v9674
    %9739 = vst.msk [vmem:[#allocation3 + $0x128] sm:$0xff] %vm1754, %v9675
    %9740 = vst.msk [vmem:[#allocation3 + $0x130] sm:$0xff] %vm1754, %v9676
    %9741 = vst.msk [vmem:[#allocation3 + $0x138] sm:$0xff] %vm1754, %v9677
    %9742 = vst.msk [vmem:[#allocation3 + $0x140] sm:$0xff] %vm1754, %v9678
    %9743 = vst.msk [vmem:[#allocation3 + $0x148] sm:$0xff] %vm1754, %v9679
    %9744 = vst.msk [vmem:[#allocation3 + $0x150] sm:$0xff] %vm1754, %v9680
    %9745 = vst.msk [vmem:[#allocation3 + $0x158] sm:$0xff] %vm1754, %v9681
    %9746 = vst.msk [vmem:[#allocation3 + $0x160] sm:$0xff] %vm1754, %v9682
    %9747 = vst.msk [vmem:[#allocation3 + $0x168] sm:$0xff] %vm1754, %v9683
    %9748 = vst.msk [vmem:[#allocation3 + $0x170] sm:$0xff] %vm1754, %v9684
    %9749 = vst.msk [vmem:[#allocation3 + $0x178] sm:$0xff] %vm1754, %v9685
    %9750 = vst.msk [vmem:[#allocation3 + $0x180] sm:$0xff] %vm1754, %v9686
    %9751 = vst.msk [vmem:[#allocation3 + $0x188] sm:$0xff] %vm1754, %v9687
    %9752 = vst.msk [vmem:[#allocation3 + $0x190] sm:$0xff] %vm1754, %v9688
    %9753 = vst.msk [vmem:[#allocation3 + $0x198] sm:$0xff] %vm1754, %v9689
    %9754 = vst.msk [vmem:[#allocation3 + $0x1a0] sm:$0xff] %vm1754, %v9690
    %9755 = vst.msk [vmem:[#allocation3 + $0x1a8] sm:$0xff] %vm1754, %v9691
    %9756 = vst.msk [vmem:[#allocation3 + $0x1b0] sm:$0xff] %vm1754, %v9692
    %9757 = vst.msk [vmem:[#allocation3 + $0x1b8] sm:$0xff] %vm1754, %v9693
    %9758 = vst.msk [vmem:[#allocation3 + $0x1c0] sm:$0xff] %vm1754, %v9694
    %9759 = vst.msk [vmem:[#allocation3 + $0x1c8] sm:$0xff] %vm1754, %v9695
    %9760 = vst.msk [vmem:[#allocation3 + $0x1d0] sm:$0xff] %vm1754, %v9696
    %9761 = vst.msk [vmem:[#allocation3 + $0x1d8] sm:$0xff] %vm1754, %v9697
    %9762 = vst.msk [vmem:[#allocation3 + $0x1e0] sm:$0xff] %vm1754, %v9698
    %9763 = vst.msk [vmem:[#allocation3 + $0x1e8] sm:$0xff] %vm1754, %v9699
    %9764 = vst.msk [vmem:[#allocation3 + $0x1f0] sm:$0xff] %vm1754, %v9700
    %9765 = vst.msk [vmem:[#allocation3 + $0x1f8] sm:$0xff] %vm1754, %v9701
    // Predicated region
    $region94: #{tpu_custom_call.1} parent=1 // pred_check
      _
    $region95: #{tpu_custom_call.1} parent=1 // pred_check_branch
      %9767 = sbr.rel (0) target = $region97
    $region96: #{tpu_custom_call.1} parent=1 // pred_region
      %s9769 = ssub.s32 8192, 8192
      %9770 = vsyncadd [#allocation4], %s9769
      %s9771 = sshll.u32 [#allocation3], 4
      %s9772 = int_to_ptr.vmem [resolvable:$true] %s9771
      %9777 = dma.vmem_to_hbm [thread:$0]  %s9772, 8192, %s23, [#allocation4], 128, 128, 8
    $region97: #{tpu_custom_call.1} parent=1 // pred_fallthru
      _
    // Predicated region
    $region98: #{tpu_custom_call.1} parent=1 // pred_check
      _
    $region99: #{tpu_custom_call.1} parent=1 // pred_check_branch
      %9779 = sbr.rel (0) target = $region101
    $region100: #{tpu_custom_call.1} parent=1 // pred_region
      %9780 = dma.done [#allocation4], 8192
    $region101: #{tpu_custom_call.1} parent=1 // pred_fallthru
      _
    %9781 = vsyncpa [#allocation4], 1

</llo_original>
